<compile_context>
chip_gen: v7x
topology: tpu7x:2x2x1
jax: 0.10.0
libtpu: 0.0.40
codegen_flags: <defaults>
</compile_context>

<pallas_src>
import functools

import jax
import jax.numpy as jnp
from jax import lax
from jax.experimental import pallas as pl
from jax.experimental.pallas import tpu as pltpu

_EPS = 1e-5
_VMEM_LIMIT = 32 * 1024 * 1024   # portable across v5e/v6e/v7x


# ----------------------------- Pallas kernels ------------------------------

def _fc_kernel(z_ref, w_ref, b_ref, o_ref):
    # (B, Z) bf16 @ (Z, N) bf16 -> f32, + f32 bias.  Single block.
    o_ref[...] = (
        jnp.dot(z_ref[...], w_ref[...], preferred_element_type=jnp.float32)
        + b_ref[...]
    )


def _deconv_bn_relu_kernel(x_ref, w_ref, g_ref, b_ref, o_ref, acc_ref):
    # Fused stride-2 transposed conv (K-concatenated 4-tap matmul per output
    # parity) + BatchNorm2d (training batch statistics) + ReLU.
    #   x_ref  : (4, M, 4*Cin)  bf16  per-parity lhs slabs, M = B*H*W
    #   w_ref  : (4, 4*Cin, Cout) bf16 per-parity stacked tap weights
    #   g_ref, b_ref : (1, Cout) f32
    #   o_ref  : (M, 4*Cout)   bf16  parity p at lanes [p*Cout, (p+1)*Cout)
    #   acc_ref: (M, 4*Cout)   f32   scratch for the raw pre-BN accumulators
    m = x_ref.shape[1]
    cout = w_ref.shape[-1]

    # Pass 1: one MXU matmul per parity; stash raw acc, accumulate stats.
    s = jnp.zeros((1, cout), jnp.float32)
    ss = jnp.zeros((1, cout), jnp.float32)
    for p in range(4):
        acc = jnp.dot(x_ref[p], w_ref[p], preferred_element_type=jnp.float32)
        acc_ref[:, p * cout:(p + 1) * cout] = acc
        s = s + jnp.sum(acc, axis=0, keepdims=True)
        ss = ss + jnp.sum(acc * acc, axis=0, keepdims=True)

    # Batch statistics over all rows and all 4 parities (= full B*Ho*Wo).
    n_tot = 4.0 * m
    mean = s / n_tot
    var = jnp.maximum(ss / n_tot - mean * mean, 0.0)
    scale = g_ref[...] * lax.rsqrt(var + _EPS)      # fold gamma into the scale
    shift = b_ref[...] - mean * scale

    # Pass 2: normalize + ReLU, write bf16 output.
    for p in range(4):
        y = acc_ref[:, p * cout:(p + 1) * cout] * scale + shift
        o_ref[:, p * cout:(p + 1) * cout] = jnp.maximum(y, 0.0).astype(o_ref.dtype)


def _deconv_tanh_kernel(x_ref, w_ref, b_ref, o_ref):
    # Fused stride-2 transposed conv (K-concat per parity) + bias + tanh.
    # Tiled over M rows (grid axis 0, "parallel" -> both v7x TensorCores).
    cpad = w_ref.shape[-1]
    for p in range(4):
        acc = jnp.dot(x_ref[p], w_ref[p], preferred_element_type=jnp.float32)
        o_ref[:, p * cpad:(p + 1) * cpad] = jnp.tanh(acc + b_ref[...])


# --------------------------- pallas_call wrappers ---------------------------

def _full_spec(shape):
    return pl.BlockSpec(shape, lambda: (0,) * len(shape))


def _fc(z, w, b):
    bsz, zdim = z.shape
    n = w.shape[1]
    return pl.pallas_call(
        _fc_kernel,
        out_shape=jax.ShapeDtypeStruct((bsz, n), jnp.float32),
        in_specs=[_full_spec((bsz, zdim)), _full_spec((zdim, n)),
                  _full_spec((1, n))],
        out_specs=_full_spec((bsz, n)),
        compiler_params=pltpu.CompilerParams(vmem_limit_bytes=_VMEM_LIMIT),
    )(z, w, b)


def _deconv_bn_relu(xs, w4, g, b):
    # Single-block call: BN needs exact full-batch statistics and the layers
    # are tiny at small batch.  (For large B this should become an M-tiled
    # two-pass reduction; not needed at B=2.)
    m = xs.shape[1]
    cout = w4.shape[-1]
    return pl.pallas_call(
        _deconv_bn_relu_kernel,
        out_shape=jax.ShapeDtypeStruct((m, 4 * cout), jnp.bfloat16),
        in_specs=[_full_spec(xs.shape), _full_spec(w4.shape),
                  _full_spec(g.shape), _full_spec(b.shape)],
        out_specs=_full_spec((m, 4 * cout)),
        scratch_shapes=[pltpu.VMEM((m, 4 * cout), jnp.float32)],
        compiler_params=pltpu.CompilerParams(vmem_limit_bytes=_VMEM_LIMIT),
    )(xs, w4, g, b)


def _deconv_tanh(xs, w4, bias):
    _, m, k = xs.shape
    cpad = w4.shape[-1]
    grid_m = 2 if (m % 16 == 0 and m >= 32) else 1   # 2-way split for v7x TCs
    tm = m // grid_m
    return pl.pallas_call(
        _deconv_tanh_kernel,
        out_shape=jax.ShapeDtypeStruct((m, 4 * cpad), jnp.float32),
        grid=(grid_m,),
        in_specs=[pl.BlockSpec((4, tm, k), lambda i: (0, i, 0)),
                  pl.BlockSpec(w4.shape, lambda i: (0, 0, 0)),
                  pl.BlockSpec(bias.shape, lambda i: (0, 0))],
        out_specs=pl.BlockSpec((tm, 4 * cpad), lambda i: (i, 0)),
        compiler_params=pltpu.CompilerParams(
            dimension_semantics=("parallel",),
            vmem_limit_bytes=_VMEM_LIMIT),
    )(xs, w4, bias)


# ------------------------------ JAX glue -----------------------------------

def _parity_slabs(x_nhwc):
    """Build the 4 per-parity K-concatenated lhs slabs.
    Returns (4, B*H*W, 4*C) bf16 where slab[po*2+pw][:, k*C:(k+1)*C] holds the
    1-padded input shifted by (po+dh, pw+dw), k = dh*2+dw."""
    B, H, W, C = x_nhwc.shape
    xp = jnp.pad(x_nhwc, ((0, 0), (1, 1), (1, 1), (0, 0)))
    views = [[xp[:, a:a + H, b:b + W, :] for b in range(3)] for a in range(3)]
    slabs = []
    for po in range(2):
        for pw in range(2):
            taps = [views[po + dh][pw + dw] for dh in range(2) for dw in range(2)]
            slab = jnp.concatenate(taps, axis=-1).reshape(B * H * W, 4 * C)
            slabs.append(slab)
    return jnp.stack(slabs, axis=0).astype(jnp.bfloat16), (B, H, W)


def _assemble(y, b, h, w, cout):
    """(B*H*W, 4*Cp) parity-packed kernel output -> (B, 2H, 2W, cout)."""
    cp = y.shape[1] // 4
    y = y.reshape(b, h, w, 2, 2, cp)[..., :cout]       # strip lane padding
    y = jnp.transpose(y, (0, 1, 3, 2, 4, 5))           # pixel shuffle
    return y.reshape(b, 2 * h, 2 * w, cout)


# ---------------------------- parameters ------------------------------------

def init_params(key, z_size, conv_dim=32):
    ks = jax.random.split(key, 6)
    d = conv_dim

    def nrm(k, shape, scale=0.05):
        return scale * jax.random.normal(k, shape, jnp.float32)

    return dict(
        fc_w=nrm(ks[0], (z_size, d * 4 * 4 * 4)),
        fc_b=nrm(ks[1], (1, d * 4 * 4 * 4)),
        w1=nrm(ks[2], (d * 4, d * 2, 4, 4)),          # deconv1 (Cin, Cout, 4, 4)
        g1=jnp.ones((1, d * 2), jnp.float32),
        b1=jnp.zeros((1, d * 2), jnp.float32),
        w2=nrm(ks[3], (d * 2, d, 4, 4)),              # deconv2
        g2=jnp.ones((1, d), jnp.float32),
        b2=jnp.zeros((1, d), jnp.float32),
        w3=nrm(ks[4], (d, 3, 4, 4)),                  # deconv3 (bias, no BN)
        bias3=nrm(ks[5], (1, 3)),
    )


def pack_params(params, conv_dim=32):
    """Hoisted constant work (runs once, outside jit):
      * fc weights permuted to NHWC column order and cast to bf16,
      * per-deconv per-parity K-concatenated tap weights (4, 4*Cin, Cout) bf16,
      * final-layer output channels padded 3 -> 8 lanes."""
    d = conv_dim
    fc_w = params["fc_w"].reshape(-1, d * 4, 4, 4).transpose(0, 2, 3, 1)
    fc_w = fc_w.reshape(-1, d * 4 * 16)
    fc_b = params["fc_b"].reshape(1, d * 4, 4, 4).transpose(0, 2, 3, 1)
    fc_b = fc_b.reshape(1, d * 4 * 16)

    def pack_w(w, cpad=None):
        cin, cout = w.shape[0], w.shape[1]
        cpad = cout if cpad is None else cpad
        mats = []
        for po in range(2):
            for pw in range(2):
                blocks = []
                for dh in range(2):
                    for dw in range(2):
                        kh = 3 - po - 2 * dh
                        kw = 3 - pw - 2 * dw
                        blk = jnp.zeros((cin, cpad), jnp.float32)
                        blk = blk.at[:, :cout].set(w[:, :, kh, kw])
                        blocks.append(blk)
                mats.append(jnp.concatenate(blocks, axis=0))   # (4*Cin, cpad)
        return jnp.stack(mats, axis=0).astype(jnp.bfloat16)    # (4, 4*Cin, cpad)

    return dict(
        fc_w=fc_w.astype(jnp.bfloat16), fc_b=fc_b,
        w1=pack_w(params["w1"]), g1=params["g1"], b1=params["b1"],
        w2=pack_w(params["w2"]), g2=params["g2"], b2=params["b2"],
        w3=pack_w(params["w3"], cpad=8),
        bias3=jnp.zeros((1, 8), jnp.float32).at[:, :3].set(params["bias3"]),
    )


# ---------------------------- Generator model ------------------------------

def generator_forward(packed, z, conv_dim=32):
    B = z.shape[0]
    # fc: (B, z) -> (B, 4*4*conv_dim*4); columns already in NHWC order.
    fc_out = _fc(z.astype(jnp.bfloat16), packed["fc_w"], packed["fc_b"])
    x = fc_out.reshape(B, 4, 4, conv_dim * 4)          # (B, 4, 4, 128) NHWC

    # deconv1 + BN + ReLU : (B,4,4,128) -> (B,8,8,64)
    xs, (b, h, w) = _parity_slabs(x)
    y = _deconv_bn_relu(xs, packed["w1"], packed["g1"], packed["b1"])
    x = _assemble(y, b, h, w, cout=conv_dim * 2)

    # deconv2 + BN + ReLU : (B,8,8,64) -> (B,16,16,32)
    xs, (b, h, w) = _parity_slabs(x)
    y = _deconv_bn_relu(xs, packed["w2"], packed["g2"], packed["b2"])
    x = _assemble(y, b, h, w, cout=conv_dim)

    # deconv3 + bias + tanh : (B,16,16,32) -> (B,32,32,3)
    xs, (b, h, w) = _parity_slabs(x)
    y = _deconv_tanh(xs, packed["w3"], packed["bias3"])
    x = _assemble(y, b, h, w, cout=3)
    return jnp.transpose(x, (0, 3, 1, 2))              # back to NCHW


# --------------------------- pure-JAX reference ----------------------------

def _deconv_ref(x_nhwc, w_deconv, bias=None):
    w_hwio = jnp.transpose(w_deconv[:, :, ::-1, ::-1], (2, 3, 0, 1))
    y = lax.conv_general_dilated(
        x_nhwc, w_hwio, window_strides=(1, 1),
        padding=((2, 2), (2, 2)), lhs_dilation=(2, 2),
        dimension_numbers=("NHWC", "HWIO", "NHWC"))
    if bias is not None:
        y = y + bias.reshape(1, 1, 1, -1)
    return y


def generator_ref(params, z, conv_dim=32):
    B = z.shape[0]
    x = z @ params["fc_w"] + params["fc_b"]
    x = x.reshape(B, conv_dim * 4, 4, 4).transpose(0, 2, 3, 1)

    def bn(y, g, b):
        m = y.mean(axis=(0, 1, 2), keepdims=True)
        v = ((y - m) ** 2).mean(axis=(0, 1, 2), keepdims=True)
        return (y - m) * lax.rsqrt(v + _EPS) * g.reshape(1, 1, 1, -1) + b.reshape(1, 1, 1, -1)

    x = jnp.maximum(bn(_deconv_ref(x, params["w1"]), params["g1"], params["b1"]), 0.0)
    x = jnp.maximum(bn(_deconv_ref(x, params["w2"]), params["g2"], params["b2"]), 0.0)
    x = jnp.tanh(_deconv_ref(x, params["w3"], params["bias3"]))
    return jnp.transpose(x, (0, 3, 1, 2))


# --------------------------------- main -------------------------------------

if __name__ == "__main__":
    key = jax.random.PRNGKey(0)
    z_size, conv_dim, batch = 64, 32, 2
    kp, kz = jax.random.split(key)
    params = init_params(kp, z_size, conv_dim)
    packed = pack_params(params, conv_dim)             # one-time weight packing
    z = jax.random.normal(kz, (batch, z_size), jnp.float32)

    fwd = jax.jit(functools.partial(generator_forward, conv_dim=conv_dim))
    out = jax.block_until_ready(fwd(packed, z))
    assert out.shape == (batch, 3, 32, 32), out.shape

    ref = generator_ref(params, z, conv_dim)
    max_err = float(jnp.max(jnp.abs(out - ref)))
    assert jnp.allclose(out, ref, atol=5e-2, rtol=5e-2), max_err

    print("KERNEL_OK")
</pallas_src>

<mosaic_0001>
module attributes {stable_mosaic.version = 11 : i64} {
  func.func @_fc_kernel(%arg0: memref<2x64xbf16, #tpu.memory_space<vmem>>, %arg1: memref<64x2048xbf16, #tpu.memory_space<vmem>>, %arg2: memref<1x2048xf32, #tpu.memory_space<vmem>>, %arg3: memref<2x2048xf32, #tpu.memory_space<vmem>>) attributes {dimension_semantics = [], scalar_prefetch = 0 : i64, scratch_operands = 0 : i64, tpu.core_type = #tpu.core_type<tc>} {
    %c0 = arith.constant 0 : index
    %c0_0 = arith.constant 0 : index
    %0 = vector.load %arg0[%c0, %c0_0] : memref<2x64xbf16, #tpu.memory_space<vmem>>, vector<2x64xbf16>
    %c0_1 = arith.constant 0 : index
    %c0_2 = arith.constant 0 : index
    %1 = vector.load %arg1[%c0_1, %c0_2] : memref<64x2048xbf16, #tpu.memory_space<vmem>>, vector<64x2048xbf16>
    %cst = arith.constant dense<0.000000e+00> : vector<2x2048xf32>
    %2 = tpu.matmul %0, %1, %cst {dimension_numbers = #tpu.dot_dimension_numbers<[1], [0], [0], [1], [0, 0, 1, 1], [], []>} : vector<2x64xbf16>, vector<64x2048xbf16>, vector<2x2048xf32> -> vector<2x2048xf32>
    %c0_3 = arith.constant 0 : index
    %c0_4 = arith.constant 0 : index
    %3 = vector.load %arg2[%c0_3, %c0_4] : memref<1x2048xf32, #tpu.memory_space<vmem>>, vector<1x2048xf32>
    %4 = vector.broadcast %3 : vector<1x2048xf32> to vector<2x2048xf32>
    %5 = arith.addf %2, %4 : vector<2x2048xf32>
    %c0_5 = arith.constant 0 : index
    %c0_6 = arith.constant 0 : index
    %6 = vector.load %arg3[%c0_5, %c0_6] : memref<2x2048xf32, #tpu.memory_space<vmem>>, vector<2x2048xf32>
    tpu.vector_store %arg3[%c0_5, %c0_6], %5 {strides = array<i32>} : memref<2x2048xf32, #tpu.memory_space<vmem>>, vector<2x2048xf32>,
    return
  }
}

module attributes {stable_mosaic.version = 11 : i64} {
  func.func @_deconv_bn_relu_kernel(%arg0: memref<4x32x512xbf16, #tpu.memory_space<vmem>>, %arg1: memref<4x512x64xbf16, #tpu.memory_space<vmem>>, %arg2: memref<1x64xf32, #tpu.memory_space<vmem>>, %arg3: memref<1x64xf32, #tpu.memory_space<vmem>>, %arg4: memref<32x256xbf16, #tpu.memory_space<vmem>>, %arg5: memref<32x256xf32, #tpu.memory_space<vmem>>) attributes {dimension_semantics = [], scalar_prefetch = 0 : i64, scratch_operands = 1 : i64, tpu.core_type = #tpu.core_type<tc>} {
    %cst = arith.constant 0.000000e+00 : f32
    %0 = vector.broadcast %cst : f32 to vector<1x64xf32>
    %cst_0 = arith.constant 0.000000e+00 : f32
    %1 = vector.broadcast %cst_0 : f32 to vector<1x64xf32>
    %c0 = arith.constant 0 : index
    %c0_1 = arith.constant 0 : index
    %c0_2 = arith.constant 0 : index
    %2 = vector.load %arg0[%c0, %c0_1, %c0_2] : memref<4x32x512xbf16, #tpu.memory_space<vmem>>, vector<1x32x512xbf16>
    %3 = vector.shape_cast %2 : vector<1x32x512xbf16> to vector<32x512xbf16>
    %c0_3 = arith.constant 0 : index
    %c0_4 = arith.constant 0 : index
    %c0_5 = arith.constant 0 : index
    %4 = vector.load %arg1[%c0_3, %c0_4, %c0_5] : memref<4x512x64xbf16, #tpu.memory_space<vmem>>, vector<1x512x64xbf16>
    %5 = vector.shape_cast %4 : vector<1x512x64xbf16> to vector<512x64xbf16>
    %cst_6 = arith.constant dense<0.000000e+00> : vector<32x64xf32>
    %6 = tpu.matmul %3, %5, %cst_6 {dimension_numbers = #tpu.dot_dimension_numbers<[1], [0], [0], [1], [0, 0, 1, 1], [], []>} : vector<32x512xbf16>, vector<512x64xbf16>, vector<32x64xf32> -> vector<32x64xf32>
    %c0_7 = arith.constant 0 : index
    %c0_8 = arith.constant 0 : index
    %7 = vector.load %arg5[%c0_7, %c0_8] : memref<32x256xf32, #tpu.memory_space<vmem>>, vector<32x64xf32>
    tpu.vector_store %arg5[%c0_7, %c0_8], %6 {strides = array<i32>} : memref<32x256xf32, #tpu.memory_space<vmem>>, vector<32x64xf32>,
    %cst_9 = arith.constant dense<0.000000e+00> : vector<64xf32>
    %8 = vector.multi_reduction <add>, %6, %cst_9 [0] : vector<32x64xf32> to vector<64xf32>
    %9 = vector.shape_cast %8 : vector<64xf32> to vector<1x64xf32>
    %10 = arith.addf %0, %9 : vector<1x64xf32>
    %11 = arith.mulf %6, %6 : vector<32x64xf32>
    %cst_10 = arith.constant dense<0.000000e+00> : vector<64xf32>
    %12 = vector.multi_reduction <add>, %11, %cst_10 [0] : vector<32x64xf32> to vector<64xf32>
    %13 = vector.shape_cast %12 : vector<64xf32> to vector<1x64xf32>
    %14 = arith.addf %1, %13 : vector<1x64xf32>
    %c1 = arith.constant 1 : index
    %c0_11 = arith.constant 0 : index
    %c0_12 = arith.constant 0 : index
    %15 = vector.load %arg0[%c1, %c0_11, %c0_12] : memref<4x32x512xbf16, #tpu.memory_space<vmem>>, vector<1x32x512xbf16>
    %16 = vector.shape_cast %15 : vector<1x32x512xbf16> to vector<32x512xbf16>
    %c1_13 = arith.constant 1 : index
    %c0_14 = arith.constant 0 : index
    %c0_15 = arith.constant 0 : index
    %17 = vector.load %arg1[%c1_13, %c0_14, %c0_15] : memref<4x512x64xbf16, #tpu.memory_space<vmem>>, vector<1x512x64xbf16>
    %18 = vector.shape_cast %17 : vector<1x512x64xbf16> to vector<512x64xbf16>
    %cst_16 = arith.constant dense<0.000000e+00> : vector<32x64xf32>
    %19 = tpu.matmul %16, %18, %cst_16 {dimension_numbers = #tpu.dot_dimension_numbers<[1], [0], [0], [1], [0, 0, 1, 1], [], []>} : vector<32x512xbf16>, vector<512x64xbf16>, vector<32x64xf32> -> vector<32x64xf32>
    %c0_17 = arith.constant 0 : index
    %c64 = arith.constant 64 : index
    %20 = vector.load %arg5[%c0_17, %c64] : memref<32x256xf32, #tpu.memory_space<vmem>>, vector<32x64xf32>
    tpu.vector_store %arg5[%c0_17, %c64], %19 {strides = array<i32>} : memref<32x256xf32, #tpu.memory_space<vmem>>, vector<32x64xf32>,
    %cst_18 = arith.constant dense<0.000000e+00> : vector<64xf32>
    %21 = vector.multi_reduction <add>, %19, %cst_18 [0] : vector<32x64xf32> to vector<64xf32>
    %22 = vector.shape_cast %21 : vector<64xf32> to vector<1x64xf32>
    %23 = arith.addf %10, %22 : vector<1x64xf32>
    %24 = arith.mulf %19, %19 : vector<32x64xf32>
    %cst_19 = arith.constant dense<0.000000e+00> : vector<64xf32>
    %25 = vector.multi_reduction <add>, %24, %cst_19 [0] : vector<32x64xf32> to vector<64xf32>
    %26 = vector.shape_cast %25 : vector<64xf32> to vector<1x64xf32>
    %27 = arith.addf %14, %26 : vector<1x64xf32>
    %c2 = arith.constant 2 : index
    %c0_20 = arith.constant 0 : index
    %c0_21 = arith.constant 0 : index
    %28 = vector.load %arg0[%c2, %c0_20, %c0_21] : memref<4x32x512xbf16, #tpu.memory_space<vmem>>, vector<1x32x512xbf16>
    %29 = vector.shape_cast %28 : vector<1x32x512xbf16> to vector<32x512xbf16>
    %c2_22 = arith.constant 2 : index
    %c0_23 = arith.constant 0 : index
    %c0_24 = arith.constant 0 : index
    %30 = vector.load %arg1[%c2_22, %c0_23, %c0_24] : memref<4x512x64xbf16, #tpu.memory_space<vmem>>, vector<1x512x64xbf16>
    %31 = vector.shape_cast %30 : vector<1x512x64xbf16> to vector<512x64xbf16>
    %cst_25 = arith.constant dense<0.000000e+00> : vector<32x64xf32>
    %32 = tpu.matmul %29, %31, %cst_25 {dimension_numbers = #tpu.dot_dimension_numbers<[1], [0], [0], [1], [0, 0, 1, 1], [], []>} : vector<32x512xbf16>, vector<512x64xbf16>, vector<32x64xf32> -> vector<32x64xf32>
    %c0_26 = arith.constant 0 : index
    %c128 = arith.constant 128 : index
    %33 = vector.load %arg5[%c0_26, %c128] : memref<32x256xf32, #tpu.memory_space<vmem>>, vector<32x64xf32>
    tpu.vector_store %arg5[%c0_26, %c128], %32 {strides = array<i32>} : memref<32x256xf32, #tpu.memory_space<vmem>>, vector<32x64xf32>,
    %cst_27 = arith.constant dense<0.000000e+00> : vector<64xf32>
    %34 = vector.multi_reduction <add>, %32, %cst_27 [0] : vector<32x64xf32> to vector<64xf32>
    %35 = vector.shape_cast %34 : vector<64xf32> to vector<1x64xf32>
    %36 = arith.addf %23, %35 : vector<1x64xf32>
    %37 = arith.mulf %32, %32 : vector<32x64xf32>
    %cst_28 = arith.constant dense<0.000000e+00> : vector<64xf32>
    %38 = vector.multi_reduction <add>, %37, %cst_28 [0] : vector<32x64xf32> to vector<64xf32>
    %39 = vector.shape_cast %38 : vector<64xf32> to vector<1x64xf32>
    %40 = arith.addf %27, %39 : vector<1x64xf32>
    %c3 = arith.constant 3 : index
    %c0_29 = arith.constant 0 : index
    %c0_30 = arith.constant 0 : index
    %41 = vector.load %arg0[%c3, %c0_29, %c0_30] : memref<4x32x512xbf16, #tpu.memory_space<vmem>>, vector<1x32x512xbf16>
    %42 = vector.shape_cast %41 : vector<1x32x512xbf16> to vector<32x512xbf16>
    %c3_31 = arith.constant 3 : index
    %c0_32 = arith.constant 0 : index
    %c0_33 = arith.constant 0 : index
    %43 = vector.load %arg1[%c3_31, %c0_32, %c0_33] : memref<4x512x64xbf16, #tpu.memory_space<vmem>>, vector<1x512x64xbf16>
    %44 = vector.shape_cast %43 : vector<1x512x64xbf16> to vector<512x64xbf16>
    %cst_34 = arith.constant dense<0.000000e+00> : vector<32x64xf32>
    %45 = tpu.matmul %42, %44, %cst_34 {dimension_numbers = #tpu.dot_dimension_numbers<[1], [0], [0], [1], [0, 0, 1, 1], [], []>} : vector<32x512xbf16>, vector<512x64xbf16>, vector<32x64xf32> -> vector<32x64xf32>
    %c0_35 = arith.constant 0 : index
    %c192 = arith.constant 192 : index
    %46 = vector.load %arg5[%c0_35, %c192] : memref<32x256xf32, #tpu.memory_space<vmem>>, vector<32x64xf32>
    tpu.vector_store %arg5[%c0_35, %c192], %45 {strides = array<i32>} : memref<32x256xf32, #tpu.memory_space<vmem>>, vector<32x64xf32>,
    %cst_36 = arith.constant dense<0.000000e+00> : vector<64xf32>
    %47 = vector.multi_reduction <add>, %45, %cst_36 [0] : vector<32x64xf32> to vector<64xf32>
    %48 = vector.shape_cast %47 : vector<64xf32> to vector<1x64xf32>
    %49 = arith.addf %36, %48 : vector<1x64xf32>
    %50 = arith.mulf %45, %45 : vector<32x64xf32>
    %cst_37 = arith.constant dense<0.000000e+00> : vector<64xf32>
    %51 = vector.multi_reduction <add>, %50, %cst_37 [0] : vector<32x64xf32> to vector<64xf32>
    %52 = vector.shape_cast %51 : vector<64xf32> to vector<1x64xf32>
    %53 = arith.addf %40, %52 : vector<1x64xf32>
    %cst_38 = arith.constant 1.280000e+02 : f32
    %54 = vector.broadcast %cst_38 : f32 to vector<1x64xf32>
    %55 = arith.divf %49, %54 : vector<1x64xf32>
    %cst_39 = arith.constant 1.280000e+02 : f32
    %56 = vector.broadcast %cst_39 : f32 to vector<1x64xf32>
    %57 = arith.divf %53, %56 : vector<1x64xf32>
    %58 = arith.mulf %55, %55 : vector<1x64xf32>
    %59 = arith.subf %57, %58 : vector<1x64xf32>
    %cst_40 = arith.constant 0.000000e+00 : f32
    %60 = vector.broadcast %cst_40 : f32 to vector<1x64xf32>
    %61 = arith.maximumf %59, %60 : vector<1x64xf32>
    %c0_41 = arith.constant 0 : index
    %c0_42 = arith.constant 0 : index
    %62 = vector.load %arg2[%c0_41, %c0_42] : memref<1x64xf32, #tpu.memory_space<vmem>>, vector<1x64xf32>
    %cst_43 = arith.constant 9.99999974E-6 : f32
    %63 = vector.broadcast %cst_43 : f32 to vector<1x64xf32>
    %64 = arith.addf %61, %63 : vector<1x64xf32>
    %65 = math.rsqrt %64 : vector<1x64xf32>
    %66 = arith.mulf %62, %65 : vector<1x64xf32>
    %c0_44 = arith.constant 0 : index
    %c0_45 = arith.constant 0 : index
    %67 = vector.load %arg3[%c0_44, %c0_45] : memref<1x64xf32, #tpu.memory_space<vmem>>, vector<1x64xf32>
    %68 = arith.mulf %55, %66 : vector<1x64xf32>
    %69 = arith.subf %67, %68 : vector<1x64xf32>
    %c0_46 = arith.constant 0 : index
    %c0_47 = arith.constant 0 : index
    %70 = vector.load %arg5[%c0_46, %c0_47] : memref<32x256xf32, #tpu.memory_space<vmem>>, vector<32x64xf32>
    %71 = vector.broadcast %66 : vector<1x64xf32> to vector<32x64xf32>
    %72 = arith.mulf %70, %71 : vector<32x64xf32>
    %73 = vector.broadcast %69 : vector<1x64xf32> to vector<32x64xf32>
    %74 = arith.addf %72, %73 : vector<32x64xf32>
    %cst_48 = arith.constant 0.000000e+00 : f32
    %75 = vector.broadcast %cst_48 : f32 to vector<32x64xf32>
    %76 = arith.maximumf %74, %75 : vector<32x64xf32>
    %77 = arith.truncf %76 : vector<32x64xf32> to vector<32x64xbf16>
    %c0_49 = arith.constant 0 : index
    %c0_50 = arith.constant 0 : index
    %78 = vector.load %arg4[%c0_49, %c0_50] : memref<32x256xbf16, #tpu.memory_space<vmem>>, vector<32x64xbf16>
    tpu.vector_store %arg4[%c0_49, %c0_50], %77 {strides = array<i32>} : memref<32x256xbf16, #tpu.memory_space<vmem>>, vector<32x64xbf16>,
    %c0_51 = arith.constant 0 : index
    %c64_52 = arith.constant 64 : index
    %79 = vector.load %arg5[%c0_51, %c64_52] : memref<32x256xf32, #tpu.memory_space<vmem>>, vector<32x64xf32>
    %80 = vector.broadcast %66 : vector<1x64xf32> to vector<32x64xf32>
    %81 = arith.mulf %79, %80 : vector<32x64xf32>
    %82 = vector.broadcast %69 : vector<1x64xf32> to vector<32x64xf32>
    %83 = arith.addf %81, %82 : vector<32x64xf32>
    %cst_53 = arith.constant 0.000000e+00 : f32
    %84 = vector.broadcast %cst_53 : f32 to vector<32x64xf32>
    %85 = arith.maximumf %83, %84 : vector<32x64xf32>
    %86 = arith.truncf %85 : vector<32x64xf32> to vector<32x64xbf16>
    %c0_54 = arith.constant 0 : index
    %c64_55 = arith.constant 64 : index
    %87 = vector.load %arg4[%c0_54, %c64_55] : memref<32x256xbf16, #tpu.memory_space<vmem>>, vector<32x64xbf16>
    tpu.vector_store %arg4[%c0_54, %c64_55], %86 {strides = array<i32>} : memref<32x256xbf16, #tpu.memory_space<vmem>>, vector<32x64xbf16>,
    %c0_56 = arith.constant 0 : index
    %c128_57 = arith.constant 128 : index
    %88 = vector.load %arg5[%c0_56, %c128_57] : memref<32x256xf32, #tpu.memory_space<vmem>>, vector<32x64xf32>
    %89 = vector.broadcast %66 : vector<1x64xf32> to vector<32x64xf32>
    %90 = arith.mulf %88, %89 : vector<32x64xf32>
    %91 = vector.broadcast %69 : vector<1x64xf32> to vector<32x64xf32>
    %92 = arith.addf %90, %91 : vector<32x64xf32>
    %cst_58 = arith.constant 0.000000e+00 : f32
    %93 = vector.broadcast %cst_58 : f32 to vector<32x64xf32>
    %94 = arith.maximumf %92, %93 : vector<32x64xf32>
    %95 = arith.truncf %94 : vector<32x64xf32> to vector<32x64xbf16>
    %c0_59 = arith.constant 0 : index
    %c128_60 = arith.constant 128 : index
    %96 = vector.load %arg4[%c0_59, %c128_60] : memref<32x256xbf16, #tpu.memory_space<vmem>>, vector<32x64xbf16>
    tpu.vector_store %arg4[%c0_59, %c128_60], %95 {strides = array<i32>} : memref<32x256xbf16, #tpu.memory_space<vmem>>, vector<32x64xbf16>,
    %c0_61 = arith.constant 0 : index
    %c192_62 = arith.constant 192 : index
    %97 = vector.load %arg5[%c0_61, %c192_62] : memref<32x256xf32, #tpu.memory_space<vmem>>, vector<32x64xf32>
    %98 = vector.broadcast %66 : vector<1x64xf32> to vector<32x64xf32>
    %99 = arith.mulf %97, %98 : vector<32x64xf32>
    %100 = vector.broadcast %69 : vector<1x64xf32> to vector<32x64xf32>
    %101 = arith.addf %99, %100 : vector<32x64xf32>
    %cst_63 = arith.constant 0.000000e+00 : f32
    %102 = vector.broadcast %cst_63 : f32 to vector<32x64xf32>
    %103 = arith.maximumf %101, %102 : vector<32x64xf32>
    %104 = arith.truncf %103 : vector<32x64xf32> to vector<32x64xbf16>
    %c0_64 = arith.constant 0 : index
    %c192_65 = arith.constant 192 : index
    %105 = vector.load %arg4[%c0_64, %c192_65] : memref<32x256xbf16, #tpu.memory_space<vmem>>, vector<32x64xbf16>
    tpu.vector_store %arg4[%c0_64, %c192_65], %104 {strides = array<i32>} : memref<32x256xbf16, #tpu.memory_space<vmem>>, vector<32x64xbf16>,
    return
  }
}

module attributes {stable_mosaic.version = 11 : i64} {
  func.func @_deconv_bn_relu_kernel(%arg0: memref<4x128x256xbf16, #tpu.memory_space<vmem>>, %arg1: memref<4x256x32xbf16, #tpu.memory_space<vmem>>, %arg2: memref<1x32xf32, #tpu.memory_space<vmem>>, %arg3: memref<1x32xf32, #tpu.memory_space<vmem>>, %arg4: memref<128x128xbf16, #tpu.memory_space<vmem>>, %arg5: memref<128x128xf32, #tpu.memory_space<vmem>>) attributes {dimension_semantics = [], scalar_prefetch = 0 : i64, scratch_operands = 1 : i64, tpu.core_type = #tpu.core_type<tc>} {
    %cst = arith.constant 0.000000e+00 : f32
    %0 = vector.broadcast %cst : f32 to vector<1x32xf32>
    %cst_0 = arith.constant 0.000000e+00 : f32
    %1 = vector.broadcast %cst_0 : f32 to vector<1x32xf32>
    %c0 = arith.constant 0 : index
    %c0_1 = arith.constant 0 : index
    %c0_2 = arith.constant 0 : index
    %2 = vector.load %arg0[%c0, %c0_1, %c0_2] : memref<4x128x256xbf16, #tpu.memory_space<vmem>>, vector<1x128x256xbf16>
    %3 = vector.shape_cast %2 : vector<1x128x256xbf16> to vector<128x256xbf16>
    %c0_3 = arith.constant 0 : index
    %c0_4 = arith.constant 0 : index
    %c0_5 = arith.constant 0 : index
    %4 = vector.load %arg1[%c0_3, %c0_4, %c0_5] : memref<4x256x32xbf16, #tpu.memory_space<vmem>>, vector<1x256x32xbf16>
    %5 = vector.shape_cast %4 : vector<1x256x32xbf16> to vector<256x32xbf16>
    %cst_6 = arith.constant dense<0.000000e+00> : vector<128x32xf32>
    %6 = tpu.matmul %3, %5, %cst_6 {dimension_numbers = #tpu.dot_dimension_numbers<[1], [0], [0], [1], [0, 0, 1, 1], [], []>} : vector<128x256xbf16>, vector<256x32xbf16>, vector<128x32xf32> -> vector<128x32xf32>
    %c0_7 = arith.constant 0 : index
    %c0_8 = arith.constant 0 : index
    %7 = vector.load %arg5[%c0_7, %c0_8] : memref<128x128xf32, #tpu.memory_space<vmem>>, vector<128x32xf32>
    tpu.vector_store %arg5[%c0_7, %c0_8], %6 {strides = array<i32>} : memref<128x128xf32, #tpu.memory_space<vmem>>, vector<128x32xf32>,
    %cst_9 = arith.constant dense<0.000000e+00> : vector<32xf32>
    %8 = vector.multi_reduction <add>, %6, %cst_9 [0] : vector<128x32xf32> to vector<32xf32>
    %9 = vector.shape_cast %8 : vector<32xf32> to vector<1x32xf32>
    %10 = arith.addf %0, %9 : vector<1x32xf32>
    %11 = arith.mulf %6, %6 : vector<128x32xf32>
    %cst_10 = arith.constant dense<0.000000e+00> : vector<32xf32>
    %12 = vector.multi_reduction <add>, %11, %cst_10 [0] : vector<128x32xf32> to vector<32xf32>
    %13 = vector.shape_cast %12 : vector<32xf32> to vector<1x32xf32>
    %14 = arith.addf %1, %13 : vector<1x32xf32>
    %c1 = arith.constant 1 : index
    %c0_11 = arith.constant 0 : index
    %c0_12 = arith.constant 0 : index
    %15 = vector.load %arg0[%c1, %c0_11, %c0_12] : memref<4x128x256xbf16, #tpu.memory_space<vmem>>, vector<1x128x256xbf16>
    %16 = vector.shape_cast %15 : vector<1x128x256xbf16> to vector<128x256xbf16>
    %c1_13 = arith.constant 1 : index
    %c0_14 = arith.constant 0 : index
    %c0_15 = arith.constant 0 : index
    %17 = vector.load %arg1[%c1_13, %c0_14, %c0_15] : memref<4x256x32xbf16, #tpu.memory_space<vmem>>, vector<1x256x32xbf16>
    %18 = vector.shape_cast %17 : vector<1x256x32xbf16> to vector<256x32xbf16>
    %cst_16 = arith.constant dense<0.000000e+00> : vector<128x32xf32>
    %19 = tpu.matmul %16, %18, %cst_16 {dimension_numbers = #tpu.dot_dimension_numbers<[1], [0], [0], [1], [0, 0, 1, 1], [], []>} : vector<128x256xbf16>, vector<256x32xbf16>, vector<128x32xf32> -> vector<128x32xf32>
    %c0_17 = arith.constant 0 : index
    %c32 = arith.constant 32 : index
    %20 = vector.load %arg5[%c0_17, %c32] : memref<128x128xf32, #tpu.memory_space<vmem>>, vector<128x32xf32>
    tpu.vector_store %arg5[%c0_17, %c32], %19 {strides = array<i32>} : memref<128x128xf32, #tpu.memory_space<vmem>>, vector<128x32xf32>,
    %cst_18 = arith.constant dense<0.000000e+00> : vector<32xf32>
    %21 = vector.multi_reduction <add>, %19, %cst_18 [0] : vector<128x32xf32> to vector<32xf32>
    %22 = vector.shape_cast %21 : vector<32xf32> to vector<1x32xf32>
    %23 = arith.addf %10, %22 : vector<1x32xf32>
    %24 = arith.mulf %19, %19 : vector<128x32xf32>
    %cst_19 = arith.constant dense<0.000000e+00> : vector<32xf32>
    %25 = vector.multi_reduction <add>, %24, %cst_19 [0] : vector<128x32xf32> to vector<32xf32>
    %26 = vector.shape_cast %25 : vector<32xf32> to vector<1x32xf32>
    %27 = arith.addf %14, %26 : vector<1x32xf32>
    %c2 = arith.constant 2 : index
    %c0_20 = arith.constant 0 : index
    %c0_21 = arith.constant 0 : index
    %28 = vector.load %arg0[%c2, %c0_20, %c0_21] : memref<4x128x256xbf16, #tpu.memory_space<vmem>>, vector<1x128x256xbf16>
    %29 = vector.shape_cast %28 : vector<1x128x256xbf16> to vector<128x256xbf16>
    %c2_22 = arith.constant 2 : index
    %c0_23 = arith.constant 0 : index
    %c0_24 = arith.constant 0 : index
    %30 = vector.load %arg1[%c2_22, %c0_23, %c0_24] : memref<4x256x32xbf16, #tpu.memory_space<vmem>>, vector<1x256x32xbf16>
    %31 = vector.shape_cast %30 : vector<1x256x32xbf16> to vector<256x32xbf16>
    %cst_25 = arith.constant dense<0.000000e+00> : vector<128x32xf32>
    %32 = tpu.matmul %29, %31, %cst_25 {dimension_numbers = #tpu.dot_dimension_numbers<[1], [0], [0], [1], [0, 0, 1, 1], [], []>} : vector<128x256xbf16>, vector<256x32xbf16>, vector<128x32xf32> -> vector<128x32xf32>
    %c0_26 = arith.constant 0 : index
    %c64 = arith.constant 64 : index
    %33 = vector.load %arg5[%c0_26, %c64] : memref<128x128xf32, #tpu.memory_space<vmem>>, vector<128x32xf32>
    tpu.vector_store %arg5[%c0_26, %c64], %32 {strides = array<i32>} : memref<128x128xf32, #tpu.memory_space<vmem>>, vector<128x32xf32>,
    %cst_27 = arith.constant dense<0.000000e+00> : vector<32xf32>
    %34 = vector.multi_reduction <add>, %32, %cst_27 [0] : vector<128x32xf32> to vector<32xf32>
    %35 = vector.shape_cast %34 : vector<32xf32> to vector<1x32xf32>
    %36 = arith.addf %23, %35 : vector<1x32xf32>
    %37 = arith.mulf %32, %32 : vector<128x32xf32>
    %cst_28 = arith.constant dense<0.000000e+00> : vector<32xf32>
    %38 = vector.multi_reduction <add>, %37, %cst_28 [0] : vector<128x32xf32> to vector<32xf32>
    %39 = vector.shape_cast %38 : vector<32xf32> to vector<1x32xf32>
    %40 = arith.addf %27, %39 : vector<1x32xf32>
    %c3 = arith.constant 3 : index
    %c0_29 = arith.constant 0 : index
    %c0_30 = arith.constant 0 : index
    %41 = vector.load %arg0[%c3, %c0_29, %c0_30] : memref<4x128x256xbf16, #tpu.memory_space<vmem>>, vector<1x128x256xbf16>
    %42 = vector.shape_cast %41 : vector<1x128x256xbf16> to vector<128x256xbf16>
    %c3_31 = arith.constant 3 : index
    %c0_32 = arith.constant 0 : index
    %c0_33 = arith.constant 0 : index
    %43 = vector.load %arg1[%c3_31, %c0_32, %c0_33] : memref<4x256x32xbf16, #tpu.memory_space<vmem>>, vector<1x256x32xbf16>
    %44 = vector.shape_cast %43 : vector<1x256x32xbf16> to vector<256x32xbf16>
    %cst_34 = arith.constant dense<0.000000e+00> : vector<128x32xf32>
    %45 = tpu.matmul %42, %44, %cst_34 {dimension_numbers = #tpu.dot_dimension_numbers<[1], [0], [0], [1], [0, 0, 1, 1], [], []>} : vector<128x256xbf16>, vector<256x32xbf16>, vector<128x32xf32> -> vector<128x32xf32>
    %c0_35 = arith.constant 0 : index
    %c96 = arith.constant 96 : index
    %46 = vector.load %arg5[%c0_35, %c96] : memref<128x128xf32, #tpu.memory_space<vmem>>, vector<128x32xf32>
    tpu.vector_store %arg5[%c0_35, %c96], %45 {strides = array<i32>} : memref<128x128xf32, #tpu.memory_space<vmem>>, vector<128x32xf32>,
    %cst_36 = arith.constant dense<0.000000e+00> : vector<32xf32>
    %47 = vector.multi_reduction <add>, %45, %cst_36 [0] : vector<128x32xf32> to vector<32xf32>
    %48 = vector.shape_cast %47 : vector<32xf32> to vector<1x32xf32>
    %49 = arith.addf %36, %48 : vector<1x32xf32>
    %50 = arith.mulf %45, %45 : vector<128x32xf32>
    %cst_37 = arith.constant dense<0.000000e+00> : vector<32xf32>
    %51 = vector.multi_reduction <add>, %50, %cst_37 [0] : vector<128x32xf32> to vector<32xf32>
    %52 = vector.shape_cast %51 : vector<32xf32> to vector<1x32xf32>
    %53 = arith.addf %40, %52 : vector<1x32xf32>
    %cst_38 = arith.constant 5.120000e+02 : f32
    %54 = vector.broadcast %cst_38 : f32 to vector<1x32xf32>
    %55 = arith.divf %49, %54 : vector<1x32xf32>
    %cst_39 = arith.constant 5.120000e+02 : f32
    %56 = vector.broadcast %cst_39 : f32 to vector<1x32xf32>
    %57 = arith.divf %53, %56 : vector<1x32xf32>
    %58 = arith.mulf %55, %55 : vector<1x32xf32>
    %59 = arith.subf %57, %58 : vector<1x32xf32>
    %cst_40 = arith.constant 0.000000e+00 : f32
    %60 = vector.broadcast %cst_40 : f32 to vector<1x32xf32>
    %61 = arith.maximumf %59, %60 : vector<1x32xf32>
    %c0_41 = arith.constant 0 : index
    %c0_42 = arith.constant 0 : index
    %62 = vector.load %arg2[%c0_41, %c0_42] : memref<1x32xf32, #tpu.memory_space<vmem>>, vector<1x32xf32>
    %cst_43 = arith.constant 9.99999974E-6 : f32
    %63 = vector.broadcast %cst_43 : f32 to vector<1x32xf32>
    %64 = arith.addf %61, %63 : vector<1x32xf32>
    %65 = math.rsqrt %64 : vector<1x32xf32>
    %66 = arith.mulf %62, %65 : vector<1x32xf32>
    %c0_44 = arith.constant 0 : index
    %c0_45 = arith.constant 0 : index
    %67 = vector.load %arg3[%c0_44, %c0_45] : memref<1x32xf32, #tpu.memory_space<vmem>>, vector<1x32xf32>
    %68 = arith.mulf %55, %66 : vector<1x32xf32>
    %69 = arith.subf %67, %68 : vector<1x32xf32>
    %c0_46 = arith.constant 0 : index
    %c0_47 = arith.constant 0 : index
    %70 = vector.load %arg5[%c0_46, %c0_47] : memref<128x128xf32, #tpu.memory_space<vmem>>, vector<128x32xf32>
    %71 = vector.broadcast %66 : vector<1x32xf32> to vector<128x32xf32>
    %72 = arith.mulf %70, %71 : vector<128x32xf32>
    %73 = vector.broadcast %69 : vector<1x32xf32> to vector<128x32xf32>
    %74 = arith.addf %72, %73 : vector<128x32xf32>
    %cst_48 = arith.constant 0.000000e+00 : f32
    %75 = vector.broadcast %cst_48 : f32 to vector<128x32xf32>
    %76 = arith.maximumf %74, %75 : vector<128x32xf32>
    %77 = arith.truncf %76 : vector<128x32xf32> to vector<128x32xbf16>
    %c0_49 = arith.constant 0 : index
    %c0_50 = arith.constant 0 : index
    %78 = vector.load %arg4[%c0_49, %c0_50] : memref<128x128xbf16, #tpu.memory_space<vmem>>, vector<128x32xbf16>
    tpu.vector_store %arg4[%c0_49, %c0_50], %77 {strides = array<i32>} : memref<128x128xbf16, #tpu.memory_space<vmem>>, vector<128x32xbf16>,
    %c0_51 = arith.constant 0 : index
    %c32_52 = arith.constant 32 : index
    %79 = vector.load %arg5[%c0_51, %c32_52] : memref<128x128xf32, #tpu.memory_space<vmem>>, vector<128x32xf32>
    %80 = vector.broadcast %66 : vector<1x32xf32> to vector<128x32xf32>
    %81 = arith.mulf %79, %80 : vector<128x32xf32>
    %82 = vector.broadcast %69 : vector<1x32xf32> to vector<128x32xf32>
    %83 = arith.addf %81, %82 : vector<128x32xf32>
    %cst_53 = arith.constant 0.000000e+00 : f32
    %84 = vector.broadcast %cst_53 : f32 to vector<128x32xf32>
    %85 = arith.maximumf %83, %84 : vector<128x32xf32>
    %86 = arith.truncf %85 : vector<128x32xf32> to vector<128x32xbf16>
    %c0_54 = arith.constant 0 : index
    %c32_55 = arith.constant 32 : index
    %87 = vector.load %arg4[%c0_54, %c32_55] : memref<128x128xbf16, #tpu.memory_space<vmem>>, vector<128x32xbf16>
    tpu.vector_store %arg4[%c0_54, %c32_55], %86 {strides = array<i32>} : memref<128x128xbf16, #tpu.memory_space<vmem>>, vector<128x32xbf16>,
    %c0_56 = arith.constant 0 : index
    %c64_57 = arith.constant 64 : index
    %88 = vector.load %arg5[%c0_56, %c64_57] : memref<128x128xf32, #tpu.memory_space<vmem>>, vector<128x32xf32>
    %89 = vector.broadcast %66 : vector<1x32xf32> to vector<128x32xf32>
    %90 = arith.mulf %88, %89 : vector<128x32xf32>
    %91 = vector.broadcast %69 : vector<1x32xf32> to vector<128x32xf32>
    %92 = arith.addf %90, %91 : vector<128x32xf32>
    %cst_58 = arith.constant 0.000000e+00 : f32
    %93 = vector.broadcast %cst_58 : f32 to vector<128x32xf32>
    %94 = arith.maximumf %92, %93 : vector<128x32xf32>
    %95 = arith.truncf %94 : vector<128x32xf32> to vector<128x32xbf16>
    %c0_59 = arith.constant 0 : index
    %c64_60 = arith.constant 64 : index
    %96 = vector.load %arg4[%c0_59, %c64_60] : memref<128x128xbf16, #tpu.memory_space<vmem>>, vector<128x32xbf16>
    tpu.vector_store %arg4[%c0_59, %c64_60], %95 {strides = array<i32>} : memref<128x128xbf16, #tpu.memory_space<vmem>>, vector<128x32xbf16>,
    %c0_61 = arith.constant 0 : index
    %c96_62 = arith.constant 96 : index
    %97 = vector.load %arg5[%c0_61, %c96_62] : memref<128x128xf32, #tpu.memory_space<vmem>>, vector<128x32xf32>
    %98 = vector.broadcast %66 : vector<1x32xf32> to vector<128x32xf32>
    %99 = arith.mulf %97, %98 : vector<128x32xf32>
    %100 = vector.broadcast %69 : vector<1x32xf32> to vector<128x32xf32>
    %101 = arith.addf %99, %100 : vector<128x32xf32>
    %cst_63 = arith.constant 0.000000e+00 : f32
    %102 = vector.broadcast %cst_63 : f32 to vector<128x32xf32>
    %103 = arith.maximumf %101, %102 : vector<128x32xf32>
    %104 = arith.truncf %103 : vector<128x32xf32> to vector<128x32xbf16>
    %c0_64 = arith.constant 0 : index
    %c96_65 = arith.constant 96 : index
    %105 = vector.load %arg4[%c0_64, %c96_65] : memref<128x128xbf16, #tpu.memory_space<vmem>>, vector<128x32xbf16>
    tpu.vector_store %arg4[%c0_64, %c96_65], %104 {strides = array<i32>} : memref<128x128xbf16, #tpu.memory_space<vmem>>, vector<128x32xbf16>,
    return
  }
}

module attributes {stable_mosaic.version = 11 : i64} {
  func.func @_deconv_tanh_kernel(%arg0: i32, %arg1: memref<4x256x128xbf16, #tpu.memory_space<vmem>>, %arg2: memref<4x128x8xbf16, #tpu.memory_space<vmem>>, %arg3: memref<1x8xf32, #tpu.memory_space<vmem>>, %arg4: memref<256x32xf32, #tpu.memory_space<vmem>>) attributes {dimension_semantics = [#tpu.dimension_semantics<parallel>], iteration_bounds = array<i64: 2>, scalar_prefetch = 0 : i64, scratch_operands = 0 : i64, tpu.core_type = #tpu.core_type<tc>, window_params = [{transform_indices = @transform_0, window_bounds = array<i64: 4, 256, 128>}, {pipeline_mode = #tpu.pipeline_mode<synchronous>, transform_indices = @transform_1, window_bounds = array<i64: 4, 128, 8>}, {pipeline_mode = #tpu.pipeline_mode<synchronous>, transform_indices = @transform_2, window_bounds = array<i64: 1, 8>}, {transform_indices = @transform_3, window_bounds = array<i64: 256, 32>}]} {
    %c0 = arith.constant 0 : index
    %c0_0 = arith.constant 0 : index
    %c0_1 = arith.constant 0 : index
    %0 = vector.load %arg1[%c0, %c0_0, %c0_1] : memref<4x256x128xbf16, #tpu.memory_space<vmem>>, vector<1x256x128xbf16>
    %1 = vector.shape_cast %0 : vector<1x256x128xbf16> to vector<256x128xbf16>
    %c0_2 = arith.constant 0 : index
    %c0_3 = arith.constant 0 : index
    %c0_4 = arith.constant 0 : index
    %2 = vector.load %arg2[%c0_2, %c0_3, %c0_4] : memref<4x128x8xbf16, #tpu.memory_space<vmem>>, vector<1x128x8xbf16>
    %3 = vector.shape_cast %2 : vector<1x128x8xbf16> to vector<128x8xbf16>
    %cst = arith.constant dense<0.000000e+00> : vector<256x8xf32>
    %4 = tpu.matmul %1, %3, %cst {dimension_numbers = #tpu.dot_dimension_numbers<[1], [0], [0], [1], [0, 0, 1, 1], [], []>} : vector<256x128xbf16>, vector<128x8xbf16>, vector<256x8xf32> -> vector<256x8xf32>
    %c0_5 = arith.constant 0 : index
    %c0_6 = arith.constant 0 : index
    %5 = vector.load %arg3[%c0_5, %c0_6] : memref<1x8xf32, #tpu.memory_space<vmem>>, vector<1x8xf32>
    %6 = vector.broadcast %5 : vector<1x8xf32> to vector<256x8xf32>
    %7 = arith.addf %4, %6 : vector<256x8xf32>
    %8 = math.tanh %7 : vector<256x8xf32>
    %c0_7 = arith.constant 0 : index
    %c0_8 = arith.constant 0 : index
    %9 = vector.load %arg4[%c0_7, %c0_8] : memref<256x32xf32, #tpu.memory_space<vmem>>, vector<256x8xf32>
    tpu.vector_store %arg4[%c0_7, %c0_8], %8 {strides = array<i32>} : memref<256x32xf32, #tpu.memory_space<vmem>>, vector<256x8xf32>,
    %c1 = arith.constant 1 : index
    %c0_9 = arith.constant 0 : index
    %c0_10 = arith.constant 0 : index
    %10 = vector.load %arg1[%c1, %c0_9, %c0_10] : memref<4x256x128xbf16, #tpu.memory_space<vmem>>, vector<1x256x128xbf16>
    %11 = vector.shape_cast %10 : vector<1x256x128xbf16> to vector<256x128xbf16>
    %c1_11 = arith.constant 1 : index
    %c0_12 = arith.constant 0 : index
    %c0_13 = arith.constant 0 : index
    %12 = vector.load %arg2[%c1_11, %c0_12, %c0_13] : memref<4x128x8xbf16, #tpu.memory_space<vmem>>, vector<1x128x8xbf16>
    %13 = vector.shape_cast %12 : vector<1x128x8xbf16> to vector<128x8xbf16>
    %cst_14 = arith.constant dense<0.000000e+00> : vector<256x8xf32>
    %14 = tpu.matmul %11, %13, %cst_14 {dimension_numbers = #tpu.dot_dimension_numbers<[1], [0], [0], [1], [0, 0, 1, 1], [], []>} : vector<256x128xbf16>, vector<128x8xbf16>, vector<256x8xf32> -> vector<256x8xf32>
    %c0_15 = arith.constant 0 : index
    %c0_16 = arith.constant 0 : index
    %15 = vector.load %arg3[%c0_15, %c0_16] : memref<1x8xf32, #tpu.memory_space<vmem>>, vector<1x8xf32>
    %16 = vector.broadcast %15 : vector<1x8xf32> to vector<256x8xf32>
    %17 = arith.addf %14, %16 : vector<256x8xf32>
    %18 = math.tanh %17 : vector<256x8xf32>
    %c0_17 = arith.constant 0 : index
    %c8 = arith.constant 8 : index
    %19 = vector.load %arg4[%c0_17, %c8] : memref<256x32xf32, #tpu.memory_space<vmem>>, vector<256x8xf32>
    tpu.vector_store %arg4[%c0_17, %c8], %18 {strides = array<i32>} : memref<256x32xf32, #tpu.memory_space<vmem>>, vector<256x8xf32>,
    %c2 = arith.constant 2 : index
    %c0_18 = arith.constant 0 : index
    %c0_19 = arith.constant 0 : index
    %20 = vector.load %arg1[%c2, %c0_18, %c0_19] : memref<4x256x128xbf16, #tpu.memory_space<vmem>>, vector<1x256x128xbf16>
    %21 = vector.shape_cast %20 : vector<1x256x128xbf16> to vector<256x128xbf16>
    %c2_20 = arith.constant 2 : index
    %c0_21 = arith.constant 0 : index
    %c0_22 = arith.constant 0 : index
    %22 = vector.load %arg2[%c2_20, %c0_21, %c0_22] : memref<4x128x8xbf16, #tpu.memory_space<vmem>>, vector<1x128x8xbf16>
    %23 = vector.shape_cast %22 : vector<1x128x8xbf16> to vector<128x8xbf16>
    %cst_23 = arith.constant dense<0.000000e+00> : vector<256x8xf32>
    %24 = tpu.matmul %21, %23, %cst_23 {dimension_numbers = #tpu.dot_dimension_numbers<[1], [0], [0], [1], [0, 0, 1, 1], [], []>} : vector<256x128xbf16>, vector<128x8xbf16>, vector<256x8xf32> -> vector<256x8xf32>
    %c0_24 = arith.constant 0 : index
    %c0_25 = arith.constant 0 : index
    %25 = vector.load %arg3[%c0_24, %c0_25] : memref<1x8xf32, #tpu.memory_space<vmem>>, vector<1x8xf32>
    %26 = vector.broadcast %25 : vector<1x8xf32> to vector<256x8xf32>
    %27 = arith.addf %24, %26 : vector<256x8xf32>
    %28 = math.tanh %27 : vector<256x8xf32>
    %c0_26 = arith.constant 0 : index
    %c16 = arith.constant 16 : index
    %29 = vector.load %arg4[%c0_26, %c16] : memref<256x32xf32, #tpu.memory_space<vmem>>, vector<256x8xf32>
    tpu.vector_store %arg4[%c0_26, %c16], %28 {strides = array<i32>} : memref<256x32xf32, #tpu.memory_space<vmem>>, vector<256x8xf32>,
    %c3 = arith.constant 3 : index
    %c0_27 = arith.constant 0 : index
    %c0_28 = arith.constant 0 : index
    %30 = vector.load %arg1[%c3, %c0_27, %c0_28] : memref<4x256x128xbf16, #tpu.memory_space<vmem>>, vector<1x256x128xbf16>
    %31 = vector.shape_cast %30 : vector<1x256x128xbf16> to vector<256x128xbf16>
    %c3_29 = arith.constant 3 : index
    %c0_30 = arith.constant 0 : index
    %c0_31 = arith.constant 0 : index
    %32 = vector.load %arg2[%c3_29, %c0_30, %c0_31] : memref<4x128x8xbf16, #tpu.memory_space<vmem>>, vector<1x128x8xbf16>
    %33 = vector.shape_cast %32 : vector<1x128x8xbf16> to vector<128x8xbf16>
    %cst_32 = arith.constant dense<0.000000e+00> : vector<256x8xf32>
    %34 = tpu.matmul %31, %33, %cst_32 {dimension_numbers = #tpu.dot_dimension_numbers<[1], [0], [0], [1], [0, 0, 1, 1], [], []>} : vector<256x128xbf16>, vector<128x8xbf16>, vector<256x8xf32> -> vector<256x8xf32>
    %c0_33 = arith.constant 0 : index
    %c0_34 = arith.constant 0 : index
    %35 = vector.load %arg3[%c0_33, %c0_34] : memref<1x8xf32, #tpu.memory_space<vmem>>, vector<1x8xf32>
    %36 = vector.broadcast %35 : vector<1x8xf32> to vector<256x8xf32>
    %37 = arith.addf %34, %36 : vector<256x8xf32>
    %38 = math.tanh %37 : vector<256x8xf32>
    %c0_35 = arith.constant 0 : index
    %c24 = arith.constant 24 : index
    %39 = vector.load %arg4[%c0_35, %c24] : memref<256x32xf32, #tpu.memory_space<vmem>>, vector<256x8xf32>
    tpu.vector_store %arg4[%c0_35, %c24], %38 {strides = array<i32>} : memref<256x32xf32, #tpu.memory_space<vmem>>, vector<256x8xf32>,
    return
  }
  func.func @transform_0(%arg0: i32) -> (i32, i32, i32) {
    %c0_i32 = arith.constant 0 : i32
    %c0_i32_0 = arith.constant 0 : i32
    %c0_i32_1 = arith.constant 0 : i32
    return %c0_i32, %arg0, %c0_i32_0 : i32, i32, i32
  }
  func.func @transform_1(%arg0: i32) -> (i32, i32, i32) {
    %c0_i32 = arith.constant 0 : i32
    %c0_i32_0 = arith.constant 0 : i32
    %c0_i32_1 = arith.constant 0 : i32
    %c0_i32_2 = arith.constant 0 : i32
    return %c0_i32, %c0_i32_0, %c0_i32_1 : i32, i32, i32
  }
  func.func @transform_2(%arg0: i32) -> (i32, i32) {
    %c0_i32 = arith.constant 0 : i32
    %c0_i32_0 = arith.constant 0 : i32
    %c0_i32_1 = arith.constant 0 : i32
    return %c0_i32, %c0_i32_0 : i32, i32
  }
  func.func @transform_3(%arg0: i32) -> (i32, i32) {
    %c0_i32 = arith.constant 0 : i32
    %c0_i32_0 = arith.constant 0 : i32
    return %arg0, %c0_i32 : i32, i32
  }
}

</mosaic_0001>

<llo_original>
// kernel: generator_forward.4
$region0: #{generator_forward.4}
  #allocation0 [shape = 'u32[]', space=smem, size = 0x4, offset = 0x4, fixed_abs, tag = 'smem constant byte address 0x4 - core index']
  #allocation1 [shape = 'u32[144,128]{1,0:T(1,128)}', space=vmem, size = 0x12000, scoped, tag = 'internal scratch']
  %s0 = inlined_call_operand.vmem [shape: bf16[2,64], index: 0, kind: input, shape index: {}]
  %s1 = inlined_call_operand.hbm [shape: bf16[64,2048], index: 1, kind: input, shape index: {}]
  %s2 = inlined_call_operand.hbm [shape: f32[1,2048], index: 2, kind: input, shape index: {}]
  %s3 = inlined_call_operand.vmem [shape: f32[2,2048], index: 3, kind: output, shape index: {}]
  %s4 = sld [smem:[#allocation0]]
  $region30: #{generator_forward.4} parent=0
    _
  %s6 = ssub.s32 1, %s4
  %s7 = scalar_select 0, %s6, %s4
  $region1: #{generator_forward.4} parent=0
    #allocation2 [shape = 'u8[262144]{0}', space=vmem, size = 0x40000, scoped, tag = 'input window, operand 1, single buffered']
    #allocation3 [shape = 's32[1]{0}', space=sflag, size = 0x4, scoped, tag = 'scoped memory for generator_forward.4']
    #allocation4 [shape = 'u8[8192]{0}', space=vmem, size = 0x2000, scoped, tag = 'input window, operand 2, single buffered']
    #allocation5 [shape = 's32[1]{0}', space=sflag, size = 0x4, scoped, tag = 'scoped memory for generator_forward.4']
    %8 = vsyncpa [#allocation3], 0
    %9 = vsyncpa [#allocation5], 0
    // Predicated region
    $region2: #{generator_forward.4} parent=1 // pred_check
      _
    $region3: #{generator_forward.4} parent=1 // pred_check_branch
      %11 = sbr.rel (0) target = $region5
    $region4: #{generator_forward.4} parent=1 // pred_region
      _
    $region5: #{generator_forward.4} parent=1 // pred_fallthru
      _
    // Predicated region
    $region6: #{generator_forward.4} parent=1 // pred_check
      _
    $region7: #{generator_forward.4} parent=1 // pred_check_branch
      %13 = sbr.rel (0) target = $region9
    $region8: #{generator_forward.4} parent=1 // pred_region
      %s15 = ssub.s32 8192, 8192
      %16 = vsyncadd [#allocation3], %s15
      %s17 = sshll.u32 [#allocation2], 4
      %s18 = int_to_ptr.vmem [resolvable:$true] %s17
      %23 = dma.hbm_to_vmem [thread:$0]  %s1, 8192, %s18, [#allocation3], 1024, 1024, 64
    $region9: #{generator_forward.4} parent=1 // pred_fallthru
      _
    // Predicated region
    $region10: #{generator_forward.4} parent=1 // pred_check
      _
    $region11: #{generator_forward.4} parent=1 // pred_check_branch
      %25 = sbr.rel (0) target = $region13
    $region12: #{generator_forward.4} parent=1 // pred_region
      %s27 = ssub.s32 256, 256
      %28 = vsyncadd [#allocation5], %s27
      %s30 = sshll.u32 [#allocation4], 4
      %s31 = int_to_ptr.vmem [resolvable:$true] %s30
      %33 = dma.hbm_to_vmem [thread:$0]  %s2, 256, %s31, [#allocation5]
    $region13: #{generator_forward.4} parent=1 // pred_fallthru
      _
    // Predicated region
    $region14: #{generator_forward.4} parent=1 // pred_check
      _
    $region15: #{generator_forward.4} parent=1 // pred_check_branch
      %35 = sbr.rel (0) target = $region17
    $region16: #{generator_forward.4} parent=1 // pred_region
      %36 = dma.done [#allocation3], 8192
    $region17: #{generator_forward.4} parent=1 // pred_fallthru
      _
    // Predicated region
    $region18: #{generator_forward.4} parent=1 // pred_check
      _
    $region19: #{generator_forward.4} parent=1 // pred_check_branch
      %38 = sbr.rel (0) target = $region21
    $region20: #{generator_forward.4} parent=1 // pred_region
      %39 = dma.done [#allocation5], 256
    $region21: #{generator_forward.4} parent=1 // pred_fallthru
      _
    %v41 = vld [vmem:[%s0] sm:$0x1]
    %v42 = vld [vmem:[#allocation2] sm:$0xff]
    %v43 = vld [vmem:[#allocation2 + $0x8] sm:$0xff]
    %v44 = vld [vmem:[#allocation2 + $0x10] sm:$0xff]
    %v45 = vld [vmem:[#allocation2 + $0x18] sm:$0xff]
    %v46 = vld [vmem:[#allocation2 + $0x20] sm:$0xff]
    %v47 = vld [vmem:[#allocation2 + $0x28] sm:$0xff]
    %v48 = vld [vmem:[#allocation2 + $0x30] sm:$0xff]
    %v49 = vld [vmem:[#allocation2 + $0x38] sm:$0xff]
    %v50 = vld [vmem:[#allocation2 + $0x40] sm:$0xff]
    %v51 = vld [vmem:[#allocation2 + $0x48] sm:$0xff]
    %v52 = vld [vmem:[#allocation2 + $0x50] sm:$0xff]
    %v53 = vld [vmem:[#allocation2 + $0x58] sm:$0xff]
    %v54 = vld [vmem:[#allocation2 + $0x60] sm:$0xff]
    %v55 = vld [vmem:[#allocation2 + $0x68] sm:$0xff]
    %v56 = vld [vmem:[#allocation2 + $0x70] sm:$0xff]
    %v57 = vld [vmem:[#allocation2 + $0x78] sm:$0xff]
    %v58 = vld [vmem:[#allocation2 + $0x80] sm:$0xff]
    %v59 = vld [vmem:[#allocation2 + $0x88] sm:$0xff]
    %v60 = vld [vmem:[#allocation2 + $0x90] sm:$0xff]
    %v61 = vld [vmem:[#allocation2 + $0x98] sm:$0xff]
    %v62 = vld [vmem:[#allocation2 + $0xa0] sm:$0xff]
    %v63 = vld [vmem:[#allocation2 + $0xa8] sm:$0xff]
    %v64 = vld [vmem:[#allocation2 + $0xb0] sm:$0xff]
    %v65 = vld [vmem:[#allocation2 + $0xb8] sm:$0xff]
    %v66 = vld [vmem:[#allocation2 + $0xc0] sm:$0xff]
    %v67 = vld [vmem:[#allocation2 + $0xc8] sm:$0xff]
    %v68 = vld [vmem:[#allocation2 + $0xd0] sm:$0xff]
    %v69 = vld [vmem:[#allocation2 + $0xd8] sm:$0xff]
    %v70 = vld [vmem:[#allocation2 + $0xe0] sm:$0xff]
    %v71 = vld [vmem:[#allocation2 + $0xe8] sm:$0xff]
    %v72 = vld [vmem:[#allocation2 + $0xf0] sm:$0xff]
    %v73 = vld [vmem:[#allocation2 + $0xf8] sm:$0xff]
    %v74 = vld [vmem:[#allocation2 + $0x100] sm:$0xff]
    %v75 = vld [vmem:[#allocation2 + $0x108] sm:$0xff]
    %v76 = vld [vmem:[#allocation2 + $0x110] sm:$0xff]
    %v77 = vld [vmem:[#allocation2 + $0x118] sm:$0xff]
    %v78 = vld [vmem:[#allocation2 + $0x120] sm:$0xff]
    %v79 = vld [vmem:[#allocation2 + $0x128] sm:$0xff]
    %v80 = vld [vmem:[#allocation2 + $0x130] sm:$0xff]
    %v81 = vld [vmem:[#allocation2 + $0x138] sm:$0xff]
    %v82 = vld [vmem:[#allocation2 + $0x140] sm:$0xff]
    %v83 = vld [vmem:[#allocation2 + $0x148] sm:$0xff]
    %v84 = vld [vmem:[#allocation2 + $0x150] sm:$0xff]
    %v85 = vld [vmem:[#allocation2 + $0x158] sm:$0xff]
    %v86 = vld [vmem:[#allocation2 + $0x160] sm:$0xff]
    %v87 = vld [vmem:[#allocation2 + $0x168] sm:$0xff]
    %v88 = vld [vmem:[#allocation2 + $0x170] sm:$0xff]
    %v89 = vld [vmem:[#allocation2 + $0x178] sm:$0xff]
    %v90 = vld [vmem:[#allocation2 + $0x180] sm:$0xff]
    %v91 = vld [vmem:[#allocation2 + $0x188] sm:$0xff]
    %v92 = vld [vmem:[#allocation2 + $0x190] sm:$0xff]
    %v93 = vld [vmem:[#allocation2 + $0x198] sm:$0xff]
    %v94 = vld [vmem:[#allocation2 + $0x1a0] sm:$0xff]
    %v95 = vld [vmem:[#allocation2 + $0x1a8] sm:$0xff]
    %v96 = vld [vmem:[#allocation2 + $0x1b0] sm:$0xff]
    %v97 = vld [vmem:[#allocation2 + $0x1b8] sm:$0xff]
    %v98 = vld [vmem:[#allocation2 + $0x1c0] sm:$0xff]
    %v99 = vld [vmem:[#allocation2 + $0x1c8] sm:$0xff]
    %v100 = vld [vmem:[#allocation2 + $0x1d0] sm:$0xff]
    %v101 = vld [vmem:[#allocation2 + $0x1d8] sm:$0xff]
    %v102 = vld [vmem:[#allocation2 + $0x1e0] sm:$0xff]
    %v103 = vld [vmem:[#allocation2 + $0x1e8] sm:$0xff]
    %v104 = vld [vmem:[#allocation2 + $0x1f0] sm:$0xff]
    %v105 = vld [vmem:[#allocation2 + $0x1f8] sm:$0xff]
    %v106 = vld [vmem:[#allocation4] sm:$0xff]
    %v107 = vld [vmem:[#allocation4 + $0x8] sm:$0xff]
    %v110 = vlaneseq
    %v111 = vshrl.u32 %v110, 7
    %v112 = vsub.s32 0, %v111
    %v113 = vrot.slane %v106, %v112
    %v114 = vlaneseq
    %v115 = vshrl.u32 %v114, 7
    %v116 = vsub.s32 1, %v115
    %v117 = vrot.slane %v106, %v116
    %v118 = vlaneseq
    %v119 = vshrl.u32 %v118, 7
    %v120 = vsub.s32 2, %v119
    %v121 = vrot.slane %v106, %v120
    %v122 = vlaneseq
    %v123 = vshrl.u32 %v122, 7
    %v124 = vsub.s32 3, %v123
    %v125 = vrot.slane %v106, %v124
    %v126 = vlaneseq
    %v127 = vshrl.u32 %v126, 7
    %v128 = vsub.s32 4, %v127
    %v129 = vrot.slane %v106, %v128
    %v130 = vlaneseq
    %v131 = vshrl.u32 %v130, 7
    %v132 = vsub.s32 5, %v131
    %v133 = vrot.slane %v106, %v132
    %v134 = vlaneseq
    %v135 = vshrl.u32 %v134, 7
    %v136 = vsub.s32 6, %v135
    %v137 = vrot.slane %v106, %v136
    %v138 = vlaneseq
    %v139 = vshrl.u32 %v138, 7
    %v140 = vsub.s32 7, %v139
    %v141 = vrot.slane %v106, %v140
    %v142 = vlaneseq
    %v143 = vshrl.u32 %v142, 7
    %v144 = vsub.s32 0, %v143
    %v145 = vrot.slane %v107, %v144
    %v146 = vlaneseq
    %v147 = vshrl.u32 %v146, 7
    %v148 = vsub.s32 1, %v147
    %v149 = vrot.slane %v107, %v148
    %v150 = vlaneseq
    %v151 = vshrl.u32 %v150, 7
    %v152 = vsub.s32 2, %v151
    %v153 = vrot.slane %v107, %v152
    %v154 = vlaneseq
    %v155 = vshrl.u32 %v154, 7
    %v156 = vsub.s32 3, %v155
    %v157 = vrot.slane %v107, %v156
    %v158 = vlaneseq
    %v159 = vshrl.u32 %v158, 7
    %v160 = vsub.s32 4, %v159
    %v161 = vrot.slane %v107, %v160
    %v162 = vlaneseq
    %v163 = vshrl.u32 %v162, 7
    %v164 = vsub.s32 5, %v163
    %v165 = vrot.slane %v107, %v164
    %v166 = vlaneseq
    %v167 = vshrl.u32 %v166, 7
    %v168 = vsub.s32 6, %v167
    %v169 = vrot.slane %v107, %v168
    %v170 = vlaneseq
    %v171 = vshrl.u32 %v170, 7
    %v172 = vsub.s32 7, %v171
    %v173 = vrot.slane %v107, %v172
    %v254 = vunpack.c.l.b16 %v42
    %v255 = vunpack.c.h.b16 %v42
    %v256 = vunpack.c.l.b16 %v43
    %v257 = vunpack.c.h.b16 %v43
    %v258 = vunpack.c.l.b16 %v44
    %v259 = vunpack.c.h.b16 %v44
    %v260 = vunpack.c.l.b16 %v45
    %v261 = vunpack.c.h.b16 %v45
    %v262 = vunpack.c.l.b16 %v46
    %v263 = vunpack.c.h.b16 %v46
    %v264 = vunpack.c.l.b16 %v47
    %v265 = vunpack.c.h.b16 %v47
    %v266 = vunpack.c.l.b16 %v48
    %v267 = vunpack.c.h.b16 %v48
    %v268 = vunpack.c.l.b16 %v49
    %v269 = vunpack.c.h.b16 %v49
    %v270 = vunpack.c.l.b16 %v50
    %v271 = vunpack.c.h.b16 %v50
    %v272 = vunpack.c.l.b16 %v51
    %v273 = vunpack.c.h.b16 %v51
    %v274 = vunpack.c.l.b16 %v52
    %v275 = vunpack.c.h.b16 %v52
    %v276 = vunpack.c.l.b16 %v53
    %v277 = vunpack.c.h.b16 %v53
    %v278 = vunpack.c.l.b16 %v54
    %v279 = vunpack.c.h.b16 %v54
    %v280 = vunpack.c.l.b16 %v55
    %v281 = vunpack.c.h.b16 %v55
    %v282 = vunpack.c.l.b16 %v56
    %v283 = vunpack.c.h.b16 %v56
    %v284 = vunpack.c.l.b16 %v57
    %v285 = vunpack.c.h.b16 %v57
    %v286 = vunpack.c.l.b16 %v58
    %v287 = vunpack.c.h.b16 %v58
    %v288 = vunpack.c.l.b16 %v59
    %v289 = vunpack.c.h.b16 %v59
    %v290 = vunpack.c.l.b16 %v60
    %v291 = vunpack.c.h.b16 %v60
    %v292 = vunpack.c.l.b16 %v61
    %v293 = vunpack.c.h.b16 %v61
    %v294 = vunpack.c.l.b16 %v62
    %v295 = vunpack.c.h.b16 %v62
    %v296 = vunpack.c.l.b16 %v63
    %v297 = vunpack.c.h.b16 %v63
    %v298 = vunpack.c.l.b16 %v64
    %v299 = vunpack.c.h.b16 %v64
    %v300 = vunpack.c.l.b16 %v65
    %v301 = vunpack.c.h.b16 %v65
    %v302 = vunpack.c.l.b16 %v66
    %v303 = vunpack.c.h.b16 %v66
    %v304 = vunpack.c.l.b16 %v67
    %v305 = vunpack.c.h.b16 %v67
    %v306 = vunpack.c.l.b16 %v68
    %v307 = vunpack.c.h.b16 %v68
    %v308 = vunpack.c.l.b16 %v69
    %v309 = vunpack.c.h.b16 %v69
    %v310 = vunpack.c.l.b16 %v70
    %v311 = vunpack.c.h.b16 %v70
    %v312 = vunpack.c.l.b16 %v71
    %v313 = vunpack.c.h.b16 %v71
    %v314 = vunpack.c.l.b16 %v72
    %v315 = vunpack.c.h.b16 %v72
    %v316 = vunpack.c.l.b16 %v73
    %v317 = vunpack.c.h.b16 %v73
    %v318 = vunpack.c.l.b16 %v74
    %v319 = vunpack.c.h.b16 %v74
    %v320 = vunpack.c.l.b16 %v75
    %v321 = vunpack.c.h.b16 %v75
    %v322 = vunpack.c.l.b16 %v76
    %v323 = vunpack.c.h.b16 %v76
    %v324 = vunpack.c.l.b16 %v77
    %v325 = vunpack.c.h.b16 %v77
    %v326 = vunpack.c.l.b16 %v78
    %v327 = vunpack.c.h.b16 %v78
    %v328 = vunpack.c.l.b16 %v79
    %v329 = vunpack.c.h.b16 %v79
    %v330 = vunpack.c.l.b16 %v80
    %v331 = vunpack.c.h.b16 %v80
    %v332 = vunpack.c.l.b16 %v81
    %v333 = vunpack.c.h.b16 %v81
    %v334 = vunpack.c.l.b16 %v82
    %v335 = vunpack.c.h.b16 %v82
    %v336 = vunpack.c.l.b16 %v83
    %v337 = vunpack.c.h.b16 %v83
    %v338 = vunpack.c.l.b16 %v84
    %v339 = vunpack.c.h.b16 %v84
    %v340 = vunpack.c.l.b16 %v85
    %v341 = vunpack.c.h.b16 %v85
    %v342 = vunpack.c.l.b16 %v86
    %v343 = vunpack.c.h.b16 %v86
    %v344 = vunpack.c.l.b16 %v87
    %v345 = vunpack.c.h.b16 %v87
    %v346 = vunpack.c.l.b16 %v88
    %v347 = vunpack.c.h.b16 %v88
    %v348 = vunpack.c.l.b16 %v89
    %v349 = vunpack.c.h.b16 %v89
    %v350 = vunpack.c.l.b16 %v90
    %v351 = vunpack.c.h.b16 %v90
    %v352 = vunpack.c.l.b16 %v91
    %v353 = vunpack.c.h.b16 %v91
    %v354 = vunpack.c.l.b16 %v92
    %v355 = vunpack.c.h.b16 %v92
    %v356 = vunpack.c.l.b16 %v93
    %v357 = vunpack.c.h.b16 %v93
    %v358 = vunpack.c.l.b16 %v94
    %v359 = vunpack.c.h.b16 %v94
    %v360 = vunpack.c.l.b16 %v95
    %v361 = vunpack.c.h.b16 %v95
    %v362 = vunpack.c.l.b16 %v96
    %v363 = vunpack.c.h.b16 %v96
    %v364 = vunpack.c.l.b16 %v97
    %v365 = vunpack.c.h.b16 %v97
    %v366 = vunpack.c.l.b16 %v98
    %v367 = vunpack.c.h.b16 %v98
    %v368 = vunpack.c.l.b16 %v99
    %v369 = vunpack.c.h.b16 %v99
    %v370 = vunpack.c.l.b16 %v100
    %v371 = vunpack.c.h.b16 %v100
    %v372 = vunpack.c.l.b16 %v101
    %v373 = vunpack.c.h.b16 %v101
    %v374 = vunpack.c.l.b16 %v102
    %v375 = vunpack.c.h.b16 %v102
    %v376 = vunpack.c.l.b16 %v103
    %v377 = vunpack.c.h.b16 %v103
    %v378 = vunpack.c.l.b16 %v104
    %v379 = vunpack.c.h.b16 %v104
    %v380 = vunpack.c.l.b16 %v105
    %v381 = vunpack.c.h.b16 %v105
    %v382 = vpack.c.b16 %v270, %v254
    %v383 = vpack.c.b16 %v271, %v255
    %v384 = vpack.c.b16 %v272, %v256
    %v385 = vpack.c.b16 %v273, %v257
    %v386 = vpack.c.b16 %v274, %v258
    %v387 = vpack.c.b16 %v275, %v259
    %v388 = vpack.c.b16 %v276, %v260
    %v389 = vpack.c.b16 %v277, %v261
    %v390 = vpack.c.b16 %v278, %v262
    %v391 = vpack.c.b16 %v279, %v263
    %v392 = vpack.c.b16 %v280, %v264
    %v393 = vpack.c.b16 %v281, %v265
    %v394 = vpack.c.b16 %v282, %v266
    %v395 = vpack.c.b16 %v283, %v267
    %v396 = vpack.c.b16 %v284, %v268
    %v397 = vpack.c.b16 %v285, %v269
    %v398 = vpack.c.b16 %v302, %v286
    %v399 = vpack.c.b16 %v303, %v287
    %v400 = vpack.c.b16 %v304, %v288
    %v401 = vpack.c.b16 %v305, %v289
    %v402 = vpack.c.b16 %v306, %v290
    %v403 = vpack.c.b16 %v307, %v291
    %v404 = vpack.c.b16 %v308, %v292
    %v405 = vpack.c.b16 %v309, %v293
    %v406 = vpack.c.b16 %v310, %v294
    %v407 = vpack.c.b16 %v311, %v295
    %v408 = vpack.c.b16 %v312, %v296
    %v409 = vpack.c.b16 %v313, %v297
    %v410 = vpack.c.b16 %v314, %v298
    %v411 = vpack.c.b16 %v315, %v299
    %v412 = vpack.c.b16 %v316, %v300
    %v413 = vpack.c.b16 %v317, %v301
    %v414 = vpack.c.b16 %v334, %v318
    %v415 = vpack.c.b16 %v335, %v319
    %v416 = vpack.c.b16 %v336, %v320
    %v417 = vpack.c.b16 %v337, %v321
    %v418 = vpack.c.b16 %v338, %v322
    %v419 = vpack.c.b16 %v339, %v323
    %v420 = vpack.c.b16 %v340, %v324
    %v421 = vpack.c.b16 %v341, %v325
    %v422 = vpack.c.b16 %v342, %v326
    %v423 = vpack.c.b16 %v343, %v327
    %v424 = vpack.c.b16 %v344, %v328
    %v425 = vpack.c.b16 %v345, %v329
    %v426 = vpack.c.b16 %v346, %v330
    %v427 = vpack.c.b16 %v347, %v331
    %v428 = vpack.c.b16 %v348, %v332
    %v429 = vpack.c.b16 %v349, %v333
    %v430 = vpack.c.b16 %v366, %v350
    %v431 = vpack.c.b16 %v367, %v351
    %v432 = vpack.c.b16 %v368, %v352
    %v433 = vpack.c.b16 %v369, %v353
    %v434 = vpack.c.b16 %v370, %v354
    %v435 = vpack.c.b16 %v371, %v355
    %v436 = vpack.c.b16 %v372, %v356
    %v437 = vpack.c.b16 %v373, %v357
    %v438 = vpack.c.b16 %v374, %v358
    %v439 = vpack.c.b16 %v375, %v359
    %v440 = vpack.c.b16 %v376, %v360
    %v441 = vpack.c.b16 %v377, %v361
    %v442 = vpack.c.b16 %v378, %v362
    %v443 = vpack.c.b16 %v379, %v363
    %v444 = vpack.c.b16 %v380, %v364
    %v445 = vpack.c.b16 %v381, %v365
    %vm510 = vcmask 523264
    %v512 = vsel %vm510, %v41, 0
    %514 = vmatprep.subr.bf16.mxu0 %v383
    %515 = vmatpush1.bf16.msra.mxu0 %v382
    %516 = vmatprep.subr.bf16.mxu0 %v399
    %517 = vmatpush1.bf16.msra.mxu0 %v398
    %518 = vmatprep.subr.bf16.mxu0 %v415
    %519 = vmatpush1.bf16.msra.mxu0 %v414
    %520 = vmatprep.subr.bf16.mxu0 %v431
    %521 = vmatpush1.bf16.msra.mxu0 %v430
    %522 = vmatprep.subr.bf16.mxu0 0
    %523 = vmatpush1.bf16.msra.mxu0 0
    %524 = vmatprep.subr.bf16.mxu0 0
    %525 = vmatpush1.bf16.msra.mxu0 0
    %526 = vmatprep.subr.bf16.mxu0 0
    %527 = vmatpush1.bf16.msra.mxu0 0
    %528 = vmatprep.subr.bf16.mxu0 0
    %529 = vmatpush1.bf16.msra.mxu0 0
    %530 = vmatprep.subr.bf16.mxu0 0
    %531 = vmatpush1.bf16.msra.mxu0 0
    %532 = vmatprep.subr.bf16.mxu0 0
    %533 = vmatpush1.bf16.msra.mxu0 0
    %534 = vmatprep.subr.bf16.mxu0 0
    %535 = vmatpush1.bf16.msra.mxu0 0
    %536 = vmatprep.subr.bf16.mxu0 0
    %537 = vmatpush1.bf16.msra.mxu0 0
    %538 = vmatprep.subr.bf16.mxu0 0
    %539 = vmatpush1.bf16.msra.mxu0 0
    %540 = vmatprep.subr.bf16.mxu0 0
    %541 = vmatpush1.bf16.msra.mxu0 0
    %542 = vmatprep.subr.bf16.mxu0 0
    %543 = vmatpush1.bf16.msra.mxu0 0
    %544 = vmatprep.subr.bf16.mxu0 0
    %545 = vmatpush1.bf16.msra.mxu0 0
    %546 = vmatprep.mubr.bf16.mxu0 0
    %547 = vmatmul.mubr.bf16.gmra.mrb[0].mxu0 %v512
    %v548 = vpop.f32.mrb[0].mxu0
    %v549 = vadd.f32 %v113, %v548
    %v550 = vpop.f32.mrb[0].mxu0
    %v551 = vadd.f32 %v117, %v550
    %v552 = vpop.f32.mrb[0].mxu0
    %v553 = vpop.f32.mrb[0].mxu0
    %554 = vdwg.mxu0
    %555 = vmatprep.subr.bf16.mxu0 %v385
    %556 = vmatpush1.bf16.msra.mxu0 %v384
    %557 = vmatprep.subr.bf16.mxu0 %v401
    %558 = vmatpush1.bf16.msra.mxu0 %v400
    %559 = vmatprep.subr.bf16.mxu0 %v417
    %560 = vmatpush1.bf16.msra.mxu0 %v416
    %561 = vmatprep.subr.bf16.mxu0 %v433
    %562 = vmatpush1.bf16.msra.mxu0 %v432
    %563 = vmatprep.subr.bf16.mxu0 0
    %564 = vmatpush1.bf16.msra.mxu0 0
    %565 = vmatprep.subr.bf16.mxu0 0
    %566 = vmatpush1.bf16.msra.mxu0 0
    %567 = vmatprep.subr.bf16.mxu0 0
    %568 = vmatpush1.bf16.msra.mxu0 0
    %569 = vmatprep.subr.bf16.mxu0 0
    %570 = vmatpush1.bf16.msra.mxu0 0
    %571 = vmatprep.subr.bf16.mxu0 0
    %572 = vmatpush1.bf16.msra.mxu0 0
    %573 = vmatprep.subr.bf16.mxu0 0
    %574 = vmatpush1.bf16.msra.mxu0 0
    %575 = vmatprep.subr.bf16.mxu0 0
    %576 = vmatpush1.bf16.msra.mxu0 0
    %577 = vmatprep.subr.bf16.mxu0 0
    %578 = vmatpush1.bf16.msra.mxu0 0
    %579 = vmatprep.subr.bf16.mxu0 0
    %580 = vmatpush1.bf16.msra.mxu0 0
    %581 = vmatprep.subr.bf16.mxu0 0
    %582 = vmatpush1.bf16.msra.mxu0 0
    %583 = vmatprep.subr.bf16.mxu0 0
    %584 = vmatpush1.bf16.msra.mxu0 0
    %585 = vmatprep.subr.bf16.mxu0 0
    %586 = vmatpush1.bf16.msra.mxu0 0
    %587 = vmatprep.mubr.bf16.mxu0 0
    %588 = vmatmul.mubr.bf16.gmra.mrb[0].mxu0 %v512
    %v589 = vpop.f32.mrb[0].mxu0
    %v590 = vadd.f32 %v121, %v589
    %v591 = vpop.f32.mrb[0].mxu0
    %v592 = vadd.f32 %v125, %v591
    %v593 = vpop.f32.mrb[0].mxu0
    %v594 = vpop.f32.mrb[0].mxu0
    %595 = vdwg.mxu0
    %596 = vmatprep.subr.bf16.mxu0 %v387
    %597 = vmatpush1.bf16.msra.mxu0 %v386
    %598 = vmatprep.subr.bf16.mxu0 %v403
    %599 = vmatpush1.bf16.msra.mxu0 %v402
    %600 = vmatprep.subr.bf16.mxu0 %v419
    %601 = vmatpush1.bf16.msra.mxu0 %v418
    %602 = vmatprep.subr.bf16.mxu0 %v435
    %603 = vmatpush1.bf16.msra.mxu0 %v434
    %604 = vmatprep.subr.bf16.mxu0 0
    %605 = vmatpush1.bf16.msra.mxu0 0
    %606 = vmatprep.subr.bf16.mxu0 0
    %607 = vmatpush1.bf16.msra.mxu0 0
    %608 = vmatprep.subr.bf16.mxu0 0
    %609 = vmatpush1.bf16.msra.mxu0 0
    %610 = vmatprep.subr.bf16.mxu0 0
    %611 = vmatpush1.bf16.msra.mxu0 0
    %612 = vmatprep.subr.bf16.mxu0 0
    %613 = vmatpush1.bf16.msra.mxu0 0
    %614 = vmatprep.subr.bf16.mxu0 0
    %615 = vmatpush1.bf16.msra.mxu0 0
    %616 = vmatprep.subr.bf16.mxu0 0
    %617 = vmatpush1.bf16.msra.mxu0 0
    %618 = vmatprep.subr.bf16.mxu0 0
    %619 = vmatpush1.bf16.msra.mxu0 0
    %620 = vmatprep.subr.bf16.mxu0 0
    %621 = vmatpush1.bf16.msra.mxu0 0
    %622 = vmatprep.subr.bf16.mxu0 0
    %623 = vmatpush1.bf16.msra.mxu0 0
    %624 = vmatprep.subr.bf16.mxu0 0
    %625 = vmatpush1.bf16.msra.mxu0 0
    %626 = vmatprep.subr.bf16.mxu0 0
    %627 = vmatpush1.bf16.msra.mxu0 0
    %628 = vmatprep.mubr.bf16.mxu0 0
    %629 = vmatmul.mubr.bf16.gmra.mrb[0].mxu0 %v512
    %v630 = vpop.f32.mrb[0].mxu0
    %v631 = vadd.f32 %v129, %v630
    %v632 = vpop.f32.mrb[0].mxu0
    %v633 = vadd.f32 %v133, %v632
    %v634 = vpop.f32.mrb[0].mxu0
    %v635 = vpop.f32.mrb[0].mxu0
    %636 = vdwg.mxu0
    %637 = vmatprep.subr.bf16.mxu0 %v389
    %638 = vmatpush1.bf16.msra.mxu0 %v388
    %639 = vmatprep.subr.bf16.mxu0 %v405
    %640 = vmatpush1.bf16.msra.mxu0 %v404
    %641 = vmatprep.subr.bf16.mxu0 %v421
    %642 = vmatpush1.bf16.msra.mxu0 %v420
    %643 = vmatprep.subr.bf16.mxu0 %v437
    %644 = vmatpush1.bf16.msra.mxu0 %v436
    %645 = vmatprep.subr.bf16.mxu0 0
    %646 = vmatpush1.bf16.msra.mxu0 0
    %647 = vmatprep.subr.bf16.mxu0 0
    %648 = vmatpush1.bf16.msra.mxu0 0
    %649 = vmatprep.subr.bf16.mxu0 0
    %650 = vmatpush1.bf16.msra.mxu0 0
    %651 = vmatprep.subr.bf16.mxu0 0
    %652 = vmatpush1.bf16.msra.mxu0 0
    %653 = vmatprep.subr.bf16.mxu0 0
    %654 = vmatpush1.bf16.msra.mxu0 0
    %655 = vmatprep.subr.bf16.mxu0 0
    %656 = vmatpush1.bf16.msra.mxu0 0
    %657 = vmatprep.subr.bf16.mxu0 0
    %658 = vmatpush1.bf16.msra.mxu0 0
    %659 = vmatprep.subr.bf16.mxu0 0
    %660 = vmatpush1.bf16.msra.mxu0 0
    %661 = vmatprep.subr.bf16.mxu0 0
    %662 = vmatpush1.bf16.msra.mxu0 0
    %663 = vmatprep.subr.bf16.mxu0 0
    %664 = vmatpush1.bf16.msra.mxu0 0
    %665 = vmatprep.subr.bf16.mxu0 0
    %666 = vmatpush1.bf16.msra.mxu0 0
    %667 = vmatprep.subr.bf16.mxu0 0
    %668 = vmatpush1.bf16.msra.mxu0 0
    %669 = vmatprep.mubr.bf16.mxu0 0
    %670 = vmatmul.mubr.bf16.gmra.mrb[0].mxu0 %v512
    %v671 = vpop.f32.mrb[0].mxu0
    %v672 = vadd.f32 %v137, %v671
    %v673 = vpop.f32.mrb[0].mxu0
    %v674 = vadd.f32 %v141, %v673
    %v675 = vpop.f32.mrb[0].mxu0
    %v676 = vpop.f32.mrb[0].mxu0
    %677 = vdwg.mxu0
    %678 = vmatprep.subr.bf16.mxu0 %v391
    %679 = vmatpush1.bf16.msra.mxu0 %v390
    %680 = vmatprep.subr.bf16.mxu0 %v407
    %681 = vmatpush1.bf16.msra.mxu0 %v406
    %682 = vmatprep.subr.bf16.mxu0 %v423
    %683 = vmatpush1.bf16.msra.mxu0 %v422
    %684 = vmatprep.subr.bf16.mxu0 %v439
    %685 = vmatpush1.bf16.msra.mxu0 %v438
    %686 = vmatprep.subr.bf16.mxu0 0
    %687 = vmatpush1.bf16.msra.mxu0 0
    %688 = vmatprep.subr.bf16.mxu0 0
    %689 = vmatpush1.bf16.msra.mxu0 0
    %690 = vmatprep.subr.bf16.mxu0 0
    %691 = vmatpush1.bf16.msra.mxu0 0
    %692 = vmatprep.subr.bf16.mxu0 0
    %693 = vmatpush1.bf16.msra.mxu0 0
    %694 = vmatprep.subr.bf16.mxu0 0
    %695 = vmatpush1.bf16.msra.mxu0 0
    %696 = vmatprep.subr.bf16.mxu0 0
    %697 = vmatpush1.bf16.msra.mxu0 0
    %698 = vmatprep.subr.bf16.mxu0 0
    %699 = vmatpush1.bf16.msra.mxu0 0
    %700 = vmatprep.subr.bf16.mxu0 0
    %701 = vmatpush1.bf16.msra.mxu0 0
    %702 = vmatprep.subr.bf16.mxu0 0
    %703 = vmatpush1.bf16.msra.mxu0 0
    %704 = vmatprep.subr.bf16.mxu0 0
    %705 = vmatpush1.bf16.msra.mxu0 0
    %706 = vmatprep.subr.bf16.mxu0 0
    %707 = vmatpush1.bf16.msra.mxu0 0
    %708 = vmatprep.subr.bf16.mxu0 0
    %709 = vmatpush1.bf16.msra.mxu0 0
    %710 = vmatprep.mubr.bf16.mxu0 0
    %711 = vmatmul.mubr.bf16.gmra.mrb[0].mxu0 %v512
    %v712 = vpop.f32.mrb[0].mxu0
    %v713 = vadd.f32 %v145, %v712
    %v714 = vpop.f32.mrb[0].mxu0
    %v715 = vadd.f32 %v149, %v714
    %v716 = vpop.f32.mrb[0].mxu0
    %v717 = vpop.f32.mrb[0].mxu0
    %718 = vdwg.mxu0
    %719 = vmatprep.subr.bf16.mxu0 %v393
    %720 = vmatpush1.bf16.msra.mxu0 %v392
    %721 = vmatprep.subr.bf16.mxu0 %v409
    %722 = vmatpush1.bf16.msra.mxu0 %v408
    %723 = vmatprep.subr.bf16.mxu0 %v425
    %724 = vmatpush1.bf16.msra.mxu0 %v424
    %725 = vmatprep.subr.bf16.mxu0 %v441
    %726 = vmatpush1.bf16.msra.mxu0 %v440
    %727 = vmatprep.subr.bf16.mxu0 0
    %728 = vmatpush1.bf16.msra.mxu0 0
    %729 = vmatprep.subr.bf16.mxu0 0
    %730 = vmatpush1.bf16.msra.mxu0 0
    %731 = vmatprep.subr.bf16.mxu0 0
    %732 = vmatpush1.bf16.msra.mxu0 0
    %733 = vmatprep.subr.bf16.mxu0 0
    %734 = vmatpush1.bf16.msra.mxu0 0
    %735 = vmatprep.subr.bf16.mxu0 0
    %736 = vmatpush1.bf16.msra.mxu0 0
    %737 = vmatprep.subr.bf16.mxu0 0
    %738 = vmatpush1.bf16.msra.mxu0 0
    %739 = vmatprep.subr.bf16.mxu0 0
    %740 = vmatpush1.bf16.msra.mxu0 0
    %741 = vmatprep.subr.bf16.mxu0 0
    %742 = vmatpush1.bf16.msra.mxu0 0
    %743 = vmatprep.subr.bf16.mxu0 0
    %744 = vmatpush1.bf16.msra.mxu0 0
    %745 = vmatprep.subr.bf16.mxu0 0
    %746 = vmatpush1.bf16.msra.mxu0 0
    %747 = vmatprep.subr.bf16.mxu0 0
    %748 = vmatpush1.bf16.msra.mxu0 0
    %749 = vmatprep.subr.bf16.mxu0 0
    %750 = vmatpush1.bf16.msra.mxu0 0
    %751 = vmatprep.mubr.bf16.mxu0 0
    %752 = vmatmul.mubr.bf16.gmra.mrb[0].mxu0 %v512
    %v753 = vpop.f32.mrb[0].mxu0
    %v754 = vadd.f32 %v153, %v753
    %v755 = vpop.f32.mrb[0].mxu0
    %v756 = vadd.f32 %v157, %v755
    %v757 = vpop.f32.mrb[0].mxu0
    %v758 = vpop.f32.mrb[0].mxu0
    %759 = vdwg.mxu0
    %760 = vmatprep.subr.bf16.mxu0 %v395
    %761 = vmatpush1.bf16.msra.mxu0 %v394
    %762 = vmatprep.subr.bf16.mxu0 %v411
    %763 = vmatpush1.bf16.msra.mxu0 %v410
    %764 = vmatprep.subr.bf16.mxu0 %v427
    %765 = vmatpush1.bf16.msra.mxu0 %v426
    %766 = vmatprep.subr.bf16.mxu0 %v443
    %767 = vmatpush1.bf16.msra.mxu0 %v442
    %768 = vmatprep.subr.bf16.mxu0 0
    %769 = vmatpush1.bf16.msra.mxu0 0
    %770 = vmatprep.subr.bf16.mxu0 0
    %771 = vmatpush1.bf16.msra.mxu0 0
    %772 = vmatprep.subr.bf16.mxu0 0
    %773 = vmatpush1.bf16.msra.mxu0 0
    %774 = vmatprep.subr.bf16.mxu0 0
    %775 = vmatpush1.bf16.msra.mxu0 0
    %776 = vmatprep.subr.bf16.mxu0 0
    %777 = vmatpush1.bf16.msra.mxu0 0
    %778 = vmatprep.subr.bf16.mxu0 0
    %779 = vmatpush1.bf16.msra.mxu0 0
    %780 = vmatprep.subr.bf16.mxu0 0
    %781 = vmatpush1.bf16.msra.mxu0 0
    %782 = vmatprep.subr.bf16.mxu0 0
    %783 = vmatpush1.bf16.msra.mxu0 0
    %784 = vmatprep.subr.bf16.mxu0 0
    %785 = vmatpush1.bf16.msra.mxu0 0
    %786 = vmatprep.subr.bf16.mxu0 0
    %787 = vmatpush1.bf16.msra.mxu0 0
    %788 = vmatprep.subr.bf16.mxu0 0
    %789 = vmatpush1.bf16.msra.mxu0 0
    %790 = vmatprep.subr.bf16.mxu0 0
    %791 = vmatpush1.bf16.msra.mxu0 0
    %792 = vmatprep.mubr.bf16.mxu0 0
    %793 = vmatmul.mubr.bf16.gmra.mrb[0].mxu0 %v512
    %v794 = vpop.f32.mrb[0].mxu0
    %v795 = vadd.f32 %v161, %v794
    %v796 = vpop.f32.mrb[0].mxu0
    %v797 = vadd.f32 %v165, %v796
    %v798 = vpop.f32.mrb[0].mxu0
    %v799 = vpop.f32.mrb[0].mxu0
    %800 = vdwg.mxu0
    %801 = vmatprep.subr.bf16.mxu0 %v397
    %802 = vmatpush1.bf16.msra.mxu0 %v396
    %803 = vmatprep.subr.bf16.mxu0 %v413
    %804 = vmatpush1.bf16.msra.mxu0 %v412
    %805 = vmatprep.subr.bf16.mxu0 %v429
    %806 = vmatpush1.bf16.msra.mxu0 %v428
    %807 = vmatprep.subr.bf16.mxu0 %v445
    %808 = vmatpush1.bf16.msra.mxu0 %v444
    %809 = vmatprep.subr.bf16.mxu0 0
    %810 = vmatpush1.bf16.msra.mxu0 0
    %811 = vmatprep.subr.bf16.mxu0 0
    %812 = vmatpush1.bf16.msra.mxu0 0
    %813 = vmatprep.subr.bf16.mxu0 0
    %814 = vmatpush1.bf16.msra.mxu0 0
    %815 = vmatprep.subr.bf16.mxu0 0
    %816 = vmatpush1.bf16.msra.mxu0 0
    %817 = vmatprep.subr.bf16.mxu0 0
    %818 = vmatpush1.bf16.msra.mxu0 0
    %819 = vmatprep.subr.bf16.mxu0 0
    %820 = vmatpush1.bf16.msra.mxu0 0
    %821 = vmatprep.subr.bf16.mxu0 0
    %822 = vmatpush1.bf16.msra.mxu0 0
    %823 = vmatprep.subr.bf16.mxu0 0
    %824 = vmatpush1.bf16.msra.mxu0 0
    %825 = vmatprep.subr.bf16.mxu0 0
    %826 = vmatpush1.bf16.msra.mxu0 0
    %827 = vmatprep.subr.bf16.mxu0 0
    %828 = vmatpush1.bf16.msra.mxu0 0
    %829 = vmatprep.subr.bf16.mxu0 0
    %830 = vmatpush1.bf16.msra.mxu0 0
    %831 = vmatprep.subr.bf16.mxu0 0
    %832 = vmatpush1.bf16.msra.mxu0 0
    %833 = vmatprep.mubr.bf16.mxu0 0
    %834 = vmatmul.mubr.bf16.gmra.mrb[0].mxu0 %v512
    %v835 = vpop.f32.mrb[0].mxu0
    %v836 = vadd.f32 %v169, %v835
    %v837 = vpop.f32.mrb[0].mxu0
    %v838 = vadd.f32 %v173, %v837
    %v839 = vpop.f32.mrb[0].mxu0
    %v840 = vpop.f32.mrb[0].mxu0
    %841 = vdwg.mxu0
    %v858 = vcombine.low %v549, %v551
    %v859 = vcombine.low %v590, %v592
    %v861 = vunpack.c.l.s4 1983009808
    %v862 = vunpack.c.0.s8 %v861
    %v863 = vlaneseq
    %v864 = vshrl.u32 %v863, 7
    %v865 = vsub.s32 %v862, %v864
    %v866 = vrot.slane %v858, %v865
    %v868 = vunpack.c.l.s4 1983009808
    %v869 = vunpack.c.0.s8 %v868
    %v870 = vlaneseq
    %v871 = vshrl.u32 %v870, 7
    %v872 = vsub.s32 %v869, %v871
    %v873 = vrot.slane %v859, %v872
    %v874 = vcombine.low %v866, %v873
    %v875 = vcombine.low %v631, %v633
    %v876 = vcombine.low %v672, %v674
    %v878 = vunpack.c.l.s4 1983009808
    %v879 = vunpack.c.0.s8 %v878
    %v880 = vlaneseq
    %v881 = vshrl.u32 %v880, 7
    %v882 = vsub.s32 %v879, %v881
    %v883 = vrot.slane %v875, %v882
    %v885 = vunpack.c.l.s4 1983009808
    %v886 = vunpack.c.0.s8 %v885
    %v887 = vlaneseq
    %v888 = vshrl.u32 %v887, 7
    %v889 = vsub.s32 %v886, %v888
    %v890 = vrot.slane %v876, %v889
    %v891 = vcombine.low %v883, %v890
    %v892 = vcombine.low %v713, %v715
    %v893 = vcombine.low %v754, %v756
    %v895 = vunpack.c.l.s4 1983009808
    %v896 = vunpack.c.0.s8 %v895
    %v897 = vlaneseq
    %v898 = vshrl.u32 %v897, 7
    %v899 = vsub.s32 %v896, %v898
    %v900 = vrot.slane %v892, %v899
    %v902 = vunpack.c.l.s4 1983009808
    %v903 = vunpack.c.0.s8 %v902
    %v904 = vlaneseq
    %v905 = vshrl.u32 %v904, 7
    %v906 = vsub.s32 %v903, %v905
    %v907 = vrot.slane %v893, %v906
    %v908 = vcombine.low %v900, %v907
    %v909 = vcombine.low %v795, %v797
    %v910 = vcombine.low %v836, %v838
    %v912 = vunpack.c.l.s4 1983009808
    %v913 = vunpack.c.0.s8 %v912
    %v914 = vlaneseq
    %v915 = vshrl.u32 %v914, 7
    %v916 = vsub.s32 %v913, %v915
    %v917 = vrot.slane %v909, %v916
    %v919 = vunpack.c.l.s4 1983009808
    %v920 = vunpack.c.0.s8 %v919
    %v921 = vlaneseq
    %v922 = vshrl.u32 %v921, 7
    %v923 = vsub.s32 %v920, %v922
    %v924 = vrot.slane %v910, %v923
    %v925 = vcombine.low %v917, %v924
    %930 = vst [vmem:[%s3] sm:$0xff] %v874
    %931 = vst [vmem:[%s3 + $0x8] sm:$0xff] %v891
    %932 = vst [vmem:[%s3 + $0x10] sm:$0xff] %v908
    %933 = vst [vmem:[%s3 + $0x18] sm:$0xff] %v925
    // Predicated region
    $region22: #{generator_forward.4} parent=1 // pred_check
      _
    $region23: #{generator_forward.4} parent=1 // pred_check_branch
      %935 = sbr.rel (0) target = $region25
    $region24: #{generator_forward.4} parent=1 // pred_region
      _
    $region25: #{generator_forward.4} parent=1 // pred_fallthru
      _
    // Predicated region
    $region26: #{generator_forward.4} parent=1 // pred_check
      _
    $region27: #{generator_forward.4} parent=1 // pred_check_branch
      %937 = sbr.rel (0) target = $region29
    $region28: #{generator_forward.4} parent=1 // pred_region
      _
    $region29: #{generator_forward.4} parent=1 // pred_fallthru
      _
    %938 = vsyncpa [#allocation3], 1
    %939 = vsyncpa [#allocation5], 1

// kernel: generator_forward.5
$region0: #{generator_forward.5}
  #allocation0 [shape = 'u32[]', space=smem, size = 0x4, offset = 0x4, fixed_abs, tag = 'smem constant byte address 0x4 - core index']
  #allocation1 [shape = 'u32[144,128]{1,0:T(1,128)}', space=vmem, size = 0x12000, scoped, tag = 'internal scratch']
  #allocation2 [shape = 'f32[32,256]{1,0:T(8,128)}', space=vmem, size = 0x8000, scoped, tag = 'scratch operand']
  %s0 = inlined_call_operand.vmem [shape: bf16[4,32,512], index: 0, kind: input, shape index: {}]
  %s1 = inlined_call_operand.vmem [shape: bf16[4,512,64], index: 1, kind: input, shape index: {}]
  %s2 = inlined_call_operand.hbm [shape: f32[1,64], index: 2, kind: input, shape index: {}]
  %s3 = inlined_call_operand.hbm [shape: f32[1,64], index: 3, kind: input, shape index: {}]
  %s4 = inlined_call_operand.vmem [shape: bf16[32,256], index: 4, kind: output, shape index: {}]
  %s5 = sld [smem:[#allocation0]]
  $region34: #{generator_forward.5} parent=0
    _
  %s7 = ssub.s32 1, %s5
  %s8 = scalar_select 0, %s7, %s5
  $region1: #{generator_forward.5} parent=0
    #allocation3 [shape = 'u8[512]{0}', space=vmem, size = 0x400, scoped, tag = 'input window, operand 2, single buffered']
    #allocation4 [shape = 's32[1]{0}', space=sflag, size = 0x4, scoped, tag = 'scoped memory for generator_forward.5']
    #allocation5 [shape = 'u8[512]{0}', space=vmem, size = 0x400, scoped, tag = 'input window, operand 3, single buffered']
    #allocation6 [shape = 's32[1]{0}', space=sflag, size = 0x4, scoped, tag = 'scoped memory for generator_forward.5']
    %9 = vsyncpa [#allocation4], 0
    %10 = vsyncpa [#allocation6], 0
    // Predicated region
    $region2: #{generator_forward.5} parent=1 // pred_check
      _
    $region3: #{generator_forward.5} parent=1 // pred_check_branch
      %12 = sbr.rel (0) target = $region5
    $region4: #{generator_forward.5} parent=1 // pred_region
      _
    $region5: #{generator_forward.5} parent=1 // pred_fallthru
      _
    // Predicated region
    $region6: #{generator_forward.5} parent=1 // pred_check
      _
    $region7: #{generator_forward.5} parent=1 // pred_check_branch
      %14 = sbr.rel (0) target = $region9
    $region8: #{generator_forward.5} parent=1 // pred_region
      _
    $region9: #{generator_forward.5} parent=1 // pred_fallthru
      _
    // Predicated region
    $region10: #{generator_forward.5} parent=1 // pred_check
      _
    $region11: #{generator_forward.5} parent=1 // pred_check_branch
      %16 = sbr.rel (0) target = $region13
    $region12: #{generator_forward.5} parent=1 // pred_region
      %s18 = ssub.s32 16, 16
      %19 = vsyncadd [#allocation4], %s18
      %s21 = sshll.u32 [#allocation3], 4
      %s22 = int_to_ptr.vmem [resolvable:$true] %s21
      %24 = dma.hbm_to_vmem [thread:$0]  %s2, 16, %s22, [#allocation4]
    $region13: #{generator_forward.5} parent=1 // pred_fallthru
      _
    // Predicated region
    $region14: #{generator_forward.5} parent=1 // pred_check
      _
    $region15: #{generator_forward.5} parent=1 // pred_check_branch
      %26 = sbr.rel (0) target = $region17
    $region16: #{generator_forward.5} parent=1 // pred_region
      %s28 = ssub.s32 16, 16
      %29 = vsyncadd [#allocation6], %s28
      %s31 = sshll.u32 [#allocation5], 4
      %s32 = int_to_ptr.vmem [resolvable:$true] %s31
      %34 = dma.hbm_to_vmem [thread:$0]  %s3, 16, %s32, [#allocation6]
    $region17: #{generator_forward.5} parent=1 // pred_fallthru
      _
    // Predicated region
    $region18: #{generator_forward.5} parent=1 // pred_check
      _
    $region19: #{generator_forward.5} parent=1 // pred_check_branch
      %36 = sbr.rel (0) target = $region21
    $region20: #{generator_forward.5} parent=1 // pred_region
      %37 = dma.done [#allocation4], 16
    $region21: #{generator_forward.5} parent=1 // pred_fallthru
      _
    // Predicated region
    $region22: #{generator_forward.5} parent=1 // pred_check
      _
    $region23: #{generator_forward.5} parent=1 // pred_check_branch
      %39 = sbr.rel (0) target = $region25
    $region24: #{generator_forward.5} parent=1 // pred_region
      %40 = dma.done [#allocation6], 16
    $region25: #{generator_forward.5} parent=1 // pred_fallthru
      _
    %v42 = vld [vmem:[%s0] sm:$0xff]
    %v43 = vld [vmem:[%s0 + $0x8] sm:$0xff]
    %v44 = vld [vmem:[%s0 + $0x10] sm:$0xff]
    %v45 = vld [vmem:[%s0 + $0x18] sm:$0xff]
    %v46 = vld [vmem:[%s0 + $0x20] sm:$0xff]
    %v47 = vld [vmem:[%s0 + $0x28] sm:$0xff]
    %v48 = vld [vmem:[%s0 + $0x30] sm:$0xff]
    %v49 = vld [vmem:[%s0 + $0x38] sm:$0xff]
    %v50 = vld [vmem:[%s1] sm:$0xf]
    %v51 = vld [vmem:[%s1 + $0x4] sm:$0xf]
    %v52 = vld [vmem:[%s1 + $0x8] sm:$0xf]
    %v53 = vld [vmem:[%s1 + $0xc] sm:$0xf]
    %v54 = vld [vmem:[%s1 + $0x10] sm:$0xf]
    %v55 = vld [vmem:[%s1 + $0x14] sm:$0xf]
    %v56 = vld [vmem:[%s1 + $0x18] sm:$0xf]
    %v57 = vld [vmem:[%s1 + $0x1c] sm:$0xf]
    %v58 = vld [vmem:[%s1 + $0x20] sm:$0xf]
    %v59 = vld [vmem:[%s1 + $0x24] sm:$0xf]
    %v60 = vld [vmem:[%s1 + $0x28] sm:$0xf]
    %v61 = vld [vmem:[%s1 + $0x2c] sm:$0xf]
    %v62 = vld [vmem:[%s1 + $0x30] sm:$0xf]
    %v63 = vld [vmem:[%s1 + $0x34] sm:$0xf]
    %v64 = vld [vmem:[%s1 + $0x38] sm:$0xf]
    %v65 = vld [vmem:[%s1 + $0x3c] sm:$0xf]
    %v66 = vld [vmem:[%s1 + $0x40] sm:$0xf]
    %v67 = vld [vmem:[%s1 + $0x44] sm:$0xf]
    %v68 = vld [vmem:[%s1 + $0x48] sm:$0xf]
    %v69 = vld [vmem:[%s1 + $0x4c] sm:$0xf]
    %v70 = vld [vmem:[%s1 + $0x50] sm:$0xf]
    %v71 = vld [vmem:[%s1 + $0x54] sm:$0xf]
    %v72 = vld [vmem:[%s1 + $0x58] sm:$0xf]
    %v73 = vld [vmem:[%s1 + $0x5c] sm:$0xf]
    %v74 = vld [vmem:[%s1 + $0x60] sm:$0xf]
    %v75 = vld [vmem:[%s1 + $0x64] sm:$0xf]
    %v76 = vld [vmem:[%s1 + $0x68] sm:$0xf]
    %v77 = vld [vmem:[%s1 + $0x6c] sm:$0xf]
    %v78 = vld [vmem:[%s1 + $0x70] sm:$0xf]
    %v79 = vld [vmem:[%s1 + $0x74] sm:$0xf]
    %v80 = vld [vmem:[%s1 + $0x78] sm:$0xf]
    %v81 = vld [vmem:[%s1 + $0x7c] sm:$0xf]
    %v82 = vld [vmem:[%s1 + $0x80] sm:$0xf]
    %v83 = vld [vmem:[%s1 + $0x84] sm:$0xf]
    %v84 = vld [vmem:[%s1 + $0x88] sm:$0xf]
    %v85 = vld [vmem:[%s1 + $0x8c] sm:$0xf]
    %v86 = vld [vmem:[%s1 + $0x90] sm:$0xf]
    %v87 = vld [vmem:[%s1 + $0x94] sm:$0xf]
    %v88 = vld [vmem:[%s1 + $0x98] sm:$0xf]
    %v89 = vld [vmem:[%s1 + $0x9c] sm:$0xf]
    %v90 = vld [vmem:[%s1 + $0xa0] sm:$0xf]
    %v91 = vld [vmem:[%s1 + $0xa4] sm:$0xf]
    %v92 = vld [vmem:[%s1 + $0xa8] sm:$0xf]
    %v93 = vld [vmem:[%s1 + $0xac] sm:$0xf]
    %v94 = vld [vmem:[%s1 + $0xb0] sm:$0xf]
    %v95 = vld [vmem:[%s1 + $0xb4] sm:$0xf]
    %v96 = vld [vmem:[%s1 + $0xb8] sm:$0xf]
    %v97 = vld [vmem:[%s1 + $0xbc] sm:$0xf]
    %v98 = vld [vmem:[%s1 + $0xc0] sm:$0xf]
    %v99 = vld [vmem:[%s1 + $0xc4] sm:$0xf]
    %v100 = vld [vmem:[%s1 + $0xc8] sm:$0xf]
    %v101 = vld [vmem:[%s1 + $0xcc] sm:$0xf]
    %v102 = vld [vmem:[%s1 + $0xd0] sm:$0xf]
    %v103 = vld [vmem:[%s1 + $0xd4] sm:$0xf]
    %v104 = vld [vmem:[%s1 + $0xd8] sm:$0xf]
    %v105 = vld [vmem:[%s1 + $0xdc] sm:$0xf]
    %v106 = vld [vmem:[%s1 + $0xe0] sm:$0xf]
    %v107 = vld [vmem:[%s1 + $0xe4] sm:$0xf]
    %v108 = vld [vmem:[%s1 + $0xe8] sm:$0xf]
    %v109 = vld [vmem:[%s1 + $0xec] sm:$0xf]
    %v110 = vld [vmem:[%s1 + $0xf0] sm:$0xf]
    %v111 = vld [vmem:[%s1 + $0xf4] sm:$0xf]
    %v112 = vld [vmem:[%s1 + $0xf8] sm:$0xf]
    %v113 = vld [vmem:[%s1 + $0xfc] sm:$0xf]
    %v122 = vunpack.c.l.b16 %v42
    %v123 = vunpack.c.h.b16 %v42
    %v124 = vunpack.c.l.b16 %v43
    %v125 = vunpack.c.h.b16 %v43
    %v126 = vunpack.c.l.b16 %v44
    %v127 = vunpack.c.h.b16 %v44
    %v128 = vunpack.c.l.b16 %v45
    %v129 = vunpack.c.h.b16 %v45
    %v130 = vunpack.c.l.b16 %v46
    %v131 = vunpack.c.h.b16 %v46
    %v132 = vunpack.c.l.b16 %v47
    %v133 = vunpack.c.h.b16 %v47
    %v134 = vunpack.c.l.b16 %v48
    %v135 = vunpack.c.h.b16 %v48
    %v136 = vunpack.c.l.b16 %v49
    %v137 = vunpack.c.h.b16 %v49
    %v138 = vpack.c.b16 %v126, %v122
    %v139 = vpack.c.b16 %v127, %v123
    %v140 = vpack.c.b16 %v128, %v124
    %v141 = vpack.c.b16 %v129, %v125
    %v142 = vpack.c.b16 %v134, %v130
    %v143 = vpack.c.b16 %v135, %v131
    %v144 = vpack.c.b16 %v136, %v132
    %v145 = vpack.c.b16 %v137, %v133
    %v218 = vunpack.c.l.b16 %v50
    %v219 = vunpack.c.l.b16 %v51
    %v220 = vunpack.c.l.b16 %v52
    %v221 = vunpack.c.l.b16 %v53
    %v222 = vunpack.c.l.b16 %v54
    %v223 = vunpack.c.l.b16 %v55
    %v224 = vunpack.c.l.b16 %v56
    %v225 = vunpack.c.l.b16 %v57
    %v226 = vunpack.c.l.b16 %v58
    %v227 = vunpack.c.l.b16 %v59
    %v228 = vunpack.c.l.b16 %v60
    %v229 = vunpack.c.l.b16 %v61
    %v230 = vunpack.c.l.b16 %v62
    %v231 = vunpack.c.l.b16 %v63
    %v232 = vunpack.c.l.b16 %v64
    %v233 = vunpack.c.l.b16 %v65
    %v234 = vunpack.c.l.b16 %v66
    %v235 = vunpack.c.l.b16 %v67
    %v236 = vunpack.c.l.b16 %v68
    %v237 = vunpack.c.l.b16 %v69
    %v238 = vunpack.c.l.b16 %v70
    %v239 = vunpack.c.l.b16 %v71
    %v240 = vunpack.c.l.b16 %v72
    %v241 = vunpack.c.l.b16 %v73
    %v242 = vunpack.c.l.b16 %v74
    %v243 = vunpack.c.l.b16 %v75
    %v244 = vunpack.c.l.b16 %v76
    %v245 = vunpack.c.l.b16 %v77
    %v246 = vunpack.c.l.b16 %v78
    %v247 = vunpack.c.l.b16 %v79
    %v248 = vunpack.c.l.b16 %v80
    %v249 = vunpack.c.l.b16 %v81
    %v250 = vunpack.c.l.b16 %v82
    %v251 = vunpack.c.l.b16 %v83
    %v252 = vunpack.c.l.b16 %v84
    %v253 = vunpack.c.l.b16 %v85
    %v254 = vunpack.c.l.b16 %v86
    %v255 = vunpack.c.l.b16 %v87
    %v256 = vunpack.c.l.b16 %v88
    %v257 = vunpack.c.l.b16 %v89
    %v258 = vunpack.c.l.b16 %v90
    %v259 = vunpack.c.l.b16 %v91
    %v260 = vunpack.c.l.b16 %v92
    %v261 = vunpack.c.l.b16 %v93
    %v262 = vunpack.c.l.b16 %v94
    %v263 = vunpack.c.l.b16 %v95
    %v264 = vunpack.c.l.b16 %v96
    %v265 = vunpack.c.l.b16 %v97
    %v266 = vunpack.c.l.b16 %v98
    %v267 = vunpack.c.l.b16 %v99
    %v268 = vunpack.c.l.b16 %v100
    %v269 = vunpack.c.l.b16 %v101
    %v270 = vunpack.c.l.b16 %v102
    %v271 = vunpack.c.l.b16 %v103
    %v272 = vunpack.c.l.b16 %v104
    %v273 = vunpack.c.l.b16 %v105
    %v274 = vunpack.c.l.b16 %v106
    %v275 = vunpack.c.l.b16 %v107
    %v276 = vunpack.c.l.b16 %v108
    %v277 = vunpack.c.l.b16 %v109
    %v278 = vunpack.c.l.b16 %v110
    %v279 = vunpack.c.l.b16 %v111
    %v280 = vunpack.c.l.b16 %v112
    %v281 = vunpack.c.l.b16 %v113
    %v282 = vpack.c.b16 %v219, %v218
    %v283 = vpack.c.b16 %v221, %v220
    %v284 = vpack.c.b16 %v223, %v222
    %v285 = vpack.c.b16 %v225, %v224
    %v286 = vpack.c.b16 %v227, %v226
    %v287 = vpack.c.b16 %v229, %v228
    %v288 = vpack.c.b16 %v231, %v230
    %v289 = vpack.c.b16 %v233, %v232
    %v290 = vpack.c.b16 %v235, %v234
    %v291 = vpack.c.b16 %v237, %v236
    %v292 = vpack.c.b16 %v239, %v238
    %v293 = vpack.c.b16 %v241, %v240
    %v294 = vpack.c.b16 %v243, %v242
    %v295 = vpack.c.b16 %v245, %v244
    %v296 = vpack.c.b16 %v247, %v246
    %v297 = vpack.c.b16 %v249, %v248
    %v298 = vpack.c.b16 %v251, %v250
    %v299 = vpack.c.b16 %v253, %v252
    %v300 = vpack.c.b16 %v255, %v254
    %v301 = vpack.c.b16 %v257, %v256
    %v302 = vpack.c.b16 %v259, %v258
    %v303 = vpack.c.b16 %v261, %v260
    %v304 = vpack.c.b16 %v263, %v262
    %v305 = vpack.c.b16 %v265, %v264
    %v306 = vpack.c.b16 %v267, %v266
    %v307 = vpack.c.b16 %v269, %v268
    %v308 = vpack.c.b16 %v271, %v270
    %v309 = vpack.c.b16 %v273, %v272
    %v310 = vpack.c.b16 %v275, %v274
    %v311 = vpack.c.b16 %v277, %v276
    %v312 = vpack.c.b16 %v279, %v278
    %v313 = vpack.c.b16 %v281, %v280
    %346 = vmatprep.subr.bf16.mxu0 0
    %347 = vmatpush1.bf16.msra.mxu0 %v282
    %348 = vmatprep.subr.bf16.mxu0 0
    %349 = vmatpush1.bf16.msra.mxu0 %v283
    %350 = vmatprep.subr.bf16.mxu0 0
    %351 = vmatpush1.bf16.msra.mxu0 %v284
    %352 = vmatprep.subr.bf16.mxu0 0
    %353 = vmatpush1.bf16.msra.mxu0 %v285
    %354 = vmatprep.subr.bf16.mxu0 0
    %355 = vmatpush1.bf16.msra.mxu0 %v286
    %356 = vmatprep.subr.bf16.mxu0 0
    %357 = vmatpush1.bf16.msra.mxu0 %v287
    %358 = vmatprep.subr.bf16.mxu0 0
    %359 = vmatpush1.bf16.msra.mxu0 %v288
    %360 = vmatprep.subr.bf16.mxu0 0
    %361 = vmatpush1.bf16.msra.mxu0 %v289
    %362 = vmatprep.subr.bf16.mxu0 0
    %363 = vmatpush1.bf16.msra.mxu0 %v290
    %364 = vmatprep.subr.bf16.mxu0 0
    %365 = vmatpush1.bf16.msra.mxu0 %v291
    %366 = vmatprep.subr.bf16.mxu0 0
    %367 = vmatpush1.bf16.msra.mxu0 %v292
    %368 = vmatprep.subr.bf16.mxu0 0
    %369 = vmatpush1.bf16.msra.mxu0 %v293
    %370 = vmatprep.subr.bf16.mxu0 0
    %371 = vmatpush1.bf16.msra.mxu0 %v294
    %372 = vmatprep.subr.bf16.mxu0 0
    %373 = vmatpush1.bf16.msra.mxu0 %v295
    %374 = vmatprep.subr.bf16.mxu0 0
    %375 = vmatpush1.bf16.msra.mxu0 %v296
    %376 = vmatprep.subr.bf16.mxu0 0
    %377 = vmatpush1.bf16.msra.mxu0 %v297
    %378 = vmatprep.mubr.bf16.mxu0 %v139
    %379 = vmatmul.mubr.bf16.gmra.mrb[0].mxu0 %v138
    %v380 = vpop.f32.mrb[0].mxu0
    %v381 = vadd.f32 0.0, %v380
    %v382 = vpop.f32.mrb[0].mxu0
    %v383 = vpop.f32.mrb[0].mxu0
    %v384 = vadd.f32 0.0, %v383
    %v385 = vpop.f32.mrb[0].mxu0
    %386 = vmatprep.mubr.bf16.mxu0 %v143
    %387 = vmatmul.mubr.bf16.gmra.mrb[0].mxu0 %v142
    %v388 = vpop.f32.mrb[0].mxu0
    %v389 = vadd.f32 0.0, %v388
    %v390 = vpop.f32.mrb[0].mxu0
    %v391 = vpop.f32.mrb[0].mxu0
    %v392 = vadd.f32 0.0, %v391
    %v393 = vpop.f32.mrb[0].mxu0
    %394 = vdwg.mxu0
    %395 = vmatprep.subr.bf16.mxu0 0
    %396 = vmatpush1.bf16.msra.mxu0 %v298
    %397 = vmatprep.subr.bf16.mxu0 0
    %398 = vmatpush1.bf16.msra.mxu0 %v299
    %399 = vmatprep.subr.bf16.mxu0 0
    %400 = vmatpush1.bf16.msra.mxu0 %v300
    %401 = vmatprep.subr.bf16.mxu0 0
    %402 = vmatpush1.bf16.msra.mxu0 %v301
    %403 = vmatprep.subr.bf16.mxu0 0
    %404 = vmatpush1.bf16.msra.mxu0 %v302
    %405 = vmatprep.subr.bf16.mxu0 0
    %406 = vmatpush1.bf16.msra.mxu0 %v303
    %407 = vmatprep.subr.bf16.mxu0 0
    %408 = vmatpush1.bf16.msra.mxu0 %v304
    %409 = vmatprep.subr.bf16.mxu0 0
    %410 = vmatpush1.bf16.msra.mxu0 %v305
    %411 = vmatprep.subr.bf16.mxu0 0
    %412 = vmatpush1.bf16.msra.mxu0 %v306
    %413 = vmatprep.subr.bf16.mxu0 0
    %414 = vmatpush1.bf16.msra.mxu0 %v307
    %415 = vmatprep.subr.bf16.mxu0 0
    %416 = vmatpush1.bf16.msra.mxu0 %v308
    %417 = vmatprep.subr.bf16.mxu0 0
    %418 = vmatpush1.bf16.msra.mxu0 %v309
    %419 = vmatprep.subr.bf16.mxu0 0
    %420 = vmatpush1.bf16.msra.mxu0 %v310
    %421 = vmatprep.subr.bf16.mxu0 0
    %422 = vmatpush1.bf16.msra.mxu0 %v311
    %423 = vmatprep.subr.bf16.mxu0 0
    %424 = vmatpush1.bf16.msra.mxu0 %v312
    %425 = vmatprep.subr.bf16.mxu0 0
    %426 = vmatpush1.bf16.msra.mxu0 %v313
    %427 = vmatprep.mubr.bf16.mxu0 %v141
    %428 = vmatmul.mubr.bf16.gmra.mrb[0].mxu0 %v140
    %v429 = vpop.f32.mrb[0].mxu0
    %v430 = vadd.f32 %v381, %v429
    %v431 = vpop.f32.mrb[0].mxu0
    %v432 = vpop.f32.mrb[0].mxu0
    %v433 = vadd.f32 %v384, %v432
    %v434 = vpop.f32.mrb[0].mxu0
    %435 = vmatprep.mubr.bf16.mxu0 %v145
    %436 = vmatmul.mubr.bf16.gmra.mrb[0].mxu0 %v144
    %v437 = vpop.f32.mrb[0].mxu0
    %v438 = vadd.f32 %v389, %v437
    %v439 = vpop.f32.mrb[0].mxu0
    %v440 = vpop.f32.mrb[0].mxu0
    %v441 = vadd.f32 %v392, %v440
    %v442 = vpop.f32.mrb[0].mxu0
    %443 = vdwg.mxu0
    %vm444 = vcmask 523264
    %445 = vst.msk [vmem:[#allocation2] sm:$0xff] %vm444, %v430
    %446 = vst.msk [vmem:[#allocation2 + $0x10] sm:$0xff] %vm444, %v433
    %447 = vst.msk [vmem:[#allocation2 + $0x20] sm:$0xff] %vm444, %v438
    %448 = vst.msk [vmem:[#allocation2 + $0x30] sm:$0xff] %vm444, %v441
    %v449 = vsel %vm444, %v430, 0.0
    %v450 = vsel %vm444, %v433, 0.0
    %v451 = vadd.f32 %v449, %v450
    %v452 = vsel %vm444, %v438, 0.0
    %v453 = vadd.f32 %v451, %v452
    %v454 = vsel %vm444, %v441, 0.0
    %v455 = vadd.f32 %v453, %v454
    %v456 = vrot.slane %v455, 4
    %v457 = vadd.f32 %v455, %v456
    %v458 = vrot.slane %v457, 2
    %v459 = vadd.f32 %v457, %v458
    %v460 = vrot.slane %v459, 1
    %v461 = vadd.f32 %v459, %v460
    %v462 = vadd.f32 %v461, 0.0
    %v463 = vmul.f32 %v430, %v430
    %v464 = vmul.f32 %v433, %v433
    %v465 = vmul.f32 %v438, %v438
    %v466 = vmul.f32 %v441, %v441
    %v467 = vsel %vm444, %v463, 0.0
    %v468 = vsel %vm444, %v464, 0.0
    %v469 = vadd.f32 %v467, %v468
    %v470 = vsel %vm444, %v465, 0.0
    %v471 = vadd.f32 %v469, %v470
    %v472 = vsel %vm444, %v466, 0.0
    %v473 = vadd.f32 %v471, %v472
    %v474 = vrot.slane %v473, 4
    %v475 = vadd.f32 %v473, %v474
    %v476 = vrot.slane %v475, 2
    %v477 = vadd.f32 %v475, %v476
    %v478 = vrot.slane %v477, 1
    %v479 = vadd.f32 %v477, %v478
    %v480 = vadd.f32 %v479, 0.0
    %s481 = scalar_lea.vmem %s0, 64
    %v482 = vld [vmem:[%s481] sm:$0xff]
    %v483 = vld [vmem:[%s481 + $0x8] sm:$0xff]
    %v484 = vld [vmem:[%s481 + $0x10] sm:$0xff]
    %v485 = vld [vmem:[%s481 + $0x18] sm:$0xff]
    %v486 = vld [vmem:[%s481 + $0x20] sm:$0xff]
    %v487 = vld [vmem:[%s481 + $0x28] sm:$0xff]
    %v488 = vld [vmem:[%s481 + $0x30] sm:$0xff]
    %v489 = vld [vmem:[%s481 + $0x38] sm:$0xff]
    %s490 = scalar_lea.vmem %s1, 256
    %v491 = vld [vmem:[%s490] sm:$0xf]
    %v492 = vld [vmem:[%s490 + $0x4] sm:$0xf]
    %v493 = vld [vmem:[%s490 + $0x8] sm:$0xf]
    %v494 = vld [vmem:[%s490 + $0xc] sm:$0xf]
    %v495 = vld [vmem:[%s490 + $0x10] sm:$0xf]
    %v496 = vld [vmem:[%s490 + $0x14] sm:$0xf]
    %v497 = vld [vmem:[%s490 + $0x18] sm:$0xf]
    %v498 = vld [vmem:[%s490 + $0x1c] sm:$0xf]
    %v499 = vld [vmem:[%s490 + $0x20] sm:$0xf]
    %v500 = vld [vmem:[%s490 + $0x24] sm:$0xf]
    %v501 = vld [vmem:[%s490 + $0x28] sm:$0xf]
    %v502 = vld [vmem:[%s490 + $0x2c] sm:$0xf]
    %v503 = vld [vmem:[%s490 + $0x30] sm:$0xf]
    %v504 = vld [vmem:[%s490 + $0x34] sm:$0xf]
    %v505 = vld [vmem:[%s490 + $0x38] sm:$0xf]
    %v506 = vld [vmem:[%s490 + $0x3c] sm:$0xf]
    %v507 = vld [vmem:[%s490 + $0x40] sm:$0xf]
    %v508 = vld [vmem:[%s490 + $0x44] sm:$0xf]
    %v509 = vld [vmem:[%s490 + $0x48] sm:$0xf]
    %v510 = vld [vmem:[%s490 + $0x4c] sm:$0xf]
    %v511 = vld [vmem:[%s490 + $0x50] sm:$0xf]
    %v512 = vld [vmem:[%s490 + $0x54] sm:$0xf]
    %v513 = vld [vmem:[%s490 + $0x58] sm:$0xf]
    %v514 = vld [vmem:[%s490 + $0x5c] sm:$0xf]
    %v515 = vld [vmem:[%s490 + $0x60] sm:$0xf]
    %v516 = vld [vmem:[%s490 + $0x64] sm:$0xf]
    %v517 = vld [vmem:[%s490 + $0x68] sm:$0xf]
    %v518 = vld [vmem:[%s490 + $0x6c] sm:$0xf]
    %v519 = vld [vmem:[%s490 + $0x70] sm:$0xf]
    %v520 = vld [vmem:[%s490 + $0x74] sm:$0xf]
    %v521 = vld [vmem:[%s490 + $0x78] sm:$0xf]
    %v522 = vld [vmem:[%s490 + $0x7c] sm:$0xf]
    %v523 = vld [vmem:[%s490 + $0x80] sm:$0xf]
    %v524 = vld [vmem:[%s490 + $0x84] sm:$0xf]
    %v525 = vld [vmem:[%s490 + $0x88] sm:$0xf]
    %v526 = vld [vmem:[%s490 + $0x8c] sm:$0xf]
    %v527 = vld [vmem:[%s490 + $0x90] sm:$0xf]
    %v528 = vld [vmem:[%s490 + $0x94] sm:$0xf]
    %v529 = vld [vmem:[%s490 + $0x98] sm:$0xf]
    %v530 = vld [vmem:[%s490 + $0x9c] sm:$0xf]
    %v531 = vld [vmem:[%s490 + $0xa0] sm:$0xf]
    %v532 = vld [vmem:[%s490 + $0xa4] sm:$0xf]
    %v533 = vld [vmem:[%s490 + $0xa8] sm:$0xf]
    %v534 = vld [vmem:[%s490 + $0xac] sm:$0xf]
    %v535 = vld [vmem:[%s490 + $0xb0] sm:$0xf]
    %v536 = vld [vmem:[%s490 + $0xb4] sm:$0xf]
    %v537 = vld [vmem:[%s490 + $0xb8] sm:$0xf]
    %v538 = vld [vmem:[%s490 + $0xbc] sm:$0xf]
    %v539 = vld [vmem:[%s490 + $0xc0] sm:$0xf]
    %v540 = vld [vmem:[%s490 + $0xc4] sm:$0xf]
    %v541 = vld [vmem:[%s490 + $0xc8] sm:$0xf]
    %v542 = vld [vmem:[%s490 + $0xcc] sm:$0xf]
    %v543 = vld [vmem:[%s490 + $0xd0] sm:$0xf]
    %v544 = vld [vmem:[%s490 + $0xd4] sm:$0xf]
    %v545 = vld [vmem:[%s490 + $0xd8] sm:$0xf]
    %v546 = vld [vmem:[%s490 + $0xdc] sm:$0xf]
    %v547 = vld [vmem:[%s490 + $0xe0] sm:$0xf]
    %v548 = vld [vmem:[%s490 + $0xe4] sm:$0xf]
    %v549 = vld [vmem:[%s490 + $0xe8] sm:$0xf]
    %v550 = vld [vmem:[%s490 + $0xec] sm:$0xf]
    %v551 = vld [vmem:[%s490 + $0xf0] sm:$0xf]
    %v552 = vld [vmem:[%s490 + $0xf4] sm:$0xf]
    %v553 = vld [vmem:[%s490 + $0xf8] sm:$0xf]
    %v554 = vld [vmem:[%s490 + $0xfc] sm:$0xf]
    %v563 = vunpack.c.l.b16 %v482
    %v564 = vunpack.c.h.b16 %v482
    %v565 = vunpack.c.l.b16 %v483
    %v566 = vunpack.c.h.b16 %v483
    %v567 = vunpack.c.l.b16 %v484
    %v568 = vunpack.c.h.b16 %v484
    %v569 = vunpack.c.l.b16 %v485
    %v570 = vunpack.c.h.b16 %v485
    %v571 = vunpack.c.l.b16 %v486
    %v572 = vunpack.c.h.b16 %v486
    %v573 = vunpack.c.l.b16 %v487
    %v574 = vunpack.c.h.b16 %v487
    %v575 = vunpack.c.l.b16 %v488
    %v576 = vunpack.c.h.b16 %v488
    %v577 = vunpack.c.l.b16 %v489
    %v578 = vunpack.c.h.b16 %v489
    %v579 = vpack.c.b16 %v567, %v563
    %v580 = vpack.c.b16 %v568, %v564
    %v581 = vpack.c.b16 %v569, %v565
    %v582 = vpack.c.b16 %v570, %v566
    %v583 = vpack.c.b16 %v575, %v571
    %v584 = vpack.c.b16 %v576, %v572
    %v585 = vpack.c.b16 %v577, %v573
    %v586 = vpack.c.b16 %v578, %v574
    %v659 = vunpack.c.l.b16 %v491
    %v660 = vunpack.c.l.b16 %v492
    %v661 = vunpack.c.l.b16 %v493
    %v662 = vunpack.c.l.b16 %v494
    %v663 = vunpack.c.l.b16 %v495
    %v664 = vunpack.c.l.b16 %v496
    %v665 = vunpack.c.l.b16 %v497
    %v666 = vunpack.c.l.b16 %v498
    %v667 = vunpack.c.l.b16 %v499
    %v668 = vunpack.c.l.b16 %v500
    %v669 = vunpack.c.l.b16 %v501
    %v670 = vunpack.c.l.b16 %v502
    %v671 = vunpack.c.l.b16 %v503
    %v672 = vunpack.c.l.b16 %v504
    %v673 = vunpack.c.l.b16 %v505
    %v674 = vunpack.c.l.b16 %v506
    %v675 = vunpack.c.l.b16 %v507
    %v676 = vunpack.c.l.b16 %v508
    %v677 = vunpack.c.l.b16 %v509
    %v678 = vunpack.c.l.b16 %v510
    %v679 = vunpack.c.l.b16 %v511
    %v680 = vunpack.c.l.b16 %v512
    %v681 = vunpack.c.l.b16 %v513
    %v682 = vunpack.c.l.b16 %v514
    %v683 = vunpack.c.l.b16 %v515
    %v684 = vunpack.c.l.b16 %v516
    %v685 = vunpack.c.l.b16 %v517
    %v686 = vunpack.c.l.b16 %v518
    %v687 = vunpack.c.l.b16 %v519
    %v688 = vunpack.c.l.b16 %v520
    %v689 = vunpack.c.l.b16 %v521
    %v690 = vunpack.c.l.b16 %v522
    %v691 = vunpack.c.l.b16 %v523
    %v692 = vunpack.c.l.b16 %v524
    %v693 = vunpack.c.l.b16 %v525
    %v694 = vunpack.c.l.b16 %v526
    %v695 = vunpack.c.l.b16 %v527
    %v696 = vunpack.c.l.b16 %v528
    %v697 = vunpack.c.l.b16 %v529
    %v698 = vunpack.c.l.b16 %v530
    %v699 = vunpack.c.l.b16 %v531
    %v700 = vunpack.c.l.b16 %v532
    %v701 = vunpack.c.l.b16 %v533
    %v702 = vunpack.c.l.b16 %v534
    %v703 = vunpack.c.l.b16 %v535
    %v704 = vunpack.c.l.b16 %v536
    %v705 = vunpack.c.l.b16 %v537
    %v706 = vunpack.c.l.b16 %v538
    %v707 = vunpack.c.l.b16 %v539
    %v708 = vunpack.c.l.b16 %v540
    %v709 = vunpack.c.l.b16 %v541
    %v710 = vunpack.c.l.b16 %v542
    %v711 = vunpack.c.l.b16 %v543
    %v712 = vunpack.c.l.b16 %v544
    %v713 = vunpack.c.l.b16 %v545
    %v714 = vunpack.c.l.b16 %v546
    %v715 = vunpack.c.l.b16 %v547
    %v716 = vunpack.c.l.b16 %v548
    %v717 = vunpack.c.l.b16 %v549
    %v718 = vunpack.c.l.b16 %v550
    %v719 = vunpack.c.l.b16 %v551
    %v720 = vunpack.c.l.b16 %v552
    %v721 = vunpack.c.l.b16 %v553
    %v722 = vunpack.c.l.b16 %v554
    %v723 = vpack.c.b16 %v660, %v659
    %v724 = vpack.c.b16 %v662, %v661
    %v725 = vpack.c.b16 %v664, %v663
    %v726 = vpack.c.b16 %v666, %v665
    %v727 = vpack.c.b16 %v668, %v667
    %v728 = vpack.c.b16 %v670, %v669
    %v729 = vpack.c.b16 %v672, %v671
    %v730 = vpack.c.b16 %v674, %v673
    %v731 = vpack.c.b16 %v676, %v675
    %v732 = vpack.c.b16 %v678, %v677
    %v733 = vpack.c.b16 %v680, %v679
    %v734 = vpack.c.b16 %v682, %v681
    %v735 = vpack.c.b16 %v684, %v683
    %v736 = vpack.c.b16 %v686, %v685
    %v737 = vpack.c.b16 %v688, %v687
    %v738 = vpack.c.b16 %v690, %v689
    %v739 = vpack.c.b16 %v692, %v691
    %v740 = vpack.c.b16 %v694, %v693
    %v741 = vpack.c.b16 %v696, %v695
    %v742 = vpack.c.b16 %v698, %v697
    %v743 = vpack.c.b16 %v700, %v699
    %v744 = vpack.c.b16 %v702, %v701
    %v745 = vpack.c.b16 %v704, %v703
    %v746 = vpack.c.b16 %v706, %v705
    %v747 = vpack.c.b16 %v708, %v707
    %v748 = vpack.c.b16 %v710, %v709
    %v749 = vpack.c.b16 %v712, %v711
    %v750 = vpack.c.b16 %v714, %v713
    %v751 = vpack.c.b16 %v716, %v715
    %v752 = vpack.c.b16 %v718, %v717
    %v753 = vpack.c.b16 %v720, %v719
    %v754 = vpack.c.b16 %v722, %v721
    %787 = vmatprep.subr.bf16.mxu0 0
    %788 = vmatpush1.bf16.msra.mxu0 %v723
    %789 = vmatprep.subr.bf16.mxu0 0
    %790 = vmatpush1.bf16.msra.mxu0 %v724
    %791 = vmatprep.subr.bf16.mxu0 0
    %792 = vmatpush1.bf16.msra.mxu0 %v725
    %793 = vmatprep.subr.bf16.mxu0 0
    %794 = vmatpush1.bf16.msra.mxu0 %v726
    %795 = vmatprep.subr.bf16.mxu0 0
    %796 = vmatpush1.bf16.msra.mxu0 %v727
    %797 = vmatprep.subr.bf16.mxu0 0
    %798 = vmatpush1.bf16.msra.mxu0 %v728
    %799 = vmatprep.subr.bf16.mxu0 0
    %800 = vmatpush1.bf16.msra.mxu0 %v729
    %801 = vmatprep.subr.bf16.mxu0 0
    %802 = vmatpush1.bf16.msra.mxu0 %v730
    %803 = vmatprep.subr.bf16.mxu0 0
    %804 = vmatpush1.bf16.msra.mxu0 %v731
    %805 = vmatprep.subr.bf16.mxu0 0
    %806 = vmatpush1.bf16.msra.mxu0 %v732
    %807 = vmatprep.subr.bf16.mxu0 0
    %808 = vmatpush1.bf16.msra.mxu0 %v733
    %809 = vmatprep.subr.bf16.mxu0 0
    %810 = vmatpush1.bf16.msra.mxu0 %v734
    %811 = vmatprep.subr.bf16.mxu0 0
    %812 = vmatpush1.bf16.msra.mxu0 %v735
    %813 = vmatprep.subr.bf16.mxu0 0
    %814 = vmatpush1.bf16.msra.mxu0 %v736
    %815 = vmatprep.subr.bf16.mxu0 0
    %816 = vmatpush1.bf16.msra.mxu0 %v737
    %817 = vmatprep.subr.bf16.mxu0 0
    %818 = vmatpush1.bf16.msra.mxu0 %v738
    %819 = vmatprep.mubr.bf16.mxu0 %v580
    %820 = vmatmul.mubr.bf16.gmra.mrb[0].mxu0 %v579
    %v821 = vpop.f32.mrb[0].mxu0
    %v822 = vadd.f32 0.0, %v821
    %v823 = vpop.f32.mrb[0].mxu0
    %v824 = vpop.f32.mrb[0].mxu0
    %v825 = vadd.f32 0.0, %v824
    %v826 = vpop.f32.mrb[0].mxu0
    %827 = vmatprep.mubr.bf16.mxu0 %v584
    %828 = vmatmul.mubr.bf16.gmra.mrb[0].mxu0 %v583
    %v829 = vpop.f32.mrb[0].mxu0
    %v830 = vadd.f32 0.0, %v829
    %v831 = vpop.f32.mrb[0].mxu0
    %v832 = vpop.f32.mrb[0].mxu0
    %v833 = vadd.f32 0.0, %v832
    %v834 = vpop.f32.mrb[0].mxu0
    %835 = vdwg.mxu0
    %836 = vmatprep.subr.bf16.mxu0 0
    %837 = vmatpush1.bf16.msra.mxu0 %v739
    %838 = vmatprep.subr.bf16.mxu0 0
    %839 = vmatpush1.bf16.msra.mxu0 %v740
    %840 = vmatprep.subr.bf16.mxu0 0
    %841 = vmatpush1.bf16.msra.mxu0 %v741
    %842 = vmatprep.subr.bf16.mxu0 0
    %843 = vmatpush1.bf16.msra.mxu0 %v742
    %844 = vmatprep.subr.bf16.mxu0 0
    %845 = vmatpush1.bf16.msra.mxu0 %v743
    %846 = vmatprep.subr.bf16.mxu0 0
    %847 = vmatpush1.bf16.msra.mxu0 %v744
    %848 = vmatprep.subr.bf16.mxu0 0
    %849 = vmatpush1.bf16.msra.mxu0 %v745
    %850 = vmatprep.subr.bf16.mxu0 0
    %851 = vmatpush1.bf16.msra.mxu0 %v746
    %852 = vmatprep.subr.bf16.mxu0 0
    %853 = vmatpush1.bf16.msra.mxu0 %v747
    %854 = vmatprep.subr.bf16.mxu0 0
    %855 = vmatpush1.bf16.msra.mxu0 %v748
    %856 = vmatprep.subr.bf16.mxu0 0
    %857 = vmatpush1.bf16.msra.mxu0 %v749
    %858 = vmatprep.subr.bf16.mxu0 0
    %859 = vmatpush1.bf16.msra.mxu0 %v750
    %860 = vmatprep.subr.bf16.mxu0 0
    %861 = vmatpush1.bf16.msra.mxu0 %v751
    %862 = vmatprep.subr.bf16.mxu0 0
    %863 = vmatpush1.bf16.msra.mxu0 %v752
    %864 = vmatprep.subr.bf16.mxu0 0
    %865 = vmatpush1.bf16.msra.mxu0 %v753
    %866 = vmatprep.subr.bf16.mxu0 0
    %867 = vmatpush1.bf16.msra.mxu0 %v754
    %868 = vmatprep.mubr.bf16.mxu0 %v582
    %869 = vmatmul.mubr.bf16.gmra.mrb[0].mxu0 %v581
    %v870 = vpop.f32.mrb[0].mxu0
    %v871 = vadd.f32 %v822, %v870
    %v872 = vpop.f32.mrb[0].mxu0
    %v873 = vpop.f32.mrb[0].mxu0
    %v874 = vadd.f32 %v825, %v873
    %v875 = vpop.f32.mrb[0].mxu0
    %876 = vmatprep.mubr.bf16.mxu0 %v586
    %877 = vmatmul.mubr.bf16.gmra.mrb[0].mxu0 %v585
    %v878 = vpop.f32.mrb[0].mxu0
    %v879 = vadd.f32 %v830, %v878
    %v880 = vpop.f32.mrb[0].mxu0
    %v881 = vpop.f32.mrb[0].mxu0
    %v882 = vadd.f32 %v833, %v881
    %v883 = vpop.f32.mrb[0].mxu0
    %884 = vdwg.mxu0
    %889 = vrot.lane.b32.xlu0 %v871, 64
    %v890 = vpop.permute.xlu0 %889
    %891 = vrot.lane.b32.xlu0 %v874, 64
    %v892 = vpop.permute.xlu0 %891
    %893 = vrot.lane.b32.xlu0 %v879, 64
    %v894 = vpop.permute.xlu0 %893
    %895 = vrot.lane.b32.xlu0 %v882, 64
    %v896 = vpop.permute.xlu0 %895
    %vm901 = vcmask 1048064
    %902 = vst.msk [vmem:[#allocation2] sm:$0xff] %vm901, %v890
    %903 = vst.msk [vmem:[#allocation2 + $0x10] sm:$0xff] %vm901, %v892
    %904 = vst.msk [vmem:[#allocation2 + $0x20] sm:$0xff] %vm901, %v894
    %905 = vst.msk [vmem:[#allocation2 + $0x30] sm:$0xff] %vm901, %v896
    %v906 = vsel %vm444, %v871, 0.0
    %v907 = vsel %vm444, %v874, 0.0
    %v908 = vadd.f32 %v906, %v907
    %v909 = vsel %vm444, %v879, 0.0
    %v910 = vadd.f32 %v908, %v909
    %v911 = vsel %vm444, %v882, 0.0
    %v912 = vadd.f32 %v910, %v911
    %v913 = vrot.slane %v912, 4
    %v914 = vadd.f32 %v912, %v913
    %v915 = vrot.slane %v914, 2
    %v916 = vadd.f32 %v914, %v915
    %v917 = vrot.slane %v916, 1
    %v918 = vadd.f32 %v916, %v917
    %v919 = vadd.f32 %v462, %v918
    %v920 = vmul.f32 %v871, %v871
    %v921 = vmul.f32 %v874, %v874
    %v922 = vmul.f32 %v879, %v879
    %v923 = vmul.f32 %v882, %v882
    %v924 = vsel %vm444, %v920, 0.0
    %v925 = vsel %vm444, %v921, 0.0
    %v926 = vadd.f32 %v924, %v925
    %v927 = vsel %vm444, %v922, 0.0
    %v928 = vadd.f32 %v926, %v927
    %v929 = vsel %vm444, %v923, 0.0
    %v930 = vadd.f32 %v928, %v929
    %v931 = vrot.slane %v930, 4
    %v932 = vadd.f32 %v930, %v931
    %v933 = vrot.slane %v932, 2
    %v934 = vadd.f32 %v932, %v933
    %v935 = vrot.slane %v934, 1
    %v936 = vadd.f32 %v934, %v935
    %v937 = vadd.f32 %v480, %v936
    %s938 = scalar_lea.vmem %s0, 128
    %v939 = vld [vmem:[%s938] sm:$0xff]
    %v940 = vld [vmem:[%s938 + $0x8] sm:$0xff]
    %v941 = vld [vmem:[%s938 + $0x10] sm:$0xff]
    %v942 = vld [vmem:[%s938 + $0x18] sm:$0xff]
    %v943 = vld [vmem:[%s938 + $0x20] sm:$0xff]
    %v944 = vld [vmem:[%s938 + $0x28] sm:$0xff]
    %v945 = vld [vmem:[%s938 + $0x30] sm:$0xff]
    %v946 = vld [vmem:[%s938 + $0x38] sm:$0xff]
    %s947 = scalar_lea.vmem %s1, 512
    %v948 = vld [vmem:[%s947] sm:$0xf]
    %v949 = vld [vmem:[%s947 + $0x4] sm:$0xf]
    %v950 = vld [vmem:[%s947 + $0x8] sm:$0xf]
    %v951 = vld [vmem:[%s947 + $0xc] sm:$0xf]
    %v952 = vld [vmem:[%s947 + $0x10] sm:$0xf]
    %v953 = vld [vmem:[%s947 + $0x14] sm:$0xf]
    %v954 = vld [vmem:[%s947 + $0x18] sm:$0xf]
    %v955 = vld [vmem:[%s947 + $0x1c] sm:$0xf]
    %v956 = vld [vmem:[%s947 + $0x20] sm:$0xf]
    %v957 = vld [vmem:[%s947 + $0x24] sm:$0xf]
    %v958 = vld [vmem:[%s947 + $0x28] sm:$0xf]
    %v959 = vld [vmem:[%s947 + $0x2c] sm:$0xf]
    %v960 = vld [vmem:[%s947 + $0x30] sm:$0xf]
    %v961 = vld [vmem:[%s947 + $0x34] sm:$0xf]
    %v962 = vld [vmem:[%s947 + $0x38] sm:$0xf]
    %v963 = vld [vmem:[%s947 + $0x3c] sm:$0xf]
    %v964 = vld [vmem:[%s947 + $0x40] sm:$0xf]
    %v965 = vld [vmem:[%s947 + $0x44] sm:$0xf]
    %v966 = vld [vmem:[%s947 + $0x48] sm:$0xf]
    %v967 = vld [vmem:[%s947 + $0x4c] sm:$0xf]
    %v968 = vld [vmem:[%s947 + $0x50] sm:$0xf]
    %v969 = vld [vmem:[%s947 + $0x54] sm:$0xf]
    %v970 = vld [vmem:[%s947 + $0x58] sm:$0xf]
    %v971 = vld [vmem:[%s947 + $0x5c] sm:$0xf]
    %v972 = vld [vmem:[%s947 + $0x60] sm:$0xf]
    %v973 = vld [vmem:[%s947 + $0x64] sm:$0xf]
    %v974 = vld [vmem:[%s947 + $0x68] sm:$0xf]
    %v975 = vld [vmem:[%s947 + $0x6c] sm:$0xf]
    %v976 = vld [vmem:[%s947 + $0x70] sm:$0xf]
    %v977 = vld [vmem:[%s947 + $0x74] sm:$0xf]
    %v978 = vld [vmem:[%s947 + $0x78] sm:$0xf]
    %v979 = vld [vmem:[%s947 + $0x7c] sm:$0xf]
    %v980 = vld [vmem:[%s947 + $0x80] sm:$0xf]
    %v981 = vld [vmem:[%s947 + $0x84] sm:$0xf]
    %v982 = vld [vmem:[%s947 + $0x88] sm:$0xf]
    %v983 = vld [vmem:[%s947 + $0x8c] sm:$0xf]
    %v984 = vld [vmem:[%s947 + $0x90] sm:$0xf]
    %v985 = vld [vmem:[%s947 + $0x94] sm:$0xf]
    %v986 = vld [vmem:[%s947 + $0x98] sm:$0xf]
    %v987 = vld [vmem:[%s947 + $0x9c] sm:$0xf]
    %v988 = vld [vmem:[%s947 + $0xa0] sm:$0xf]
    %v989 = vld [vmem:[%s947 + $0xa4] sm:$0xf]
    %v990 = vld [vmem:[%s947 + $0xa8] sm:$0xf]
    %v991 = vld [vmem:[%s947 + $0xac] sm:$0xf]
    %v992 = vld [vmem:[%s947 + $0xb0] sm:$0xf]
    %v993 = vld [vmem:[%s947 + $0xb4] sm:$0xf]
    %v994 = vld [vmem:[%s947 + $0xb8] sm:$0xf]
    %v995 = vld [vmem:[%s947 + $0xbc] sm:$0xf]
    %v996 = vld [vmem:[%s947 + $0xc0] sm:$0xf]
    %v997 = vld [vmem:[%s947 + $0xc4] sm:$0xf]
    %v998 = vld [vmem:[%s947 + $0xc8] sm:$0xf]
    %v999 = vld [vmem:[%s947 + $0xcc] sm:$0xf]
    %v1000 = vld [vmem:[%s947 + $0xd0] sm:$0xf]
    %v1001 = vld [vmem:[%s947 + $0xd4] sm:$0xf]
    %v1002 = vld [vmem:[%s947 + $0xd8] sm:$0xf]
    %v1003 = vld [vmem:[%s947 + $0xdc] sm:$0xf]
    %v1004 = vld [vmem:[%s947 + $0xe0] sm:$0xf]
    %v1005 = vld [vmem:[%s947 + $0xe4] sm:$0xf]
    %v1006 = vld [vmem:[%s947 + $0xe8] sm:$0xf]
    %v1007 = vld [vmem:[%s947 + $0xec] sm:$0xf]
    %v1008 = vld [vmem:[%s947 + $0xf0] sm:$0xf]
    %v1009 = vld [vmem:[%s947 + $0xf4] sm:$0xf]
    %v1010 = vld [vmem:[%s947 + $0xf8] sm:$0xf]
    %v1011 = vld [vmem:[%s947 + $0xfc] sm:$0xf]
    %v1020 = vunpack.c.l.b16 %v939
    %v1021 = vunpack.c.h.b16 %v939
    %v1022 = vunpack.c.l.b16 %v940
    %v1023 = vunpack.c.h.b16 %v940
    %v1024 = vunpack.c.l.b16 %v941
    %v1025 = vunpack.c.h.b16 %v941
    %v1026 = vunpack.c.l.b16 %v942
    %v1027 = vunpack.c.h.b16 %v942
    %v1028 = vunpack.c.l.b16 %v943
    %v1029 = vunpack.c.h.b16 %v943
    %v1030 = vunpack.c.l.b16 %v944
    %v1031 = vunpack.c.h.b16 %v944
    %v1032 = vunpack.c.l.b16 %v945
    %v1033 = vunpack.c.h.b16 %v945
    %v1034 = vunpack.c.l.b16 %v946
    %v1035 = vunpack.c.h.b16 %v946
    %v1036 = vpack.c.b16 %v1024, %v1020
    %v1037 = vpack.c.b16 %v1025, %v1021
    %v1038 = vpack.c.b16 %v1026, %v1022
    %v1039 = vpack.c.b16 %v1027, %v1023
    %v1040 = vpack.c.b16 %v1032, %v1028
    %v1041 = vpack.c.b16 %v1033, %v1029
    %v1042 = vpack.c.b16 %v1034, %v1030
    %v1043 = vpack.c.b16 %v1035, %v1031
    %v1116 = vunpack.c.l.b16 %v948
    %v1117 = vunpack.c.l.b16 %v949
    %v1118 = vunpack.c.l.b16 %v950
    %v1119 = vunpack.c.l.b16 %v951
    %v1120 = vunpack.c.l.b16 %v952
    %v1121 = vunpack.c.l.b16 %v953
    %v1122 = vunpack.c.l.b16 %v954
    %v1123 = vunpack.c.l.b16 %v955
    %v1124 = vunpack.c.l.b16 %v956
    %v1125 = vunpack.c.l.b16 %v957
    %v1126 = vunpack.c.l.b16 %v958
    %v1127 = vunpack.c.l.b16 %v959
    %v1128 = vunpack.c.l.b16 %v960
    %v1129 = vunpack.c.l.b16 %v961
    %v1130 = vunpack.c.l.b16 %v962
    %v1131 = vunpack.c.l.b16 %v963
    %v1132 = vunpack.c.l.b16 %v964
    %v1133 = vunpack.c.l.b16 %v965
    %v1134 = vunpack.c.l.b16 %v966
    %v1135 = vunpack.c.l.b16 %v967
    %v1136 = vunpack.c.l.b16 %v968
    %v1137 = vunpack.c.l.b16 %v969
    %v1138 = vunpack.c.l.b16 %v970
    %v1139 = vunpack.c.l.b16 %v971
    %v1140 = vunpack.c.l.b16 %v972
    %v1141 = vunpack.c.l.b16 %v973
    %v1142 = vunpack.c.l.b16 %v974
    %v1143 = vunpack.c.l.b16 %v975
    %v1144 = vunpack.c.l.b16 %v976
    %v1145 = vunpack.c.l.b16 %v977
    %v1146 = vunpack.c.l.b16 %v978
    %v1147 = vunpack.c.l.b16 %v979
    %v1148 = vunpack.c.l.b16 %v980
    %v1149 = vunpack.c.l.b16 %v981
    %v1150 = vunpack.c.l.b16 %v982
    %v1151 = vunpack.c.l.b16 %v983
    %v1152 = vunpack.c.l.b16 %v984
    %v1153 = vunpack.c.l.b16 %v985
    %v1154 = vunpack.c.l.b16 %v986
    %v1155 = vunpack.c.l.b16 %v987
    %v1156 = vunpack.c.l.b16 %v988
    %v1157 = vunpack.c.l.b16 %v989
    %v1158 = vunpack.c.l.b16 %v990
    %v1159 = vunpack.c.l.b16 %v991
    %v1160 = vunpack.c.l.b16 %v992
    %v1161 = vunpack.c.l.b16 %v993
    %v1162 = vunpack.c.l.b16 %v994
    %v1163 = vunpack.c.l.b16 %v995
    %v1164 = vunpack.c.l.b16 %v996
    %v1165 = vunpack.c.l.b16 %v997
    %v1166 = vunpack.c.l.b16 %v998
    %v1167 = vunpack.c.l.b16 %v999
    %v1168 = vunpack.c.l.b16 %v1000
    %v1169 = vunpack.c.l.b16 %v1001
    %v1170 = vunpack.c.l.b16 %v1002
    %v1171 = vunpack.c.l.b16 %v1003
    %v1172 = vunpack.c.l.b16 %v1004
    %v1173 = vunpack.c.l.b16 %v1005
    %v1174 = vunpack.c.l.b16 %v1006
    %v1175 = vunpack.c.l.b16 %v1007
    %v1176 = vunpack.c.l.b16 %v1008
    %v1177 = vunpack.c.l.b16 %v1009
    %v1178 = vunpack.c.l.b16 %v1010
    %v1179 = vunpack.c.l.b16 %v1011
    %v1180 = vpack.c.b16 %v1117, %v1116
    %v1181 = vpack.c.b16 %v1119, %v1118
    %v1182 = vpack.c.b16 %v1121, %v1120
    %v1183 = vpack.c.b16 %v1123, %v1122
    %v1184 = vpack.c.b16 %v1125, %v1124
    %v1185 = vpack.c.b16 %v1127, %v1126
    %v1186 = vpack.c.b16 %v1129, %v1128
    %v1187 = vpack.c.b16 %v1131, %v1130
    %v1188 = vpack.c.b16 %v1133, %v1132
    %v1189 = vpack.c.b16 %v1135, %v1134
    %v1190 = vpack.c.b16 %v1137, %v1136
    %v1191 = vpack.c.b16 %v1139, %v1138
    %v1192 = vpack.c.b16 %v1141, %v1140
    %v1193 = vpack.c.b16 %v1143, %v1142
    %v1194 = vpack.c.b16 %v1145, %v1144
    %v1195 = vpack.c.b16 %v1147, %v1146
    %v1196 = vpack.c.b16 %v1149, %v1148
    %v1197 = vpack.c.b16 %v1151, %v1150
    %v1198 = vpack.c.b16 %v1153, %v1152
    %v1199 = vpack.c.b16 %v1155, %v1154
    %v1200 = vpack.c.b16 %v1157, %v1156
    %v1201 = vpack.c.b16 %v1159, %v1158
    %v1202 = vpack.c.b16 %v1161, %v1160
    %v1203 = vpack.c.b16 %v1163, %v1162
    %v1204 = vpack.c.b16 %v1165, %v1164
    %v1205 = vpack.c.b16 %v1167, %v1166
    %v1206 = vpack.c.b16 %v1169, %v1168
    %v1207 = vpack.c.b16 %v1171, %v1170
    %v1208 = vpack.c.b16 %v1173, %v1172
    %v1209 = vpack.c.b16 %v1175, %v1174
    %v1210 = vpack.c.b16 %v1177, %v1176
    %v1211 = vpack.c.b16 %v1179, %v1178
    %1244 = vmatprep.subr.bf16.mxu0 0
    %1245 = vmatpush1.bf16.msra.mxu0 %v1180
    %1246 = vmatprep.subr.bf16.mxu0 0
    %1247 = vmatpush1.bf16.msra.mxu0 %v1181
    %1248 = vmatprep.subr.bf16.mxu0 0
    %1249 = vmatpush1.bf16.msra.mxu0 %v1182
    %1250 = vmatprep.subr.bf16.mxu0 0
    %1251 = vmatpush1.bf16.msra.mxu0 %v1183
    %1252 = vmatprep.subr.bf16.mxu0 0
    %1253 = vmatpush1.bf16.msra.mxu0 %v1184
    %1254 = vmatprep.subr.bf16.mxu0 0
    %1255 = vmatpush1.bf16.msra.mxu0 %v1185
    %1256 = vmatprep.subr.bf16.mxu0 0
    %1257 = vmatpush1.bf16.msra.mxu0 %v1186
    %1258 = vmatprep.subr.bf16.mxu0 0
    %1259 = vmatpush1.bf16.msra.mxu0 %v1187
    %1260 = vmatprep.subr.bf16.mxu0 0
    %1261 = vmatpush1.bf16.msra.mxu0 %v1188
    %1262 = vmatprep.subr.bf16.mxu0 0
    %1263 = vmatpush1.bf16.msra.mxu0 %v1189
    %1264 = vmatprep.subr.bf16.mxu0 0
    %1265 = vmatpush1.bf16.msra.mxu0 %v1190
    %1266 = vmatprep.subr.bf16.mxu0 0
    %1267 = vmatpush1.bf16.msra.mxu0 %v1191
    %1268 = vmatprep.subr.bf16.mxu0 0
    %1269 = vmatpush1.bf16.msra.mxu0 %v1192
    %1270 = vmatprep.subr.bf16.mxu0 0
    %1271 = vmatpush1.bf16.msra.mxu0 %v1193
    %1272 = vmatprep.subr.bf16.mxu0 0
    %1273 = vmatpush1.bf16.msra.mxu0 %v1194
    %1274 = vmatprep.subr.bf16.mxu0 0
    %1275 = vmatpush1.bf16.msra.mxu0 %v1195
    %1276 = vmatprep.mubr.bf16.mxu0 %v1037
    %1277 = vmatmul.mubr.bf16.gmra.mrb[0].mxu0 %v1036
    %v1278 = vpop.f32.mrb[0].mxu0
    %v1279 = vadd.f32 0.0, %v1278
    %v1280 = vpop.f32.mrb[0].mxu0
    %v1281 = vpop.f32.mrb[0].mxu0
    %v1282 = vadd.f32 0.0, %v1281
    %v1283 = vpop.f32.mrb[0].mxu0
    %1284 = vmatprep.mubr.bf16.mxu0 %v1041
    %1285 = vmatmul.mubr.bf16.gmra.mrb[0].mxu0 %v1040
    %v1286 = vpop.f32.mrb[0].mxu0
    %v1287 = vadd.f32 0.0, %v1286
    %v1288 = vpop.f32.mrb[0].mxu0
    %v1289 = vpop.f32.mrb[0].mxu0
    %v1290 = vadd.f32 0.0, %v1289
    %v1291 = vpop.f32.mrb[0].mxu0
    %1292 = vdwg.mxu0
    %1293 = vmatprep.subr.bf16.mxu0 0
    %1294 = vmatpush1.bf16.msra.mxu0 %v1196
    %1295 = vmatprep.subr.bf16.mxu0 0
    %1296 = vmatpush1.bf16.msra.mxu0 %v1197
    %1297 = vmatprep.subr.bf16.mxu0 0
    %1298 = vmatpush1.bf16.msra.mxu0 %v1198
    %1299 = vmatprep.subr.bf16.mxu0 0
    %1300 = vmatpush1.bf16.msra.mxu0 %v1199
    %1301 = vmatprep.subr.bf16.mxu0 0
    %1302 = vmatpush1.bf16.msra.mxu0 %v1200
    %1303 = vmatprep.subr.bf16.mxu0 0
    %1304 = vmatpush1.bf16.msra.mxu0 %v1201
    %1305 = vmatprep.subr.bf16.mxu0 0
    %1306 = vmatpush1.bf16.msra.mxu0 %v1202
    %1307 = vmatprep.subr.bf16.mxu0 0
    %1308 = vmatpush1.bf16.msra.mxu0 %v1203
    %1309 = vmatprep.subr.bf16.mxu0 0
    %1310 = vmatpush1.bf16.msra.mxu0 %v1204
    %1311 = vmatprep.subr.bf16.mxu0 0
    %1312 = vmatpush1.bf16.msra.mxu0 %v1205
    %1313 = vmatprep.subr.bf16.mxu0 0
    %1314 = vmatpush1.bf16.msra.mxu0 %v1206
    %1315 = vmatprep.subr.bf16.mxu0 0
    %1316 = vmatpush1.bf16.msra.mxu0 %v1207
    %1317 = vmatprep.subr.bf16.mxu0 0
    %1318 = vmatpush1.bf16.msra.mxu0 %v1208
    %1319 = vmatprep.subr.bf16.mxu0 0
    %1320 = vmatpush1.bf16.msra.mxu0 %v1209
    %1321 = vmatprep.subr.bf16.mxu0 0
    %1322 = vmatpush1.bf16.msra.mxu0 %v1210
    %1323 = vmatprep.subr.bf16.mxu0 0
    %1324 = vmatpush1.bf16.msra.mxu0 %v1211
    %1325 = vmatprep.mubr.bf16.mxu0 %v1039
    %1326 = vmatmul.mubr.bf16.gmra.mrb[0].mxu0 %v1038
    %v1327 = vpop.f32.mrb[0].mxu0
    %v1328 = vadd.f32 %v1279, %v1327
    %v1329 = vpop.f32.mrb[0].mxu0
    %v1330 = vpop.f32.mrb[0].mxu0
    %v1331 = vadd.f32 %v1282, %v1330
    %v1332 = vpop.f32.mrb[0].mxu0
    %1333 = vmatprep.mubr.bf16.mxu0 %v1043
    %1334 = vmatmul.mubr.bf16.gmra.mrb[0].mxu0 %v1042
    %v1335 = vpop.f32.mrb[0].mxu0
    %v1336 = vadd.f32 %v1287, %v1335
    %v1337 = vpop.f32.mrb[0].mxu0
    %v1338 = vpop.f32.mrb[0].mxu0
    %v1339 = vadd.f32 %v1290, %v1338
    %v1340 = vpop.f32.mrb[0].mxu0
    %1341 = vdwg.mxu0
    %1342 = vst.msk [vmem:[#allocation2 + $0x8] sm:$0xff] %vm444, %v1328
    %1343 = vst.msk [vmem:[#allocation2 + $0x18] sm:$0xff] %vm444, %v1331
    %1344 = vst.msk [vmem:[#allocation2 + $0x28] sm:$0xff] %vm444, %v1336
    %1345 = vst.msk [vmem:[#allocation2 + $0x38] sm:$0xff] %vm444, %v1339
    %v1346 = vsel %vm444, %v1328, 0.0
    %v1347 = vsel %vm444, %v1331, 0.0
    %v1348 = vadd.f32 %v1346, %v1347
    %v1349 = vsel %vm444, %v1336, 0.0
    %v1350 = vadd.f32 %v1348, %v1349
    %v1351 = vsel %vm444, %v1339, 0.0
    %v1352 = vadd.f32 %v1350, %v1351
    %v1353 = vrot.slane %v1352, 4
    %v1354 = vadd.f32 %v1352, %v1353
    %v1355 = vrot.slane %v1354, 2
    %v1356 = vadd.f32 %v1354, %v1355
    %v1357 = vrot.slane %v1356, 1
    %v1358 = vadd.f32 %v1356, %v1357
    %v1359 = vadd.f32 %v919, %v1358
    %v1360 = vmul.f32 %v1328, %v1328
    %v1361 = vmul.f32 %v1331, %v1331
    %v1362 = vmul.f32 %v1336, %v1336
    %v1363 = vmul.f32 %v1339, %v1339
    %v1364 = vsel %vm444, %v1360, 0.0
    %v1365 = vsel %vm444, %v1361, 0.0
    %v1366 = vadd.f32 %v1364, %v1365
    %v1367 = vsel %vm444, %v1362, 0.0
    %v1368 = vadd.f32 %v1366, %v1367
    %v1369 = vsel %vm444, %v1363, 0.0
    %v1370 = vadd.f32 %v1368, %v1369
    %v1371 = vrot.slane %v1370, 4
    %v1372 = vadd.f32 %v1370, %v1371
    %v1373 = vrot.slane %v1372, 2
    %v1374 = vadd.f32 %v1372, %v1373
    %v1375 = vrot.slane %v1374, 1
    %v1376 = vadd.f32 %v1374, %v1375
    %v1377 = vadd.f32 %v937, %v1376
    %s1378 = scalar_lea.vmem %s0, 192
    %v1379 = vld [vmem:[%s1378] sm:$0xff]
    %v1380 = vld [vmem:[%s1378 + $0x8] sm:$0xff]
    %v1381 = vld [vmem:[%s1378 + $0x10] sm:$0xff]
    %v1382 = vld [vmem:[%s1378 + $0x18] sm:$0xff]
    %v1383 = vld [vmem:[%s1378 + $0x20] sm:$0xff]
    %v1384 = vld [vmem:[%s1378 + $0x28] sm:$0xff]
    %v1385 = vld [vmem:[%s1378 + $0x30] sm:$0xff]
    %v1386 = vld [vmem:[%s1378 + $0x38] sm:$0xff]
    %s1387 = scalar_lea.vmem %s1, 768
    %v1388 = vld [vmem:[%s1387] sm:$0xf]
    %v1389 = vld [vmem:[%s1387 + $0x4] sm:$0xf]
    %v1390 = vld [vmem:[%s1387 + $0x8] sm:$0xf]
    %v1391 = vld [vmem:[%s1387 + $0xc] sm:$0xf]
    %v1392 = vld [vmem:[%s1387 + $0x10] sm:$0xf]
    %v1393 = vld [vmem:[%s1387 + $0x14] sm:$0xf]
    %v1394 = vld [vmem:[%s1387 + $0x18] sm:$0xf]
    %v1395 = vld [vmem:[%s1387 + $0x1c] sm:$0xf]
    %v1396 = vld [vmem:[%s1387 + $0x20] sm:$0xf]
    %v1397 = vld [vmem:[%s1387 + $0x24] sm:$0xf]
    %v1398 = vld [vmem:[%s1387 + $0x28] sm:$0xf]
    %v1399 = vld [vmem:[%s1387 + $0x2c] sm:$0xf]
    %v1400 = vld [vmem:[%s1387 + $0x30] sm:$0xf]
    %v1401 = vld [vmem:[%s1387 + $0x34] sm:$0xf]
    %v1402 = vld [vmem:[%s1387 + $0x38] sm:$0xf]
    %v1403 = vld [vmem:[%s1387 + $0x3c] sm:$0xf]
    %v1404 = vld [vmem:[%s1387 + $0x40] sm:$0xf]
    %v1405 = vld [vmem:[%s1387 + $0x44] sm:$0xf]
    %v1406 = vld [vmem:[%s1387 + $0x48] sm:$0xf]
    %v1407 = vld [vmem:[%s1387 + $0x4c] sm:$0xf]
    %v1408 = vld [vmem:[%s1387 + $0x50] sm:$0xf]
    %v1409 = vld [vmem:[%s1387 + $0x54] sm:$0xf]
    %v1410 = vld [vmem:[%s1387 + $0x58] sm:$0xf]
    %v1411 = vld [vmem:[%s1387 + $0x5c] sm:$0xf]
    %v1412 = vld [vmem:[%s1387 + $0x60] sm:$0xf]
    %v1413 = vld [vmem:[%s1387 + $0x64] sm:$0xf]
    %v1414 = vld [vmem:[%s1387 + $0x68] sm:$0xf]
    %v1415 = vld [vmem:[%s1387 + $0x6c] sm:$0xf]
    %v1416 = vld [vmem:[%s1387 + $0x70] sm:$0xf]
    %v1417 = vld [vmem:[%s1387 + $0x74] sm:$0xf]
    %v1418 = vld [vmem:[%s1387 + $0x78] sm:$0xf]
    %v1419 = vld [vmem:[%s1387 + $0x7c] sm:$0xf]
    %v1420 = vld [vmem:[%s1387 + $0x80] sm:$0xf]
    %v1421 = vld [vmem:[%s1387 + $0x84] sm:$0xf]
    %v1422 = vld [vmem:[%s1387 + $0x88] sm:$0xf]
    %v1423 = vld [vmem:[%s1387 + $0x8c] sm:$0xf]
    %v1424 = vld [vmem:[%s1387 + $0x90] sm:$0xf]
    %v1425 = vld [vmem:[%s1387 + $0x94] sm:$0xf]
    %v1426 = vld [vmem:[%s1387 + $0x98] sm:$0xf]
    %v1427 = vld [vmem:[%s1387 + $0x9c] sm:$0xf]
    %v1428 = vld [vmem:[%s1387 + $0xa0] sm:$0xf]
    %v1429 = vld [vmem:[%s1387 + $0xa4] sm:$0xf]
    %v1430 = vld [vmem:[%s1387 + $0xa8] sm:$0xf]
    %v1431 = vld [vmem:[%s1387 + $0xac] sm:$0xf]
    %v1432 = vld [vmem:[%s1387 + $0xb0] sm:$0xf]
    %v1433 = vld [vmem:[%s1387 + $0xb4] sm:$0xf]
    %v1434 = vld [vmem:[%s1387 + $0xb8] sm:$0xf]
    %v1435 = vld [vmem:[%s1387 + $0xbc] sm:$0xf]
    %v1436 = vld [vmem:[%s1387 + $0xc0] sm:$0xf]
    %v1437 = vld [vmem:[%s1387 + $0xc4] sm:$0xf]
    %v1438 = vld [vmem:[%s1387 + $0xc8] sm:$0xf]
    %v1439 = vld [vmem:[%s1387 + $0xcc] sm:$0xf]
    %v1440 = vld [vmem:[%s1387 + $0xd0] sm:$0xf]
    %v1441 = vld [vmem:[%s1387 + $0xd4] sm:$0xf]
    %v1442 = vld [vmem:[%s1387 + $0xd8] sm:$0xf]
    %v1443 = vld [vmem:[%s1387 + $0xdc] sm:$0xf]
    %v1444 = vld [vmem:[%s1387 + $0xe0] sm:$0xf]
    %v1445 = vld [vmem:[%s1387 + $0xe4] sm:$0xf]
    %v1446 = vld [vmem:[%s1387 + $0xe8] sm:$0xf]
    %v1447 = vld [vmem:[%s1387 + $0xec] sm:$0xf]
    %v1448 = vld [vmem:[%s1387 + $0xf0] sm:$0xf]
    %v1449 = vld [vmem:[%s1387 + $0xf4] sm:$0xf]
    %v1450 = vld [vmem:[%s1387 + $0xf8] sm:$0xf]
    %v1451 = vld [vmem:[%s1387 + $0xfc] sm:$0xf]
    %v1460 = vunpack.c.l.b16 %v1379
    %v1461 = vunpack.c.h.b16 %v1379
    %v1462 = vunpack.c.l.b16 %v1380
    %v1463 = vunpack.c.h.b16 %v1380
    %v1464 = vunpack.c.l.b16 %v1381
    %v1465 = vunpack.c.h.b16 %v1381
    %v1466 = vunpack.c.l.b16 %v1382
    %v1467 = vunpack.c.h.b16 %v1382
    %v1468 = vunpack.c.l.b16 %v1383
    %v1469 = vunpack.c.h.b16 %v1383
    %v1470 = vunpack.c.l.b16 %v1384
    %v1471 = vunpack.c.h.b16 %v1384
    %v1472 = vunpack.c.l.b16 %v1385
    %v1473 = vunpack.c.h.b16 %v1385
    %v1474 = vunpack.c.l.b16 %v1386
    %v1475 = vunpack.c.h.b16 %v1386
    %v1476 = vpack.c.b16 %v1464, %v1460
    %v1477 = vpack.c.b16 %v1465, %v1461
    %v1478 = vpack.c.b16 %v1466, %v1462
    %v1479 = vpack.c.b16 %v1467, %v1463
    %v1480 = vpack.c.b16 %v1472, %v1468
    %v1481 = vpack.c.b16 %v1473, %v1469
    %v1482 = vpack.c.b16 %v1474, %v1470
    %v1483 = vpack.c.b16 %v1475, %v1471
    %v1556 = vunpack.c.l.b16 %v1388
    %v1557 = vunpack.c.l.b16 %v1389
    %v1558 = vunpack.c.l.b16 %v1390
    %v1559 = vunpack.c.l.b16 %v1391
    %v1560 = vunpack.c.l.b16 %v1392
    %v1561 = vunpack.c.l.b16 %v1393
    %v1562 = vunpack.c.l.b16 %v1394
    %v1563 = vunpack.c.l.b16 %v1395
    %v1564 = vunpack.c.l.b16 %v1396
    %v1565 = vunpack.c.l.b16 %v1397
    %v1566 = vunpack.c.l.b16 %v1398
    %v1567 = vunpack.c.l.b16 %v1399
    %v1568 = vunpack.c.l.b16 %v1400
    %v1569 = vunpack.c.l.b16 %v1401
    %v1570 = vunpack.c.l.b16 %v1402
    %v1571 = vunpack.c.l.b16 %v1403
    %v1572 = vunpack.c.l.b16 %v1404
    %v1573 = vunpack.c.l.b16 %v1405
    %v1574 = vunpack.c.l.b16 %v1406
    %v1575 = vunpack.c.l.b16 %v1407
    %v1576 = vunpack.c.l.b16 %v1408
    %v1577 = vunpack.c.l.b16 %v1409
    %v1578 = vunpack.c.l.b16 %v1410
    %v1579 = vunpack.c.l.b16 %v1411
    %v1580 = vunpack.c.l.b16 %v1412
    %v1581 = vunpack.c.l.b16 %v1413
    %v1582 = vunpack.c.l.b16 %v1414
    %v1583 = vunpack.c.l.b16 %v1415
    %v1584 = vunpack.c.l.b16 %v1416
    %v1585 = vunpack.c.l.b16 %v1417
    %v1586 = vunpack.c.l.b16 %v1418
    %v1587 = vunpack.c.l.b16 %v1419
    %v1588 = vunpack.c.l.b16 %v1420
    %v1589 = vunpack.c.l.b16 %v1421
    %v1590 = vunpack.c.l.b16 %v1422
    %v1591 = vunpack.c.l.b16 %v1423
    %v1592 = vunpack.c.l.b16 %v1424
    %v1593 = vunpack.c.l.b16 %v1425
    %v1594 = vunpack.c.l.b16 %v1426
    %v1595 = vunpack.c.l.b16 %v1427
    %v1596 = vunpack.c.l.b16 %v1428
    %v1597 = vunpack.c.l.b16 %v1429
    %v1598 = vunpack.c.l.b16 %v1430
    %v1599 = vunpack.c.l.b16 %v1431
    %v1600 = vunpack.c.l.b16 %v1432
    %v1601 = vunpack.c.l.b16 %v1433
    %v1602 = vunpack.c.l.b16 %v1434
    %v1603 = vunpack.c.l.b16 %v1435
    %v1604 = vunpack.c.l.b16 %v1436
    %v1605 = vunpack.c.l.b16 %v1437
    %v1606 = vunpack.c.l.b16 %v1438
    %v1607 = vunpack.c.l.b16 %v1439
    %v1608 = vunpack.c.l.b16 %v1440
    %v1609 = vunpack.c.l.b16 %v1441
    %v1610 = vunpack.c.l.b16 %v1442
    %v1611 = vunpack.c.l.b16 %v1443
    %v1612 = vunpack.c.l.b16 %v1444
    %v1613 = vunpack.c.l.b16 %v1445
    %v1614 = vunpack.c.l.b16 %v1446
    %v1615 = vunpack.c.l.b16 %v1447
    %v1616 = vunpack.c.l.b16 %v1448
    %v1617 = vunpack.c.l.b16 %v1449
    %v1618 = vunpack.c.l.b16 %v1450
    %v1619 = vunpack.c.l.b16 %v1451
    %v1620 = vpack.c.b16 %v1557, %v1556
    %v1621 = vpack.c.b16 %v1559, %v1558
    %v1622 = vpack.c.b16 %v1561, %v1560
    %v1623 = vpack.c.b16 %v1563, %v1562
    %v1624 = vpack.c.b16 %v1565, %v1564
    %v1625 = vpack.c.b16 %v1567, %v1566
    %v1626 = vpack.c.b16 %v1569, %v1568
    %v1627 = vpack.c.b16 %v1571, %v1570
    %v1628 = vpack.c.b16 %v1573, %v1572
    %v1629 = vpack.c.b16 %v1575, %v1574
    %v1630 = vpack.c.b16 %v1577, %v1576
    %v1631 = vpack.c.b16 %v1579, %v1578
    %v1632 = vpack.c.b16 %v1581, %v1580
    %v1633 = vpack.c.b16 %v1583, %v1582
    %v1634 = vpack.c.b16 %v1585, %v1584
    %v1635 = vpack.c.b16 %v1587, %v1586
    %v1636 = vpack.c.b16 %v1589, %v1588
    %v1637 = vpack.c.b16 %v1591, %v1590
    %v1638 = vpack.c.b16 %v1593, %v1592
    %v1639 = vpack.c.b16 %v1595, %v1594
    %v1640 = vpack.c.b16 %v1597, %v1596
    %v1641 = vpack.c.b16 %v1599, %v1598
    %v1642 = vpack.c.b16 %v1601, %v1600
    %v1643 = vpack.c.b16 %v1603, %v1602
    %v1644 = vpack.c.b16 %v1605, %v1604
    %v1645 = vpack.c.b16 %v1607, %v1606
    %v1646 = vpack.c.b16 %v1609, %v1608
    %v1647 = vpack.c.b16 %v1611, %v1610
    %v1648 = vpack.c.b16 %v1613, %v1612
    %v1649 = vpack.c.b16 %v1615, %v1614
    %v1650 = vpack.c.b16 %v1617, %v1616
    %v1651 = vpack.c.b16 %v1619, %v1618
    %1684 = vmatprep.subr.bf16.mxu0 0
    %1685 = vmatpush1.bf16.msra.mxu0 %v1620
    %1686 = vmatprep.subr.bf16.mxu0 0
    %1687 = vmatpush1.bf16.msra.mxu0 %v1621
    %1688 = vmatprep.subr.bf16.mxu0 0
    %1689 = vmatpush1.bf16.msra.mxu0 %v1622
    %1690 = vmatprep.subr.bf16.mxu0 0
    %1691 = vmatpush1.bf16.msra.mxu0 %v1623
    %1692 = vmatprep.subr.bf16.mxu0 0
    %1693 = vmatpush1.bf16.msra.mxu0 %v1624
    %1694 = vmatprep.subr.bf16.mxu0 0
    %1695 = vmatpush1.bf16.msra.mxu0 %v1625
    %1696 = vmatprep.subr.bf16.mxu0 0
    %1697 = vmatpush1.bf16.msra.mxu0 %v1626
    %1698 = vmatprep.subr.bf16.mxu0 0
    %1699 = vmatpush1.bf16.msra.mxu0 %v1627
    %1700 = vmatprep.subr.bf16.mxu0 0
    %1701 = vmatpush1.bf16.msra.mxu0 %v1628
    %1702 = vmatprep.subr.bf16.mxu0 0
    %1703 = vmatpush1.bf16.msra.mxu0 %v1629
    %1704 = vmatprep.subr.bf16.mxu0 0
    %1705 = vmatpush1.bf16.msra.mxu0 %v1630
    %1706 = vmatprep.subr.bf16.mxu0 0
    %1707 = vmatpush1.bf16.msra.mxu0 %v1631
    %1708 = vmatprep.subr.bf16.mxu0 0
    %1709 = vmatpush1.bf16.msra.mxu0 %v1632
    %1710 = vmatprep.subr.bf16.mxu0 0
    %1711 = vmatpush1.bf16.msra.mxu0 %v1633
    %1712 = vmatprep.subr.bf16.mxu0 0
    %1713 = vmatpush1.bf16.msra.mxu0 %v1634
    %1714 = vmatprep.subr.bf16.mxu0 0
    %1715 = vmatpush1.bf16.msra.mxu0 %v1635
    %1716 = vmatprep.mubr.bf16.mxu0 %v1477
    %1717 = vmatmul.mubr.bf16.gmra.mrb[0].mxu0 %v1476
    %v1718 = vpop.f32.mrb[0].mxu0
    %v1719 = vadd.f32 0.0, %v1718
    %v1720 = vpop.f32.mrb[0].mxu0
    %v1721 = vpop.f32.mrb[0].mxu0
    %v1722 = vadd.f32 0.0, %v1721
    %v1723 = vpop.f32.mrb[0].mxu0
    %1724 = vmatprep.mubr.bf16.mxu0 %v1481
    %1725 = vmatmul.mubr.bf16.gmra.mrb[0].mxu0 %v1480
    %v1726 = vpop.f32.mrb[0].mxu0
    %v1727 = vadd.f32 0.0, %v1726
    %v1728 = vpop.f32.mrb[0].mxu0
    %v1729 = vpop.f32.mrb[0].mxu0
    %v1730 = vadd.f32 0.0, %v1729
    %v1731 = vpop.f32.mrb[0].mxu0
    %1732 = vdwg.mxu0
    %1733 = vmatprep.subr.bf16.mxu0 0
    %1734 = vmatpush1.bf16.msra.mxu0 %v1636
    %1735 = vmatprep.subr.bf16.mxu0 0
    %1736 = vmatpush1.bf16.msra.mxu0 %v1637
    %1737 = vmatprep.subr.bf16.mxu0 0
    %1738 = vmatpush1.bf16.msra.mxu0 %v1638
    %1739 = vmatprep.subr.bf16.mxu0 0
    %1740 = vmatpush1.bf16.msra.mxu0 %v1639
    %1741 = vmatprep.subr.bf16.mxu0 0
    %1742 = vmatpush1.bf16.msra.mxu0 %v1640
    %1743 = vmatprep.subr.bf16.mxu0 0
    %1744 = vmatpush1.bf16.msra.mxu0 %v1641
    %1745 = vmatprep.subr.bf16.mxu0 0
    %1746 = vmatpush1.bf16.msra.mxu0 %v1642
    %1747 = vmatprep.subr.bf16.mxu0 0
    %1748 = vmatpush1.bf16.msra.mxu0 %v1643
    %1749 = vmatprep.subr.bf16.mxu0 0
    %1750 = vmatpush1.bf16.msra.mxu0 %v1644
    %1751 = vmatprep.subr.bf16.mxu0 0
    %1752 = vmatpush1.bf16.msra.mxu0 %v1645
    %1753 = vmatprep.subr.bf16.mxu0 0
    %1754 = vmatpush1.bf16.msra.mxu0 %v1646
    %1755 = vmatprep.subr.bf16.mxu0 0
    %1756 = vmatpush1.bf16.msra.mxu0 %v1647
    %1757 = vmatprep.subr.bf16.mxu0 0
    %1758 = vmatpush1.bf16.msra.mxu0 %v1648
    %1759 = vmatprep.subr.bf16.mxu0 0
    %1760 = vmatpush1.bf16.msra.mxu0 %v1649
    %1761 = vmatprep.subr.bf16.mxu0 0
    %1762 = vmatpush1.bf16.msra.mxu0 %v1650
    %1763 = vmatprep.subr.bf16.mxu0 0
    %1764 = vmatpush1.bf16.msra.mxu0 %v1651
    %1765 = vmatprep.mubr.bf16.mxu0 %v1479
    %1766 = vmatmul.mubr.bf16.gmra.mrb[0].mxu0 %v1478
    %v1767 = vpop.f32.mrb[0].mxu0
    %v1768 = vadd.f32 %v1719, %v1767
    %v1769 = vpop.f32.mrb[0].mxu0
    %v1770 = vpop.f32.mrb[0].mxu0
    %v1771 = vadd.f32 %v1722, %v1770
    %v1772 = vpop.f32.mrb[0].mxu0
    %1773 = vmatprep.mubr.bf16.mxu0 %v1483
    %1774 = vmatmul.mubr.bf16.gmra.mrb[0].mxu0 %v1482
    %v1775 = vpop.f32.mrb[0].mxu0
    %v1776 = vadd.f32 %v1727, %v1775
    %v1777 = vpop.f32.mrb[0].mxu0
    %v1778 = vpop.f32.mrb[0].mxu0
    %v1779 = vadd.f32 %v1730, %v1778
    %v1780 = vpop.f32.mrb[0].mxu0
    %1781 = vdwg.mxu0
    %1786 = vrot.lane.b32.xlu0 %v1768, 64
    %v1787 = vpop.permute.xlu0 %1786
    %1788 = vrot.lane.b32.xlu0 %v1771, 64
    %v1789 = vpop.permute.xlu0 %1788
    %1790 = vrot.lane.b32.xlu0 %v1776, 64
    %v1791 = vpop.permute.xlu0 %1790
    %1792 = vrot.lane.b32.xlu0 %v1779, 64
    %v1793 = vpop.permute.xlu0 %1792
    %1798 = vst.msk [vmem:[#allocation2 + $0x8] sm:$0xff] %vm901, %v1787
    %1799 = vst.msk [vmem:[#allocation2 + $0x18] sm:$0xff] %vm901, %v1789
    %1800 = vst.msk [vmem:[#allocation2 + $0x28] sm:$0xff] %vm901, %v1791
    %1801 = vst.msk [vmem:[#allocation2 + $0x38] sm:$0xff] %vm901, %v1793
    %v1802 = vsel %vm444, %v1768, 0.0
    %v1803 = vsel %vm444, %v1771, 0.0
    %v1804 = vadd.f32 %v1802, %v1803
    %v1805 = vsel %vm444, %v1776, 0.0
    %v1806 = vadd.f32 %v1804, %v1805
    %v1807 = vsel %vm444, %v1779, 0.0
    %v1808 = vadd.f32 %v1806, %v1807
    %v1809 = vrot.slane %v1808, 4
    %v1810 = vadd.f32 %v1808, %v1809
    %v1811 = vrot.slane %v1810, 2
    %v1812 = vadd.f32 %v1810, %v1811
    %v1813 = vrot.slane %v1812, 1
    %v1814 = vadd.f32 %v1812, %v1813
    %v1815 = vadd.f32 %v1359, %v1814
    %v1816 = vmul.f32 %v1768, %v1768
    %v1817 = vmul.f32 %v1771, %v1771
    %v1818 = vmul.f32 %v1776, %v1776
    %v1819 = vmul.f32 %v1779, %v1779
    %v1820 = vsel %vm444, %v1816, 0.0
    %v1821 = vsel %vm444, %v1817, 0.0
    %v1822 = vadd.f32 %v1820, %v1821
    %v1823 = vsel %vm444, %v1818, 0.0
    %v1824 = vadd.f32 %v1822, %v1823
    %v1825 = vsel %vm444, %v1819, 0.0
    %v1826 = vadd.f32 %v1824, %v1825
    %v1827 = vrot.slane %v1826, 4
    %v1828 = vadd.f32 %v1826, %v1827
    %v1829 = vrot.slane %v1828, 2
    %v1830 = vadd.f32 %v1828, %v1829
    %v1831 = vrot.slane %v1830, 1
    %v1832 = vadd.f32 %v1830, %v1831
    %v1833 = vadd.f32 %v1377, %v1832
    %v1834 = vrcp.pop 128.0
    %v1835 = vmul.f32 %v1815, %v1834
    %v1836 = vmul.f32 %v1833, %v1834
    %v1837 = vmul.f32 %v1835, %v1835
    %v1838 = vsub.f32 %v1836, %v1837
    %v1839 = vmax.f32 %v1838, 0.0
    %v1840 = vld [vmem:[#allocation3] sm:$0x1]
    %v1841 = vadd.f32 %v1839, 1e-05
    %v1842 = vrsqrt.pop %v1841
    %v1843 = vmul.f32 %v1840, %v1842
    %v1844 = vld [vmem:[#allocation5] sm:$0x1]
    %v1845 = vmul.f32 %v1835, %v1843
    %v1846 = vsub.f32 %v1844, %v1845
    %v1847 = vld [vmem:[#allocation2] sm:$0xff]
    %v1848 = vld [vmem:[#allocation2 + $0x10] sm:$0xff]
    %v1849 = vld [vmem:[#allocation2 + $0x20] sm:$0xff]
    %v1850 = vld [vmem:[#allocation2 + $0x30] sm:$0xff]
    %v1852 = vlaneseq
    %v1853 = vshrl.u32 %v1852, 7
    %v1854 = vsub.s32 0, %v1853
    %v1855 = vrot.slane %v1843, %v1854
    %v1857 = vmul.f32 %v1847, %v1855
    %v1858 = vmul.f32 %v1848, %v1855
    %v1859 = vmul.f32 %v1849, %v1855
    %v1860 = vmul.f32 %v1850, %v1855
    %v1862 = vlaneseq
    %v1863 = vshrl.u32 %v1862, 7
    %v1864 = vsub.s32 0, %v1863
    %v1865 = vrot.slane %v1846, %v1864
    %v1867 = vadd.f32 %v1857, %v1865
    %v1868 = vadd.f32 %v1858, %v1865
    %v1869 = vadd.f32 %v1859, %v1865
    %v1870 = vadd.f32 %v1860, %v1865
    %v1871 = vmax.f32 %v1867, 0.0
    %v1872 = vmax.f32 %v1868, 0.0
    %v1873 = vmax.f32 %v1869, 0.0
    %v1874 = vmax.f32 %v1870, 0.0
    %v1875 = vpack.c.bf16 %v1872, %v1871
    %v1876 = vpack.c.bf16 %v1874, %v1873
    %v1879 = vunpack.c.l.b16 %v1875
    %v1880 = vunpack.c.h.b16 %v1875
    %v1881 = vunpack.c.l.b16 %v1876
    %v1882 = vunpack.c.h.b16 %v1876
    %v1883 = vpack.c.b16 %v1879, %v1879
    %v1884 = vpack.c.b16 %v1880, %v1880
    %v1885 = vpack.c.b16 %v1881, %v1881
    %v1886 = vpack.c.b16 %v1882, %v1882
    %vm1891 = vcmask 519168
    %1892 = vst.msk [vmem:[%s4] sm:$0xf] %vm1891, %v1883
    %1893 = vst.msk [vmem:[%s4 + $0x8] sm:$0xf] %vm1891, %v1884
    %1894 = vst.msk [vmem:[%s4 + $0x10] sm:$0xf] %vm1891, %v1885
    %1895 = vst.msk [vmem:[%s4 + $0x18] sm:$0xf] %vm1891, %v1886
    %v1896 = vld [vmem:[#allocation2] sm:$0xff]
    %v1897 = vld [vmem:[#allocation2 + $0x10] sm:$0xff]
    %v1898 = vld [vmem:[#allocation2 + $0x20] sm:$0xff]
    %v1899 = vld [vmem:[#allocation2 + $0x30] sm:$0xff]
    %1900 = vrot.lane.b32.xlu0 %v1855, 64
    %v1901 = vpop.permute.xlu0 %1900
    %v1903 = vmul.f32 %v1896, %v1901
    %v1904 = vmul.f32 %v1897, %v1901
    %v1905 = vmul.f32 %v1898, %v1901
    %v1906 = vmul.f32 %v1899, %v1901
    %1907 = vrot.lane.b32.xlu0 %v1865, 64
    %v1908 = vpop.permute.xlu0 %1907
    %v1910 = vadd.f32 %v1903, %v1908
    %v1911 = vadd.f32 %v1904, %v1908
    %v1912 = vadd.f32 %v1905, %v1908
    %v1913 = vadd.f32 %v1906, %v1908
    %v1914 = vmax.f32 %v1910, 0.0
    %v1915 = vmax.f32 %v1911, 0.0
    %v1916 = vmax.f32 %v1912, 0.0
    %v1917 = vmax.f32 %v1913, 0.0
    %v1918 = vpack.c.bf16 %v1915, %v1914
    %v1919 = vpack.c.bf16 %v1917, %v1916
    %v1922 = vunpack.c.l.b16 %v1918
    %v1923 = vunpack.c.h.b16 %v1918
    %v1924 = vunpack.c.l.b16 %v1919
    %v1925 = vunpack.c.h.b16 %v1919
    %v1926 = vpack.c.b16 %v1922, %v1922
    %v1927 = vpack.c.b16 %v1923, %v1923
    %v1928 = vpack.c.b16 %v1924, %v1924
    %v1929 = vpack.c.b16 %v1925, %v1925
    %vm1934 = vcmask 1043968
    %1935 = vst.msk [vmem:[%s4] sm:$0xf] %vm1934, %v1926
    %1936 = vst.msk [vmem:[%s4 + $0x8] sm:$0xf] %vm1934, %v1927
    %1937 = vst.msk [vmem:[%s4 + $0x10] sm:$0xf] %vm1934, %v1928
    %1938 = vst.msk [vmem:[%s4 + $0x18] sm:$0xf] %vm1934, %v1929
    %v1939 = vld [vmem:[#allocation2 + $0x8] sm:$0xff]
    %v1940 = vld [vmem:[#allocation2 + $0x18] sm:$0xff]
    %v1941 = vld [vmem:[#allocation2 + $0x28] sm:$0xff]
    %v1942 = vld [vmem:[#allocation2 + $0x38] sm:$0xff]
    %v1943 = vmul.f32 %v1939, %v1855
    %v1944 = vmul.f32 %v1940, %v1855
    %v1945 = vmul.f32 %v1941, %v1855
    %v1946 = vmul.f32 %v1942, %v1855
    %v1947 = vadd.f32 %v1943, %v1865
    %v1948 = vadd.f32 %v1944, %v1865
    %v1949 = vadd.f32 %v1945, %v1865
    %v1950 = vadd.f32 %v1946, %v1865
    %v1951 = vmax.f32 %v1947, 0.0
    %v1952 = vmax.f32 %v1948, 0.0
    %v1953 = vmax.f32 %v1949, 0.0
    %v1954 = vmax.f32 %v1950, 0.0
    %v1955 = vpack.c.bf16 %v1952, %v1951
    %v1956 = vpack.c.bf16 %v1954, %v1953
    %v1959 = vunpack.c.l.b16 %v1955
    %v1960 = vunpack.c.h.b16 %v1955
    %v1961 = vunpack.c.l.b16 %v1956
    %v1962 = vunpack.c.h.b16 %v1956
    %v1963 = vpack.c.b16 %v1959, %v1959
    %v1964 = vpack.c.b16 %v1960, %v1960
    %v1965 = vpack.c.b16 %v1961, %v1961
    %v1966 = vpack.c.b16 %v1962, %v1962
    %1971 = vst.msk [vmem:[%s4 + $0x4] sm:$0xf] %vm1891, %v1963
    %1972 = vst.msk [vmem:[%s4 + $0xc] sm:$0xf] %vm1891, %v1964
    %1973 = vst.msk [vmem:[%s4 + $0x14] sm:$0xf] %vm1891, %v1965
    %1974 = vst.msk [vmem:[%s4 + $0x1c] sm:$0xf] %vm1891, %v1966
    %v1975 = vld [vmem:[#allocation2 + $0x8] sm:$0xff]
    %v1976 = vld [vmem:[#allocation2 + $0x18] sm:$0xff]
    %v1977 = vld [vmem:[#allocation2 + $0x28] sm:$0xff]
    %v1978 = vld [vmem:[#allocation2 + $0x38] sm:$0xff]
    %v1979 = vmul.f32 %v1975, %v1901
    %v1980 = vmul.f32 %v1976, %v1901
    %v1981 = vmul.f32 %v1977, %v1901
    %v1982 = vmul.f32 %v1978, %v1901
    %v1983 = vadd.f32 %v1979, %v1908
    %v1984 = vadd.f32 %v1980, %v1908
    %v1985 = vadd.f32 %v1981, %v1908
    %v1986 = vadd.f32 %v1982, %v1908
    %v1987 = vmax.f32 %v1983, 0.0
    %v1988 = vmax.f32 %v1984, 0.0
    %v1989 = vmax.f32 %v1985, 0.0
    %v1990 = vmax.f32 %v1986, 0.0
    %v1991 = vpack.c.bf16 %v1988, %v1987
    %v1992 = vpack.c.bf16 %v1990, %v1989
    %v1995 = vunpack.c.l.b16 %v1991
    %v1996 = vunpack.c.h.b16 %v1991
    %v1997 = vunpack.c.l.b16 %v1992
    %v1998 = vunpack.c.h.b16 %v1992
    %v1999 = vpack.c.b16 %v1995, %v1995
    %v2000 = vpack.c.b16 %v1996, %v1996
    %v2001 = vpack.c.b16 %v1997, %v1997
    %v2002 = vpack.c.b16 %v1998, %v1998
    %2007 = vst.msk [vmem:[%s4 + $0x4] sm:$0xf] %vm1934, %v1999
    %2008 = vst.msk [vmem:[%s4 + $0xc] sm:$0xf] %vm1934, %v2000
    %2009 = vst.msk [vmem:[%s4 + $0x14] sm:$0xf] %vm1934, %v2001
    %2010 = vst.msk [vmem:[%s4 + $0x1c] sm:$0xf] %vm1934, %v2002
    // Predicated region
    $region26: #{generator_forward.5} parent=1 // pred_check
      _
    $region27: #{generator_forward.5} parent=1 // pred_check_branch
      %2012 = sbr.rel (0) target = $region29
    $region28: #{generator_forward.5} parent=1 // pred_region
      _
    $region29: #{generator_forward.5} parent=1 // pred_fallthru
      _
    // Predicated region
    $region30: #{generator_forward.5} parent=1 // pred_check
      _
    $region31: #{generator_forward.5} parent=1 // pred_check_branch
      %2014 = sbr.rel (0) target = $region33
    $region32: #{generator_forward.5} parent=1 // pred_region
      _
    $region33: #{generator_forward.5} parent=1 // pred_fallthru
      _
    %2015 = vsyncpa [#allocation4], 1
    %2016 = vsyncpa [#allocation6], 1

// kernel: generator_forward.6
$region0: #{generator_forward.6}
  #allocation0 [shape = 'u32[]', space=smem, size = 0x4, offset = 0x4, fixed_abs, tag = 'smem constant byte address 0x4 - core index']
  #allocation1 [shape = 'u32[144,128]{1,0:T(1,128)}', space=vmem, size = 0x12000, scoped, tag = 'internal scratch']
  #allocation2 [shape = 'f32[128,128]{1,0:T(8,128)}', space=vmem, size = 0x10000, scoped, tag = 'scratch operand']
  %s0 = inlined_call_operand.vmem [shape: bf16[4,128,256], index: 0, kind: input, shape index: {}]
  %s1 = inlined_call_operand.vmem [shape: bf16[4,256,32], index: 1, kind: input, shape index: {}]
  %s2 = inlined_call_operand.vmem [shape: f32[1,32], index: 2, kind: input, shape index: {}]
  %s3 = inlined_call_operand.vmem [shape: f32[1,32], index: 3, kind: input, shape index: {}]
  %s4 = inlined_call_operand.vmem [shape: bf16[128,128], index: 4, kind: output, shape index: {}]
  %s5 = sld [smem:[#allocation0]]
  $region26: #{generator_forward.6} parent=0
    _
  %s7 = ssub.s32 1, %s5
  %s8 = scalar_select 0, %s7, %s5
  // Predicated region
  $region2: #{generator_forward.6} parent=0 // pred_check
    _
  $region3: #{generator_forward.6} parent=0 // pred_check_branch
    %10 = sbr.rel (0) target = $region5
  $region4: #{generator_forward.6} parent=0 // pred_region
    _
  $region5: #{generator_forward.6} parent=0 // pred_fallthru
    _
  // Predicated region
  $region6: #{generator_forward.6} parent=0 // pred_check
    _
  $region7: #{generator_forward.6} parent=0 // pred_check_branch
    %12 = sbr.rel (0) target = $region9
  $region8: #{generator_forward.6} parent=0 // pred_region
    _
  $region9: #{generator_forward.6} parent=0 // pred_fallthru
    _
  // Predicated region
  $region10: #{generator_forward.6} parent=0 // pred_check
    _
  $region11: #{generator_forward.6} parent=0 // pred_check_branch
    %14 = sbr.rel (0) target = $region13
  $region12: #{generator_forward.6} parent=0 // pred_region
    _
  $region13: #{generator_forward.6} parent=0 // pred_fallthru
    _
  // Predicated region
  $region14: #{generator_forward.6} parent=0 // pred_check
    _
  $region15: #{generator_forward.6} parent=0 // pred_check_branch
    %16 = sbr.rel (0) target = $region17
  $region16: #{generator_forward.6} parent=0 // pred_region
    _
  $region17: #{generator_forward.6} parent=0 // pred_fallthru
    _
  %v18 = vld [vmem:[%s0] sm:$0xff]
  %v19 = vld [vmem:[%s0 + $0x8] sm:$0xff]
  %v20 = vld [vmem:[%s0 + $0x10] sm:$0xff]
  %v21 = vld [vmem:[%s0 + $0x18] sm:$0xff]
  %v22 = vld [vmem:[%s0 + $0x20] sm:$0xff]
  %v23 = vld [vmem:[%s0 + $0x28] sm:$0xff]
  %v24 = vld [vmem:[%s0 + $0x30] sm:$0xff]
  %v25 = vld [vmem:[%s0 + $0x38] sm:$0xff]
  %v26 = vld [vmem:[%s0 + $0x40] sm:$0xff]
  %v27 = vld [vmem:[%s0 + $0x48] sm:$0xff]
  %v28 = vld [vmem:[%s0 + $0x50] sm:$0xff]
  %v29 = vld [vmem:[%s0 + $0x58] sm:$0xff]
  %v30 = vld [vmem:[%s0 + $0x60] sm:$0xff]
  %v31 = vld [vmem:[%s0 + $0x68] sm:$0xff]
  %v32 = vld [vmem:[%s0 + $0x70] sm:$0xff]
  %v33 = vld [vmem:[%s0 + $0x78] sm:$0xff]
  %v34 = vld [vmem:[%s1] sm:$0xf]
  %v35 = vld [vmem:[%s1 + $0x4] sm:$0xf]
  %v36 = vld [vmem:[%s1 + $0x8] sm:$0xf]
  %v37 = vld [vmem:[%s1 + $0xc] sm:$0xf]
  %v38 = vld [vmem:[%s1 + $0x10] sm:$0xf]
  %v39 = vld [vmem:[%s1 + $0x14] sm:$0xf]
  %v40 = vld [vmem:[%s1 + $0x18] sm:$0xf]
  %v41 = vld [vmem:[%s1 + $0x1c] sm:$0xf]
  %v42 = vld [vmem:[%s1 + $0x20] sm:$0xf]
  %v43 = vld [vmem:[%s1 + $0x24] sm:$0xf]
  %v44 = vld [vmem:[%s1 + $0x28] sm:$0xf]
  %v45 = vld [vmem:[%s1 + $0x2c] sm:$0xf]
  %v46 = vld [vmem:[%s1 + $0x30] sm:$0xf]
  %v47 = vld [vmem:[%s1 + $0x34] sm:$0xf]
  %v48 = vld [vmem:[%s1 + $0x38] sm:$0xf]
  %v49 = vld [vmem:[%s1 + $0x3c] sm:$0xf]
  %v50 = vld [vmem:[%s1 + $0x40] sm:$0xf]
  %v51 = vld [vmem:[%s1 + $0x44] sm:$0xf]
  %v52 = vld [vmem:[%s1 + $0x48] sm:$0xf]
  %v53 = vld [vmem:[%s1 + $0x4c] sm:$0xf]
  %v54 = vld [vmem:[%s1 + $0x50] sm:$0xf]
  %v55 = vld [vmem:[%s1 + $0x54] sm:$0xf]
  %v56 = vld [vmem:[%s1 + $0x58] sm:$0xf]
  %v57 = vld [vmem:[%s1 + $0x5c] sm:$0xf]
  %v58 = vld [vmem:[%s1 + $0x60] sm:$0xf]
  %v59 = vld [vmem:[%s1 + $0x64] sm:$0xf]
  %v60 = vld [vmem:[%s1 + $0x68] sm:$0xf]
  %v61 = vld [vmem:[%s1 + $0x6c] sm:$0xf]
  %v62 = vld [vmem:[%s1 + $0x70] sm:$0xf]
  %v63 = vld [vmem:[%s1 + $0x74] sm:$0xf]
  %v64 = vld [vmem:[%s1 + $0x78] sm:$0xf]
  %v65 = vld [vmem:[%s1 + $0x7c] sm:$0xf]
  %v82 = vunpack.c.l.b16 %v18
  %v83 = vunpack.c.h.b16 %v18
  %v84 = vunpack.c.l.b16 %v19
  %v85 = vunpack.c.h.b16 %v19
  %v86 = vunpack.c.l.b16 %v20
  %v87 = vunpack.c.h.b16 %v20
  %v88 = vunpack.c.l.b16 %v21
  %v89 = vunpack.c.h.b16 %v21
  %v90 = vunpack.c.l.b16 %v22
  %v91 = vunpack.c.h.b16 %v22
  %v92 = vunpack.c.l.b16 %v23
  %v93 = vunpack.c.h.b16 %v23
  %v94 = vunpack.c.l.b16 %v24
  %v95 = vunpack.c.h.b16 %v24
  %v96 = vunpack.c.l.b16 %v25
  %v97 = vunpack.c.h.b16 %v25
  %v98 = vunpack.c.l.b16 %v26
  %v99 = vunpack.c.h.b16 %v26
  %v100 = vunpack.c.l.b16 %v27
  %v101 = vunpack.c.h.b16 %v27
  %v102 = vunpack.c.l.b16 %v28
  %v103 = vunpack.c.h.b16 %v28
  %v104 = vunpack.c.l.b16 %v29
  %v105 = vunpack.c.h.b16 %v29
  %v106 = vunpack.c.l.b16 %v30
  %v107 = vunpack.c.h.b16 %v30
  %v108 = vunpack.c.l.b16 %v31
  %v109 = vunpack.c.h.b16 %v31
  %v110 = vunpack.c.l.b16 %v32
  %v111 = vunpack.c.h.b16 %v32
  %v112 = vunpack.c.l.b16 %v33
  %v113 = vunpack.c.h.b16 %v33
  %v114 = vpack.c.b16 %v84, %v82
  %v115 = vpack.c.b16 %v85, %v83
  %v116 = vpack.c.b16 %v88, %v86
  %v117 = vpack.c.b16 %v89, %v87
  %v118 = vpack.c.b16 %v92, %v90
  %v119 = vpack.c.b16 %v93, %v91
  %v120 = vpack.c.b16 %v96, %v94
  %v121 = vpack.c.b16 %v97, %v95
  %v122 = vpack.c.b16 %v100, %v98
  %v123 = vpack.c.b16 %v101, %v99
  %v124 = vpack.c.b16 %v104, %v102
  %v125 = vpack.c.b16 %v105, %v103
  %v126 = vpack.c.b16 %v108, %v106
  %v127 = vpack.c.b16 %v109, %v107
  %v128 = vpack.c.b16 %v112, %v110
  %v129 = vpack.c.b16 %v113, %v111
  %v178 = vunpack.c.l.b16 %v34
  %v179 = vunpack.c.l.b16 %v35
  %v180 = vunpack.c.l.b16 %v36
  %v181 = vunpack.c.l.b16 %v37
  %v182 = vunpack.c.l.b16 %v38
  %v183 = vunpack.c.l.b16 %v39
  %v184 = vunpack.c.l.b16 %v40
  %v185 = vunpack.c.l.b16 %v41
  %v186 = vunpack.c.l.b16 %v42
  %v187 = vunpack.c.l.b16 %v43
  %v188 = vunpack.c.l.b16 %v44
  %v189 = vunpack.c.l.b16 %v45
  %v190 = vunpack.c.l.b16 %v46
  %v191 = vunpack.c.l.b16 %v47
  %v192 = vunpack.c.l.b16 %v48
  %v193 = vunpack.c.l.b16 %v49
  %v194 = vunpack.c.l.b16 %v50
  %v195 = vunpack.c.l.b16 %v51
  %v196 = vunpack.c.l.b16 %v52
  %v197 = vunpack.c.l.b16 %v53
  %v198 = vunpack.c.l.b16 %v54
  %v199 = vunpack.c.l.b16 %v55
  %v200 = vunpack.c.l.b16 %v56
  %v201 = vunpack.c.l.b16 %v57
  %v202 = vunpack.c.l.b16 %v58
  %v203 = vunpack.c.l.b16 %v59
  %v204 = vunpack.c.l.b16 %v60
  %v205 = vunpack.c.l.b16 %v61
  %v206 = vunpack.c.l.b16 %v62
  %v207 = vunpack.c.l.b16 %v63
  %v208 = vunpack.c.l.b16 %v64
  %v209 = vunpack.c.l.b16 %v65
  %v210 = vpack.c.b16 %v179, %v178
  %v211 = vpack.c.b16 %v181, %v180
  %v212 = vpack.c.b16 %v183, %v182
  %v213 = vpack.c.b16 %v185, %v184
  %v214 = vpack.c.b16 %v187, %v186
  %v215 = vpack.c.b16 %v189, %v188
  %v216 = vpack.c.b16 %v191, %v190
  %v217 = vpack.c.b16 %v193, %v192
  %v218 = vpack.c.b16 %v195, %v194
  %v219 = vpack.c.b16 %v197, %v196
  %v220 = vpack.c.b16 %v199, %v198
  %v221 = vpack.c.b16 %v201, %v200
  %v222 = vpack.c.b16 %v203, %v202
  %v223 = vpack.c.b16 %v205, %v204
  %v224 = vpack.c.b16 %v207, %v206
  %v225 = vpack.c.b16 %v209, %v208
  %242 = vmatprep.subr.bf16.mxu0 0
  %243 = vmatpush1.bf16.msra.mxu0 %v210
  %244 = vmatprep.subr.bf16.mxu0 0
  %245 = vmatpush1.bf16.msra.mxu0 %v211
  %246 = vmatprep.subr.bf16.mxu0 0
  %247 = vmatpush1.bf16.msra.mxu0 %v212
  %248 = vmatprep.subr.bf16.mxu0 0
  %249 = vmatpush1.bf16.msra.mxu0 %v213
  %250 = vmatprep.subr.bf16.mxu0 0
  %251 = vmatpush1.bf16.msra.mxu0 %v214
  %252 = vmatprep.subr.bf16.mxu0 0
  %253 = vmatpush1.bf16.msra.mxu0 %v215
  %254 = vmatprep.subr.bf16.mxu0 0
  %255 = vmatpush1.bf16.msra.mxu0 %v216
  %256 = vmatprep.subr.bf16.mxu0 0
  %257 = vmatpush1.bf16.msra.mxu0 %v217
  %258 = vmatprep.subr.bf16.mxu0 0
  %259 = vmatpush1.bf16.msra.mxu0 %v218
  %260 = vmatprep.subr.bf16.mxu0 0
  %261 = vmatpush1.bf16.msra.mxu0 %v219
  %262 = vmatprep.subr.bf16.mxu0 0
  %263 = vmatpush1.bf16.msra.mxu0 %v220
  %264 = vmatprep.subr.bf16.mxu0 0
  %265 = vmatpush1.bf16.msra.mxu0 %v221
  %266 = vmatprep.subr.bf16.mxu0 0
  %267 = vmatpush1.bf16.msra.mxu0 %v222
  %268 = vmatprep.subr.bf16.mxu0 0
  %269 = vmatpush1.bf16.msra.mxu0 %v223
  %270 = vmatprep.subr.bf16.mxu0 0
  %271 = vmatpush1.bf16.msra.mxu0 %v224
  %272 = vmatprep.subr.bf16.mxu0 0
  %273 = vmatpush1.bf16.msra.mxu0 %v225
  %274 = vmatprep.mubr.bf16.mxu0 %v115
  %275 = vmatmul.mubr.bf16.gmra.mrb[0].mxu0 %v114
  %v276 = vpop.f32.mrb[0].mxu0
  %v277 = vadd.f32 0.0, %v276
  %v278 = vpop.f32.mrb[0].mxu0
  %v279 = vpop.f32.mrb[0].mxu0
  %v280 = vadd.f32 0.0, %v279
  %v281 = vpop.f32.mrb[0].mxu0
  %282 = vmatprep.mubr.bf16.mxu0 %v117
  %283 = vmatmul.mubr.bf16.gmra.mrb[0].mxu0 %v116
  %v284 = vpop.f32.mrb[0].mxu0
  %v285 = vadd.f32 0.0, %v284
  %v286 = vpop.f32.mrb[0].mxu0
  %v287 = vpop.f32.mrb[0].mxu0
  %v288 = vadd.f32 0.0, %v287
  %v289 = vpop.f32.mrb[0].mxu0
  %290 = vmatprep.mubr.bf16.mxu0 %v119
  %291 = vmatmul.mubr.bf16.gmra.mrb[0].mxu0 %v118
  %v292 = vpop.f32.mrb[0].mxu0
  %v293 = vadd.f32 0.0, %v292
  %v294 = vpop.f32.mrb[0].mxu0
  %v295 = vpop.f32.mrb[0].mxu0
  %v296 = vadd.f32 0.0, %v295
  %v297 = vpop.f32.mrb[0].mxu0
  %298 = vmatprep.mubr.bf16.mxu0 %v121
  %299 = vmatmul.mubr.bf16.gmra.mrb[0].mxu0 %v120
  %v300 = vpop.f32.mrb[0].mxu0
  %v301 = vadd.f32 0.0, %v300
  %v302 = vpop.f32.mrb[0].mxu0
  %v303 = vpop.f32.mrb[0].mxu0
  %v304 = vadd.f32 0.0, %v303
  %v305 = vpop.f32.mrb[0].mxu0
  %306 = vmatprep.mubr.bf16.mxu0 %v123
  %307 = vmatmul.mubr.bf16.gmra.mrb[0].mxu0 %v122
  %v308 = vpop.f32.mrb[0].mxu0
  %v309 = vadd.f32 0.0, %v308
  %v310 = vpop.f32.mrb[0].mxu0
  %v311 = vpop.f32.mrb[0].mxu0
  %v312 = vadd.f32 0.0, %v311
  %v313 = vpop.f32.mrb[0].mxu0
  %314 = vmatprep.mubr.bf16.mxu0 %v125
  %315 = vmatmul.mubr.bf16.gmra.mrb[0].mxu0 %v124
  %v316 = vpop.f32.mrb[0].mxu0
  %v317 = vadd.f32 0.0, %v316
  %v318 = vpop.f32.mrb[0].mxu0
  %v319 = vpop.f32.mrb[0].mxu0
  %v320 = vadd.f32 0.0, %v319
  %v321 = vpop.f32.mrb[0].mxu0
  %322 = vmatprep.mubr.bf16.mxu0 %v127
  %323 = vmatmul.mubr.bf16.gmra.mrb[0].mxu0 %v126
  %v324 = vpop.f32.mrb[0].mxu0
  %v325 = vadd.f32 0.0, %v324
  %v326 = vpop.f32.mrb[0].mxu0
  %v327 = vpop.f32.mrb[0].mxu0
  %v328 = vadd.f32 0.0, %v327
  %v329 = vpop.f32.mrb[0].mxu0
  %330 = vmatprep.mubr.bf16.mxu0 %v129
  %331 = vmatmul.mubr.bf16.gmra.mrb[0].mxu0 %v128
  %v332 = vpop.f32.mrb[0].mxu0
  %v333 = vadd.f32 0.0, %v332
  %v334 = vpop.f32.mrb[0].mxu0
  %v335 = vpop.f32.mrb[0].mxu0
  %v336 = vadd.f32 0.0, %v335
  %v337 = vpop.f32.mrb[0].mxu0
  %338 = vdwg.mxu0
  %vm339 = vcmask 261120
  %340 = vst.msk [vmem:[#allocation2] sm:$0xff] %vm339, %v277
  %341 = vst.msk [vmem:[#allocation2 + $0x8] sm:$0xff] %vm339, %v280
  %342 = vst.msk [vmem:[#allocation2 + $0x10] sm:$0xff] %vm339, %v285
  %343 = vst.msk [vmem:[#allocation2 + $0x18] sm:$0xff] %vm339, %v288
  %344 = vst.msk [vmem:[#allocation2 + $0x20] sm:$0xff] %vm339, %v293
  %345 = vst.msk [vmem:[#allocation2 + $0x28] sm:$0xff] %vm339, %v296
  %346 = vst.msk [vmem:[#allocation2 + $0x30] sm:$0xff] %vm339, %v301
  %347 = vst.msk [vmem:[#allocation2 + $0x38] sm:$0xff] %vm339, %v304
  %348 = vst.msk [vmem:[#allocation2 + $0x40] sm:$0xff] %vm339, %v309
  %349 = vst.msk [vmem:[#allocation2 + $0x48] sm:$0xff] %vm339, %v312
  %350 = vst.msk [vmem:[#allocation2 + $0x50] sm:$0xff] %vm339, %v317
  %351 = vst.msk [vmem:[#allocation2 + $0x58] sm:$0xff] %vm339, %v320
  %352 = vst.msk [vmem:[#allocation2 + $0x60] sm:$0xff] %vm339, %v325
  %353 = vst.msk [vmem:[#allocation2 + $0x68] sm:$0xff] %vm339, %v328
  %354 = vst.msk [vmem:[#allocation2 + $0x70] sm:$0xff] %vm339, %v333
  %355 = vst.msk [vmem:[#allocation2 + $0x78] sm:$0xff] %vm339, %v336
  %v356 = vsel %vm339, %v277, 0.0
  %v357 = vsel %vm339, %v280, 0.0
  %v358 = vadd.f32 %v356, %v357
  %v359 = vsel %vm339, %v285, 0.0
  %v360 = vadd.f32 %v358, %v359
  %v361 = vsel %vm339, %v288, 0.0
  %v362 = vadd.f32 %v360, %v361
  %v363 = vsel %vm339, %v293, 0.0
  %v364 = vadd.f32 %v362, %v363
  %v365 = vsel %vm339, %v296, 0.0
  %v366 = vadd.f32 %v364, %v365
  %v367 = vsel %vm339, %v301, 0.0
  %v368 = vadd.f32 %v366, %v367
  %v369 = vsel %vm339, %v304, 0.0
  %v370 = vadd.f32 %v368, %v369
  %v371 = vsel %vm339, %v309, 0.0
  %v372 = vadd.f32 %v370, %v371
  %v373 = vsel %vm339, %v312, 0.0
  %v374 = vadd.f32 %v372, %v373
  %v375 = vsel %vm339, %v317, 0.0
  %v376 = vadd.f32 %v374, %v375
  %v377 = vsel %vm339, %v320, 0.0
  %v378 = vadd.f32 %v376, %v377
  %v379 = vsel %vm339, %v325, 0.0
  %v380 = vadd.f32 %v378, %v379
  %v381 = vsel %vm339, %v328, 0.0
  %v382 = vadd.f32 %v380, %v381
  %v383 = vsel %vm339, %v333, 0.0
  %v384 = vadd.f32 %v382, %v383
  %v385 = vsel %vm339, %v336, 0.0
  %v386 = vadd.f32 %v384, %v385
  %v387 = vrot.slane %v386, 4
  %v388 = vadd.f32 %v386, %v387
  %v389 = vrot.slane %v388, 2
  %v390 = vadd.f32 %v388, %v389
  %v391 = vrot.slane %v390, 1
  %v392 = vadd.f32 %v390, %v391
  %v393 = vadd.f32 %v392, 0.0
  %v394 = vmul.f32 %v277, %v277
  %v395 = vmul.f32 %v280, %v280
  %v396 = vmul.f32 %v285, %v285
  %v397 = vmul.f32 %v288, %v288
  %v398 = vmul.f32 %v293, %v293
  %v399 = vmul.f32 %v296, %v296
  %v400 = vmul.f32 %v301, %v301
  %v401 = vmul.f32 %v304, %v304
  %v402 = vmul.f32 %v309, %v309
  %v403 = vmul.f32 %v312, %v312
  %v404 = vmul.f32 %v317, %v317
  %v405 = vmul.f32 %v320, %v320
  %v406 = vmul.f32 %v325, %v325
  %v407 = vmul.f32 %v328, %v328
  %v408 = vmul.f32 %v333, %v333
  %v409 = vmul.f32 %v336, %v336
  %v410 = vsel %vm339, %v394, 0.0
  %v411 = vsel %vm339, %v395, 0.0
  %v412 = vadd.f32 %v410, %v411
  %v413 = vsel %vm339, %v396, 0.0
  %v414 = vadd.f32 %v412, %v413
  %v415 = vsel %vm339, %v397, 0.0
  %v416 = vadd.f32 %v414, %v415
  %v417 = vsel %vm339, %v398, 0.0
  %v418 = vadd.f32 %v416, %v417
  %v419 = vsel %vm339, %v399, 0.0
  %v420 = vadd.f32 %v418, %v419
  %v421 = vsel %vm339, %v400, 0.0
  %v422 = vadd.f32 %v420, %v421
  %v423 = vsel %vm339, %v401, 0.0
  %v424 = vadd.f32 %v422, %v423
  %v425 = vsel %vm339, %v402, 0.0
  %v426 = vadd.f32 %v424, %v425
  %v427 = vsel %vm339, %v403, 0.0
  %v428 = vadd.f32 %v426, %v427
  %v429 = vsel %vm339, %v404, 0.0
  %v430 = vadd.f32 %v428, %v429
  %v431 = vsel %vm339, %v405, 0.0
  %v432 = vadd.f32 %v430, %v431
  %v433 = vsel %vm339, %v406, 0.0
  %v434 = vadd.f32 %v432, %v433
  %v435 = vsel %vm339, %v407, 0.0
  %v436 = vadd.f32 %v434, %v435
  %v437 = vsel %vm339, %v408, 0.0
  %v438 = vadd.f32 %v436, %v437
  %v439 = vsel %vm339, %v409, 0.0
  %v440 = vadd.f32 %v438, %v439
  %v441 = vrot.slane %v440, 4
  %v442 = vadd.f32 %v440, %v441
  %v443 = vrot.slane %v442, 2
  %v444 = vadd.f32 %v442, %v443
  %v445 = vrot.slane %v444, 1
  %v446 = vadd.f32 %v444, %v445
  %v447 = vadd.f32 %v446, 0.0
  %s448 = scalar_lea.vmem %s0, 128
  %v449 = vld [vmem:[%s448] sm:$0xff]
  %v450 = vld [vmem:[%s448 + $0x8] sm:$0xff]
  %v451 = vld [vmem:[%s448 + $0x10] sm:$0xff]
  %v452 = vld [vmem:[%s448 + $0x18] sm:$0xff]
  %v453 = vld [vmem:[%s448 + $0x20] sm:$0xff]
  %v454 = vld [vmem:[%s448 + $0x28] sm:$0xff]
  %v455 = vld [vmem:[%s448 + $0x30] sm:$0xff]
  %v456 = vld [vmem:[%s448 + $0x38] sm:$0xff]
  %v457 = vld [vmem:[%s448 + $0x40] sm:$0xff]
  %v458 = vld [vmem:[%s448 + $0x48] sm:$0xff]
  %v459 = vld [vmem:[%s448 + $0x50] sm:$0xff]
  %v460 = vld [vmem:[%s448 + $0x58] sm:$0xff]
  %v461 = vld [vmem:[%s448 + $0x60] sm:$0xff]
  %v462 = vld [vmem:[%s448 + $0x68] sm:$0xff]
  %v463 = vld [vmem:[%s448 + $0x70] sm:$0xff]
  %v464 = vld [vmem:[%s448 + $0x78] sm:$0xff]
  %s465 = scalar_lea.vmem %s1, 128
  %v466 = vld [vmem:[%s465] sm:$0xf]
  %v467 = vld [vmem:[%s465 + $0x4] sm:$0xf]
  %v468 = vld [vmem:[%s465 + $0x8] sm:$0xf]
  %v469 = vld [vmem:[%s465 + $0xc] sm:$0xf]
  %v470 = vld [vmem:[%s465 + $0x10] sm:$0xf]
  %v471 = vld [vmem:[%s465 + $0x14] sm:$0xf]
  %v472 = vld [vmem:[%s465 + $0x18] sm:$0xf]
  %v473 = vld [vmem:[%s465 + $0x1c] sm:$0xf]
  %v474 = vld [vmem:[%s465 + $0x20] sm:$0xf]
  %v475 = vld [vmem:[%s465 + $0x24] sm:$0xf]
  %v476 = vld [vmem:[%s465 + $0x28] sm:$0xf]
  %v477 = vld [vmem:[%s465 + $0x2c] sm:$0xf]
  %v478 = vld [vmem:[%s465 + $0x30] sm:$0xf]
  %v479 = vld [vmem:[%s465 + $0x34] sm:$0xf]
  %v480 = vld [vmem:[%s465 + $0x38] sm:$0xf]
  %v481 = vld [vmem:[%s465 + $0x3c] sm:$0xf]
  %v482 = vld [vmem:[%s465 + $0x40] sm:$0xf]
  %v483 = vld [vmem:[%s465 + $0x44] sm:$0xf]
  %v484 = vld [vmem:[%s465 + $0x48] sm:$0xf]
  %v485 = vld [vmem:[%s465 + $0x4c] sm:$0xf]
  %v486 = vld [vmem:[%s465 + $0x50] sm:$0xf]
  %v487 = vld [vmem:[%s465 + $0x54] sm:$0xf]
  %v488 = vld [vmem:[%s465 + $0x58] sm:$0xf]
  %v489 = vld [vmem:[%s465 + $0x5c] sm:$0xf]
  %v490 = vld [vmem:[%s465 + $0x60] sm:$0xf]
  %v491 = vld [vmem:[%s465 + $0x64] sm:$0xf]
  %v492 = vld [vmem:[%s465 + $0x68] sm:$0xf]
  %v493 = vld [vmem:[%s465 + $0x6c] sm:$0xf]
  %v494 = vld [vmem:[%s465 + $0x70] sm:$0xf]
  %v495 = vld [vmem:[%s465 + $0x74] sm:$0xf]
  %v496 = vld [vmem:[%s465 + $0x78] sm:$0xf]
  %v497 = vld [vmem:[%s465 + $0x7c] sm:$0xf]
  %v514 = vunpack.c.l.b16 %v449
  %v515 = vunpack.c.h.b16 %v449
  %v516 = vunpack.c.l.b16 %v450
  %v517 = vunpack.c.h.b16 %v450
  %v518 = vunpack.c.l.b16 %v451
  %v519 = vunpack.c.h.b16 %v451
  %v520 = vunpack.c.l.b16 %v452
  %v521 = vunpack.c.h.b16 %v452
  %v522 = vunpack.c.l.b16 %v453
  %v523 = vunpack.c.h.b16 %v453
  %v524 = vunpack.c.l.b16 %v454
  %v525 = vunpack.c.h.b16 %v454
  %v526 = vunpack.c.l.b16 %v455
  %v527 = vunpack.c.h.b16 %v455
  %v528 = vunpack.c.l.b16 %v456
  %v529 = vunpack.c.h.b16 %v456
  %v530 = vunpack.c.l.b16 %v457
  %v531 = vunpack.c.h.b16 %v457
  %v532 = vunpack.c.l.b16 %v458
  %v533 = vunpack.c.h.b16 %v458
  %v534 = vunpack.c.l.b16 %v459
  %v535 = vunpack.c.h.b16 %v459
  %v536 = vunpack.c.l.b16 %v460
  %v537 = vunpack.c.h.b16 %v460
  %v538 = vunpack.c.l.b16 %v461
  %v539 = vunpack.c.h.b16 %v461
  %v540 = vunpack.c.l.b16 %v462
  %v541 = vunpack.c.h.b16 %v462
  %v542 = vunpack.c.l.b16 %v463
  %v543 = vunpack.c.h.b16 %v463
  %v544 = vunpack.c.l.b16 %v464
  %v545 = vunpack.c.h.b16 %v464
  %v546 = vpack.c.b16 %v516, %v514
  %v547 = vpack.c.b16 %v517, %v515
  %v548 = vpack.c.b16 %v520, %v518
  %v549 = vpack.c.b16 %v521, %v519
  %v550 = vpack.c.b16 %v524, %v522
  %v551 = vpack.c.b16 %v525, %v523
  %v552 = vpack.c.b16 %v528, %v526
  %v553 = vpack.c.b16 %v529, %v527
  %v554 = vpack.c.b16 %v532, %v530
  %v555 = vpack.c.b16 %v533, %v531
  %v556 = vpack.c.b16 %v536, %v534
  %v557 = vpack.c.b16 %v537, %v535
  %v558 = vpack.c.b16 %v540, %v538
  %v559 = vpack.c.b16 %v541, %v539
  %v560 = vpack.c.b16 %v544, %v542
  %v561 = vpack.c.b16 %v545, %v543
  %v610 = vunpack.c.l.b16 %v466
  %v611 = vunpack.c.l.b16 %v467
  %v612 = vunpack.c.l.b16 %v468
  %v613 = vunpack.c.l.b16 %v469
  %v614 = vunpack.c.l.b16 %v470
  %v615 = vunpack.c.l.b16 %v471
  %v616 = vunpack.c.l.b16 %v472
  %v617 = vunpack.c.l.b16 %v473
  %v618 = vunpack.c.l.b16 %v474
  %v619 = vunpack.c.l.b16 %v475
  %v620 = vunpack.c.l.b16 %v476
  %v621 = vunpack.c.l.b16 %v477
  %v622 = vunpack.c.l.b16 %v478
  %v623 = vunpack.c.l.b16 %v479
  %v624 = vunpack.c.l.b16 %v480
  %v625 = vunpack.c.l.b16 %v481
  %v626 = vunpack.c.l.b16 %v482
  %v627 = vunpack.c.l.b16 %v483
  %v628 = vunpack.c.l.b16 %v484
  %v629 = vunpack.c.l.b16 %v485
  %v630 = vunpack.c.l.b16 %v486
  %v631 = vunpack.c.l.b16 %v487
  %v632 = vunpack.c.l.b16 %v488
  %v633 = vunpack.c.l.b16 %v489
  %v634 = vunpack.c.l.b16 %v490
  %v635 = vunpack.c.l.b16 %v491
  %v636 = vunpack.c.l.b16 %v492
  %v637 = vunpack.c.l.b16 %v493
  %v638 = vunpack.c.l.b16 %v494
  %v639 = vunpack.c.l.b16 %v495
  %v640 = vunpack.c.l.b16 %v496
  %v641 = vunpack.c.l.b16 %v497
  %v642 = vpack.c.b16 %v611, %v610
  %v643 = vpack.c.b16 %v613, %v612
  %v644 = vpack.c.b16 %v615, %v614
  %v645 = vpack.c.b16 %v617, %v616
  %v646 = vpack.c.b16 %v619, %v618
  %v647 = vpack.c.b16 %v621, %v620
  %v648 = vpack.c.b16 %v623, %v622
  %v649 = vpack.c.b16 %v625, %v624
  %v650 = vpack.c.b16 %v627, %v626
  %v651 = vpack.c.b16 %v629, %v628
  %v652 = vpack.c.b16 %v631, %v630
  %v653 = vpack.c.b16 %v633, %v632
  %v654 = vpack.c.b16 %v635, %v634
  %v655 = vpack.c.b16 %v637, %v636
  %v656 = vpack.c.b16 %v639, %v638
  %v657 = vpack.c.b16 %v641, %v640
  %674 = vmatprep.subr.bf16.mxu0 0
  %675 = vmatpush1.bf16.msra.mxu0 %v642
  %676 = vmatprep.subr.bf16.mxu0 0
  %677 = vmatpush1.bf16.msra.mxu0 %v643
  %678 = vmatprep.subr.bf16.mxu0 0
  %679 = vmatpush1.bf16.msra.mxu0 %v644
  %680 = vmatprep.subr.bf16.mxu0 0
  %681 = vmatpush1.bf16.msra.mxu0 %v645
  %682 = vmatprep.subr.bf16.mxu0 0
  %683 = vmatpush1.bf16.msra.mxu0 %v646
  %684 = vmatprep.subr.bf16.mxu0 0
  %685 = vmatpush1.bf16.msra.mxu0 %v647
  %686 = vmatprep.subr.bf16.mxu0 0
  %687 = vmatpush1.bf16.msra.mxu0 %v648
  %688 = vmatprep.subr.bf16.mxu0 0
  %689 = vmatpush1.bf16.msra.mxu0 %v649
  %690 = vmatprep.subr.bf16.mxu0 0
  %691 = vmatpush1.bf16.msra.mxu0 %v650
  %692 = vmatprep.subr.bf16.mxu0 0
  %693 = vmatpush1.bf16.msra.mxu0 %v651
  %694 = vmatprep.subr.bf16.mxu0 0
  %695 = vmatpush1.bf16.msra.mxu0 %v652
  %696 = vmatprep.subr.bf16.mxu0 0
  %697 = vmatpush1.bf16.msra.mxu0 %v653
  %698 = vmatprep.subr.bf16.mxu0 0
  %699 = vmatpush1.bf16.msra.mxu0 %v654
  %700 = vmatprep.subr.bf16.mxu0 0
  %701 = vmatpush1.bf16.msra.mxu0 %v655
  %702 = vmatprep.subr.bf16.mxu0 0
  %703 = vmatpush1.bf16.msra.mxu0 %v656
  %704 = vmatprep.subr.bf16.mxu0 0
  %705 = vmatpush1.bf16.msra.mxu0 %v657
  %706 = vmatprep.mubr.bf16.mxu0 %v547
  %707 = vmatmul.mubr.bf16.gmra.mrb[0].mxu0 %v546
  %v708 = vpop.f32.mrb[0].mxu0
  %v709 = vadd.f32 0.0, %v708
  %v710 = vpop.f32.mrb[0].mxu0
  %v711 = vpop.f32.mrb[0].mxu0
  %v712 = vadd.f32 0.0, %v711
  %v713 = vpop.f32.mrb[0].mxu0
  %714 = vmatprep.mubr.bf16.mxu0 %v549
  %715 = vmatmul.mubr.bf16.gmra.mrb[0].mxu0 %v548
  %v716 = vpop.f32.mrb[0].mxu0
  %v717 = vadd.f32 0.0, %v716
  %v718 = vpop.f32.mrb[0].mxu0
  %v719 = vpop.f32.mrb[0].mxu0
  %v720 = vadd.f32 0.0, %v719
  %v721 = vpop.f32.mrb[0].mxu0
  %722 = vmatprep.mubr.bf16.mxu0 %v551
  %723 = vmatmul.mubr.bf16.gmra.mrb[0].mxu0 %v550
  %v724 = vpop.f32.mrb[0].mxu0
  %v725 = vadd.f32 0.0, %v724
  %v726 = vpop.f32.mrb[0].mxu0
  %v727 = vpop.f32.mrb[0].mxu0
  %v728 = vadd.f32 0.0, %v727
  %v729 = vpop.f32.mrb[0].mxu0
  %730 = vmatprep.mubr.bf16.mxu0 %v553
  %731 = vmatmul.mubr.bf16.gmra.mrb[0].mxu0 %v552
  %v732 = vpop.f32.mrb[0].mxu0
  %v733 = vadd.f32 0.0, %v732
  %v734 = vpop.f32.mrb[0].mxu0
  %v735 = vpop.f32.mrb[0].mxu0
  %v736 = vadd.f32 0.0, %v735
  %v737 = vpop.f32.mrb[0].mxu0
  %738 = vmatprep.mubr.bf16.mxu0 %v555
  %739 = vmatmul.mubr.bf16.gmra.mrb[0].mxu0 %v554
  %v740 = vpop.f32.mrb[0].mxu0
  %v741 = vadd.f32 0.0, %v740
  %v742 = vpop.f32.mrb[0].mxu0
  %v743 = vpop.f32.mrb[0].mxu0
  %v744 = vadd.f32 0.0, %v743
  %v745 = vpop.f32.mrb[0].mxu0
  %746 = vmatprep.mubr.bf16.mxu0 %v557
  %747 = vmatmul.mubr.bf16.gmra.mrb[0].mxu0 %v556
  %v748 = vpop.f32.mrb[0].mxu0
  %v749 = vadd.f32 0.0, %v748
  %v750 = vpop.f32.mrb[0].mxu0
  %v751 = vpop.f32.mrb[0].mxu0
  %v752 = vadd.f32 0.0, %v751
  %v753 = vpop.f32.mrb[0].mxu0
  %754 = vmatprep.mubr.bf16.mxu0 %v559
  %755 = vmatmul.mubr.bf16.gmra.mrb[0].mxu0 %v558
  %v756 = vpop.f32.mrb[0].mxu0
  %v757 = vadd.f32 0.0, %v756
  %v758 = vpop.f32.mrb[0].mxu0
  %v759 = vpop.f32.mrb[0].mxu0
  %v760 = vadd.f32 0.0, %v759
  %v761 = vpop.f32.mrb[0].mxu0
  %762 = vmatprep.mubr.bf16.mxu0 %v561
  %763 = vmatmul.mubr.bf16.gmra.mrb[0].mxu0 %v560
  %v764 = vpop.f32.mrb[0].mxu0
  %v765 = vadd.f32 0.0, %v764
  %v766 = vpop.f32.mrb[0].mxu0
  %v767 = vpop.f32.mrb[0].mxu0
  %v768 = vadd.f32 0.0, %v767
  %v769 = vpop.f32.mrb[0].mxu0
  %770 = vdwg.mxu0
  %787 = vrot.lane.b32.xlu0 %v709, 32
  %v788 = vpop.permute.xlu0 %787
  %789 = vrot.lane.b32.xlu0 %v712, 32
  %v790 = vpop.permute.xlu0 %789
  %791 = vrot.lane.b32.xlu0 %v717, 32
  %v792 = vpop.permute.xlu0 %791
  %793 = vrot.lane.b32.xlu0 %v720, 32
  %v794 = vpop.permute.xlu0 %793
  %795 = vrot.lane.b32.xlu0 %v725, 32
  %v796 = vpop.permute.xlu0 %795
  %797 = vrot.lane.b32.xlu0 %v728, 32
  %v798 = vpop.permute.xlu0 %797
  %799 = vrot.lane.b32.xlu0 %v733, 32
  %v800 = vpop.permute.xlu0 %799
  %801 = vrot.lane.b32.xlu0 %v736, 32
  %v802 = vpop.permute.xlu0 %801
  %803 = vrot.lane.b32.xlu0 %v741, 32
  %v804 = vpop.permute.xlu0 %803
  %805 = vrot.lane.b32.xlu0 %v744, 32
  %v806 = vpop.permute.xlu0 %805
  %807 = vrot.lane.b32.xlu0 %v749, 32
  %v808 = vpop.permute.xlu0 %807
  %809 = vrot.lane.b32.xlu0 %v752, 32
  %v810 = vpop.permute.xlu0 %809
  %811 = vrot.lane.b32.xlu0 %v757, 32
  %v812 = vpop.permute.xlu0 %811
  %813 = vrot.lane.b32.xlu0 %v760, 32
  %v814 = vpop.permute.xlu0 %813
  %815 = vrot.lane.b32.xlu0 %v765, 32
  %v816 = vpop.permute.xlu0 %815
  %817 = vrot.lane.b32.xlu0 %v768, 32
  %v818 = vpop.permute.xlu0 %817
  %vm835 = vcmask 523520
  %836 = vst.msk [vmem:[#allocation2] sm:$0xff] %vm835, %v788
  %837 = vst.msk [vmem:[#allocation2 + $0x8] sm:$0xff] %vm835, %v790
  %838 = vst.msk [vmem:[#allocation2 + $0x10] sm:$0xff] %vm835, %v792
  %839 = vst.msk [vmem:[#allocation2 + $0x18] sm:$0xff] %vm835, %v794
  %840 = vst.msk [vmem:[#allocation2 + $0x20] sm:$0xff] %vm835, %v796
  %841 = vst.msk [vmem:[#allocation2 + $0x28] sm:$0xff] %vm835, %v798
  %842 = vst.msk [vmem:[#allocation2 + $0x30] sm:$0xff] %vm835, %v800
  %843 = vst.msk [vmem:[#allocation2 + $0x38] sm:$0xff] %vm835, %v802
  %844 = vst.msk [vmem:[#allocation2 + $0x40] sm:$0xff] %vm835, %v804
  %845 = vst.msk [vmem:[#allocation2 + $0x48] sm:$0xff] %vm835, %v806
  %846 = vst.msk [vmem:[#allocation2 + $0x50] sm:$0xff] %vm835, %v808
  %847 = vst.msk [vmem:[#allocation2 + $0x58] sm:$0xff] %vm835, %v810
  %848 = vst.msk [vmem:[#allocation2 + $0x60] sm:$0xff] %vm835, %v812
  %849 = vst.msk [vmem:[#allocation2 + $0x68] sm:$0xff] %vm835, %v814
  %850 = vst.msk [vmem:[#allocation2 + $0x70] sm:$0xff] %vm835, %v816
  %851 = vst.msk [vmem:[#allocation2 + $0x78] sm:$0xff] %vm835, %v818
  %v852 = vsel %vm339, %v709, 0.0
  %v853 = vsel %vm339, %v712, 0.0
  %v854 = vadd.f32 %v852, %v853
  %v855 = vsel %vm339, %v717, 0.0
  %v856 = vadd.f32 %v854, %v855
  %v857 = vsel %vm339, %v720, 0.0
  %v858 = vadd.f32 %v856, %v857
  %v859 = vsel %vm339, %v725, 0.0
  %v860 = vadd.f32 %v858, %v859
  %v861 = vsel %vm339, %v728, 0.0
  %v862 = vadd.f32 %v860, %v861
  %v863 = vsel %vm339, %v733, 0.0
  %v864 = vadd.f32 %v862, %v863
  %v865 = vsel %vm339, %v736, 0.0
  %v866 = vadd.f32 %v864, %v865
  %v867 = vsel %vm339, %v741, 0.0
  %v868 = vadd.f32 %v866, %v867
  %v869 = vsel %vm339, %v744, 0.0
  %v870 = vadd.f32 %v868, %v869
  %v871 = vsel %vm339, %v749, 0.0
  %v872 = vadd.f32 %v870, %v871
  %v873 = vsel %vm339, %v752, 0.0
  %v874 = vadd.f32 %v872, %v873
  %v875 = vsel %vm339, %v757, 0.0
  %v876 = vadd.f32 %v874, %v875
  %v877 = vsel %vm339, %v760, 0.0
  %v878 = vadd.f32 %v876, %v877
  %v879 = vsel %vm339, %v765, 0.0
  %v880 = vadd.f32 %v878, %v879
  %v881 = vsel %vm339, %v768, 0.0
  %v882 = vadd.f32 %v880, %v881
  %v883 = vrot.slane %v882, 4
  %v884 = vadd.f32 %v882, %v883
  %v885 = vrot.slane %v884, 2
  %v886 = vadd.f32 %v884, %v885
  %v887 = vrot.slane %v886, 1
  %v888 = vadd.f32 %v886, %v887
  %v889 = vadd.f32 %v393, %v888
  %v890 = vmul.f32 %v709, %v709
  %v891 = vmul.f32 %v712, %v712
  %v892 = vmul.f32 %v717, %v717
  %v893 = vmul.f32 %v720, %v720
  %v894 = vmul.f32 %v725, %v725
  %v895 = vmul.f32 %v728, %v728
  %v896 = vmul.f32 %v733, %v733
  %v897 = vmul.f32 %v736, %v736
  %v898 = vmul.f32 %v741, %v741
  %v899 = vmul.f32 %v744, %v744
  %v900 = vmul.f32 %v749, %v749
  %v901 = vmul.f32 %v752, %v752
  %v902 = vmul.f32 %v757, %v757
  %v903 = vmul.f32 %v760, %v760
  %v904 = vmul.f32 %v765, %v765
  %v905 = vmul.f32 %v768, %v768
  %v906 = vsel %vm339, %v890, 0.0
  %v907 = vsel %vm339, %v891, 0.0
  %v908 = vadd.f32 %v906, %v907
  %v909 = vsel %vm339, %v892, 0.0
  %v910 = vadd.f32 %v908, %v909
  %v911 = vsel %vm339, %v893, 0.0
  %v912 = vadd.f32 %v910, %v911
  %v913 = vsel %vm339, %v894, 0.0
  %v914 = vadd.f32 %v912, %v913
  %v915 = vsel %vm339, %v895, 0.0
  %v916 = vadd.f32 %v914, %v915
  %v917 = vsel %vm339, %v896, 0.0
  %v918 = vadd.f32 %v916, %v917
  %v919 = vsel %vm339, %v897, 0.0
  %v920 = vadd.f32 %v918, %v919
  %v921 = vsel %vm339, %v898, 0.0
  %v922 = vadd.f32 %v920, %v921
  %v923 = vsel %vm339, %v899, 0.0
  %v924 = vadd.f32 %v922, %v923
  %v925 = vsel %vm339, %v900, 0.0
  %v926 = vadd.f32 %v924, %v925
  %v927 = vsel %vm339, %v901, 0.0
  %v928 = vadd.f32 %v926, %v927
  %v929 = vsel %vm339, %v902, 0.0
  %v930 = vadd.f32 %v928, %v929
  %v931 = vsel %vm339, %v903, 0.0
  %v932 = vadd.f32 %v930, %v931
  %v933 = vsel %vm339, %v904, 0.0
  %v934 = vadd.f32 %v932, %v933
  %v935 = vsel %vm339, %v905, 0.0
  %v936 = vadd.f32 %v934, %v935
  %v937 = vrot.slane %v936, 4
  %v938 = vadd.f32 %v936, %v937
  %v939 = vrot.slane %v938, 2
  %v940 = vadd.f32 %v938, %v939
  %v941 = vrot.slane %v940, 1
  %v942 = vadd.f32 %v940, %v941
  %v943 = vadd.f32 %v447, %v942
  %s944 = scalar_lea.vmem %s0, 256
  %v945 = vld [vmem:[%s944] sm:$0xff]
  %v946 = vld [vmem:[%s944 + $0x8] sm:$0xff]
  %v947 = vld [vmem:[%s944 + $0x10] sm:$0xff]
  %v948 = vld [vmem:[%s944 + $0x18] sm:$0xff]
  %v949 = vld [vmem:[%s944 + $0x20] sm:$0xff]
  %v950 = vld [vmem:[%s944 + $0x28] sm:$0xff]
  %v951 = vld [vmem:[%s944 + $0x30] sm:$0xff]
  %v952 = vld [vmem:[%s944 + $0x38] sm:$0xff]
  %v953 = vld [vmem:[%s944 + $0x40] sm:$0xff]
  %v954 = vld [vmem:[%s944 + $0x48] sm:$0xff]
  %v955 = vld [vmem:[%s944 + $0x50] sm:$0xff]
  %v956 = vld [vmem:[%s944 + $0x58] sm:$0xff]
  %v957 = vld [vmem:[%s944 + $0x60] sm:$0xff]
  %v958 = vld [vmem:[%s944 + $0x68] sm:$0xff]
  %v959 = vld [vmem:[%s944 + $0x70] sm:$0xff]
  %v960 = vld [vmem:[%s944 + $0x78] sm:$0xff]
  %s961 = scalar_lea.vmem %s1, 256
  %v962 = vld [vmem:[%s961] sm:$0xf]
  %v963 = vld [vmem:[%s961 + $0x4] sm:$0xf]
  %v964 = vld [vmem:[%s961 + $0x8] sm:$0xf]
  %v965 = vld [vmem:[%s961 + $0xc] sm:$0xf]
  %v966 = vld [vmem:[%s961 + $0x10] sm:$0xf]
  %v967 = vld [vmem:[%s961 + $0x14] sm:$0xf]
  %v968 = vld [vmem:[%s961 + $0x18] sm:$0xf]
  %v969 = vld [vmem:[%s961 + $0x1c] sm:$0xf]
  %v970 = vld [vmem:[%s961 + $0x20] sm:$0xf]
  %v971 = vld [vmem:[%s961 + $0x24] sm:$0xf]
  %v972 = vld [vmem:[%s961 + $0x28] sm:$0xf]
  %v973 = vld [vmem:[%s961 + $0x2c] sm:$0xf]
  %v974 = vld [vmem:[%s961 + $0x30] sm:$0xf]
  %v975 = vld [vmem:[%s961 + $0x34] sm:$0xf]
  %v976 = vld [vmem:[%s961 + $0x38] sm:$0xf]
  %v977 = vld [vmem:[%s961 + $0x3c] sm:$0xf]
  %v978 = vld [vmem:[%s961 + $0x40] sm:$0xf]
  %v979 = vld [vmem:[%s961 + $0x44] sm:$0xf]
  %v980 = vld [vmem:[%s961 + $0x48] sm:$0xf]
  %v981 = vld [vmem:[%s961 + $0x4c] sm:$0xf]
  %v982 = vld [vmem:[%s961 + $0x50] sm:$0xf]
  %v983 = vld [vmem:[%s961 + $0x54] sm:$0xf]
  %v984 = vld [vmem:[%s961 + $0x58] sm:$0xf]
  %v985 = vld [vmem:[%s961 + $0x5c] sm:$0xf]
  %v986 = vld [vmem:[%s961 + $0x60] sm:$0xf]
  %v987 = vld [vmem:[%s961 + $0x64] sm:$0xf]
  %v988 = vld [vmem:[%s961 + $0x68] sm:$0xf]
  %v989 = vld [vmem:[%s961 + $0x6c] sm:$0xf]
  %v990 = vld [vmem:[%s961 + $0x70] sm:$0xf]
  %v991 = vld [vmem:[%s961 + $0x74] sm:$0xf]
  %v992 = vld [vmem:[%s961 + $0x78] sm:$0xf]
  %v993 = vld [vmem:[%s961 + $0x7c] sm:$0xf]
  %v1010 = vunpack.c.l.b16 %v945
  %v1011 = vunpack.c.h.b16 %v945
  %v1012 = vunpack.c.l.b16 %v946
  %v1013 = vunpack.c.h.b16 %v946
  %v1014 = vunpack.c.l.b16 %v947
  %v1015 = vunpack.c.h.b16 %v947
  %v1016 = vunpack.c.l.b16 %v948
  %v1017 = vunpack.c.h.b16 %v948
  %v1018 = vunpack.c.l.b16 %v949
  %v1019 = vunpack.c.h.b16 %v949
  %v1020 = vunpack.c.l.b16 %v950
  %v1021 = vunpack.c.h.b16 %v950
  %v1022 = vunpack.c.l.b16 %v951
  %v1023 = vunpack.c.h.b16 %v951
  %v1024 = vunpack.c.l.b16 %v952
  %v1025 = vunpack.c.h.b16 %v952
  %v1026 = vunpack.c.l.b16 %v953
  %v1027 = vunpack.c.h.b16 %v953
  %v1028 = vunpack.c.l.b16 %v954
  %v1029 = vunpack.c.h.b16 %v954
  %v1030 = vunpack.c.l.b16 %v955
  %v1031 = vunpack.c.h.b16 %v955
  %v1032 = vunpack.c.l.b16 %v956
  %v1033 = vunpack.c.h.b16 %v956
  %v1034 = vunpack.c.l.b16 %v957
  %v1035 = vunpack.c.h.b16 %v957
  %v1036 = vunpack.c.l.b16 %v958
  %v1037 = vunpack.c.h.b16 %v958
  %v1038 = vunpack.c.l.b16 %v959
  %v1039 = vunpack.c.h.b16 %v959
  %v1040 = vunpack.c.l.b16 %v960
  %v1041 = vunpack.c.h.b16 %v960
  %v1042 = vpack.c.b16 %v1012, %v1010
  %v1043 = vpack.c.b16 %v1013, %v1011
  %v1044 = vpack.c.b16 %v1016, %v1014
  %v1045 = vpack.c.b16 %v1017, %v1015
  %v1046 = vpack.c.b16 %v1020, %v1018
  %v1047 = vpack.c.b16 %v1021, %v1019
  %v1048 = vpack.c.b16 %v1024, %v1022
  %v1049 = vpack.c.b16 %v1025, %v1023
  %v1050 = vpack.c.b16 %v1028, %v1026
  %v1051 = vpack.c.b16 %v1029, %v1027
  %v1052 = vpack.c.b16 %v1032, %v1030
  %v1053 = vpack.c.b16 %v1033, %v1031
  %v1054 = vpack.c.b16 %v1036, %v1034
  %v1055 = vpack.c.b16 %v1037, %v1035
  %v1056 = vpack.c.b16 %v1040, %v1038
  %v1057 = vpack.c.b16 %v1041, %v1039
  %v1106 = vunpack.c.l.b16 %v962
  %v1107 = vunpack.c.l.b16 %v963
  %v1108 = vunpack.c.l.b16 %v964
  %v1109 = vunpack.c.l.b16 %v965
  %v1110 = vunpack.c.l.b16 %v966
  %v1111 = vunpack.c.l.b16 %v967
  %v1112 = vunpack.c.l.b16 %v968
  %v1113 = vunpack.c.l.b16 %v969
  %v1114 = vunpack.c.l.b16 %v970
  %v1115 = vunpack.c.l.b16 %v971
  %v1116 = vunpack.c.l.b16 %v972
  %v1117 = vunpack.c.l.b16 %v973
  %v1118 = vunpack.c.l.b16 %v974
  %v1119 = vunpack.c.l.b16 %v975
  %v1120 = vunpack.c.l.b16 %v976
  %v1121 = vunpack.c.l.b16 %v977
  %v1122 = vunpack.c.l.b16 %v978
  %v1123 = vunpack.c.l.b16 %v979
  %v1124 = vunpack.c.l.b16 %v980
  %v1125 = vunpack.c.l.b16 %v981
  %v1126 = vunpack.c.l.b16 %v982
  %v1127 = vunpack.c.l.b16 %v983
  %v1128 = vunpack.c.l.b16 %v984
  %v1129 = vunpack.c.l.b16 %v985
  %v1130 = vunpack.c.l.b16 %v986
  %v1131 = vunpack.c.l.b16 %v987
  %v1132 = vunpack.c.l.b16 %v988
  %v1133 = vunpack.c.l.b16 %v989
  %v1134 = vunpack.c.l.b16 %v990
  %v1135 = vunpack.c.l.b16 %v991
  %v1136 = vunpack.c.l.b16 %v992
  %v1137 = vunpack.c.l.b16 %v993
  %v1138 = vpack.c.b16 %v1107, %v1106
  %v1139 = vpack.c.b16 %v1109, %v1108
  %v1140 = vpack.c.b16 %v1111, %v1110
  %v1141 = vpack.c.b16 %v1113, %v1112
  %v1142 = vpack.c.b16 %v1115, %v1114
  %v1143 = vpack.c.b16 %v1117, %v1116
  %v1144 = vpack.c.b16 %v1119, %v1118
  %v1145 = vpack.c.b16 %v1121, %v1120
  %v1146 = vpack.c.b16 %v1123, %v1122
  %v1147 = vpack.c.b16 %v1125, %v1124
  %v1148 = vpack.c.b16 %v1127, %v1126
  %v1149 = vpack.c.b16 %v1129, %v1128
  %v1150 = vpack.c.b16 %v1131, %v1130
  %v1151 = vpack.c.b16 %v1133, %v1132
  %v1152 = vpack.c.b16 %v1135, %v1134
  %v1153 = vpack.c.b16 %v1137, %v1136
  %1170 = vmatprep.subr.bf16.mxu0 0
  %1171 = vmatpush1.bf16.msra.mxu0 %v1138
  %1172 = vmatprep.subr.bf16.mxu0 0
  %1173 = vmatpush1.bf16.msra.mxu0 %v1139
  %1174 = vmatprep.subr.bf16.mxu0 0
  %1175 = vmatpush1.bf16.msra.mxu0 %v1140
  %1176 = vmatprep.subr.bf16.mxu0 0
  %1177 = vmatpush1.bf16.msra.mxu0 %v1141
  %1178 = vmatprep.subr.bf16.mxu0 0
  %1179 = vmatpush1.bf16.msra.mxu0 %v1142
  %1180 = vmatprep.subr.bf16.mxu0 0
  %1181 = vmatpush1.bf16.msra.mxu0 %v1143
  %1182 = vmatprep.subr.bf16.mxu0 0
  %1183 = vmatpush1.bf16.msra.mxu0 %v1144
  %1184 = vmatprep.subr.bf16.mxu0 0
  %1185 = vmatpush1.bf16.msra.mxu0 %v1145
  %1186 = vmatprep.subr.bf16.mxu0 0
  %1187 = vmatpush1.bf16.msra.mxu0 %v1146
  %1188 = vmatprep.subr.bf16.mxu0 0
  %1189 = vmatpush1.bf16.msra.mxu0 %v1147
  %1190 = vmatprep.subr.bf16.mxu0 0
  %1191 = vmatpush1.bf16.msra.mxu0 %v1148
  %1192 = vmatprep.subr.bf16.mxu0 0
  %1193 = vmatpush1.bf16.msra.mxu0 %v1149
  %1194 = vmatprep.subr.bf16.mxu0 0
  %1195 = vmatpush1.bf16.msra.mxu0 %v1150
  %1196 = vmatprep.subr.bf16.mxu0 0
  %1197 = vmatpush1.bf16.msra.mxu0 %v1151
  %1198 = vmatprep.subr.bf16.mxu0 0
  %1199 = vmatpush1.bf16.msra.mxu0 %v1152
  %1200 = vmatprep.subr.bf16.mxu0 0
  %1201 = vmatpush1.bf16.msra.mxu0 %v1153
  %1202 = vmatprep.mubr.bf16.mxu0 %v1043
  %1203 = vmatmul.mubr.bf16.gmra.mrb[0].mxu0 %v1042
  %v1204 = vpop.f32.mrb[0].mxu0
  %v1205 = vadd.f32 0.0, %v1204
  %v1206 = vpop.f32.mrb[0].mxu0
  %v1207 = vpop.f32.mrb[0].mxu0
  %v1208 = vadd.f32 0.0, %v1207
  %v1209 = vpop.f32.mrb[0].mxu0
  %1210 = vmatprep.mubr.bf16.mxu0 %v1045
  %1211 = vmatmul.mubr.bf16.gmra.mrb[0].mxu0 %v1044
  %v1212 = vpop.f32.mrb[0].mxu0
  %v1213 = vadd.f32 0.0, %v1212
  %v1214 = vpop.f32.mrb[0].mxu0
  %v1215 = vpop.f32.mrb[0].mxu0
  %v1216 = vadd.f32 0.0, %v1215
  %v1217 = vpop.f32.mrb[0].mxu0
  %1218 = vmatprep.mubr.bf16.mxu0 %v1047
  %1219 = vmatmul.mubr.bf16.gmra.mrb[0].mxu0 %v1046
  %v1220 = vpop.f32.mrb[0].mxu0
  %v1221 = vadd.f32 0.0, %v1220
  %v1222 = vpop.f32.mrb[0].mxu0
  %v1223 = vpop.f32.mrb[0].mxu0
  %v1224 = vadd.f32 0.0, %v1223
  %v1225 = vpop.f32.mrb[0].mxu0
  %1226 = vmatprep.mubr.bf16.mxu0 %v1049
  %1227 = vmatmul.mubr.bf16.gmra.mrb[0].mxu0 %v1048
  %v1228 = vpop.f32.mrb[0].mxu0
  %v1229 = vadd.f32 0.0, %v1228
  %v1230 = vpop.f32.mrb[0].mxu0
  %v1231 = vpop.f32.mrb[0].mxu0
  %v1232 = vadd.f32 0.0, %v1231
  %v1233 = vpop.f32.mrb[0].mxu0
  %1234 = vmatprep.mubr.bf16.mxu0 %v1051
  %1235 = vmatmul.mubr.bf16.gmra.mrb[0].mxu0 %v1050
  %v1236 = vpop.f32.mrb[0].mxu0
  %v1237 = vadd.f32 0.0, %v1236
  %v1238 = vpop.f32.mrb[0].mxu0
  %v1239 = vpop.f32.mrb[0].mxu0
  %v1240 = vadd.f32 0.0, %v1239
  %v1241 = vpop.f32.mrb[0].mxu0
  %1242 = vmatprep.mubr.bf16.mxu0 %v1053
  %1243 = vmatmul.mubr.bf16.gmra.mrb[0].mxu0 %v1052
  %v1244 = vpop.f32.mrb[0].mxu0
  %v1245 = vadd.f32 0.0, %v1244
  %v1246 = vpop.f32.mrb[0].mxu0
  %v1247 = vpop.f32.mrb[0].mxu0
  %v1248 = vadd.f32 0.0, %v1247
  %v1249 = vpop.f32.mrb[0].mxu0
  %1250 = vmatprep.mubr.bf16.mxu0 %v1055
  %1251 = vmatmul.mubr.bf16.gmra.mrb[0].mxu0 %v1054
  %v1252 = vpop.f32.mrb[0].mxu0
  %v1253 = vadd.f32 0.0, %v1252
  %v1254 = vpop.f32.mrb[0].mxu0
  %v1255 = vpop.f32.mrb[0].mxu0
  %v1256 = vadd.f32 0.0, %v1255
  %v1257 = vpop.f32.mrb[0].mxu0
  %1258 = vmatprep.mubr.bf16.mxu0 %v1057
  %1259 = vmatmul.mubr.bf16.gmra.mrb[0].mxu0 %v1056
  %v1260 = vpop.f32.mrb[0].mxu0
  %v1261 = vadd.f32 0.0, %v1260
  %v1262 = vpop.f32.mrb[0].mxu0
  %v1263 = vpop.f32.mrb[0].mxu0
  %v1264 = vadd.f32 0.0, %v1263
  %v1265 = vpop.f32.mrb[0].mxu0
  %1266 = vdwg.mxu0
  %1283 = vrot.lane.b32.xlu0 %v1205, 64
  %v1284 = vpop.permute.xlu0 %1283
  %1285 = vrot.lane.b32.xlu0 %v1208, 64
  %v1286 = vpop.permute.xlu0 %1285
  %1287 = vrot.lane.b32.xlu0 %v1213, 64
  %v1288 = vpop.permute.xlu0 %1287
  %1289 = vrot.lane.b32.xlu0 %v1216, 64
  %v1290 = vpop.permute.xlu0 %1289
  %1291 = vrot.lane.b32.xlu0 %v1221, 64
  %v1292 = vpop.permute.xlu0 %1291
  %1293 = vrot.lane.b32.xlu0 %v1224, 64
  %v1294 = vpop.permute.xlu0 %1293
  %1295 = vrot.lane.b32.xlu0 %v1229, 64
  %v1296 = vpop.permute.xlu0 %1295
  %1297 = vrot.lane.b32.xlu0 %v1232, 64
  %v1298 = vpop.permute.xlu0 %1297
  %1299 = vrot.lane.b32.xlu0 %v1237, 64
  %v1300 = vpop.permute.xlu0 %1299
  %1301 = vrot.lane.b32.xlu0 %v1240, 64
  %v1302 = vpop.permute.xlu0 %1301
  %1303 = vrot.lane.b32.xlu0 %v1245, 64
  %v1304 = vpop.permute.xlu0 %1303
  %1305 = vrot.lane.b32.xlu0 %v1248, 64
  %v1306 = vpop.permute.xlu0 %1305
  %1307 = vrot.lane.b32.xlu0 %v1253, 64
  %v1308 = vpop.permute.xlu0 %1307
  %1309 = vrot.lane.b32.xlu0 %v1256, 64
  %v1310 = vpop.permute.xlu0 %1309
  %1311 = vrot.lane.b32.xlu0 %v1261, 64
  %v1312 = vpop.permute.xlu0 %1311
  %1313 = vrot.lane.b32.xlu0 %v1264, 64
  %v1314 = vpop.permute.xlu0 %1313
  %vm1331 = vcmask 785920
  %1332 = vst.msk [vmem:[#allocation2] sm:$0xff] %vm1331, %v1284
  %1333 = vst.msk [vmem:[#allocation2 + $0x8] sm:$0xff] %vm1331, %v1286
  %1334 = vst.msk [vmem:[#allocation2 + $0x10] sm:$0xff] %vm1331, %v1288
  %1335 = vst.msk [vmem:[#allocation2 + $0x18] sm:$0xff] %vm1331, %v1290
  %1336 = vst.msk [vmem:[#allocation2 + $0x20] sm:$0xff] %vm1331, %v1292
  %1337 = vst.msk [vmem:[#allocation2 + $0x28] sm:$0xff] %vm1331, %v1294
  %1338 = vst.msk [vmem:[#allocation2 + $0x30] sm:$0xff] %vm1331, %v1296
  %1339 = vst.msk [vmem:[#allocation2 + $0x38] sm:$0xff] %vm1331, %v1298
  %1340 = vst.msk [vmem:[#allocation2 + $0x40] sm:$0xff] %vm1331, %v1300
  %1341 = vst.msk [vmem:[#allocation2 + $0x48] sm:$0xff] %vm1331, %v1302
  %1342 = vst.msk [vmem:[#allocation2 + $0x50] sm:$0xff] %vm1331, %v1304
  %1343 = vst.msk [vmem:[#allocation2 + $0x58] sm:$0xff] %vm1331, %v1306
  %1344 = vst.msk [vmem:[#allocation2 + $0x60] sm:$0xff] %vm1331, %v1308
  %1345 = vst.msk [vmem:[#allocation2 + $0x68] sm:$0xff] %vm1331, %v1310
  %1346 = vst.msk [vmem:[#allocation2 + $0x70] sm:$0xff] %vm1331, %v1312
  %1347 = vst.msk [vmem:[#allocation2 + $0x78] sm:$0xff] %vm1331, %v1314
  %v1348 = vsel %vm339, %v1205, 0.0
  %v1349 = vsel %vm339, %v1208, 0.0
  %v1350 = vadd.f32 %v1348, %v1349
  %v1351 = vsel %vm339, %v1213, 0.0
  %v1352 = vadd.f32 %v1350, %v1351
  %v1353 = vsel %vm339, %v1216, 0.0
  %v1354 = vadd.f32 %v1352, %v1353
  %v1355 = vsel %vm339, %v1221, 0.0
  %v1356 = vadd.f32 %v1354, %v1355
  %v1357 = vsel %vm339, %v1224, 0.0
  %v1358 = vadd.f32 %v1356, %v1357
  %v1359 = vsel %vm339, %v1229, 0.0
  %v1360 = vadd.f32 %v1358, %v1359
  %v1361 = vsel %vm339, %v1232, 0.0
  %v1362 = vadd.f32 %v1360, %v1361
  %v1363 = vsel %vm339, %v1237, 0.0
  %v1364 = vadd.f32 %v1362, %v1363
  %v1365 = vsel %vm339, %v1240, 0.0
  %v1366 = vadd.f32 %v1364, %v1365
  %v1367 = vsel %vm339, %v1245, 0.0
  %v1368 = vadd.f32 %v1366, %v1367
  %v1369 = vsel %vm339, %v1248, 0.0
  %v1370 = vadd.f32 %v1368, %v1369
  %v1371 = vsel %vm339, %v1253, 0.0
  %v1372 = vadd.f32 %v1370, %v1371
  %v1373 = vsel %vm339, %v1256, 0.0
  %v1374 = vadd.f32 %v1372, %v1373
  %v1375 = vsel %vm339, %v1261, 0.0
  %v1376 = vadd.f32 %v1374, %v1375
  %v1377 = vsel %vm339, %v1264, 0.0
  %v1378 = vadd.f32 %v1376, %v1377
  %v1379 = vrot.slane %v1378, 4
  %v1380 = vadd.f32 %v1378, %v1379
  %v1381 = vrot.slane %v1380, 2
  %v1382 = vadd.f32 %v1380, %v1381
  %v1383 = vrot.slane %v1382, 1
  %v1384 = vadd.f32 %v1382, %v1383
  %v1385 = vadd.f32 %v889, %v1384
  %v1386 = vmul.f32 %v1205, %v1205
  %v1387 = vmul.f32 %v1208, %v1208
  %v1388 = vmul.f32 %v1213, %v1213
  %v1389 = vmul.f32 %v1216, %v1216
  %v1390 = vmul.f32 %v1221, %v1221
  %v1391 = vmul.f32 %v1224, %v1224
  %v1392 = vmul.f32 %v1229, %v1229
  %v1393 = vmul.f32 %v1232, %v1232
  %v1394 = vmul.f32 %v1237, %v1237
  %v1395 = vmul.f32 %v1240, %v1240
  %v1396 = vmul.f32 %v1245, %v1245
  %v1397 = vmul.f32 %v1248, %v1248
  %v1398 = vmul.f32 %v1253, %v1253
  %v1399 = vmul.f32 %v1256, %v1256
  %v1400 = vmul.f32 %v1261, %v1261
  %v1401 = vmul.f32 %v1264, %v1264
  %v1402 = vsel %vm339, %v1386, 0.0
  %v1403 = vsel %vm339, %v1387, 0.0
  %v1404 = vadd.f32 %v1402, %v1403
  %v1405 = vsel %vm339, %v1388, 0.0
  %v1406 = vadd.f32 %v1404, %v1405
  %v1407 = vsel %vm339, %v1389, 0.0
  %v1408 = vadd.f32 %v1406, %v1407
  %v1409 = vsel %vm339, %v1390, 0.0
  %v1410 = vadd.f32 %v1408, %v1409
  %v1411 = vsel %vm339, %v1391, 0.0
  %v1412 = vadd.f32 %v1410, %v1411
  %v1413 = vsel %vm339, %v1392, 0.0
  %v1414 = vadd.f32 %v1412, %v1413
  %v1415 = vsel %vm339, %v1393, 0.0
  %v1416 = vadd.f32 %v1414, %v1415
  %v1417 = vsel %vm339, %v1394, 0.0
  %v1418 = vadd.f32 %v1416, %v1417
  %v1419 = vsel %vm339, %v1395, 0.0
  %v1420 = vadd.f32 %v1418, %v1419
  %v1421 = vsel %vm339, %v1396, 0.0
  %v1422 = vadd.f32 %v1420, %v1421
  %v1423 = vsel %vm339, %v1397, 0.0
  %v1424 = vadd.f32 %v1422, %v1423
  %v1425 = vsel %vm339, %v1398, 0.0
  %v1426 = vadd.f32 %v1424, %v1425
  %v1427 = vsel %vm339, %v1399, 0.0
  %v1428 = vadd.f32 %v1426, %v1427
  %v1429 = vsel %vm339, %v1400, 0.0
  %v1430 = vadd.f32 %v1428, %v1429
  %v1431 = vsel %vm339, %v1401, 0.0
  %v1432 = vadd.f32 %v1430, %v1431
  %v1433 = vrot.slane %v1432, 4
  %v1434 = vadd.f32 %v1432, %v1433
  %v1435 = vrot.slane %v1434, 2
  %v1436 = vadd.f32 %v1434, %v1435
  %v1437 = vrot.slane %v1436, 1
  %v1438 = vadd.f32 %v1436, %v1437
  %v1439 = vadd.f32 %v943, %v1438
  %s1440 = scalar_lea.vmem %s0, 384
  %v1441 = vld [vmem:[%s1440] sm:$0xff]
  %v1442 = vld [vmem:[%s1440 + $0x8] sm:$0xff]
  %v1443 = vld [vmem:[%s1440 + $0x10] sm:$0xff]
  %v1444 = vld [vmem:[%s1440 + $0x18] sm:$0xff]
  %v1445 = vld [vmem:[%s1440 + $0x20] sm:$0xff]
  %v1446 = vld [vmem:[%s1440 + $0x28] sm:$0xff]
  %v1447 = vld [vmem:[%s1440 + $0x30] sm:$0xff]
  %v1448 = vld [vmem:[%s1440 + $0x38] sm:$0xff]
  %v1449 = vld [vmem:[%s1440 + $0x40] sm:$0xff]
  %v1450 = vld [vmem:[%s1440 + $0x48] sm:$0xff]
  %v1451 = vld [vmem:[%s1440 + $0x50] sm:$0xff]
  %v1452 = vld [vmem:[%s1440 + $0x58] sm:$0xff]
  %v1453 = vld [vmem:[%s1440 + $0x60] sm:$0xff]
  %v1454 = vld [vmem:[%s1440 + $0x68] sm:$0xff]
  %v1455 = vld [vmem:[%s1440 + $0x70] sm:$0xff]
  %v1456 = vld [vmem:[%s1440 + $0x78] sm:$0xff]
  %s1457 = scalar_lea.vmem %s1, 384
  %v1458 = vld [vmem:[%s1457] sm:$0xf]
  %v1459 = vld [vmem:[%s1457 + $0x4] sm:$0xf]
  %v1460 = vld [vmem:[%s1457 + $0x8] sm:$0xf]
  %v1461 = vld [vmem:[%s1457 + $0xc] sm:$0xf]
  %v1462 = vld [vmem:[%s1457 + $0x10] sm:$0xf]
  %v1463 = vld [vmem:[%s1457 + $0x14] sm:$0xf]
  %v1464 = vld [vmem:[%s1457 + $0x18] sm:$0xf]
  %v1465 = vld [vmem:[%s1457 + $0x1c] sm:$0xf]
  %v1466 = vld [vmem:[%s1457 + $0x20] sm:$0xf]
  %v1467 = vld [vmem:[%s1457 + $0x24] sm:$0xf]
  %v1468 = vld [vmem:[%s1457 + $0x28] sm:$0xf]
  %v1469 = vld [vmem:[%s1457 + $0x2c] sm:$0xf]
  %v1470 = vld [vmem:[%s1457 + $0x30] sm:$0xf]
  %v1471 = vld [vmem:[%s1457 + $0x34] sm:$0xf]
  %v1472 = vld [vmem:[%s1457 + $0x38] sm:$0xf]
  %v1473 = vld [vmem:[%s1457 + $0x3c] sm:$0xf]
  %v1474 = vld [vmem:[%s1457 + $0x40] sm:$0xf]
  %v1475 = vld [vmem:[%s1457 + $0x44] sm:$0xf]
  %v1476 = vld [vmem:[%s1457 + $0x48] sm:$0xf]
  %v1477 = vld [vmem:[%s1457 + $0x4c] sm:$0xf]
  %v1478 = vld [vmem:[%s1457 + $0x50] sm:$0xf]
  %v1479 = vld [vmem:[%s1457 + $0x54] sm:$0xf]
  %v1480 = vld [vmem:[%s1457 + $0x58] sm:$0xf]
  %v1481 = vld [vmem:[%s1457 + $0x5c] sm:$0xf]
  %v1482 = vld [vmem:[%s1457 + $0x60] sm:$0xf]
  %v1483 = vld [vmem:[%s1457 + $0x64] sm:$0xf]
  %v1484 = vld [vmem:[%s1457 + $0x68] sm:$0xf]
  %v1485 = vld [vmem:[%s1457 + $0x6c] sm:$0xf]
  %v1486 = vld [vmem:[%s1457 + $0x70] sm:$0xf]
  %v1487 = vld [vmem:[%s1457 + $0x74] sm:$0xf]
  %v1488 = vld [vmem:[%s1457 + $0x78] sm:$0xf]
  %v1489 = vld [vmem:[%s1457 + $0x7c] sm:$0xf]
  %v1506 = vunpack.c.l.b16 %v1441
  %v1507 = vunpack.c.h.b16 %v1441
  %v1508 = vunpack.c.l.b16 %v1442
  %v1509 = vunpack.c.h.b16 %v1442
  %v1510 = vunpack.c.l.b16 %v1443
  %v1511 = vunpack.c.h.b16 %v1443
  %v1512 = vunpack.c.l.b16 %v1444
  %v1513 = vunpack.c.h.b16 %v1444
  %v1514 = vunpack.c.l.b16 %v1445
  %v1515 = vunpack.c.h.b16 %v1445
  %v1516 = vunpack.c.l.b16 %v1446
  %v1517 = vunpack.c.h.b16 %v1446
  %v1518 = vunpack.c.l.b16 %v1447
  %v1519 = vunpack.c.h.b16 %v1447
  %v1520 = vunpack.c.l.b16 %v1448
  %v1521 = vunpack.c.h.b16 %v1448
  %v1522 = vunpack.c.l.b16 %v1449
  %v1523 = vunpack.c.h.b16 %v1449
  %v1524 = vunpack.c.l.b16 %v1450
  %v1525 = vunpack.c.h.b16 %v1450
  %v1526 = vunpack.c.l.b16 %v1451
  %v1527 = vunpack.c.h.b16 %v1451
  %v1528 = vunpack.c.l.b16 %v1452
  %v1529 = vunpack.c.h.b16 %v1452
  %v1530 = vunpack.c.l.b16 %v1453
  %v1531 = vunpack.c.h.b16 %v1453
  %v1532 = vunpack.c.l.b16 %v1454
  %v1533 = vunpack.c.h.b16 %v1454
  %v1534 = vunpack.c.l.b16 %v1455
  %v1535 = vunpack.c.h.b16 %v1455
  %v1536 = vunpack.c.l.b16 %v1456
  %v1537 = vunpack.c.h.b16 %v1456
  %v1538 = vpack.c.b16 %v1508, %v1506
  %v1539 = vpack.c.b16 %v1509, %v1507
  %v1540 = vpack.c.b16 %v1512, %v1510
  %v1541 = vpack.c.b16 %v1513, %v1511
  %v1542 = vpack.c.b16 %v1516, %v1514
  %v1543 = vpack.c.b16 %v1517, %v1515
  %v1544 = vpack.c.b16 %v1520, %v1518
  %v1545 = vpack.c.b16 %v1521, %v1519
  %v1546 = vpack.c.b16 %v1524, %v1522
  %v1547 = vpack.c.b16 %v1525, %v1523
  %v1548 = vpack.c.b16 %v1528, %v1526
  %v1549 = vpack.c.b16 %v1529, %v1527
  %v1550 = vpack.c.b16 %v1532, %v1530
  %v1551 = vpack.c.b16 %v1533, %v1531
  %v1552 = vpack.c.b16 %v1536, %v1534
  %v1553 = vpack.c.b16 %v1537, %v1535
  %v1602 = vunpack.c.l.b16 %v1458
  %v1603 = vunpack.c.l.b16 %v1459
  %v1604 = vunpack.c.l.b16 %v1460
  %v1605 = vunpack.c.l.b16 %v1461
  %v1606 = vunpack.c.l.b16 %v1462
  %v1607 = vunpack.c.l.b16 %v1463
  %v1608 = vunpack.c.l.b16 %v1464
  %v1609 = vunpack.c.l.b16 %v1465
  %v1610 = vunpack.c.l.b16 %v1466
  %v1611 = vunpack.c.l.b16 %v1467
  %v1612 = vunpack.c.l.b16 %v1468
  %v1613 = vunpack.c.l.b16 %v1469
  %v1614 = vunpack.c.l.b16 %v1470
  %v1615 = vunpack.c.l.b16 %v1471
  %v1616 = vunpack.c.l.b16 %v1472
  %v1617 = vunpack.c.l.b16 %v1473
  %v1618 = vunpack.c.l.b16 %v1474
  %v1619 = vunpack.c.l.b16 %v1475
  %v1620 = vunpack.c.l.b16 %v1476
  %v1621 = vunpack.c.l.b16 %v1477
  %v1622 = vunpack.c.l.b16 %v1478
  %v1623 = vunpack.c.l.b16 %v1479
  %v1624 = vunpack.c.l.b16 %v1480
  %v1625 = vunpack.c.l.b16 %v1481
  %v1626 = vunpack.c.l.b16 %v1482
  %v1627 = vunpack.c.l.b16 %v1483
  %v1628 = vunpack.c.l.b16 %v1484
  %v1629 = vunpack.c.l.b16 %v1485
  %v1630 = vunpack.c.l.b16 %v1486
  %v1631 = vunpack.c.l.b16 %v1487
  %v1632 = vunpack.c.l.b16 %v1488
  %v1633 = vunpack.c.l.b16 %v1489
  %v1634 = vpack.c.b16 %v1603, %v1602
  %v1635 = vpack.c.b16 %v1605, %v1604
  %v1636 = vpack.c.b16 %v1607, %v1606
  %v1637 = vpack.c.b16 %v1609, %v1608
  %v1638 = vpack.c.b16 %v1611, %v1610
  %v1639 = vpack.c.b16 %v1613, %v1612
  %v1640 = vpack.c.b16 %v1615, %v1614
  %v1641 = vpack.c.b16 %v1617, %v1616
  %v1642 = vpack.c.b16 %v1619, %v1618
  %v1643 = vpack.c.b16 %v1621, %v1620
  %v1644 = vpack.c.b16 %v1623, %v1622
  %v1645 = vpack.c.b16 %v1625, %v1624
  %v1646 = vpack.c.b16 %v1627, %v1626
  %v1647 = vpack.c.b16 %v1629, %v1628
  %v1648 = vpack.c.b16 %v1631, %v1630
  %v1649 = vpack.c.b16 %v1633, %v1632
  %1666 = vmatprep.subr.bf16.mxu0 0
  %1667 = vmatpush1.bf16.msra.mxu0 %v1634
  %1668 = vmatprep.subr.bf16.mxu0 0
  %1669 = vmatpush1.bf16.msra.mxu0 %v1635
  %1670 = vmatprep.subr.bf16.mxu0 0
  %1671 = vmatpush1.bf16.msra.mxu0 %v1636
  %1672 = vmatprep.subr.bf16.mxu0 0
  %1673 = vmatpush1.bf16.msra.mxu0 %v1637
  %1674 = vmatprep.subr.bf16.mxu0 0
  %1675 = vmatpush1.bf16.msra.mxu0 %v1638
  %1676 = vmatprep.subr.bf16.mxu0 0
  %1677 = vmatpush1.bf16.msra.mxu0 %v1639
  %1678 = vmatprep.subr.bf16.mxu0 0
  %1679 = vmatpush1.bf16.msra.mxu0 %v1640
  %1680 = vmatprep.subr.bf16.mxu0 0
  %1681 = vmatpush1.bf16.msra.mxu0 %v1641
  %1682 = vmatprep.subr.bf16.mxu0 0
  %1683 = vmatpush1.bf16.msra.mxu0 %v1642
  %1684 = vmatprep.subr.bf16.mxu0 0
  %1685 = vmatpush1.bf16.msra.mxu0 %v1643
  %1686 = vmatprep.subr.bf16.mxu0 0
  %1687 = vmatpush1.bf16.msra.mxu0 %v1644
  %1688 = vmatprep.subr.bf16.mxu0 0
  %1689 = vmatpush1.bf16.msra.mxu0 %v1645
  %1690 = vmatprep.subr.bf16.mxu0 0
  %1691 = vmatpush1.bf16.msra.mxu0 %v1646
  %1692 = vmatprep.subr.bf16.mxu0 0
  %1693 = vmatpush1.bf16.msra.mxu0 %v1647
  %1694 = vmatprep.subr.bf16.mxu0 0
  %1695 = vmatpush1.bf16.msra.mxu0 %v1648
  %1696 = vmatprep.subr.bf16.mxu0 0
  %1697 = vmatpush1.bf16.msra.mxu0 %v1649
  %1698 = vmatprep.mubr.bf16.mxu0 %v1539
  %1699 = vmatmul.mubr.bf16.gmra.mrb[0].mxu0 %v1538
  %v1700 = vpop.f32.mrb[0].mxu0
  %v1701 = vadd.f32 0.0, %v1700
  %v1702 = vpop.f32.mrb[0].mxu0
  %v1703 = vpop.f32.mrb[0].mxu0
  %v1704 = vadd.f32 0.0, %v1703
  %v1705 = vpop.f32.mrb[0].mxu0
  %1706 = vmatprep.mubr.bf16.mxu0 %v1541
  %1707 = vmatmul.mubr.bf16.gmra.mrb[0].mxu0 %v1540
  %v1708 = vpop.f32.mrb[0].mxu0
  %v1709 = vadd.f32 0.0, %v1708
  %v1710 = vpop.f32.mrb[0].mxu0
  %v1711 = vpop.f32.mrb[0].mxu0
  %v1712 = vadd.f32 0.0, %v1711
  %v1713 = vpop.f32.mrb[0].mxu0
  %1714 = vmatprep.mubr.bf16.mxu0 %v1543
  %1715 = vmatmul.mubr.bf16.gmra.mrb[0].mxu0 %v1542
  %v1716 = vpop.f32.mrb[0].mxu0
  %v1717 = vadd.f32 0.0, %v1716
  %v1718 = vpop.f32.mrb[0].mxu0
  %v1719 = vpop.f32.mrb[0].mxu0
  %v1720 = vadd.f32 0.0, %v1719
  %v1721 = vpop.f32.mrb[0].mxu0
  %1722 = vmatprep.mubr.bf16.mxu0 %v1545
  %1723 = vmatmul.mubr.bf16.gmra.mrb[0].mxu0 %v1544
  %v1724 = vpop.f32.mrb[0].mxu0
  %v1725 = vadd.f32 0.0, %v1724
  %v1726 = vpop.f32.mrb[0].mxu0
  %v1727 = vpop.f32.mrb[0].mxu0
  %v1728 = vadd.f32 0.0, %v1727
  %v1729 = vpop.f32.mrb[0].mxu0
  %1730 = vmatprep.mubr.bf16.mxu0 %v1547
  %1731 = vmatmul.mubr.bf16.gmra.mrb[0].mxu0 %v1546
  %v1732 = vpop.f32.mrb[0].mxu0
  %v1733 = vadd.f32 0.0, %v1732
  %v1734 = vpop.f32.mrb[0].mxu0
  %v1735 = vpop.f32.mrb[0].mxu0
  %v1736 = vadd.f32 0.0, %v1735
  %v1737 = vpop.f32.mrb[0].mxu0
  %1738 = vmatprep.mubr.bf16.mxu0 %v1549
  %1739 = vmatmul.mubr.bf16.gmra.mrb[0].mxu0 %v1548
  %v1740 = vpop.f32.mrb[0].mxu0
  %v1741 = vadd.f32 0.0, %v1740
  %v1742 = vpop.f32.mrb[0].mxu0
  %v1743 = vpop.f32.mrb[0].mxu0
  %v1744 = vadd.f32 0.0, %v1743
  %v1745 = vpop.f32.mrb[0].mxu0
  %1746 = vmatprep.mubr.bf16.mxu0 %v1551
  %1747 = vmatmul.mubr.bf16.gmra.mrb[0].mxu0 %v1550
  %v1748 = vpop.f32.mrb[0].mxu0
  %v1749 = vadd.f32 0.0, %v1748
  %v1750 = vpop.f32.mrb[0].mxu0
  %v1751 = vpop.f32.mrb[0].mxu0
  %v1752 = vadd.f32 0.0, %v1751
  %v1753 = vpop.f32.mrb[0].mxu0
  %1754 = vmatprep.mubr.bf16.mxu0 %v1553
  %1755 = vmatmul.mubr.bf16.gmra.mrb[0].mxu0 %v1552
  %v1756 = vpop.f32.mrb[0].mxu0
  %v1757 = vadd.f32 0.0, %v1756
  %v1758 = vpop.f32.mrb[0].mxu0
  %v1759 = vpop.f32.mrb[0].mxu0
  %v1760 = vadd.f32 0.0, %v1759
  %v1761 = vpop.f32.mrb[0].mxu0
  %1762 = vdwg.mxu0
  %1779 = vrot.lane.b32.xlu0 %v1701, 96
  %v1780 = vpop.permute.xlu0 %1779
  %1781 = vrot.lane.b32.xlu0 %v1704, 96
  %v1782 = vpop.permute.xlu0 %1781
  %1783 = vrot.lane.b32.xlu0 %v1709, 96
  %v1784 = vpop.permute.xlu0 %1783
  %1785 = vrot.lane.b32.xlu0 %v1712, 96
  %v1786 = vpop.permute.xlu0 %1785
  %1787 = vrot.lane.b32.xlu0 %v1717, 96
  %v1788 = vpop.permute.xlu0 %1787
  %1789 = vrot.lane.b32.xlu0 %v1720, 96
  %v1790 = vpop.permute.xlu0 %1789
  %1791 = vrot.lane.b32.xlu0 %v1725, 96
  %v1792 = vpop.permute.xlu0 %1791
  %1793 = vrot.lane.b32.xlu0 %v1728, 96
  %v1794 = vpop.permute.xlu0 %1793
  %1795 = vrot.lane.b32.xlu0 %v1733, 96
  %v1796 = vpop.permute.xlu0 %1795
  %1797 = vrot.lane.b32.xlu0 %v1736, 96
  %v1798 = vpop.permute.xlu0 %1797
  %1799 = vrot.lane.b32.xlu0 %v1741, 96
  %v1800 = vpop.permute.xlu0 %1799
  %1801 = vrot.lane.b32.xlu0 %v1744, 96
  %v1802 = vpop.permute.xlu0 %1801
  %1803 = vrot.lane.b32.xlu0 %v1749, 96
  %v1804 = vpop.permute.xlu0 %1803
  %1805 = vrot.lane.b32.xlu0 %v1752, 96
  %v1806 = vpop.permute.xlu0 %1805
  %1807 = vrot.lane.b32.xlu0 %v1757, 96
  %v1808 = vpop.permute.xlu0 %1807
  %1809 = vrot.lane.b32.xlu0 %v1760, 96
  %v1810 = vpop.permute.xlu0 %1809
  %vm1827 = vcmask 1048320
  %1828 = vst.msk [vmem:[#allocation2] sm:$0xff] %vm1827, %v1780
  %1829 = vst.msk [vmem:[#allocation2 + $0x8] sm:$0xff] %vm1827, %v1782
  %1830 = vst.msk [vmem:[#allocation2 + $0x10] sm:$0xff] %vm1827, %v1784
  %1831 = vst.msk [vmem:[#allocation2 + $0x18] sm:$0xff] %vm1827, %v1786
  %1832 = vst.msk [vmem:[#allocation2 + $0x20] sm:$0xff] %vm1827, %v1788
  %1833 = vst.msk [vmem:[#allocation2 + $0x28] sm:$0xff] %vm1827, %v1790
  %1834 = vst.msk [vmem:[#allocation2 + $0x30] sm:$0xff] %vm1827, %v1792
  %1835 = vst.msk [vmem:[#allocation2 + $0x38] sm:$0xff] %vm1827, %v1794
  %1836 = vst.msk [vmem:[#allocation2 + $0x40] sm:$0xff] %vm1827, %v1796
  %1837 = vst.msk [vmem:[#allocation2 + $0x48] sm:$0xff] %vm1827, %v1798
  %1838 = vst.msk [vmem:[#allocation2 + $0x50] sm:$0xff] %vm1827, %v1800
  %1839 = vst.msk [vmem:[#allocation2 + $0x58] sm:$0xff] %vm1827, %v1802
  %1840 = vst.msk [vmem:[#allocation2 + $0x60] sm:$0xff] %vm1827, %v1804
  %1841 = vst.msk [vmem:[#allocation2 + $0x68] sm:$0xff] %vm1827, %v1806
  %1842 = vst.msk [vmem:[#allocation2 + $0x70] sm:$0xff] %vm1827, %v1808
  %1843 = vst.msk [vmem:[#allocation2 + $0x78] sm:$0xff] %vm1827, %v1810
  %v1844 = vsel %vm339, %v1701, 0.0
  %v1845 = vsel %vm339, %v1704, 0.0
  %v1846 = vadd.f32 %v1844, %v1845
  %v1847 = vsel %vm339, %v1709, 0.0
  %v1848 = vadd.f32 %v1846, %v1847
  %v1849 = vsel %vm339, %v1712, 0.0
  %v1850 = vadd.f32 %v1848, %v1849
  %v1851 = vsel %vm339, %v1717, 0.0
  %v1852 = vadd.f32 %v1850, %v1851
  %v1853 = vsel %vm339, %v1720, 0.0
  %v1854 = vadd.f32 %v1852, %v1853
  %v1855 = vsel %vm339, %v1725, 0.0
  %v1856 = vadd.f32 %v1854, %v1855
  %v1857 = vsel %vm339, %v1728, 0.0
  %v1858 = vadd.f32 %v1856, %v1857
  %v1859 = vsel %vm339, %v1733, 0.0
  %v1860 = vadd.f32 %v1858, %v1859
  %v1861 = vsel %vm339, %v1736, 0.0
  %v1862 = vadd.f32 %v1860, %v1861
  %v1863 = vsel %vm339, %v1741, 0.0
  %v1864 = vadd.f32 %v1862, %v1863
  %v1865 = vsel %vm339, %v1744, 0.0
  %v1866 = vadd.f32 %v1864, %v1865
  %v1867 = vsel %vm339, %v1749, 0.0
  %v1868 = vadd.f32 %v1866, %v1867
  %v1869 = vsel %vm339, %v1752, 0.0
  %v1870 = vadd.f32 %v1868, %v1869
  %v1871 = vsel %vm339, %v1757, 0.0
  %v1872 = vadd.f32 %v1870, %v1871
  %v1873 = vsel %vm339, %v1760, 0.0
  %v1874 = vadd.f32 %v1872, %v1873
  %v1875 = vrot.slane %v1874, 4
  %v1876 = vadd.f32 %v1874, %v1875
  %v1877 = vrot.slane %v1876, 2
  %v1878 = vadd.f32 %v1876, %v1877
  %v1879 = vrot.slane %v1878, 1
  %v1880 = vadd.f32 %v1878, %v1879
  %v1881 = vadd.f32 %v1385, %v1880
  %v1882 = vmul.f32 %v1701, %v1701
  %v1883 = vmul.f32 %v1704, %v1704
  %v1884 = vmul.f32 %v1709, %v1709
  %v1885 = vmul.f32 %v1712, %v1712
  %v1886 = vmul.f32 %v1717, %v1717
  %v1887 = vmul.f32 %v1720, %v1720
  %v1888 = vmul.f32 %v1725, %v1725
  %v1889 = vmul.f32 %v1728, %v1728
  %v1890 = vmul.f32 %v1733, %v1733
  %v1891 = vmul.f32 %v1736, %v1736
  %v1892 = vmul.f32 %v1741, %v1741
  %v1893 = vmul.f32 %v1744, %v1744
  %v1894 = vmul.f32 %v1749, %v1749
  %v1895 = vmul.f32 %v1752, %v1752
  %v1896 = vmul.f32 %v1757, %v1757
  %v1897 = vmul.f32 %v1760, %v1760
  %v1898 = vsel %vm339, %v1882, 0.0
  %v1899 = vsel %vm339, %v1883, 0.0
  %v1900 = vadd.f32 %v1898, %v1899
  %v1901 = vsel %vm339, %v1884, 0.0
  %v1902 = vadd.f32 %v1900, %v1901
  %v1903 = vsel %vm339, %v1885, 0.0
  %v1904 = vadd.f32 %v1902, %v1903
  %v1905 = vsel %vm339, %v1886, 0.0
  %v1906 = vadd.f32 %v1904, %v1905
  %v1907 = vsel %vm339, %v1887, 0.0
  %v1908 = vadd.f32 %v1906, %v1907
  %v1909 = vsel %vm339, %v1888, 0.0
  %v1910 = vadd.f32 %v1908, %v1909
  %v1911 = vsel %vm339, %v1889, 0.0
  %v1912 = vadd.f32 %v1910, %v1911
  %v1913 = vsel %vm339, %v1890, 0.0
  %v1914 = vadd.f32 %v1912, %v1913
  %v1915 = vsel %vm339, %v1891, 0.0
  %v1916 = vadd.f32 %v1914, %v1915
  %v1917 = vsel %vm339, %v1892, 0.0
  %v1918 = vadd.f32 %v1916, %v1917
  %v1919 = vsel %vm339, %v1893, 0.0
  %v1920 = vadd.f32 %v1918, %v1919
  %v1921 = vsel %vm339, %v1894, 0.0
  %v1922 = vadd.f32 %v1920, %v1921
  %v1923 = vsel %vm339, %v1895, 0.0
  %v1924 = vadd.f32 %v1922, %v1923
  %v1925 = vsel %vm339, %v1896, 0.0
  %v1926 = vadd.f32 %v1924, %v1925
  %v1927 = vsel %vm339, %v1897, 0.0
  %v1928 = vadd.f32 %v1926, %v1927
  %v1929 = vrot.slane %v1928, 4
  %v1930 = vadd.f32 %v1928, %v1929
  %v1931 = vrot.slane %v1930, 2
  %v1932 = vadd.f32 %v1930, %v1931
  %v1933 = vrot.slane %v1932, 1
  %v1934 = vadd.f32 %v1932, %v1933
  %v1935 = vadd.f32 %v1439, %v1934
  %v1936 = vrcp.pop 512.0
  %v1937 = vmul.f32 %v1881, %v1936
  %v1938 = vmul.f32 %v1935, %v1936
  %v1939 = vmul.f32 %v1937, %v1937
  %v1940 = vsub.f32 %v1938, %v1939
  %v1941 = vmax.f32 %v1940, 0.0
  %v1942 = vld [vmem:[%s2] sm:$0x1]
  %v1943 = vadd.f32 %v1941, 1e-05
  %v1944 = vrsqrt.pop %v1943
  %v1945 = vmul.f32 %v1942, %v1944
  %v1946 = vld [vmem:[%s3] sm:$0x1]
  %v1947 = vmul.f32 %v1937, %v1945
  %v1948 = vsub.f32 %v1946, %v1947
  %v1949 = vld [vmem:[#allocation2] sm:$0xff]
  %v1950 = vld [vmem:[#allocation2 + $0x8] sm:$0xff]
  %v1951 = vld [vmem:[#allocation2 + $0x10] sm:$0xff]
  %v1952 = vld [vmem:[#allocation2 + $0x18] sm:$0xff]
  %v1953 = vld [vmem:[#allocation2 + $0x20] sm:$0xff]
  %v1954 = vld [vmem:[#allocation2 + $0x28] sm:$0xff]
  %v1955 = vld [vmem:[#allocation2 + $0x30] sm:$0xff]
  %v1956 = vld [vmem:[#allocation2 + $0x38] sm:$0xff]
  %v1957 = vld [vmem:[#allocation2 + $0x40] sm:$0xff]
  %v1958 = vld [vmem:[#allocation2 + $0x48] sm:$0xff]
  %v1959 = vld [vmem:[#allocation2 + $0x50] sm:$0xff]
  %v1960 = vld [vmem:[#allocation2 + $0x58] sm:$0xff]
  %v1961 = vld [vmem:[#allocation2 + $0x60] sm:$0xff]
  %v1962 = vld [vmem:[#allocation2 + $0x68] sm:$0xff]
  %v1963 = vld [vmem:[#allocation2 + $0x70] sm:$0xff]
  %v1964 = vld [vmem:[#allocation2 + $0x78] sm:$0xff]
  %v1966 = vlaneseq
  %v1967 = vshrl.u32 %v1966, 7
  %v1968 = vsub.s32 0, %v1967
  %v1969 = vrot.slane %v1945, %v1968
  %v1971 = vmul.f32 %v1949, %v1969
  %v1972 = vmul.f32 %v1950, %v1969
  %v1973 = vmul.f32 %v1951, %v1969
  %v1974 = vmul.f32 %v1952, %v1969
  %v1975 = vmul.f32 %v1953, %v1969
  %v1976 = vmul.f32 %v1954, %v1969
  %v1977 = vmul.f32 %v1955, %v1969
  %v1978 = vmul.f32 %v1956, %v1969
  %v1979 = vmul.f32 %v1957, %v1969
  %v1980 = vmul.f32 %v1958, %v1969
  %v1981 = vmul.f32 %v1959, %v1969
  %v1982 = vmul.f32 %v1960, %v1969
  %v1983 = vmul.f32 %v1961, %v1969
  %v1984 = vmul.f32 %v1962, %v1969
  %v1985 = vmul.f32 %v1963, %v1969
  %v1986 = vmul.f32 %v1964, %v1969
  %v1988 = vlaneseq
  %v1989 = vshrl.u32 %v1988, 7
  %v1990 = vsub.s32 0, %v1989
  %v1991 = vrot.slane %v1948, %v1990
  %v1993 = vadd.f32 %v1971, %v1991
  %v1994 = vadd.f32 %v1972, %v1991
  %v1995 = vadd.f32 %v1973, %v1991
  %v1996 = vadd.f32 %v1974, %v1991
  %v1997 = vadd.f32 %v1975, %v1991
  %v1998 = vadd.f32 %v1976, %v1991
  %v1999 = vadd.f32 %v1977, %v1991
  %v2000 = vadd.f32 %v1978, %v1991
  %v2001 = vadd.f32 %v1979, %v1991
  %v2002 = vadd.f32 %v1980, %v1991
  %v2003 = vadd.f32 %v1981, %v1991
  %v2004 = vadd.f32 %v1982, %v1991
  %v2005 = vadd.f32 %v1983, %v1991
  %v2006 = vadd.f32 %v1984, %v1991
  %v2007 = vadd.f32 %v1985, %v1991
  %v2008 = vadd.f32 %v1986, %v1991
  %v2009 = vmax.f32 %v1993, 0.0
  %v2010 = vmax.f32 %v1994, 0.0
  %v2011 = vmax.f32 %v1995, 0.0
  %v2012 = vmax.f32 %v1996, 0.0
  %v2013 = vmax.f32 %v1997, 0.0
  %v2014 = vmax.f32 %v1998, 0.0
  %v2015 = vmax.f32 %v1999, 0.0
  %v2016 = vmax.f32 %v2000, 0.0
  %v2017 = vmax.f32 %v2001, 0.0
  %v2018 = vmax.f32 %v2002, 0.0
  %v2019 = vmax.f32 %v2003, 0.0
  %v2020 = vmax.f32 %v2004, 0.0
  %v2021 = vmax.f32 %v2005, 0.0
  %v2022 = vmax.f32 %v2006, 0.0
  %v2023 = vmax.f32 %v2007, 0.0
  %v2024 = vmax.f32 %v2008, 0.0
  %v2025 = vpack.c.bf16 %v2010, %v2009
  %v2026 = vpack.c.bf16 %v2012, %v2011
  %v2027 = vpack.c.bf16 %v2014, %v2013
  %v2028 = vpack.c.bf16 %v2016, %v2015
  %v2029 = vpack.c.bf16 %v2018, %v2017
  %v2030 = vpack.c.bf16 %v2020, %v2019
  %v2031 = vpack.c.bf16 %v2022, %v2021
  %v2032 = vpack.c.bf16 %v2024, %v2023
  %v2041 = vunpack.c.l.b16 %v2025
  %v2042 = vunpack.c.h.b16 %v2025
  %v2043 = vunpack.c.l.b16 %v2026
  %v2044 = vunpack.c.h.b16 %v2026
  %v2045 = vunpack.c.l.b16 %v2027
  %v2046 = vunpack.c.h.b16 %v2027
  %v2047 = vunpack.c.l.b16 %v2028
  %v2048 = vunpack.c.h.b16 %v2028
  %v2049 = vunpack.c.l.b16 %v2029
  %v2050 = vunpack.c.h.b16 %v2029
  %v2051 = vunpack.c.l.b16 %v2030
  %v2052 = vunpack.c.h.b16 %v2030
  %v2053 = vunpack.c.l.b16 %v2031
  %v2054 = vunpack.c.h.b16 %v2031
  %v2055 = vunpack.c.l.b16 %v2032
  %v2056 = vunpack.c.h.b16 %v2032
  %v2057 = vpack.c.b16 %v2041, %v2041
  %v2058 = vpack.c.b16 %v2042, %v2042
  %v2059 = vpack.c.b16 %v2043, %v2043
  %v2060 = vpack.c.b16 %v2044, %v2044
  %v2061 = vpack.c.b16 %v2045, %v2045
  %v2062 = vpack.c.b16 %v2046, %v2046
  %v2063 = vpack.c.b16 %v2047, %v2047
  %v2064 = vpack.c.b16 %v2048, %v2048
  %v2065 = vpack.c.b16 %v2049, %v2049
  %v2066 = vpack.c.b16 %v2050, %v2050
  %v2067 = vpack.c.b16 %v2051, %v2051
  %v2068 = vpack.c.b16 %v2052, %v2052
  %v2069 = vpack.c.b16 %v2053, %v2053
  %v2070 = vpack.c.b16 %v2054, %v2054
  %v2071 = vpack.c.b16 %v2055, %v2055
  %v2072 = vpack.c.b16 %v2056, %v2056
  %vm2089 = vcmask 257024
  %2090 = vst.msk [vmem:[%s4] sm:$0xf] %vm2089, %v2057
  %2091 = vst.msk [vmem:[%s4 + $0x4] sm:$0xf] %vm2089, %v2058
  %2092 = vst.msk [vmem:[%s4 + $0x8] sm:$0xf] %vm2089, %v2059
  %2093 = vst.msk [vmem:[%s4 + $0xc] sm:$0xf] %vm2089, %v2060
  %2094 = vst.msk [vmem:[%s4 + $0x10] sm:$0xf] %vm2089, %v2061
  %2095 = vst.msk [vmem:[%s4 + $0x14] sm:$0xf] %vm2089, %v2062
  %2096 = vst.msk [vmem:[%s4 + $0x18] sm:$0xf] %vm2089, %v2063
  %2097 = vst.msk [vmem:[%s4 + $0x1c] sm:$0xf] %vm2089, %v2064
  %2098 = vst.msk [vmem:[%s4 + $0x20] sm:$0xf] %vm2089, %v2065
  %2099 = vst.msk [vmem:[%s4 + $0x24] sm:$0xf] %vm2089, %v2066
  %2100 = vst.msk [vmem:[%s4 + $0x28] sm:$0xf] %vm2089, %v2067
  %2101 = vst.msk [vmem:[%s4 + $0x2c] sm:$0xf] %vm2089, %v2068
  %2102 = vst.msk [vmem:[%s4 + $0x30] sm:$0xf] %vm2089, %v2069
  %2103 = vst.msk [vmem:[%s4 + $0x34] sm:$0xf] %vm2089, %v2070
  %2104 = vst.msk [vmem:[%s4 + $0x38] sm:$0xf] %vm2089, %v2071
  %2105 = vst.msk [vmem:[%s4 + $0x3c] sm:$0xf] %vm2089, %v2072
  %v2106 = vld [vmem:[#allocation2] sm:$0xff]
  %v2107 = vld [vmem:[#allocation2 + $0x8] sm:$0xff]
  %v2108 = vld [vmem:[#allocation2 + $0x10] sm:$0xff]
  %v2109 = vld [vmem:[#allocation2 + $0x18] sm:$0xff]
  %v2110 = vld [vmem:[#allocation2 + $0x20] sm:$0xff]
  %v2111 = vld [vmem:[#allocation2 + $0x28] sm:$0xff]
  %v2112 = vld [vmem:[#allocation2 + $0x30] sm:$0xff]
  %v2113 = vld [vmem:[#allocation2 + $0x38] sm:$0xff]
  %v2114 = vld [vmem:[#allocation2 + $0x40] sm:$0xff]
  %v2115 = vld [vmem:[#allocation2 + $0x48] sm:$0xff]
  %v2116 = vld [vmem:[#allocation2 + $0x50] sm:$0xff]
  %v2117 = vld [vmem:[#allocation2 + $0x58] sm:$0xff]
  %v2118 = vld [vmem:[#allocation2 + $0x60] sm:$0xff]
  %v2119 = vld [vmem:[#allocation2 + $0x68] sm:$0xff]
  %v2120 = vld [vmem:[#allocation2 + $0x70] sm:$0xff]
  %v2121 = vld [vmem:[#allocation2 + $0x78] sm:$0xff]
  %2122 = vrot.lane.b32.xlu0 %v1969, 32
  %v2123 = vpop.permute.xlu0 %2122
  %v2125 = vmul.f32 %v2106, %v2123
  %v2126 = vmul.f32 %v2107, %v2123
  %v2127 = vmul.f32 %v2108, %v2123
  %v2128 = vmul.f32 %v2109, %v2123
  %v2129 = vmul.f32 %v2110, %v2123
  %v2130 = vmul.f32 %v2111, %v2123
  %v2131 = vmul.f32 %v2112, %v2123
  %v2132 = vmul.f32 %v2113, %v2123
  %v2133 = vmul.f32 %v2114, %v2123
  %v2134 = vmul.f32 %v2115, %v2123
  %v2135 = vmul.f32 %v2116, %v2123
  %v2136 = vmul.f32 %v2117, %v2123
  %v2137 = vmul.f32 %v2118, %v2123
  %v2138 = vmul.f32 %v2119, %v2123
  %v2139 = vmul.f32 %v2120, %v2123
  %v2140 = vmul.f32 %v2121, %v2123
  %2141 = vrot.lane.b32.xlu0 %v1991, 32
  %v2142 = vpop.permute.xlu0 %2141
  %v2144 = vadd.f32 %v2125, %v2142
  %v2145 = vadd.f32 %v2126, %v2142
  %v2146 = vadd.f32 %v2127, %v2142
  %v2147 = vadd.f32 %v2128, %v2142
  %v2148 = vadd.f32 %v2129, %v2142
  %v2149 = vadd.f32 %v2130, %v2142
  %v2150 = vadd.f32 %v2131, %v2142
  %v2151 = vadd.f32 %v2132, %v2142
  %v2152 = vadd.f32 %v2133, %v2142
  %v2153 = vadd.f32 %v2134, %v2142
  %v2154 = vadd.f32 %v2135, %v2142
  %v2155 = vadd.f32 %v2136, %v2142
  %v2156 = vadd.f32 %v2137, %v2142
  %v2157 = vadd.f32 %v2138, %v2142
  %v2158 = vadd.f32 %v2139, %v2142
  %v2159 = vadd.f32 %v2140, %v2142
  %v2160 = vmax.f32 %v2144, 0.0
  %v2161 = vmax.f32 %v2145, 0.0
  %v2162 = vmax.f32 %v2146, 0.0
  %v2163 = vmax.f32 %v2147, 0.0
  %v2164 = vmax.f32 %v2148, 0.0
  %v2165 = vmax.f32 %v2149, 0.0
  %v2166 = vmax.f32 %v2150, 0.0
  %v2167 = vmax.f32 %v2151, 0.0
  %v2168 = vmax.f32 %v2152, 0.0
  %v2169 = vmax.f32 %v2153, 0.0
  %v2170 = vmax.f32 %v2154, 0.0
  %v2171 = vmax.f32 %v2155, 0.0
  %v2172 = vmax.f32 %v2156, 0.0
  %v2173 = vmax.f32 %v2157, 0.0
  %v2174 = vmax.f32 %v2158, 0.0
  %v2175 = vmax.f32 %v2159, 0.0
  %v2176 = vpack.c.bf16 %v2161, %v2160
  %v2177 = vpack.c.bf16 %v2163, %v2162
  %v2178 = vpack.c.bf16 %v2165, %v2164
  %v2179 = vpack.c.bf16 %v2167, %v2166
  %v2180 = vpack.c.bf16 %v2169, %v2168
  %v2181 = vpack.c.bf16 %v2171, %v2170
  %v2182 = vpack.c.bf16 %v2173, %v2172
  %v2183 = vpack.c.bf16 %v2175, %v2174
  %v2192 = vunpack.c.l.b16 %v2176
  %v2193 = vunpack.c.h.b16 %v2176
  %v2194 = vunpack.c.l.b16 %v2177
  %v2195 = vunpack.c.h.b16 %v2177
  %v2196 = vunpack.c.l.b16 %v2178
  %v2197 = vunpack.c.h.b16 %v2178
  %v2198 = vunpack.c.l.b16 %v2179
  %v2199 = vunpack.c.h.b16 %v2179
  %v2200 = vunpack.c.l.b16 %v2180
  %v2201 = vunpack.c.h.b16 %v2180
  %v2202 = vunpack.c.l.b16 %v2181
  %v2203 = vunpack.c.h.b16 %v2181
  %v2204 = vunpack.c.l.b16 %v2182
  %v2205 = vunpack.c.h.b16 %v2182
  %v2206 = vunpack.c.l.b16 %v2183
  %v2207 = vunpack.c.h.b16 %v2183
  %v2208 = vpack.c.b16 %v2192, %v2192
  %v2209 = vpack.c.b16 %v2193, %v2193
  %v2210 = vpack.c.b16 %v2194, %v2194
  %v2211 = vpack.c.b16 %v2195, %v2195
  %v2212 = vpack.c.b16 %v2196, %v2196
  %v2213 = vpack.c.b16 %v2197, %v2197
  %v2214 = vpack.c.b16 %v2198, %v2198
  %v2215 = vpack.c.b16 %v2199, %v2199
  %v2216 = vpack.c.b16 %v2200, %v2200
  %v2217 = vpack.c.b16 %v2201, %v2201
  %v2218 = vpack.c.b16 %v2202, %v2202
  %v2219 = vpack.c.b16 %v2203, %v2203
  %v2220 = vpack.c.b16 %v2204, %v2204
  %v2221 = vpack.c.b16 %v2205, %v2205
  %v2222 = vpack.c.b16 %v2206, %v2206
  %v2223 = vpack.c.b16 %v2207, %v2207
  %vm2240 = vcmask 519424
  %2241 = vst.msk [vmem:[%s4] sm:$0xf] %vm2240, %v2208
  %2242 = vst.msk [vmem:[%s4 + $0x4] sm:$0xf] %vm2240, %v2209
  %2243 = vst.msk [vmem:[%s4 + $0x8] sm:$0xf] %vm2240, %v2210
  %2244 = vst.msk [vmem:[%s4 + $0xc] sm:$0xf] %vm2240, %v2211
  %2245 = vst.msk [vmem:[%s4 + $0x10] sm:$0xf] %vm2240, %v2212
  %2246 = vst.msk [vmem:[%s4 + $0x14] sm:$0xf] %vm2240, %v2213
  %2247 = vst.msk [vmem:[%s4 + $0x18] sm:$0xf] %vm2240, %v2214
  %2248 = vst.msk [vmem:[%s4 + $0x1c] sm:$0xf] %vm2240, %v2215
  %2249 = vst.msk [vmem:[%s4 + $0x20] sm:$0xf] %vm2240, %v2216
  %2250 = vst.msk [vmem:[%s4 + $0x24] sm:$0xf] %vm2240, %v2217
  %2251 = vst.msk [vmem:[%s4 + $0x28] sm:$0xf] %vm2240, %v2218
  %2252 = vst.msk [vmem:[%s4 + $0x2c] sm:$0xf] %vm2240, %v2219
  %2253 = vst.msk [vmem:[%s4 + $0x30] sm:$0xf] %vm2240, %v2220
  %2254 = vst.msk [vmem:[%s4 + $0x34] sm:$0xf] %vm2240, %v2221
  %2255 = vst.msk [vmem:[%s4 + $0x38] sm:$0xf] %vm2240, %v2222
  %2256 = vst.msk [vmem:[%s4 + $0x3c] sm:$0xf] %vm2240, %v2223
  %v2257 = vld [vmem:[#allocation2] sm:$0xff]
  %v2258 = vld [vmem:[#allocation2 + $0x8] sm:$0xff]
  %v2259 = vld [vmem:[#allocation2 + $0x10] sm:$0xff]
  %v2260 = vld [vmem:[#allocation2 + $0x18] sm:$0xff]
  %v2261 = vld [vmem:[#allocation2 + $0x20] sm:$0xff]
  %v2262 = vld [vmem:[#allocation2 + $0x28] sm:$0xff]
  %v2263 = vld [vmem:[#allocation2 + $0x30] sm:$0xff]
  %v2264 = vld [vmem:[#allocation2 + $0x38] sm:$0xff]
  %v2265 = vld [vmem:[#allocation2 + $0x40] sm:$0xff]
  %v2266 = vld [vmem:[#allocation2 + $0x48] sm:$0xff]
  %v2267 = vld [vmem:[#allocation2 + $0x50] sm:$0xff]
  %v2268 = vld [vmem:[#allocation2 + $0x58] sm:$0xff]
  %v2269 = vld [vmem:[#allocation2 + $0x60] sm:$0xff]
  %v2270 = vld [vmem:[#allocation2 + $0x68] sm:$0xff]
  %v2271 = vld [vmem:[#allocation2 + $0x70] sm:$0xff]
  %v2272 = vld [vmem:[#allocation2 + $0x78] sm:$0xff]
  %2273 = vrot.lane.b32.xlu0 %v1969, 64
  %v2274 = vpop.permute.xlu0 %2273
  %v2276 = vmul.f32 %v2257, %v2274
  %v2277 = vmul.f32 %v2258, %v2274
  %v2278 = vmul.f32 %v2259, %v2274
  %v2279 = vmul.f32 %v2260, %v2274
  %v2280 = vmul.f32 %v2261, %v2274
  %v2281 = vmul.f32 %v2262, %v2274
  %v2282 = vmul.f32 %v2263, %v2274
  %v2283 = vmul.f32 %v2264, %v2274
  %v2284 = vmul.f32 %v2265, %v2274
  %v2285 = vmul.f32 %v2266, %v2274
  %v2286 = vmul.f32 %v2267, %v2274
  %v2287 = vmul.f32 %v2268, %v2274
  %v2288 = vmul.f32 %v2269, %v2274
  %v2289 = vmul.f32 %v2270, %v2274
  %v2290 = vmul.f32 %v2271, %v2274
  %v2291 = vmul.f32 %v2272, %v2274
  %2292 = vrot.lane.b32.xlu0 %v1991, 64
  %v2293 = vpop.permute.xlu0 %2292
  %v2295 = vadd.f32 %v2276, %v2293
  %v2296 = vadd.f32 %v2277, %v2293
  %v2297 = vadd.f32 %v2278, %v2293
  %v2298 = vadd.f32 %v2279, %v2293
  %v2299 = vadd.f32 %v2280, %v2293
  %v2300 = vadd.f32 %v2281, %v2293
  %v2301 = vadd.f32 %v2282, %v2293
  %v2302 = vadd.f32 %v2283, %v2293
  %v2303 = vadd.f32 %v2284, %v2293
  %v2304 = vadd.f32 %v2285, %v2293
  %v2305 = vadd.f32 %v2286, %v2293
  %v2306 = vadd.f32 %v2287, %v2293
  %v2307 = vadd.f32 %v2288, %v2293
  %v2308 = vadd.f32 %v2289, %v2293
  %v2309 = vadd.f32 %v2290, %v2293
  %v2310 = vadd.f32 %v2291, %v2293
  %v2311 = vmax.f32 %v2295, 0.0
  %v2312 = vmax.f32 %v2296, 0.0
  %v2313 = vmax.f32 %v2297, 0.0
  %v2314 = vmax.f32 %v2298, 0.0
  %v2315 = vmax.f32 %v2299, 0.0
  %v2316 = vmax.f32 %v2300, 0.0
  %v2317 = vmax.f32 %v2301, 0.0
  %v2318 = vmax.f32 %v2302, 0.0
  %v2319 = vmax.f32 %v2303, 0.0
  %v2320 = vmax.f32 %v2304, 0.0
  %v2321 = vmax.f32 %v2305, 0.0
  %v2322 = vmax.f32 %v2306, 0.0
  %v2323 = vmax.f32 %v2307, 0.0
  %v2324 = vmax.f32 %v2308, 0.0
  %v2325 = vmax.f32 %v2309, 0.0
  %v2326 = vmax.f32 %v2310, 0.0
  %v2327 = vpack.c.bf16 %v2312, %v2311
  %v2328 = vpack.c.bf16 %v2314, %v2313
  %v2329 = vpack.c.bf16 %v2316, %v2315
  %v2330 = vpack.c.bf16 %v2318, %v2317
  %v2331 = vpack.c.bf16 %v2320, %v2319
  %v2332 = vpack.c.bf16 %v2322, %v2321
  %v2333 = vpack.c.bf16 %v2324, %v2323
  %v2334 = vpack.c.bf16 %v2326, %v2325
  %v2343 = vunpack.c.l.b16 %v2327
  %v2344 = vunpack.c.h.b16 %v2327
  %v2345 = vunpack.c.l.b16 %v2328
  %v2346 = vunpack.c.h.b16 %v2328
  %v2347 = vunpack.c.l.b16 %v2329
  %v2348 = vunpack.c.h.b16 %v2329
  %v2349 = vunpack.c.l.b16 %v2330
  %v2350 = vunpack.c.h.b16 %v2330
  %v2351 = vunpack.c.l.b16 %v2331
  %v2352 = vunpack.c.h.b16 %v2331
  %v2353 = vunpack.c.l.b16 %v2332
  %v2354 = vunpack.c.h.b16 %v2332
  %v2355 = vunpack.c.l.b16 %v2333
  %v2356 = vunpack.c.h.b16 %v2333
  %v2357 = vunpack.c.l.b16 %v2334
  %v2358 = vunpack.c.h.b16 %v2334
  %v2359 = vpack.c.b16 %v2343, %v2343
  %v2360 = vpack.c.b16 %v2344, %v2344
  %v2361 = vpack.c.b16 %v2345, %v2345
  %v2362 = vpack.c.b16 %v2346, %v2346
  %v2363 = vpack.c.b16 %v2347, %v2347
  %v2364 = vpack.c.b16 %v2348, %v2348
  %v2365 = vpack.c.b16 %v2349, %v2349
  %v2366 = vpack.c.b16 %v2350, %v2350
  %v2367 = vpack.c.b16 %v2351, %v2351
  %v2368 = vpack.c.b16 %v2352, %v2352
  %v2369 = vpack.c.b16 %v2353, %v2353
  %v2370 = vpack.c.b16 %v2354, %v2354
  %v2371 = vpack.c.b16 %v2355, %v2355
  %v2372 = vpack.c.b16 %v2356, %v2356
  %v2373 = vpack.c.b16 %v2357, %v2357
  %v2374 = vpack.c.b16 %v2358, %v2358
  %vm2391 = vcmask 781824
  %2392 = vst.msk [vmem:[%s4] sm:$0xf] %vm2391, %v2359
  %2393 = vst.msk [vmem:[%s4 + $0x4] sm:$0xf] %vm2391, %v2360
  %2394 = vst.msk [vmem:[%s4 + $0x8] sm:$0xf] %vm2391, %v2361
  %2395 = vst.msk [vmem:[%s4 + $0xc] sm:$0xf] %vm2391, %v2362
  %2396 = vst.msk [vmem:[%s4 + $0x10] sm:$0xf] %vm2391, %v2363
  %2397 = vst.msk [vmem:[%s4 + $0x14] sm:$0xf] %vm2391, %v2364
  %2398 = vst.msk [vmem:[%s4 + $0x18] sm:$0xf] %vm2391, %v2365
  %2399 = vst.msk [vmem:[%s4 + $0x1c] sm:$0xf] %vm2391, %v2366
  %2400 = vst.msk [vmem:[%s4 + $0x20] sm:$0xf] %vm2391, %v2367
  %2401 = vst.msk [vmem:[%s4 + $0x24] sm:$0xf] %vm2391, %v2368
  %2402 = vst.msk [vmem:[%s4 + $0x28] sm:$0xf] %vm2391, %v2369
  %2403 = vst.msk [vmem:[%s4 + $0x2c] sm:$0xf] %vm2391, %v2370
  %2404 = vst.msk [vmem:[%s4 + $0x30] sm:$0xf] %vm2391, %v2371
  %2405 = vst.msk [vmem:[%s4 + $0x34] sm:$0xf] %vm2391, %v2372
  %2406 = vst.msk [vmem:[%s4 + $0x38] sm:$0xf] %vm2391, %v2373
  %2407 = vst.msk [vmem:[%s4 + $0x3c] sm:$0xf] %vm2391, %v2374
  %v2408 = vld [vmem:[#allocation2] sm:$0xff]
  %v2409 = vld [vmem:[#allocation2 + $0x8] sm:$0xff]
  %v2410 = vld [vmem:[#allocation2 + $0x10] sm:$0xff]
  %v2411 = vld [vmem:[#allocation2 + $0x18] sm:$0xff]
  %v2412 = vld [vmem:[#allocation2 + $0x20] sm:$0xff]
  %v2413 = vld [vmem:[#allocation2 + $0x28] sm:$0xff]
  %v2414 = vld [vmem:[#allocation2 + $0x30] sm:$0xff]
  %v2415 = vld [vmem:[#allocation2 + $0x38] sm:$0xff]
  %v2416 = vld [vmem:[#allocation2 + $0x40] sm:$0xff]
  %v2417 = vld [vmem:[#allocation2 + $0x48] sm:$0xff]
  %v2418 = vld [vmem:[#allocation2 + $0x50] sm:$0xff]
  %v2419 = vld [vmem:[#allocation2 + $0x58] sm:$0xff]
  %v2420 = vld [vmem:[#allocation2 + $0x60] sm:$0xff]
  %v2421 = vld [vmem:[#allocation2 + $0x68] sm:$0xff]
  %v2422 = vld [vmem:[#allocation2 + $0x70] sm:$0xff]
  %v2423 = vld [vmem:[#allocation2 + $0x78] sm:$0xff]
  %2424 = vrot.lane.b32.xlu0 %v1969, 96
  %v2425 = vpop.permute.xlu0 %2424
  %v2427 = vmul.f32 %v2408, %v2425
  %v2428 = vmul.f32 %v2409, %v2425
  %v2429 = vmul.f32 %v2410, %v2425
  %v2430 = vmul.f32 %v2411, %v2425
  %v2431 = vmul.f32 %v2412, %v2425
  %v2432 = vmul.f32 %v2413, %v2425
  %v2433 = vmul.f32 %v2414, %v2425
  %v2434 = vmul.f32 %v2415, %v2425
  %v2435 = vmul.f32 %v2416, %v2425
  %v2436 = vmul.f32 %v2417, %v2425
  %v2437 = vmul.f32 %v2418, %v2425
  %v2438 = vmul.f32 %v2419, %v2425
  %v2439 = vmul.f32 %v2420, %v2425
  %v2440 = vmul.f32 %v2421, %v2425
  %v2441 = vmul.f32 %v2422, %v2425
  %v2442 = vmul.f32 %v2423, %v2425
  %2443 = vrot.lane.b32.xlu0 %v1991, 96
  %v2444 = vpop.permute.xlu0 %2443
  %v2446 = vadd.f32 %v2427, %v2444
  %v2447 = vadd.f32 %v2428, %v2444
  %v2448 = vadd.f32 %v2429, %v2444
  %v2449 = vadd.f32 %v2430, %v2444
  %v2450 = vadd.f32 %v2431, %v2444
  %v2451 = vadd.f32 %v2432, %v2444
  %v2452 = vadd.f32 %v2433, %v2444
  %v2453 = vadd.f32 %v2434, %v2444
  %v2454 = vadd.f32 %v2435, %v2444
  %v2455 = vadd.f32 %v2436, %v2444
  %v2456 = vadd.f32 %v2437, %v2444
  %v2457 = vadd.f32 %v2438, %v2444
  %v2458 = vadd.f32 %v2439, %v2444
  %v2459 = vadd.f32 %v2440, %v2444
  %v2460 = vadd.f32 %v2441, %v2444
  %v2461 = vadd.f32 %v2442, %v2444
  %v2462 = vmax.f32 %v2446, 0.0
  %v2463 = vmax.f32 %v2447, 0.0
  %v2464 = vmax.f32 %v2448, 0.0
  %v2465 = vmax.f32 %v2449, 0.0
  %v2466 = vmax.f32 %v2450, 0.0
  %v2467 = vmax.f32 %v2451, 0.0
  %v2468 = vmax.f32 %v2452, 0.0
  %v2469 = vmax.f32 %v2453, 0.0
  %v2470 = vmax.f32 %v2454, 0.0
  %v2471 = vmax.f32 %v2455, 0.0
  %v2472 = vmax.f32 %v2456, 0.0
  %v2473 = vmax.f32 %v2457, 0.0
  %v2474 = vmax.f32 %v2458, 0.0
  %v2475 = vmax.f32 %v2459, 0.0
  %v2476 = vmax.f32 %v2460, 0.0
  %v2477 = vmax.f32 %v2461, 0.0
  %v2478 = vpack.c.bf16 %v2463, %v2462
  %v2479 = vpack.c.bf16 %v2465, %v2464
  %v2480 = vpack.c.bf16 %v2467, %v2466
  %v2481 = vpack.c.bf16 %v2469, %v2468
  %v2482 = vpack.c.bf16 %v2471, %v2470
  %v2483 = vpack.c.bf16 %v2473, %v2472
  %v2484 = vpack.c.bf16 %v2475, %v2474
  %v2485 = vpack.c.bf16 %v2477, %v2476
  %v2494 = vunpack.c.l.b16 %v2478
  %v2495 = vunpack.c.h.b16 %v2478
  %v2496 = vunpack.c.l.b16 %v2479
  %v2497 = vunpack.c.h.b16 %v2479
  %v2498 = vunpack.c.l.b16 %v2480
  %v2499 = vunpack.c.h.b16 %v2480
  %v2500 = vunpack.c.l.b16 %v2481
  %v2501 = vunpack.c.h.b16 %v2481
  %v2502 = vunpack.c.l.b16 %v2482
  %v2503 = vunpack.c.h.b16 %v2482
  %v2504 = vunpack.c.l.b16 %v2483
  %v2505 = vunpack.c.h.b16 %v2483
  %v2506 = vunpack.c.l.b16 %v2484
  %v2507 = vunpack.c.h.b16 %v2484
  %v2508 = vunpack.c.l.b16 %v2485
  %v2509 = vunpack.c.h.b16 %v2485
  %v2510 = vpack.c.b16 %v2494, %v2494
  %v2511 = vpack.c.b16 %v2495, %v2495
  %v2512 = vpack.c.b16 %v2496, %v2496
  %v2513 = vpack.c.b16 %v2497, %v2497
  %v2514 = vpack.c.b16 %v2498, %v2498
  %v2515 = vpack.c.b16 %v2499, %v2499
  %v2516 = vpack.c.b16 %v2500, %v2500
  %v2517 = vpack.c.b16 %v2501, %v2501
  %v2518 = vpack.c.b16 %v2502, %v2502
  %v2519 = vpack.c.b16 %v2503, %v2503
  %v2520 = vpack.c.b16 %v2504, %v2504
  %v2521 = vpack.c.b16 %v2505, %v2505
  %v2522 = vpack.c.b16 %v2506, %v2506
  %v2523 = vpack.c.b16 %v2507, %v2507
  %v2524 = vpack.c.b16 %v2508, %v2508
  %v2525 = vpack.c.b16 %v2509, %v2509
  %vm2542 = vcmask 1044224
  %2543 = vst.msk [vmem:[%s4] sm:$0xf] %vm2542, %v2510
  %2544 = vst.msk [vmem:[%s4 + $0x4] sm:$0xf] %vm2542, %v2511
  %2545 = vst.msk [vmem:[%s4 + $0x8] sm:$0xf] %vm2542, %v2512
  %2546 = vst.msk [vmem:[%s4 + $0xc] sm:$0xf] %vm2542, %v2513
  %2547 = vst.msk [vmem:[%s4 + $0x10] sm:$0xf] %vm2542, %v2514
  %2548 = vst.msk [vmem:[%s4 + $0x14] sm:$0xf] %vm2542, %v2515
  %2549 = vst.msk [vmem:[%s4 + $0x18] sm:$0xf] %vm2542, %v2516
  %2550 = vst.msk [vmem:[%s4 + $0x1c] sm:$0xf] %vm2542, %v2517
  %2551 = vst.msk [vmem:[%s4 + $0x20] sm:$0xf] %vm2542, %v2518
  %2552 = vst.msk [vmem:[%s4 + $0x24] sm:$0xf] %vm2542, %v2519
  %2553 = vst.msk [vmem:[%s4 + $0x28] sm:$0xf] %vm2542, %v2520
  %2554 = vst.msk [vmem:[%s4 + $0x2c] sm:$0xf] %vm2542, %v2521
  %2555 = vst.msk [vmem:[%s4 + $0x30] sm:$0xf] %vm2542, %v2522
  %2556 = vst.msk [vmem:[%s4 + $0x34] sm:$0xf] %vm2542, %v2523
  %2557 = vst.msk [vmem:[%s4 + $0x38] sm:$0xf] %vm2542, %v2524
  %2558 = vst.msk [vmem:[%s4 + $0x3c] sm:$0xf] %vm2542, %v2525
  // Predicated region
  $region18: #{generator_forward.6} parent=0 // pred_check
    _
  $region19: #{generator_forward.6} parent=0 // pred_check_branch
    %2560 = sbr.rel (0) target = $region21
  $region20: #{generator_forward.6} parent=0 // pred_region
    _
  $region21: #{generator_forward.6} parent=0 // pred_fallthru
    _
  // Predicated region
  $region22: #{generator_forward.6} parent=0 // pred_check
    _
  $region23: #{generator_forward.6} parent=0 // pred_check_branch
    %2562 = sbr.rel (0) target = $region25
  $region24: #{generator_forward.6} parent=0 // pred_region
    _
  $region25: #{generator_forward.6} parent=0 // pred_fallthru
    _

// kernel: generator_forward.7
$region0: #{generator_forward.7}
  #allocation0 [shape = 'u32[]', space=smem, size = 0x4, offset = 0x4, fixed_abs, tag = 'smem constant byte address 0x4 - core index']
  #allocation1 [shape = 'u32[144,128]{1,0:T(1,128)}', space=vmem, size = 0x12000, scoped, tag = 'internal scratch']
  %s0 = inlined_call_operand.vmem [shape: bf16[4,512,128], index: 0, kind: input, shape index: {}]
  %s1 = inlined_call_operand.vmem [shape: bf16[4,128,8], index: 1, kind: input, shape index: {}]
  %s2 = inlined_call_operand.vmem [shape: f32[1,8], index: 2, kind: input, shape index: {}]
  %s3 = inlined_call_operand.vmem [shape: f32[512,32], index: 3, kind: output, shape index: {}]
  %s4 = sld [smem:[#allocation0]]
  $region86: #{generator_forward.7} parent=0
    _
  %s6 = ssub.s32 1, %s4
  %s7 = scalar_select 0, %s6, %s4
  $region1: #{generator_forward.7} parent=0
    #allocation2 [shape = 'u8[524288]{0}', space=vmem, size = 0x80000, scoped, tag = 'input window, operand 0']
    loop: start=0, step=1, limit=4
    $region2: #{generator_forward.7} parent=1 // loop_pre_header
      _
    $region3: #{generator_forward.7} parent=1 // loop_header
      %s9 = sphi 0, %s13
      %p10 = scmp.ge.s32.totalorder %s9, 4
      %s19 = sphi 0, %s21
      %s22 = sphi 0, %s19
      %s23 = sphi 0, %s22
      %s39 = sphi 0, %s23
      %s43 = sphi 0, %s43
      %s45 = sphi 0, %s43
      %s46 = sphi 0, %s45
      %s60 = sphi 0, %s46
      %s64 = sphi 0, %s64
      %s66 = sphi 0, %s64
      %s67 = sphi 0, %s66
      %s81 = sphi 0, %s67
      %s87 = sphi 0, %s89
      %s90 = sphi 0, %s87
      %s91 = sphi 0, %s90
      %s107 = sphi 0, %s91
    $region4: #{generator_forward.7} parent=1 // loop_header_branch
      %12 = sbr.rel (%p10) target = $region8
    $region5: #{generator_forward.7} parent=1 // loop_body
      %s14 = ssub.s32 %s9, 1
      %s15 = ssub.s32 %s9, 2
      %s16 = sadd.s32 %s9, 1
      %s17 = ssub.s32 %s9, %s16
      %p18 = scmp.eq.s32.totalorder %s17, 0
      %s20 = sadd.s32 %s19, 1
      %s21 = scalar_select %p18, %s19, %s20
      %p24 = pneg %p18
      %p25 = scmp.eq.s32.totalorder %s9, 1
      %p26 = por %p24, %p25
      %p27 = scmp.ne.s32.totalorder %s19, %s22
      %p28 = scmp.eq.s32.totalorder %s9, 0
      %p29 = por %p27, %p28
      %p30 = scmp.ne.s32.totalorder %s19, %s22
      %p31 = scmp.eq.s32.totalorder %s14, 1
      %p32 = por %p30, %p31
      %p33 = scmp.ne.s32.totalorder %s22, %s23
      %p34 = scmp.eq.s32.totalorder %s14, 0
      %p35 = por %p33, %p34
      %p36 = scmp.ne.s32.totalorder %s22, %s23
      %p37 = scmp.eq.s32.totalorder %s15, 1
      %p38 = por %p36, %p37
      %p40 = scmp.ne.s32.totalorder %s23, %s39
      %p41 = scmp.eq.s32.totalorder %s15, 0
      %p42 = por %p40, %p41
      %s44 = sadd.s32 %s43, 1
      %p47 = scmp.eq.s32.totalorder %s9, 1
      %p48 = scmp.ne.s32.totalorder %s43, %s45
      %p49 = scmp.eq.s32.totalorder %s9, 0
      %p50 = por %p48, %p49
      %p51 = scmp.ne.s32.totalorder %s43, %s45
      %p52 = scmp.eq.s32.totalorder %s14, 1
      %p53 = por %p51, %p52
      %p54 = scmp.ne.s32.totalorder %s45, %s46
      %p55 = scmp.eq.s32.totalorder %s14, 0
      %p56 = por %p54, %p55
      %p57 = scmp.ne.s32.totalorder %s45, %s46
      %p58 = scmp.eq.s32.totalorder %s15, 1
      %p59 = por %p57, %p58
      %p61 = scmp.ne.s32.totalorder %s46, %s60
      %p62 = scmp.eq.s32.totalorder %s15, 0
      %p63 = por %p61, %p62
      %s65 = sadd.s32 %s64, 1
      %p68 = scmp.eq.s32.totalorder %s9, 1
      %p69 = scmp.ne.s32.totalorder %s64, %s66
      %p70 = scmp.eq.s32.totalorder %s9, 0
      %p71 = por %p69, %p70
      %p72 = scmp.ne.s32.totalorder %s64, %s66
      %p73 = scmp.eq.s32.totalorder %s14, 1
      %p74 = por %p72, %p73
      %p75 = scmp.ne.s32.totalorder %s66, %s67
      %p76 = scmp.eq.s32.totalorder %s14, 0
      %p77 = por %p75, %p76
      %p78 = scmp.ne.s32.totalorder %s66, %s67
      %p79 = scmp.eq.s32.totalorder %s15, 1
      %p80 = por %p78, %p79
      %p82 = scmp.ne.s32.totalorder %s67, %s81
      %p83 = scmp.eq.s32.totalorder %s15, 0
      %p84 = por %p82, %p83
      %s85 = ssub.s32 %s9, %s16
      %p86 = scmp.eq.s32.totalorder %s85, 0
      %s88 = sadd.s32 %s87, 1
      %s89 = scalar_select %p86, %s87, %s88
      %p92 = pneg %p86
      %p93 = scmp.eq.s32.totalorder %s9, 1
      %p94 = por %p92, %p93
      %p95 = scmp.ne.s32.totalorder %s87, %s90
      %p96 = scmp.eq.s32.totalorder %s9, 0
      %p97 = por %p95, %p96
      %p98 = scmp.ne.s32.totalorder %s87, %s90
      %p99 = scmp.eq.s32.totalorder %s14, 1
      %p100 = por %p98, %p99
      %p101 = scmp.ne.s32.totalorder %s90, %s91
      %p102 = scmp.eq.s32.totalorder %s14, 0
      %p103 = por %p101, %p102
      %p104 = scmp.ne.s32.totalorder %s90, %s91
      %p105 = scmp.eq.s32.totalorder %s15, 1
      %p106 = por %p104, %p105
      %p108 = scmp.ne.s32.totalorder %s91, %s107
      %p109 = scmp.eq.s32.totalorder %s15, 0
      %p110 = por %p108, %p109
      %p111 = scmp.le.s32.totalorder 1, %s9
      %p112 = scmp.lt.s32.totalorder %s9, 3
      %p113 = pnand %p111, %p112
      %p114 = pneg %p113
      // Predicated region
      $region9: #{generator_forward.7} parent=5 // pred_check
        _
      $region10: #{generator_forward.7} parent=5 // pred_check_branch
        %116 = sbr.rel (%p113) target = $region12
      $region11: #{generator_forward.7} parent=5 // pred_region
        %s117 = ssub.s32 %s9, 1
        // Predicated region
        $region13: #{generator_forward.7} parent=11 // pred_check
          %p118 = pneg %p56
        $region14: #{generator_forward.7} parent=11 // pred_check_branch
          %120 = sbr.rel (%p118) target = $region16
        $region15: #{generator_forward.7} parent=11 // pred_region
          _
        $region16: #{generator_forward.7} parent=11 // pred_fallthru
          _
        // Predicated region
        $region17: #{generator_forward.7} parent=11 // pred_check
          %p121 = pneg %p77
        $region18: #{generator_forward.7} parent=11 // pred_check_branch
          %123 = sbr.rel (%p121) target = $region20
        $region19: #{generator_forward.7} parent=11 // pred_region
          _
        $region20: #{generator_forward.7} parent=11 // pred_fallthru
          _
      $region12: #{generator_forward.7} parent=5 // pred_fallthru
        _
      %p124 = scmp.lt.s32.totalorder %s9, 2
      // Predicated region
      $region21: #{generator_forward.7} parent=5 // pred_check
        %p125 = pneg %p124
      $region22: #{generator_forward.7} parent=5 // pred_check_branch
        %127 = sbr.rel (%p125) target = $region24
      $region23: #{generator_forward.7} parent=5 // pred_region
        // Predicated region
        $region25: #{generator_forward.7} parent=23 // pred_check
          %p128 = pneg %p29
        $region26: #{generator_forward.7} parent=23 // pred_check_branch
          %130 = sbr.rel (%p128) target = $region28
        $region27: #{generator_forward.7} parent=23 // pred_region
          %s131 = sand.u32 %s19, 1
          %s132 = sand.u32 %s19, 1
          %s133 = smul.addr %s132, 512
          %s134 = scalar_lea.vmem [#allocation2], %s133
          %s135 = smul.u32 32, %s9
          %s136 = smul.addr %s135, 4
          %s137 = scalar_lea.vmem %s0, %s136
          // Predicated region
          $region29: #{generator_forward.7} parent=27 // pred_check
            _
          $region30: #{generator_forward.7} parent=27 // pred_check_branch
            %139 = sbr.rel (0) target = $region32
          $region31: #{generator_forward.7} parent=27 // pred_region
            // Predicated region
            $region33: #{generator_forward.7} parent=31 // pred_check
              _
            $region34: #{generator_forward.7} parent=31 // pred_check_branch
              %141 = sbr.rel target = $region36
            $region35: #{generator_forward.7} parent=31 // pred_region
              // Predicated region
              $region48: #{generator_forward.7} parent=35 // pred_check
                _
              $region49: #{generator_forward.7} parent=35 // pred_check_branch
                %410 = sbr.rel (0) target = $region51
              $region50: #{generator_forward.7} parent=35 // pred_region
                loop: start=0, step=1, limit=1
                $region52: #{generator_forward.7} parent=50 // loop_pre_header
                  _
                $region53: #{generator_forward.7} parent=50 // loop_header
                  %s412 = sphi 0, %s416
                  %p413 = scmp.ge.s32.totalorder %s412, 1
                  %s417 = sphi %s137, %s137
                  %s418 = sphi %s134, %s134
                $region54: #{generator_forward.7} parent=50 // loop_header_branch
                  %415 = sbr.rel (%p413) target = $region58
                $region55: #{generator_forward.7} parent=50 // loop_body
                  _
                $region56: #{generator_forward.7} parent=50 // loop_footer
                  %s416 = sadd.s32 1, %s412
                $region57: #{generator_forward.7} parent=50 // loop_footer_branch
                  %411 = sbr.rel target = $region53
                $region58: #{generator_forward.7} parent=50 // loop_exit
                  _
                loop: start=0, step=1, limit=1
                $region59: #{generator_forward.7} parent=50 // loop_pre_header
                  _
                $region60: #{generator_forward.7} parent=50 // loop_header
                  %s421 = sphi 0, %s425
                  %p422 = scmp.ge.s32.totalorder %s421, 1
                  %s426 = sphi %s137, %s137
                  %s427 = sphi %s134, %s134
                $region61: #{generator_forward.7} parent=50 // loop_header_branch
                  %424 = sbr.rel (%p422) target = $region65
                $region62: #{generator_forward.7} parent=50 // loop_body
                  %v428 = vld [vmem:[%s426] sm:$0xf]
                  %429 = vst [vmem:[%s427] sm:$0xf] %v428
                  %v430 = vld [vmem:[%s426 + $0x4] sm:$0xf]
                  %431 = vst [vmem:[%s427 + $0x4] sm:$0xf] %v430
                  %v432 = vld [vmem:[%s426 + $0x8] sm:$0xf]
                  %433 = vst [vmem:[%s427 + $0x8] sm:$0xf] %v432
                  %v434 = vld [vmem:[%s426 + $0xc] sm:$0xf]
                  %435 = vst [vmem:[%s427 + $0xc] sm:$0xf] %v434
                  %v436 = vld [vmem:[%s426 + $0x10] sm:$0xf]
                  %437 = vst [vmem:[%s427 + $0x10] sm:$0xf] %v436
                  %v438 = vld [vmem:[%s426 + $0x14] sm:$0xf]
                  %439 = vst [vmem:[%s427 + $0x14] sm:$0xf] %v438
                  %v440 = vld [vmem:[%s426 + $0x18] sm:$0xf]
                  %441 = vst [vmem:[%s427 + $0x18] sm:$0xf] %v440
                  %v442 = vld [vmem:[%s426 + $0x1c] sm:$0xf]
                  %443 = vst [vmem:[%s427 + $0x1c] sm:$0xf] %v442
                  %v444 = vld [vmem:[%s426 + $0x20] sm:$0xf]
                  %445 = vst [vmem:[%s427 + $0x20] sm:$0xf] %v444
                  %v446 = vld [vmem:[%s426 + $0x24] sm:$0xf]
                  %447 = vst [vmem:[%s427 + $0x24] sm:$0xf] %v446
                  %v448 = vld [vmem:[%s426 + $0x28] sm:$0xf]
                  %449 = vst [vmem:[%s427 + $0x28] sm:$0xf] %v448
                  %v450 = vld [vmem:[%s426 + $0x2c] sm:$0xf]
                  %451 = vst [vmem:[%s427 + $0x2c] sm:$0xf] %v450
                  %v452 = vld [vmem:[%s426 + $0x30] sm:$0xf]
                  %453 = vst [vmem:[%s427 + $0x30] sm:$0xf] %v452
                  %v454 = vld [vmem:[%s426 + $0x34] sm:$0xf]
                  %455 = vst [vmem:[%s427 + $0x34] sm:$0xf] %v454
                  %v456 = vld [vmem:[%s426 + $0x38] sm:$0xf]
                  %457 = vst [vmem:[%s427 + $0x38] sm:$0xf] %v456
                  %v458 = vld [vmem:[%s426 + $0x3c] sm:$0xf]
                  %459 = vst [vmem:[%s427 + $0x3c] sm:$0xf] %v458
                  %v460 = vld [vmem:[%s426 + $0x40] sm:$0xf]
                  %461 = vst [vmem:[%s427 + $0x40] sm:$0xf] %v460
                  %v462 = vld [vmem:[%s426 + $0x44] sm:$0xf]
                  %463 = vst [vmem:[%s427 + $0x44] sm:$0xf] %v462
                  %v464 = vld [vmem:[%s426 + $0x48] sm:$0xf]
                  %465 = vst [vmem:[%s427 + $0x48] sm:$0xf] %v464
                  %v466 = vld [vmem:[%s426 + $0x4c] sm:$0xf]
                  %467 = vst [vmem:[%s427 + $0x4c] sm:$0xf] %v466
                  %v468 = vld [vmem:[%s426 + $0x50] sm:$0xf]
                  %469 = vst [vmem:[%s427 + $0x50] sm:$0xf] %v468
                  %v470 = vld [vmem:[%s426 + $0x54] sm:$0xf]
                  %471 = vst [vmem:[%s427 + $0x54] sm:$0xf] %v470
                  %v472 = vld [vmem:[%s426 + $0x58] sm:$0xf]
                  %473 = vst [vmem:[%s427 + $0x58] sm:$0xf] %v472
                  %v474 = vld [vmem:[%s426 + $0x5c] sm:$0xf]
                  %475 = vst [vmem:[%s427 + $0x5c] sm:$0xf] %v474
                  %v476 = vld [vmem:[%s426 + $0x60] sm:$0xf]
                  %477 = vst [vmem:[%s427 + $0x60] sm:$0xf] %v476
                  %v478 = vld [vmem:[%s426 + $0x64] sm:$0xf]
                  %479 = vst [vmem:[%s427 + $0x64] sm:$0xf] %v478
                  %v480 = vld [vmem:[%s426 + $0x68] sm:$0xf]
                  %481 = vst [vmem:[%s427 + $0x68] sm:$0xf] %v480
                  %v482 = vld [vmem:[%s426 + $0x6c] sm:$0xf]
                  %483 = vst [vmem:[%s427 + $0x6c] sm:$0xf] %v482
                  %v484 = vld [vmem:[%s426 + $0x70] sm:$0xf]
                  %485 = vst [vmem:[%s427 + $0x70] sm:$0xf] %v484
                  %v486 = vld [vmem:[%s426 + $0x74] sm:$0xf]
                  %487 = vst [vmem:[%s427 + $0x74] sm:$0xf] %v486
                  %v488 = vld [vmem:[%s426 + $0x78] sm:$0xf]
                  %489 = vst [vmem:[%s427 + $0x78] sm:$0xf] %v488
                  %v490 = vld [vmem:[%s426 + $0x7c] sm:$0xf]
                  %491 = vst [vmem:[%s427 + $0x7c] sm:$0xf] %v490
                  %v492 = vld [vmem:[%s426 + $0x100] sm:$0xf]
                  %493 = vst [vmem:[%s427 + $0x80] sm:$0xf] %v492
                  %v494 = vld [vmem:[%s426 + $0x104] sm:$0xf]
                  %495 = vst [vmem:[%s427 + $0x84] sm:$0xf] %v494
                  %v496 = vld [vmem:[%s426 + $0x108] sm:$0xf]
                  %497 = vst [vmem:[%s427 + $0x88] sm:$0xf] %v496
                  %v498 = vld [vmem:[%s426 + $0x10c] sm:$0xf]
                  %499 = vst [vmem:[%s427 + $0x8c] sm:$0xf] %v498
                  %v500 = vld [vmem:[%s426 + $0x110] sm:$0xf]
                  %501 = vst [vmem:[%s427 + $0x90] sm:$0xf] %v500
                  %v502 = vld [vmem:[%s426 + $0x114] sm:$0xf]
                  %503 = vst [vmem:[%s427 + $0x94] sm:$0xf] %v502
                  %v504 = vld [vmem:[%s426 + $0x118] sm:$0xf]
                  %505 = vst [vmem:[%s427 + $0x98] sm:$0xf] %v504
                  %v506 = vld [vmem:[%s426 + $0x11c] sm:$0xf]
                  %507 = vst [vmem:[%s427 + $0x9c] sm:$0xf] %v506
                  %v508 = vld [vmem:[%s426 + $0x120] sm:$0xf]
                  %509 = vst [vmem:[%s427 + $0xa0] sm:$0xf] %v508
                  %v510 = vld [vmem:[%s426 + $0x124] sm:$0xf]
                  %511 = vst [vmem:[%s427 + $0xa4] sm:$0xf] %v510
                  %v512 = vld [vmem:[%s426 + $0x128] sm:$0xf]
                  %513 = vst [vmem:[%s427 + $0xa8] sm:$0xf] %v512
                  %v514 = vld [vmem:[%s426 + $0x12c] sm:$0xf]
                  %515 = vst [vmem:[%s427 + $0xac] sm:$0xf] %v514
                  %v516 = vld [vmem:[%s426 + $0x130] sm:$0xf]
                  %517 = vst [vmem:[%s427 + $0xb0] sm:$0xf] %v516
                  %v518 = vld [vmem:[%s426 + $0x134] sm:$0xf]
                  %519 = vst [vmem:[%s427 + $0xb4] sm:$0xf] %v518
                  %v520 = vld [vmem:[%s426 + $0x138] sm:$0xf]
                  %521 = vst [vmem:[%s427 + $0xb8] sm:$0xf] %v520
                  %v522 = vld [vmem:[%s426 + $0x13c] sm:$0xf]
                  %523 = vst [vmem:[%s427 + $0xbc] sm:$0xf] %v522
                  %v524 = vld [vmem:[%s426 + $0x140] sm:$0xf]
                  %525 = vst [vmem:[%s427 + $0xc0] sm:$0xf] %v524
                  %v526 = vld [vmem:[%s426 + $0x144] sm:$0xf]
                  %527 = vst [vmem:[%s427 + $0xc4] sm:$0xf] %v526
                  %v528 = vld [vmem:[%s426 + $0x148] sm:$0xf]
                  %529 = vst [vmem:[%s427 + $0xc8] sm:$0xf] %v528
                  %v530 = vld [vmem:[%s426 + $0x14c] sm:$0xf]
                  %531 = vst [vmem:[%s427 + $0xcc] sm:$0xf] %v530
                  %v532 = vld [vmem:[%s426 + $0x150] sm:$0xf]
                  %533 = vst [vmem:[%s427 + $0xd0] sm:$0xf] %v532
                  %v534 = vld [vmem:[%s426 + $0x154] sm:$0xf]
                  %535 = vst [vmem:[%s427 + $0xd4] sm:$0xf] %v534
                  %v536 = vld [vmem:[%s426 + $0x158] sm:$0xf]
                  %537 = vst [vmem:[%s427 + $0xd8] sm:$0xf] %v536
                  %v538 = vld [vmem:[%s426 + $0x15c] sm:$0xf]
                  %539 = vst [vmem:[%s427 + $0xdc] sm:$0xf] %v538
                  %v540 = vld [vmem:[%s426 + $0x160] sm:$0xf]
                  %541 = vst [vmem:[%s427 + $0xe0] sm:$0xf] %v540
                  %v542 = vld [vmem:[%s426 + $0x164] sm:$0xf]
                  %543 = vst [vmem:[%s427 + $0xe4] sm:$0xf] %v542
                  %v544 = vld [vmem:[%s426 + $0x168] sm:$0xf]
                  %545 = vst [vmem:[%s427 + $0xe8] sm:$0xf] %v544
                  %v546 = vld [vmem:[%s426 + $0x16c] sm:$0xf]
                  %547 = vst [vmem:[%s427 + $0xec] sm:$0xf] %v546
                  %v548 = vld [vmem:[%s426 + $0x170] sm:$0xf]
                  %549 = vst [vmem:[%s427 + $0xf0] sm:$0xf] %v548
                  %v550 = vld [vmem:[%s426 + $0x174] sm:$0xf]
                  %551 = vst [vmem:[%s427 + $0xf4] sm:$0xf] %v550
                  %v552 = vld [vmem:[%s426 + $0x178] sm:$0xf]
                  %553 = vst [vmem:[%s427 + $0xf8] sm:$0xf] %v552
                  %v554 = vld [vmem:[%s426 + $0x17c] sm:$0xf]
                  %555 = vst [vmem:[%s427 + $0xfc] sm:$0xf] %v554
                  %v556 = vld [vmem:[%s426 + $0x200] sm:$0xf]
                  %557 = vst [vmem:[%s427 + $0x100] sm:$0xf] %v556
                  %v558 = vld [vmem:[%s426 + $0x204] sm:$0xf]
                  %559 = vst [vmem:[%s427 + $0x104] sm:$0xf] %v558
                  %v560 = vld [vmem:[%s426 + $0x208] sm:$0xf]
                  %561 = vst [vmem:[%s427 + $0x108] sm:$0xf] %v560
                  %v562 = vld [vmem:[%s426 + $0x20c] sm:$0xf]
                  %563 = vst [vmem:[%s427 + $0x10c] sm:$0xf] %v562
                  %v564 = vld [vmem:[%s426 + $0x210] sm:$0xf]
                  %565 = vst [vmem:[%s427 + $0x110] sm:$0xf] %v564
                  %v566 = vld [vmem:[%s426 + $0x214] sm:$0xf]
                  %567 = vst [vmem:[%s427 + $0x114] sm:$0xf] %v566
                  %v568 = vld [vmem:[%s426 + $0x218] sm:$0xf]
                  %569 = vst [vmem:[%s427 + $0x118] sm:$0xf] %v568
                  %v570 = vld [vmem:[%s426 + $0x21c] sm:$0xf]
                  %571 = vst [vmem:[%s427 + $0x11c] sm:$0xf] %v570
                  %v572 = vld [vmem:[%s426 + $0x220] sm:$0xf]
                  %573 = vst [vmem:[%s427 + $0x120] sm:$0xf] %v572
                  %v574 = vld [vmem:[%s426 + $0x224] sm:$0xf]
                  %575 = vst [vmem:[%s427 + $0x124] sm:$0xf] %v574
                  %v576 = vld [vmem:[%s426 + $0x228] sm:$0xf]
                  %577 = vst [vmem:[%s427 + $0x128] sm:$0xf] %v576
                  %v578 = vld [vmem:[%s426 + $0x22c] sm:$0xf]
                  %579 = vst [vmem:[%s427 + $0x12c] sm:$0xf] %v578
                  %v580 = vld [vmem:[%s426 + $0x230] sm:$0xf]
                  %581 = vst [vmem:[%s427 + $0x130] sm:$0xf] %v580
                  %v582 = vld [vmem:[%s426 + $0x234] sm:$0xf]
                  %583 = vst [vmem:[%s427 + $0x134] sm:$0xf] %v582
                  %v584 = vld [vmem:[%s426 + $0x238] sm:$0xf]
                  %585 = vst [vmem:[%s427 + $0x138] sm:$0xf] %v584
                  %v586 = vld [vmem:[%s426 + $0x23c] sm:$0xf]
                  %587 = vst [vmem:[%s427 + $0x13c] sm:$0xf] %v586
                  %v588 = vld [vmem:[%s426 + $0x240] sm:$0xf]
                  %589 = vst [vmem:[%s427 + $0x140] sm:$0xf] %v588
                  %v590 = vld [vmem:[%s426 + $0x244] sm:$0xf]
                  %591 = vst [vmem:[%s427 + $0x144] sm:$0xf] %v590
                  %v592 = vld [vmem:[%s426 + $0x248] sm:$0xf]
                  %593 = vst [vmem:[%s427 + $0x148] sm:$0xf] %v592
                  %v594 = vld [vmem:[%s426 + $0x24c] sm:$0xf]
                  %595 = vst [vmem:[%s427 + $0x14c] sm:$0xf] %v594
                  %v596 = vld [vmem:[%s426 + $0x250] sm:$0xf]
                  %597 = vst [vmem:[%s427 + $0x150] sm:$0xf] %v596
                  %v598 = vld [vmem:[%s426 + $0x254] sm:$0xf]
                  %599 = vst [vmem:[%s427 + $0x154] sm:$0xf] %v598
                  %v600 = vld [vmem:[%s426 + $0x258] sm:$0xf]
                  %601 = vst [vmem:[%s427 + $0x158] sm:$0xf] %v600
                  %v602 = vld [vmem:[%s426 + $0x25c] sm:$0xf]
                  %603 = vst [vmem:[%s427 + $0x15c] sm:$0xf] %v602
                  %v604 = vld [vmem:[%s426 + $0x260] sm:$0xf]
                  %605 = vst [vmem:[%s427 + $0x160] sm:$0xf] %v604
                  %v606 = vld [vmem:[%s426 + $0x264] sm:$0xf]
                  %607 = vst [vmem:[%s427 + $0x164] sm:$0xf] %v606
                  %v608 = vld [vmem:[%s426 + $0x268] sm:$0xf]
                  %609 = vst [vmem:[%s427 + $0x168] sm:$0xf] %v608
                  %v610 = vld [vmem:[%s426 + $0x26c] sm:$0xf]
                  %611 = vst [vmem:[%s427 + $0x16c] sm:$0xf] %v610
                  %v612 = vld [vmem:[%s426 + $0x270] sm:$0xf]
                  %613 = vst [vmem:[%s427 + $0x170] sm:$0xf] %v612
                  %v614 = vld [vmem:[%s426 + $0x274] sm:$0xf]
                  %615 = vst [vmem:[%s427 + $0x174] sm:$0xf] %v614
                  %v616 = vld [vmem:[%s426 + $0x278] sm:$0xf]
                  %617 = vst [vmem:[%s427 + $0x178] sm:$0xf] %v616
                  %v618 = vld [vmem:[%s426 + $0x27c] sm:$0xf]
                  %619 = vst [vmem:[%s427 + $0x17c] sm:$0xf] %v618
                  %v620 = vld [vmem:[%s426 + $0x300] sm:$0xf]
                  %621 = vst [vmem:[%s427 + $0x180] sm:$0xf] %v620
                  %v622 = vld [vmem:[%s426 + $0x304] sm:$0xf]
                  %623 = vst [vmem:[%s427 + $0x184] sm:$0xf] %v622
                  %v624 = vld [vmem:[%s426 + $0x308] sm:$0xf]
                  %625 = vst [vmem:[%s427 + $0x188] sm:$0xf] %v624
                  %v626 = vld [vmem:[%s426 + $0x30c] sm:$0xf]
                  %627 = vst [vmem:[%s427 + $0x18c] sm:$0xf] %v626
                  %v628 = vld [vmem:[%s426 + $0x310] sm:$0xf]
                  %629 = vst [vmem:[%s427 + $0x190] sm:$0xf] %v628
                  %v630 = vld [vmem:[%s426 + $0x314] sm:$0xf]
                  %631 = vst [vmem:[%s427 + $0x194] sm:$0xf] %v630
                  %v632 = vld [vmem:[%s426 + $0x318] sm:$0xf]
                  %633 = vst [vmem:[%s427 + $0x198] sm:$0xf] %v632
                  %v634 = vld [vmem:[%s426 + $0x31c] sm:$0xf]
                  %635 = vst [vmem:[%s427 + $0x19c] sm:$0xf] %v634
                  %v636 = vld [vmem:[%s426 + $0x320] sm:$0xf]
                  %637 = vst [vmem:[%s427 + $0x1a0] sm:$0xf] %v636
                  %v638 = vld [vmem:[%s426 + $0x324] sm:$0xf]
                  %639 = vst [vmem:[%s427 + $0x1a4] sm:$0xf] %v638
                  %v640 = vld [vmem:[%s426 + $0x328] sm:$0xf]
                  %641 = vst [vmem:[%s427 + $0x1a8] sm:$0xf] %v640
                  %v642 = vld [vmem:[%s426 + $0x32c] sm:$0xf]
                  %643 = vst [vmem:[%s427 + $0x1ac] sm:$0xf] %v642
                  %v644 = vld [vmem:[%s426 + $0x330] sm:$0xf]
                  %645 = vst [vmem:[%s427 + $0x1b0] sm:$0xf] %v644
                  %v646 = vld [vmem:[%s426 + $0x334] sm:$0xf]
                  %647 = vst [vmem:[%s427 + $0x1b4] sm:$0xf] %v646
                  %v648 = vld [vmem:[%s426 + $0x338] sm:$0xf]
                  %649 = vst [vmem:[%s427 + $0x1b8] sm:$0xf] %v648
                  %v650 = vld [vmem:[%s426 + $0x33c] sm:$0xf]
                  %651 = vst [vmem:[%s427 + $0x1bc] sm:$0xf] %v650
                  %v652 = vld [vmem:[%s426 + $0x340] sm:$0xf]
                  %653 = vst [vmem:[%s427 + $0x1c0] sm:$0xf] %v652
                  %v654 = vld [vmem:[%s426 + $0x344] sm:$0xf]
                  %655 = vst [vmem:[%s427 + $0x1c4] sm:$0xf] %v654
                  %v656 = vld [vmem:[%s426 + $0x348] sm:$0xf]
                  %657 = vst [vmem:[%s427 + $0x1c8] sm:$0xf] %v656
                  %v658 = vld [vmem:[%s426 + $0x34c] sm:$0xf]
                  %659 = vst [vmem:[%s427 + $0x1cc] sm:$0xf] %v658
                  %v660 = vld [vmem:[%s426 + $0x350] sm:$0xf]
                  %661 = vst [vmem:[%s427 + $0x1d0] sm:$0xf] %v660
                  %v662 = vld [vmem:[%s426 + $0x354] sm:$0xf]
                  %663 = vst [vmem:[%s427 + $0x1d4] sm:$0xf] %v662
                  %v664 = vld [vmem:[%s426 + $0x358] sm:$0xf]
                  %665 = vst [vmem:[%s427 + $0x1d8] sm:$0xf] %v664
                  %v666 = vld [vmem:[%s426 + $0x35c] sm:$0xf]
                  %667 = vst [vmem:[%s427 + $0x1dc] sm:$0xf] %v666
                  %v668 = vld [vmem:[%s426 + $0x360] sm:$0xf]
                  %669 = vst [vmem:[%s427 + $0x1e0] sm:$0xf] %v668
                  %v670 = vld [vmem:[%s426 + $0x364] sm:$0xf]
                  %671 = vst [vmem:[%s427 + $0x1e4] sm:$0xf] %v670
                  %v672 = vld [vmem:[%s426 + $0x368] sm:$0xf]
                  %673 = vst [vmem:[%s427 + $0x1e8] sm:$0xf] %v672
                  %v674 = vld [vmem:[%s426 + $0x36c] sm:$0xf]
                  %675 = vst [vmem:[%s427 + $0x1ec] sm:$0xf] %v674
                  %v676 = vld [vmem:[%s426 + $0x370] sm:$0xf]
                  %677 = vst [vmem:[%s427 + $0x1f0] sm:$0xf] %v676
                  %v678 = vld [vmem:[%s426 + $0x374] sm:$0xf]
                  %679 = vst [vmem:[%s427 + $0x1f4] sm:$0xf] %v678
                  %v680 = vld [vmem:[%s426 + $0x378] sm:$0xf]
                  %681 = vst [vmem:[%s427 + $0x1f8] sm:$0xf] %v680
                  %v682 = vld [vmem:[%s426 + $0x37c] sm:$0xf]
                  %683 = vst [vmem:[%s427 + $0x1fc] sm:$0xf] %v682
                $region63: #{generator_forward.7} parent=50 // loop_footer
                  %s425 = sadd.s32 1, %s421
                $region64: #{generator_forward.7} parent=50 // loop_footer_branch
                  %420 = sbr.rel target = $region60
                $region65: #{generator_forward.7} parent=50 // loop_exit
                  _
              $region51: #{generator_forward.7} parent=35 // pred_fallthru
                _
            $region36: #{generator_forward.7} parent=31 // pred_fallthru
              _
            // Predicated region
            $region37: #{generator_forward.7} parent=31 // pred_check
              _
            $region38: #{generator_forward.7} parent=31 // pred_check_branch
              %143 = sbr.rel (0) target = $region40
            $region39: #{generator_forward.7} parent=31 // pred_region
              loop: start=0, step=1, limit=1
              $region41: #{generator_forward.7} parent=39 // loop_pre_header
                _
              $region42: #{generator_forward.7} parent=39 // loop_header
                %s146 = sphi 0, %s150
                %p147 = scmp.ge.s32.totalorder %s146, 1
                %s151 = sphi %s137, %s137
                %s152 = sphi %s134, %s134
              $region43: #{generator_forward.7} parent=39 // loop_header_branch
                %149 = sbr.rel (%p147) target = $region47
              $region44: #{generator_forward.7} parent=39 // loop_body
                %v153 = vld [vmem:[%s151] sm:$0xf]
                %154 = vst [vmem:[%s152] sm:$0xf] %v153
                %v155 = vld [vmem:[%s151 + $0x4] sm:$0xf]
                %156 = vst [vmem:[%s152 + $0x4] sm:$0xf] %v155
                %v157 = vld [vmem:[%s151 + $0x8] sm:$0xf]
                %158 = vst [vmem:[%s152 + $0x8] sm:$0xf] %v157
                %v159 = vld [vmem:[%s151 + $0xc] sm:$0xf]
                %160 = vst [vmem:[%s152 + $0xc] sm:$0xf] %v159
                %v161 = vld [vmem:[%s151 + $0x10] sm:$0xf]
                %162 = vst [vmem:[%s152 + $0x10] sm:$0xf] %v161
                %v163 = vld [vmem:[%s151 + $0x14] sm:$0xf]
                %164 = vst [vmem:[%s152 + $0x14] sm:$0xf] %v163
                %v165 = vld [vmem:[%s151 + $0x18] sm:$0xf]
                %166 = vst [vmem:[%s152 + $0x18] sm:$0xf] %v165
                %v167 = vld [vmem:[%s151 + $0x1c] sm:$0xf]
                %168 = vst [vmem:[%s152 + $0x1c] sm:$0xf] %v167
                %v169 = vld [vmem:[%s151 + $0x20] sm:$0xf]
                %170 = vst [vmem:[%s152 + $0x20] sm:$0xf] %v169
                %v171 = vld [vmem:[%s151 + $0x24] sm:$0xf]
                %172 = vst [vmem:[%s152 + $0x24] sm:$0xf] %v171
                %v173 = vld [vmem:[%s151 + $0x28] sm:$0xf]
                %174 = vst [vmem:[%s152 + $0x28] sm:$0xf] %v173
                %v175 = vld [vmem:[%s151 + $0x2c] sm:$0xf]
                %176 = vst [vmem:[%s152 + $0x2c] sm:$0xf] %v175
                %v177 = vld [vmem:[%s151 + $0x30] sm:$0xf]
                %178 = vst [vmem:[%s152 + $0x30] sm:$0xf] %v177
                %v179 = vld [vmem:[%s151 + $0x34] sm:$0xf]
                %180 = vst [vmem:[%s152 + $0x34] sm:$0xf] %v179
                %v181 = vld [vmem:[%s151 + $0x38] sm:$0xf]
                %182 = vst [vmem:[%s152 + $0x38] sm:$0xf] %v181
                %v183 = vld [vmem:[%s151 + $0x3c] sm:$0xf]
                %184 = vst [vmem:[%s152 + $0x3c] sm:$0xf] %v183
                %v185 = vld [vmem:[%s151 + $0x40] sm:$0xf]
                %186 = vst [vmem:[%s152 + $0x40] sm:$0xf] %v185
                %v187 = vld [vmem:[%s151 + $0x44] sm:$0xf]
                %188 = vst [vmem:[%s152 + $0x44] sm:$0xf] %v187
                %v189 = vld [vmem:[%s151 + $0x48] sm:$0xf]
                %190 = vst [vmem:[%s152 + $0x48] sm:$0xf] %v189
                %v191 = vld [vmem:[%s151 + $0x4c] sm:$0xf]
                %192 = vst [vmem:[%s152 + $0x4c] sm:$0xf] %v191
                %v193 = vld [vmem:[%s151 + $0x50] sm:$0xf]
                %194 = vst [vmem:[%s152 + $0x50] sm:$0xf] %v193
                %v195 = vld [vmem:[%s151 + $0x54] sm:$0xf]
                %196 = vst [vmem:[%s152 + $0x54] sm:$0xf] %v195
                %v197 = vld [vmem:[%s151 + $0x58] sm:$0xf]
                %198 = vst [vmem:[%s152 + $0x58] sm:$0xf] %v197
                %v199 = vld [vmem:[%s151 + $0x5c] sm:$0xf]
                %200 = vst [vmem:[%s152 + $0x5c] sm:$0xf] %v199
                %v201 = vld [vmem:[%s151 + $0x60] sm:$0xf]
                %202 = vst [vmem:[%s152 + $0x60] sm:$0xf] %v201
                %v203 = vld [vmem:[%s151 + $0x64] sm:$0xf]
                %204 = vst [vmem:[%s152 + $0x64] sm:$0xf] %v203
                %v205 = vld [vmem:[%s151 + $0x68] sm:$0xf]
                %206 = vst [vmem:[%s152 + $0x68] sm:$0xf] %v205
                %v207 = vld [vmem:[%s151 + $0x6c] sm:$0xf]
                %208 = vst [vmem:[%s152 + $0x6c] sm:$0xf] %v207
                %v209 = vld [vmem:[%s151 + $0x70] sm:$0xf]
                %210 = vst [vmem:[%s152 + $0x70] sm:$0xf] %v209
                %v211 = vld [vmem:[%s151 + $0x74] sm:$0xf]
                %212 = vst [vmem:[%s152 + $0x74] sm:$0xf] %v211
                %v213 = vld [vmem:[%s151 + $0x78] sm:$0xf]
                %214 = vst [vmem:[%s152 + $0x78] sm:$0xf] %v213
                %v215 = vld [vmem:[%s151 + $0x7c] sm:$0xf]
                %216 = vst [vmem:[%s152 + $0x7c] sm:$0xf] %v215
                %v217 = vld [vmem:[%s151 + $0x100] sm:$0xf]
                %218 = vst [vmem:[%s152 + $0x80] sm:$0xf] %v217
                %v219 = vld [vmem:[%s151 + $0x104] sm:$0xf]
                %220 = vst [vmem:[%s152 + $0x84] sm:$0xf] %v219
                %v221 = vld [vmem:[%s151 + $0x108] sm:$0xf]
                %222 = vst [vmem:[%s152 + $0x88] sm:$0xf] %v221
                %v223 = vld [vmem:[%s151 + $0x10c] sm:$0xf]
                %224 = vst [vmem:[%s152 + $0x8c] sm:$0xf] %v223
                %v225 = vld [vmem:[%s151 + $0x110] sm:$0xf]
                %226 = vst [vmem:[%s152 + $0x90] sm:$0xf] %v225
                %v227 = vld [vmem:[%s151 + $0x114] sm:$0xf]
                %228 = vst [vmem:[%s152 + $0x94] sm:$0xf] %v227
                %v229 = vld [vmem:[%s151 + $0x118] sm:$0xf]
                %230 = vst [vmem:[%s152 + $0x98] sm:$0xf] %v229
                %v231 = vld [vmem:[%s151 + $0x11c] sm:$0xf]
                %232 = vst [vmem:[%s152 + $0x9c] sm:$0xf] %v231
                %v233 = vld [vmem:[%s151 + $0x120] sm:$0xf]
                %234 = vst [vmem:[%s152 + $0xa0] sm:$0xf] %v233
                %v235 = vld [vmem:[%s151 + $0x124] sm:$0xf]
                %236 = vst [vmem:[%s152 + $0xa4] sm:$0xf] %v235
                %v237 = vld [vmem:[%s151 + $0x128] sm:$0xf]
                %238 = vst [vmem:[%s152 + $0xa8] sm:$0xf] %v237
                %v239 = vld [vmem:[%s151 + $0x12c] sm:$0xf]
                %240 = vst [vmem:[%s152 + $0xac] sm:$0xf] %v239
                %v241 = vld [vmem:[%s151 + $0x130] sm:$0xf]
                %242 = vst [vmem:[%s152 + $0xb0] sm:$0xf] %v241
                %v243 = vld [vmem:[%s151 + $0x134] sm:$0xf]
                %244 = vst [vmem:[%s152 + $0xb4] sm:$0xf] %v243
                %v245 = vld [vmem:[%s151 + $0x138] sm:$0xf]
                %246 = vst [vmem:[%s152 + $0xb8] sm:$0xf] %v245
                %v247 = vld [vmem:[%s151 + $0x13c] sm:$0xf]
                %248 = vst [vmem:[%s152 + $0xbc] sm:$0xf] %v247
                %v249 = vld [vmem:[%s151 + $0x140] sm:$0xf]
                %250 = vst [vmem:[%s152 + $0xc0] sm:$0xf] %v249
                %v251 = vld [vmem:[%s151 + $0x144] sm:$0xf]
                %252 = vst [vmem:[%s152 + $0xc4] sm:$0xf] %v251
                %v253 = vld [vmem:[%s151 + $0x148] sm:$0xf]
                %254 = vst [vmem:[%s152 + $0xc8] sm:$0xf] %v253
                %v255 = vld [vmem:[%s151 + $0x14c] sm:$0xf]
                %256 = vst [vmem:[%s152 + $0xcc] sm:$0xf] %v255
                %v257 = vld [vmem:[%s151 + $0x150] sm:$0xf]
                %258 = vst [vmem:[%s152 + $0xd0] sm:$0xf] %v257
                %v259 = vld [vmem:[%s151 + $0x154] sm:$0xf]
                %260 = vst [vmem:[%s152 + $0xd4] sm:$0xf] %v259
                %v261 = vld [vmem:[%s151 + $0x158] sm:$0xf]
                %262 = vst [vmem:[%s152 + $0xd8] sm:$0xf] %v261
                %v263 = vld [vmem:[%s151 + $0x15c] sm:$0xf]
                %264 = vst [vmem:[%s152 + $0xdc] sm:$0xf] %v263
                %v265 = vld [vmem:[%s151 + $0x160] sm:$0xf]
                %266 = vst [vmem:[%s152 + $0xe0] sm:$0xf] %v265
                %v267 = vld [vmem:[%s151 + $0x164] sm:$0xf]
                %268 = vst [vmem:[%s152 + $0xe4] sm:$0xf] %v267
                %v269 = vld [vmem:[%s151 + $0x168] sm:$0xf]
                %270 = vst [vmem:[%s152 + $0xe8] sm:$0xf] %v269
                %v271 = vld [vmem:[%s151 + $0x16c] sm:$0xf]
                %272 = vst [vmem:[%s152 + $0xec] sm:$0xf] %v271
                %v273 = vld [vmem:[%s151 + $0x170] sm:$0xf]
                %274 = vst [vmem:[%s152 + $0xf0] sm:$0xf] %v273
                %v275 = vld [vmem:[%s151 + $0x174] sm:$0xf]
                %276 = vst [vmem:[%s152 + $0xf4] sm:$0xf] %v275
                %v277 = vld [vmem:[%s151 + $0x178] sm:$0xf]
                %278 = vst [vmem:[%s152 + $0xf8] sm:$0xf] %v277
                %v279 = vld [vmem:[%s151 + $0x17c] sm:$0xf]
                %280 = vst [vmem:[%s152 + $0xfc] sm:$0xf] %v279
                %v281 = vld [vmem:[%s151 + $0x200] sm:$0xf]
                %282 = vst [vmem:[%s152 + $0x100] sm:$0xf] %v281
                %v283 = vld [vmem:[%s151 + $0x204] sm:$0xf]
                %284 = vst [vmem:[%s152 + $0x104] sm:$0xf] %v283
                %v285 = vld [vmem:[%s151 + $0x208] sm:$0xf]
                %286 = vst [vmem:[%s152 + $0x108] sm:$0xf] %v285
                %v287 = vld [vmem:[%s151 + $0x20c] sm:$0xf]
                %288 = vst [vmem:[%s152 + $0x10c] sm:$0xf] %v287
                %v289 = vld [vmem:[%s151 + $0x210] sm:$0xf]
                %290 = vst [vmem:[%s152 + $0x110] sm:$0xf] %v289
                %v291 = vld [vmem:[%s151 + $0x214] sm:$0xf]
                %292 = vst [vmem:[%s152 + $0x114] sm:$0xf] %v291
                %v293 = vld [vmem:[%s151 + $0x218] sm:$0xf]
                %294 = vst [vmem:[%s152 + $0x118] sm:$0xf] %v293
                %v295 = vld [vmem:[%s151 + $0x21c] sm:$0xf]
                %296 = vst [vmem:[%s152 + $0x11c] sm:$0xf] %v295
                %v297 = vld [vmem:[%s151 + $0x220] sm:$0xf]
                %298 = vst [vmem:[%s152 + $0x120] sm:$0xf] %v297
                %v299 = vld [vmem:[%s151 + $0x224] sm:$0xf]
                %300 = vst [vmem:[%s152 + $0x124] sm:$0xf] %v299
                %v301 = vld [vmem:[%s151 + $0x228] sm:$0xf]
                %302 = vst [vmem:[%s152 + $0x128] sm:$0xf] %v301
                %v303 = vld [vmem:[%s151 + $0x22c] sm:$0xf]
                %304 = vst [vmem:[%s152 + $0x12c] sm:$0xf] %v303
                %v305 = vld [vmem:[%s151 + $0x230] sm:$0xf]
                %306 = vst [vmem:[%s152 + $0x130] sm:$0xf] %v305
                %v307 = vld [vmem:[%s151 + $0x234] sm:$0xf]
                %308 = vst [vmem:[%s152 + $0x134] sm:$0xf] %v307
                %v309 = vld [vmem:[%s151 + $0x238] sm:$0xf]
                %310 = vst [vmem:[%s152 + $0x138] sm:$0xf] %v309
                %v311 = vld [vmem:[%s151 + $0x23c] sm:$0xf]
                %312 = vst [vmem:[%s152 + $0x13c] sm:$0xf] %v311
                %v313 = vld [vmem:[%s151 + $0x240] sm:$0xf]
                %314 = vst [vmem:[%s152 + $0x140] sm:$0xf] %v313
                %v315 = vld [vmem:[%s151 + $0x244] sm:$0xf]
                %316 = vst [vmem:[%s152 + $0x144] sm:$0xf] %v315
                %v317 = vld [vmem:[%s151 + $0x248] sm:$0xf]
                %318 = vst [vmem:[%s152 + $0x148] sm:$0xf] %v317
                %v319 = vld [vmem:[%s151 + $0x24c] sm:$0xf]
                %320 = vst [vmem:[%s152 + $0x14c] sm:$0xf] %v319
                %v321 = vld [vmem:[%s151 + $0x250] sm:$0xf]
                %322 = vst [vmem:[%s152 + $0x150] sm:$0xf] %v321
                %v323 = vld [vmem:[%s151 + $0x254] sm:$0xf]
                %324 = vst [vmem:[%s152 + $0x154] sm:$0xf] %v323
                %v325 = vld [vmem:[%s151 + $0x258] sm:$0xf]
                %326 = vst [vmem:[%s152 + $0x158] sm:$0xf] %v325
                %v327 = vld [vmem:[%s151 + $0x25c] sm:$0xf]
                %328 = vst [vmem:[%s152 + $0x15c] sm:$0xf] %v327
                %v329 = vld [vmem:[%s151 + $0x260] sm:$0xf]
                %330 = vst [vmem:[%s152 + $0x160] sm:$0xf] %v329
                %v331 = vld [vmem:[%s151 + $0x264] sm:$0xf]
                %332 = vst [vmem:[%s152 + $0x164] sm:$0xf] %v331
                %v333 = vld [vmem:[%s151 + $0x268] sm:$0xf]
                %334 = vst [vmem:[%s152 + $0x168] sm:$0xf] %v333
                %v335 = vld [vmem:[%s151 + $0x26c] sm:$0xf]
                %336 = vst [vmem:[%s152 + $0x16c] sm:$0xf] %v335
                %v337 = vld [vmem:[%s151 + $0x270] sm:$0xf]
                %338 = vst [vmem:[%s152 + $0x170] sm:$0xf] %v337
                %v339 = vld [vmem:[%s151 + $0x274] sm:$0xf]
                %340 = vst [vmem:[%s152 + $0x174] sm:$0xf] %v339
                %v341 = vld [vmem:[%s151 + $0x278] sm:$0xf]
                %342 = vst [vmem:[%s152 + $0x178] sm:$0xf] %v341
                %v343 = vld [vmem:[%s151 + $0x27c] sm:$0xf]
                %344 = vst [vmem:[%s152 + $0x17c] sm:$0xf] %v343
                %v345 = vld [vmem:[%s151 + $0x300] sm:$0xf]
                %346 = vst [vmem:[%s152 + $0x180] sm:$0xf] %v345
                %v347 = vld [vmem:[%s151 + $0x304] sm:$0xf]
                %348 = vst [vmem:[%s152 + $0x184] sm:$0xf] %v347
                %v349 = vld [vmem:[%s151 + $0x308] sm:$0xf]
                %350 = vst [vmem:[%s152 + $0x188] sm:$0xf] %v349
                %v351 = vld [vmem:[%s151 + $0x30c] sm:$0xf]
                %352 = vst [vmem:[%s152 + $0x18c] sm:$0xf] %v351
                %v353 = vld [vmem:[%s151 + $0x310] sm:$0xf]
                %354 = vst [vmem:[%s152 + $0x190] sm:$0xf] %v353
                %v355 = vld [vmem:[%s151 + $0x314] sm:$0xf]
                %356 = vst [vmem:[%s152 + $0x194] sm:$0xf] %v355
                %v357 = vld [vmem:[%s151 + $0x318] sm:$0xf]
                %358 = vst [vmem:[%s152 + $0x198] sm:$0xf] %v357
                %v359 = vld [vmem:[%s151 + $0x31c] sm:$0xf]
                %360 = vst [vmem:[%s152 + $0x19c] sm:$0xf] %v359
                %v361 = vld [vmem:[%s151 + $0x320] sm:$0xf]
                %362 = vst [vmem:[%s152 + $0x1a0] sm:$0xf] %v361
                %v363 = vld [vmem:[%s151 + $0x324] sm:$0xf]
                %364 = vst [vmem:[%s152 + $0x1a4] sm:$0xf] %v363
                %v365 = vld [vmem:[%s151 + $0x328] sm:$0xf]
                %366 = vst [vmem:[%s152 + $0x1a8] sm:$0xf] %v365
                %v367 = vld [vmem:[%s151 + $0x32c] sm:$0xf]
                %368 = vst [vmem:[%s152 + $0x1ac] sm:$0xf] %v367
                %v369 = vld [vmem:[%s151 + $0x330] sm:$0xf]
                %370 = vst [vmem:[%s152 + $0x1b0] sm:$0xf] %v369
                %v371 = vld [vmem:[%s151 + $0x334] sm:$0xf]
                %372 = vst [vmem:[%s152 + $0x1b4] sm:$0xf] %v371
                %v373 = vld [vmem:[%s151 + $0x338] sm:$0xf]
                %374 = vst [vmem:[%s152 + $0x1b8] sm:$0xf] %v373
                %v375 = vld [vmem:[%s151 + $0x33c] sm:$0xf]
                %376 = vst [vmem:[%s152 + $0x1bc] sm:$0xf] %v375
                %v377 = vld [vmem:[%s151 + $0x340] sm:$0xf]
                %378 = vst [vmem:[%s152 + $0x1c0] sm:$0xf] %v377
                %v379 = vld [vmem:[%s151 + $0x344] sm:$0xf]
                %380 = vst [vmem:[%s152 + $0x1c4] sm:$0xf] %v379
                %v381 = vld [vmem:[%s151 + $0x348] sm:$0xf]
                %382 = vst [vmem:[%s152 + $0x1c8] sm:$0xf] %v381
                %v383 = vld [vmem:[%s151 + $0x34c] sm:$0xf]
                %384 = vst [vmem:[%s152 + $0x1cc] sm:$0xf] %v383
                %v385 = vld [vmem:[%s151 + $0x350] sm:$0xf]
                %386 = vst [vmem:[%s152 + $0x1d0] sm:$0xf] %v385
                %v387 = vld [vmem:[%s151 + $0x354] sm:$0xf]
                %388 = vst [vmem:[%s152 + $0x1d4] sm:$0xf] %v387
                %v389 = vld [vmem:[%s151 + $0x358] sm:$0xf]
                %390 = vst [vmem:[%s152 + $0x1d8] sm:$0xf] %v389
                %v391 = vld [vmem:[%s151 + $0x35c] sm:$0xf]
                %392 = vst [vmem:[%s152 + $0x1dc] sm:$0xf] %v391
                %v393 = vld [vmem:[%s151 + $0x360] sm:$0xf]
                %394 = vst [vmem:[%s152 + $0x1e0] sm:$0xf] %v393
                %v395 = vld [vmem:[%s151 + $0x364] sm:$0xf]
                %396 = vst [vmem:[%s152 + $0x1e4] sm:$0xf] %v395
                %v397 = vld [vmem:[%s151 + $0x368] sm:$0xf]
                %398 = vst [vmem:[%s152 + $0x1e8] sm:$0xf] %v397
                %v399 = vld [vmem:[%s151 + $0x36c] sm:$0xf]
                %400 = vst [vmem:[%s152 + $0x1ec] sm:$0xf] %v399
                %v401 = vld [vmem:[%s151 + $0x370] sm:$0xf]
                %402 = vst [vmem:[%s152 + $0x1f0] sm:$0xf] %v401
                %v403 = vld [vmem:[%s151 + $0x374] sm:$0xf]
                %404 = vst [vmem:[%s152 + $0x1f4] sm:$0xf] %v403
                %v405 = vld [vmem:[%s151 + $0x378] sm:$0xf]
                %406 = vst [vmem:[%s152 + $0x1f8] sm:$0xf] %v405
                %v407 = vld [vmem:[%s151 + $0x37c] sm:$0xf]
                %408 = vst [vmem:[%s152 + $0x1fc] sm:$0xf] %v407
              $region45: #{generator_forward.7} parent=39 // loop_footer
                %s150 = sadd.s32 1, %s146
              $region46: #{generator_forward.7} parent=39 // loop_footer_branch
                %145 = sbr.rel target = $region42
              $region47: #{generator_forward.7} parent=39 // loop_exit
                _
            $region40: #{generator_forward.7} parent=31 // pred_fallthru
              _
          $region32: #{generator_forward.7} parent=27 // pred_fallthru
            _
          %684 = vnop
        $region28: #{generator_forward.7} parent=23 // pred_fallthru
          _
      $region24: #{generator_forward.7} parent=5 // pred_fallthru
        _
      %p685 = scmp.le.s32.totalorder 1, %s9
      %p686 = scmp.lt.s32.totalorder %s9, 3
      %p687 = pnand %p685, %p686
      %p688 = pneg %p687
      // Predicated region
      $region66: #{generator_forward.7} parent=5 // pred_check
        _
      $region67: #{generator_forward.7} parent=5 // pred_check_branch
        %690 = sbr.rel (%p687) target = $region69
      $region68: #{generator_forward.7} parent=5 // pred_region
        %s691 = ssub.s32 %s9, 1
        %s692 = sand.u32 %s22, 1
        %s693 = sand.u32 %s22, 1
        %s694 = smul.addr %s693, 512
        %s695 = scalar_lea.vmem [#allocation2], %s694
        // Predicated region
        $region70: #{generator_forward.7} parent=68 // pred_check
          %p696 = pneg %p35
        $region71: #{generator_forward.7} parent=68 // pred_check_branch
          %698 = sbr.rel (%p696) target = $region73
        $region72: #{generator_forward.7} parent=68 // pred_region
          _
        $region73: #{generator_forward.7} parent=68 // pred_fallthru
          _
        %s699 = sand.u32 %s22, 1
        %s700 = sand.u32 %s22, 1
        %s701 = smul.addr %s700, 512
        %s702 = scalar_lea.vmem [#allocation2], %s701
        %p703 = pneg %p35
        %p704 = pneg %p32
        %p705 = pneg %p56
        %p706 = pneg %p53
        %p707 = pneg %p77
        %p708 = pneg %p74
        %p709 = pneg %p103
        %p710 = pneg %p100
        %s711 = smul.u32 32, %s14
        %p712 = scmp.lt.s32.totalorder %s711, 63
        %s713 = scalar_select %p712, %s711, 63
        %s714 = smul.addr %s713, 8
        %s715 = scalar_lea.vmem %s3, %s714
        %s716 = smul.u32 32, %s14
        %s717 = smul.u32 32, %s14
        %p718 = scmp.lt.s32.totalorder %s717, 63
        %s719 = scalar_select %p718, %s717, 63
        %s720 = smul.addr %s719, 8
        %s721 = scalar_lea.vmem %s3, %s720
        %s722 = smul.u32 32, %s14
        %v724 = vld [vmem:[%s695] sm:$0xf]
        %v725 = vld [vmem:[%s695 + $0x4] sm:$0xf]
        %v726 = vld [vmem:[%s695 + $0x8] sm:$0xf]
        %v727 = vld [vmem:[%s695 + $0xc] sm:$0xf]
        %v728 = vld [vmem:[%s695 + $0x10] sm:$0xf]
        %v729 = vld [vmem:[%s695 + $0x14] sm:$0xf]
        %v730 = vld [vmem:[%s695 + $0x18] sm:$0xf]
        %v731 = vld [vmem:[%s695 + $0x1c] sm:$0xf]
        %v732 = vld [vmem:[%s695 + $0x20] sm:$0xf]
        %v733 = vld [vmem:[%s695 + $0x24] sm:$0xf]
        %v734 = vld [vmem:[%s695 + $0x28] sm:$0xf]
        %v735 = vld [vmem:[%s695 + $0x2c] sm:$0xf]
        %v736 = vld [vmem:[%s695 + $0x30] sm:$0xf]
        %v737 = vld [vmem:[%s695 + $0x34] sm:$0xf]
        %v738 = vld [vmem:[%s695 + $0x38] sm:$0xf]
        %v739 = vld [vmem:[%s695 + $0x3c] sm:$0xf]
        %v740 = vld [vmem:[%s695 + $0x40] sm:$0xf]
        %v741 = vld [vmem:[%s695 + $0x44] sm:$0xf]
        %v742 = vld [vmem:[%s695 + $0x48] sm:$0xf]
        %v743 = vld [vmem:[%s695 + $0x4c] sm:$0xf]
        %v744 = vld [vmem:[%s695 + $0x50] sm:$0xf]
        %v745 = vld [vmem:[%s695 + $0x54] sm:$0xf]
        %v746 = vld [vmem:[%s695 + $0x58] sm:$0xf]
        %v747 = vld [vmem:[%s695 + $0x5c] sm:$0xf]
        %v748 = vld [vmem:[%s695 + $0x60] sm:$0xf]
        %v749 = vld [vmem:[%s695 + $0x64] sm:$0xf]
        %v750 = vld [vmem:[%s695 + $0x68] sm:$0xf]
        %v751 = vld [vmem:[%s695 + $0x6c] sm:$0xf]
        %v752 = vld [vmem:[%s695 + $0x70] sm:$0xf]
        %v753 = vld [vmem:[%s695 + $0x74] sm:$0xf]
        %v754 = vld [vmem:[%s695 + $0x78] sm:$0xf]
        %v755 = vld [vmem:[%s695 + $0x7c] sm:$0xf]
        %v756 = vld [vmem:[%s1] sm:$0xf]
        %v757 = vld [vmem:[%s1 + $0x4] sm:$0xf]
        %v758 = vld [vmem:[%s1 + $0x8] sm:$0xf]
        %v759 = vld [vmem:[%s1 + $0xc] sm:$0xf]
        %v760 = vld [vmem:[%s1 + $0x10] sm:$0xf]
        %v761 = vld [vmem:[%s1 + $0x14] sm:$0xf]
        %v762 = vld [vmem:[%s1 + $0x18] sm:$0xf]
        %v763 = vld [vmem:[%s1 + $0x1c] sm:$0xf]
        %v764 = vld [vmem:[%s1 + $0x20] sm:$0xf]
        %v765 = vld [vmem:[%s1 + $0x24] sm:$0xf]
        %v766 = vld [vmem:[%s1 + $0x28] sm:$0xf]
        %v767 = vld [vmem:[%s1 + $0x2c] sm:$0xf]
        %v768 = vld [vmem:[%s1 + $0x30] sm:$0xf]
        %v769 = vld [vmem:[%s1 + $0x34] sm:$0xf]
        %v770 = vld [vmem:[%s1 + $0x38] sm:$0xf]
        %v771 = vld [vmem:[%s1 + $0x3c] sm:$0xf]
        %v772 = vld [vmem:[%s2] sm:$0x1]
        %v774 = vlaneseq
        %v775 = vshrl.u32 %v774, 7
        %v776 = vsub.s32 0, %v775
        %v777 = vrot.slane %v772, %v776
        %v811 = vunpack.c.l.b16 %v724
        %v812 = vunpack.c.l.b16 %v725
        %v813 = vunpack.c.l.b16 %v726
        %v814 = vunpack.c.l.b16 %v727
        %v815 = vunpack.c.l.b16 %v728
        %v816 = vunpack.c.l.b16 %v729
        %v817 = vunpack.c.l.b16 %v730
        %v818 = vunpack.c.l.b16 %v731
        %v819 = vunpack.c.l.b16 %v732
        %v820 = vunpack.c.l.b16 %v733
        %v821 = vunpack.c.l.b16 %v734
        %v822 = vunpack.c.l.b16 %v735
        %v823 = vunpack.c.l.b16 %v736
        %v824 = vunpack.c.l.b16 %v737
        %v825 = vunpack.c.l.b16 %v738
        %v826 = vunpack.c.l.b16 %v739
        %v827 = vunpack.c.l.b16 %v740
        %v828 = vunpack.c.l.b16 %v741
        %v829 = vunpack.c.l.b16 %v742
        %v830 = vunpack.c.l.b16 %v743
        %v831 = vunpack.c.l.b16 %v744
        %v832 = vunpack.c.l.b16 %v745
        %v833 = vunpack.c.l.b16 %v746
        %v834 = vunpack.c.l.b16 %v747
        %v835 = vunpack.c.l.b16 %v748
        %v836 = vunpack.c.l.b16 %v749
        %v837 = vunpack.c.l.b16 %v750
        %v838 = vunpack.c.l.b16 %v751
        %v839 = vunpack.c.l.b16 %v752
        %v840 = vunpack.c.l.b16 %v753
        %v841 = vunpack.c.l.b16 %v754
        %v842 = vunpack.c.l.b16 %v755
        %v843 = vpack.c.b16 %v812, %v811
        %v844 = vpack.c.b16 %v814, %v813
        %v845 = vpack.c.b16 %v816, %v815
        %v846 = vpack.c.b16 %v818, %v817
        %v847 = vpack.c.b16 %v820, %v819
        %v848 = vpack.c.b16 %v822, %v821
        %v849 = vpack.c.b16 %v824, %v823
        %v850 = vpack.c.b16 %v826, %v825
        %v851 = vpack.c.b16 %v828, %v827
        %v852 = vpack.c.b16 %v830, %v829
        %v853 = vpack.c.b16 %v832, %v831
        %v854 = vpack.c.b16 %v834, %v833
        %v855 = vpack.c.b16 %v836, %v835
        %v856 = vpack.c.b16 %v838, %v837
        %v857 = vpack.c.b16 %v840, %v839
        %v858 = vpack.c.b16 %v842, %v841
        %v891 = vunpack.c.l.b16 %v756
        %v892 = vunpack.c.l.b16 %v757
        %v893 = vunpack.c.l.b16 %v758
        %v894 = vunpack.c.l.b16 %v759
        %v895 = vunpack.c.l.b16 %v760
        %v896 = vunpack.c.l.b16 %v761
        %v897 = vunpack.c.l.b16 %v762
        %v898 = vunpack.c.l.b16 %v763
        %v899 = vunpack.c.l.b16 %v764
        %v900 = vunpack.c.l.b16 %v765
        %v901 = vunpack.c.l.b16 %v766
        %v902 = vunpack.c.l.b16 %v767
        %v903 = vunpack.c.l.b16 %v768
        %v904 = vunpack.c.l.b16 %v769
        %v905 = vunpack.c.l.b16 %v770
        %v906 = vunpack.c.l.b16 %v771
        %v907 = vpack.c.b16 %v892, %v891
        %v908 = vpack.c.b16 %v894, %v893
        %v909 = vpack.c.b16 %v896, %v895
        %v910 = vpack.c.b16 %v898, %v897
        %v911 = vpack.c.b16 %v900, %v899
        %v912 = vpack.c.b16 %v902, %v901
        %v913 = vpack.c.b16 %v904, %v903
        %v914 = vpack.c.b16 %v906, %v905
        %923 = vmatprep.subr.bf16.mxu0 0
        %924 = vmatpush1.bf16.msra.mxu0 %v907
        %925 = vmatprep.subr.bf16.mxu0 0
        %926 = vmatpush1.bf16.msra.mxu0 %v908
        %927 = vmatprep.subr.bf16.mxu0 0
        %928 = vmatpush1.bf16.msra.mxu0 %v909
        %929 = vmatprep.subr.bf16.mxu0 0
        %930 = vmatpush1.bf16.msra.mxu0 %v910
        %931 = vmatprep.subr.bf16.mxu0 0
        %932 = vmatpush1.bf16.msra.mxu0 %v911
        %933 = vmatprep.subr.bf16.mxu0 0
        %934 = vmatpush1.bf16.msra.mxu0 %v912
        %935 = vmatprep.subr.bf16.mxu0 0
        %936 = vmatpush1.bf16.msra.mxu0 %v913
        %937 = vmatprep.subr.bf16.mxu0 0
        %938 = vmatpush1.bf16.msra.mxu0 %v914
        %939 = vmatprep.subr.bf16.mxu0 0
        %940 = vmatpush1.bf16.msra.mxu0 0
        %941 = vmatprep.subr.bf16.mxu0 0
        %942 = vmatpush1.bf16.msra.mxu0 0
        %943 = vmatprep.subr.bf16.mxu0 0
        %944 = vmatpush1.bf16.msra.mxu0 0
        %945 = vmatprep.subr.bf16.mxu0 0
        %946 = vmatpush1.bf16.msra.mxu0 0
        %947 = vmatprep.subr.bf16.mxu0 0
        %948 = vmatpush1.bf16.msra.mxu0 0
        %949 = vmatprep.subr.bf16.mxu0 0
        %950 = vmatpush1.bf16.msra.mxu0 0
        %951 = vmatprep.subr.bf16.mxu0 0
        %952 = vmatpush1.bf16.msra.mxu0 0
        %953 = vmatprep.subr.bf16.mxu0 0
        %954 = vmatpush1.bf16.msra.mxu0 0
        %955 = vmatprep.mubr.bf16.mxu0 0
        %956 = vmatmul.mubr.bf16.gmra.mrb[0].mxu0 %v843
        %v957 = vpop.f32.mrb[0].mxu0
        %v958 = vadd.f32 %v777, %v957
        %v959 = vpop.f32.mrb[0].mxu0
        %v960 = vpop.f32.mrb[0].mxu0
        %v961 = vadd.f32 %v777, %v960
        %v962 = vpop.f32.mrb[0].mxu0
        %963 = vmatprep.mubr.bf16.mxu0 0
        %964 = vmatmul.mubr.bf16.gmra.mrb[0].mxu0 %v844
        %v965 = vpop.f32.mrb[0].mxu0
        %v966 = vadd.f32 %v777, %v965
        %v967 = vpop.f32.mrb[0].mxu0
        %v968 = vpop.f32.mrb[0].mxu0
        %v969 = vadd.f32 %v777, %v968
        %v970 = vpop.f32.mrb[0].mxu0
        %971 = vmatprep.mubr.bf16.mxu0 0
        %972 = vmatmul.mubr.bf16.gmra.mrb[0].mxu0 %v845
        %v973 = vpop.f32.mrb[0].mxu0
        %v974 = vadd.f32 %v777, %v973
        %v975 = vpop.f32.mrb[0].mxu0
        %v976 = vpop.f32.mrb[0].mxu0
        %v977 = vadd.f32 %v777, %v976
        %v978 = vpop.f32.mrb[0].mxu0
        %979 = vmatprep.mubr.bf16.mxu0 0
        %980 = vmatmul.mubr.bf16.gmra.mrb[0].mxu0 %v846
        %v981 = vpop.f32.mrb[0].mxu0
        %v982 = vadd.f32 %v777, %v981
        %v983 = vpop.f32.mrb[0].mxu0
        %v984 = vpop.f32.mrb[0].mxu0
        %v985 = vadd.f32 %v777, %v984
        %v986 = vpop.f32.mrb[0].mxu0
        %987 = vmatprep.mubr.bf16.mxu0 0
        %988 = vmatmul.mubr.bf16.gmra.mrb[0].mxu0 %v847
        %v989 = vpop.f32.mrb[0].mxu0
        %v990 = vadd.f32 %v777, %v989
        %v991 = vpop.f32.mrb[0].mxu0
        %v992 = vpop.f32.mrb[0].mxu0
        %v993 = vadd.f32 %v777, %v992
        %v994 = vpop.f32.mrb[0].mxu0
        %995 = vmatprep.mubr.bf16.mxu0 0
        %996 = vmatmul.mubr.bf16.gmra.mrb[0].mxu0 %v848
        %v997 = vpop.f32.mrb[0].mxu0
        %v998 = vadd.f32 %v777, %v997
        %v999 = vpop.f32.mrb[0].mxu0
        %v1000 = vpop.f32.mrb[0].mxu0
        %v1001 = vadd.f32 %v777, %v1000
        %v1002 = vpop.f32.mrb[0].mxu0
        %1003 = vmatprep.mubr.bf16.mxu0 0
        %1004 = vmatmul.mubr.bf16.gmra.mrb[0].mxu0 %v849
        %v1005 = vpop.f32.mrb[0].mxu0
        %v1006 = vadd.f32 %v777, %v1005
        %v1007 = vpop.f32.mrb[0].mxu0
        %v1008 = vpop.f32.mrb[0].mxu0
        %v1009 = vadd.f32 %v777, %v1008
        %v1010 = vpop.f32.mrb[0].mxu0
        %1011 = vmatprep.mubr.bf16.mxu0 0
        %1012 = vmatmul.mubr.bf16.gmra.mrb[0].mxu0 %v850
        %v1013 = vpop.f32.mrb[0].mxu0
        %v1014 = vadd.f32 %v777, %v1013
        %v1015 = vpop.f32.mrb[0].mxu0
        %v1016 = vpop.f32.mrb[0].mxu0
        %v1017 = vadd.f32 %v777, %v1016
        %v1018 = vpop.f32.mrb[0].mxu0
        %1019 = vmatprep.mubr.bf16.mxu0 0
        %1020 = vmatmul.mubr.bf16.gmra.mrb[0].mxu0 %v851
        %v1021 = vpop.f32.mrb[0].mxu0
        %v1022 = vadd.f32 %v777, %v1021
        %v1023 = vpop.f32.mrb[0].mxu0
        %v1024 = vpop.f32.mrb[0].mxu0
        %v1025 = vadd.f32 %v777, %v1024
        %v1026 = vpop.f32.mrb[0].mxu0
        %1027 = vmatprep.mubr.bf16.mxu0 0
        %1028 = vmatmul.mubr.bf16.gmra.mrb[0].mxu0 %v852
        %v1029 = vpop.f32.mrb[0].mxu0
        %v1030 = vadd.f32 %v777, %v1029
        %v1031 = vpop.f32.mrb[0].mxu0
        %v1032 = vpop.f32.mrb[0].mxu0
        %v1033 = vadd.f32 %v777, %v1032
        %v1034 = vpop.f32.mrb[0].mxu0
        %1035 = vmatprep.mubr.bf16.mxu0 0
        %1036 = vmatmul.mubr.bf16.gmra.mrb[0].mxu0 %v853
        %v1037 = vpop.f32.mrb[0].mxu0
        %v1038 = vadd.f32 %v777, %v1037
        %v1039 = vpop.f32.mrb[0].mxu0
        %v1040 = vpop.f32.mrb[0].mxu0
        %v1041 = vadd.f32 %v777, %v1040
        %v1042 = vpop.f32.mrb[0].mxu0
        %1043 = vmatprep.mubr.bf16.mxu0 0
        %1044 = vmatmul.mubr.bf16.gmra.mrb[0].mxu0 %v854
        %v1045 = vpop.f32.mrb[0].mxu0
        %v1046 = vadd.f32 %v777, %v1045
        %v1047 = vpop.f32.mrb[0].mxu0
        %v1048 = vpop.f32.mrb[0].mxu0
        %v1049 = vadd.f32 %v777, %v1048
        %v1050 = vpop.f32.mrb[0].mxu0
        %1051 = vmatprep.mubr.bf16.mxu0 0
        %1052 = vmatmul.mubr.bf16.gmra.mrb[0].mxu0 %v855
        %v1053 = vpop.f32.mrb[0].mxu0
        %v1054 = vadd.f32 %v777, %v1053
        %v1055 = vpop.f32.mrb[0].mxu0
        %v1056 = vpop.f32.mrb[0].mxu0
        %v1057 = vadd.f32 %v777, %v1056
        %v1058 = vpop.f32.mrb[0].mxu0
        %1059 = vmatprep.mubr.bf16.mxu0 0
        %1060 = vmatmul.mubr.bf16.gmra.mrb[0].mxu0 %v856
        %v1061 = vpop.f32.mrb[0].mxu0
        %v1062 = vadd.f32 %v777, %v1061
        %v1063 = vpop.f32.mrb[0].mxu0
        %v1064 = vpop.f32.mrb[0].mxu0
        %v1065 = vadd.f32 %v777, %v1064
        %v1066 = vpop.f32.mrb[0].mxu0
        %1067 = vmatprep.mubr.bf16.mxu0 0
        %1068 = vmatmul.mubr.bf16.gmra.mrb[0].mxu0 %v857
        %v1069 = vpop.f32.mrb[0].mxu0
        %v1070 = vadd.f32 %v777, %v1069
        %v1071 = vpop.f32.mrb[0].mxu0
        %v1072 = vpop.f32.mrb[0].mxu0
        %v1073 = vadd.f32 %v777, %v1072
        %v1074 = vpop.f32.mrb[0].mxu0
        %1075 = vmatprep.mubr.bf16.mxu0 0
        %1076 = vmatmul.mubr.bf16.gmra.mrb[0].mxu0 %v858
        %v1077 = vpop.f32.mrb[0].mxu0
        %v1078 = vadd.f32 %v777, %v1077
        %v1079 = vpop.f32.mrb[0].mxu0
        %v1080 = vpop.f32.mrb[0].mxu0
        %v1081 = vadd.f32 %v777, %v1080
        %v1082 = vpop.f32.mrb[0].mxu0
        %1083 = vdwg.mxu0
        %v1084 = vtanh.pop %v958
        %v1085 = vtanh.pop %v961
        %v1086 = vtanh.pop %v966
        %v1087 = vtanh.pop %v969
        %v1088 = vtanh.pop %v974
        %v1089 = vtanh.pop %v977
        %v1090 = vtanh.pop %v982
        %v1091 = vtanh.pop %v985
        %v1092 = vtanh.pop %v990
        %v1093 = vtanh.pop %v993
        %v1094 = vtanh.pop %v998
        %v1095 = vtanh.pop %v1001
        %v1096 = vtanh.pop %v1006
        %v1097 = vtanh.pop %v1009
        %v1098 = vtanh.pop %v1014
        %v1099 = vtanh.pop %v1017
        %v1100 = vtanh.pop %v1022
        %v1101 = vtanh.pop %v1025
        %v1102 = vtanh.pop %v1030
        %v1103 = vtanh.pop %v1033
        %v1104 = vtanh.pop %v1038
        %v1105 = vtanh.pop %v1041
        %v1106 = vtanh.pop %v1046
        %v1107 = vtanh.pop %v1049
        %v1108 = vtanh.pop %v1054
        %v1109 = vtanh.pop %v1057
        %v1110 = vtanh.pop %v1062
        %v1111 = vtanh.pop %v1065
        %v1112 = vtanh.pop %v1070
        %v1113 = vtanh.pop %v1073
        %v1114 = vtanh.pop %v1078
        %v1115 = vtanh.pop %v1081
        %vm1116 = vcmask 64512
        %1117 = vst.msk [vmem:[%s721] sm:$0xff] %vm1116, %v1084
        %1118 = vst.msk [vmem:[%s721 + $0x8] sm:$0xff] %vm1116, %v1085
        %1119 = vst.msk [vmem:[%s721 + $0x10] sm:$0xff] %vm1116, %v1086
        %1120 = vst.msk [vmem:[%s721 + $0x18] sm:$0xff] %vm1116, %v1087
        %1121 = vst.msk [vmem:[%s721 + $0x20] sm:$0xff] %vm1116, %v1088
        %1122 = vst.msk [vmem:[%s721 + $0x28] sm:$0xff] %vm1116, %v1089
        %1123 = vst.msk [vmem:[%s721 + $0x30] sm:$0xff] %vm1116, %v1090
        %1124 = vst.msk [vmem:[%s721 + $0x38] sm:$0xff] %vm1116, %v1091
        %1125 = vst.msk [vmem:[%s721 + $0x40] sm:$0xff] %vm1116, %v1092
        %1126 = vst.msk [vmem:[%s721 + $0x48] sm:$0xff] %vm1116, %v1093
        %1127 = vst.msk [vmem:[%s721 + $0x50] sm:$0xff] %vm1116, %v1094
        %1128 = vst.msk [vmem:[%s721 + $0x58] sm:$0xff] %vm1116, %v1095
        %1129 = vst.msk [vmem:[%s721 + $0x60] sm:$0xff] %vm1116, %v1096
        %1130 = vst.msk [vmem:[%s721 + $0x68] sm:$0xff] %vm1116, %v1097
        %1131 = vst.msk [vmem:[%s721 + $0x70] sm:$0xff] %vm1116, %v1098
        %1132 = vst.msk [vmem:[%s721 + $0x78] sm:$0xff] %vm1116, %v1099
        %1133 = vst.msk [vmem:[%s721 + $0x80] sm:$0xff] %vm1116, %v1100
        %1134 = vst.msk [vmem:[%s721 + $0x88] sm:$0xff] %vm1116, %v1101
        %1135 = vst.msk [vmem:[%s721 + $0x90] sm:$0xff] %vm1116, %v1102
        %1136 = vst.msk [vmem:[%s721 + $0x98] sm:$0xff] %vm1116, %v1103
        %1137 = vst.msk [vmem:[%s721 + $0xa0] sm:$0xff] %vm1116, %v1104
        %1138 = vst.msk [vmem:[%s721 + $0xa8] sm:$0xff] %vm1116, %v1105
        %1139 = vst.msk [vmem:[%s721 + $0xb0] sm:$0xff] %vm1116, %v1106
        %1140 = vst.msk [vmem:[%s721 + $0xb8] sm:$0xff] %vm1116, %v1107
        %1141 = vst.msk [vmem:[%s721 + $0xc0] sm:$0xff] %vm1116, %v1108
        %1142 = vst.msk [vmem:[%s721 + $0xc8] sm:$0xff] %vm1116, %v1109
        %1143 = vst.msk [vmem:[%s721 + $0xd0] sm:$0xff] %vm1116, %v1110
        %1144 = vst.msk [vmem:[%s721 + $0xd8] sm:$0xff] %vm1116, %v1111
        %1145 = vst.msk [vmem:[%s721 + $0xe0] sm:$0xff] %vm1116, %v1112
        %1146 = vst.msk [vmem:[%s721 + $0xe8] sm:$0xff] %vm1116, %v1113
        %1147 = vst.msk [vmem:[%s721 + $0xf0] sm:$0xff] %vm1116, %v1114
        %1148 = vst.msk [vmem:[%s721 + $0xf8] sm:$0xff] %vm1116, %v1115
        %s1149 = scalar_lea.vmem %s695, 128 [#allocation2]
        %v1150 = vld [vmem:[%s1149] sm:$0xf]
        %v1151 = vld [vmem:[%s1149 + $0x4] sm:$0xf]
        %v1152 = vld [vmem:[%s1149 + $0x8] sm:$0xf]
        %v1153 = vld [vmem:[%s1149 + $0xc] sm:$0xf]
        %v1154 = vld [vmem:[%s1149 + $0x10] sm:$0xf]
        %v1155 = vld [vmem:[%s1149 + $0x14] sm:$0xf]
        %v1156 = vld [vmem:[%s1149 + $0x18] sm:$0xf]
        %v1157 = vld [vmem:[%s1149 + $0x1c] sm:$0xf]
        %v1158 = vld [vmem:[%s1149 + $0x20] sm:$0xf]
        %v1159 = vld [vmem:[%s1149 + $0x24] sm:$0xf]
        %v1160 = vld [vmem:[%s1149 + $0x28] sm:$0xf]
        %v1161 = vld [vmem:[%s1149 + $0x2c] sm:$0xf]
        %v1162 = vld [vmem:[%s1149 + $0x30] sm:$0xf]
        %v1163 = vld [vmem:[%s1149 + $0x34] sm:$0xf]
        %v1164 = vld [vmem:[%s1149 + $0x38] sm:$0xf]
        %v1165 = vld [vmem:[%s1149 + $0x3c] sm:$0xf]
        %v1166 = vld [vmem:[%s1149 + $0x40] sm:$0xf]
        %v1167 = vld [vmem:[%s1149 + $0x44] sm:$0xf]
        %v1168 = vld [vmem:[%s1149 + $0x48] sm:$0xf]
        %v1169 = vld [vmem:[%s1149 + $0x4c] sm:$0xf]
        %v1170 = vld [vmem:[%s1149 + $0x50] sm:$0xf]
        %v1171 = vld [vmem:[%s1149 + $0x54] sm:$0xf]
        %v1172 = vld [vmem:[%s1149 + $0x58] sm:$0xf]
        %v1173 = vld [vmem:[%s1149 + $0x5c] sm:$0xf]
        %v1174 = vld [vmem:[%s1149 + $0x60] sm:$0xf]
        %v1175 = vld [vmem:[%s1149 + $0x64] sm:$0xf]
        %v1176 = vld [vmem:[%s1149 + $0x68] sm:$0xf]
        %v1177 = vld [vmem:[%s1149 + $0x6c] sm:$0xf]
        %v1178 = vld [vmem:[%s1149 + $0x70] sm:$0xf]
        %v1179 = vld [vmem:[%s1149 + $0x74] sm:$0xf]
        %v1180 = vld [vmem:[%s1149 + $0x78] sm:$0xf]
        %v1181 = vld [vmem:[%s1149 + $0x7c] sm:$0xf]
        %s1182 = scalar_lea.vmem %s1, 64
        %v1183 = vld [vmem:[%s1182] sm:$0xf]
        %v1184 = vld [vmem:[%s1182 + $0x4] sm:$0xf]
        %v1185 = vld [vmem:[%s1182 + $0x8] sm:$0xf]
        %v1186 = vld [vmem:[%s1182 + $0xc] sm:$0xf]
        %v1187 = vld [vmem:[%s1182 + $0x10] sm:$0xf]
        %v1188 = vld [vmem:[%s1182 + $0x14] sm:$0xf]
        %v1189 = vld [vmem:[%s1182 + $0x18] sm:$0xf]
        %v1190 = vld [vmem:[%s1182 + $0x1c] sm:$0xf]
        %v1191 = vld [vmem:[%s1182 + $0x20] sm:$0xf]
        %v1192 = vld [vmem:[%s1182 + $0x24] sm:$0xf]
        %v1193 = vld [vmem:[%s1182 + $0x28] sm:$0xf]
        %v1194 = vld [vmem:[%s1182 + $0x2c] sm:$0xf]
        %v1195 = vld [vmem:[%s1182 + $0x30] sm:$0xf]
        %v1196 = vld [vmem:[%s1182 + $0x34] sm:$0xf]
        %v1197 = vld [vmem:[%s1182 + $0x38] sm:$0xf]
        %v1198 = vld [vmem:[%s1182 + $0x3c] sm:$0xf]
        %v1199 = vld [vmem:[%s2] sm:$0x1]
        %v1201 = vlaneseq
        %v1202 = vshrl.u32 %v1201, 7
        %v1203 = vsub.s32 0, %v1202
        %v1204 = vrot.slane %v1199, %v1203
        %v1238 = vunpack.c.l.b16 %v1150
        %v1239 = vunpack.c.l.b16 %v1151
        %v1240 = vunpack.c.l.b16 %v1152
        %v1241 = vunpack.c.l.b16 %v1153
        %v1242 = vunpack.c.l.b16 %v1154
        %v1243 = vunpack.c.l.b16 %v1155
        %v1244 = vunpack.c.l.b16 %v1156
        %v1245 = vunpack.c.l.b16 %v1157
        %v1246 = vunpack.c.l.b16 %v1158
        %v1247 = vunpack.c.l.b16 %v1159
        %v1248 = vunpack.c.l.b16 %v1160
        %v1249 = vunpack.c.l.b16 %v1161
        %v1250 = vunpack.c.l.b16 %v1162
        %v1251 = vunpack.c.l.b16 %v1163
        %v1252 = vunpack.c.l.b16 %v1164
        %v1253 = vunpack.c.l.b16 %v1165
        %v1254 = vunpack.c.l.b16 %v1166
        %v1255 = vunpack.c.l.b16 %v1167
        %v1256 = vunpack.c.l.b16 %v1168
        %v1257 = vunpack.c.l.b16 %v1169
        %v1258 = vunpack.c.l.b16 %v1170
        %v1259 = vunpack.c.l.b16 %v1171
        %v1260 = vunpack.c.l.b16 %v1172
        %v1261 = vunpack.c.l.b16 %v1173
        %v1262 = vunpack.c.l.b16 %v1174
        %v1263 = vunpack.c.l.b16 %v1175
        %v1264 = vunpack.c.l.b16 %v1176
        %v1265 = vunpack.c.l.b16 %v1177
        %v1266 = vunpack.c.l.b16 %v1178
        %v1267 = vunpack.c.l.b16 %v1179
        %v1268 = vunpack.c.l.b16 %v1180
        %v1269 = vunpack.c.l.b16 %v1181
        %v1270 = vpack.c.b16 %v1239, %v1238
        %v1271 = vpack.c.b16 %v1241, %v1240
        %v1272 = vpack.c.b16 %v1243, %v1242
        %v1273 = vpack.c.b16 %v1245, %v1244
        %v1274 = vpack.c.b16 %v1247, %v1246
        %v1275 = vpack.c.b16 %v1249, %v1248
        %v1276 = vpack.c.b16 %v1251, %v1250
        %v1277 = vpack.c.b16 %v1253, %v1252
        %v1278 = vpack.c.b16 %v1255, %v1254
        %v1279 = vpack.c.b16 %v1257, %v1256
        %v1280 = vpack.c.b16 %v1259, %v1258
        %v1281 = vpack.c.b16 %v1261, %v1260
        %v1282 = vpack.c.b16 %v1263, %v1262
        %v1283 = vpack.c.b16 %v1265, %v1264
        %v1284 = vpack.c.b16 %v1267, %v1266
        %v1285 = vpack.c.b16 %v1269, %v1268
        %v1318 = vunpack.c.l.b16 %v1183
        %v1319 = vunpack.c.l.b16 %v1184
        %v1320 = vunpack.c.l.b16 %v1185
        %v1321 = vunpack.c.l.b16 %v1186
        %v1322 = vunpack.c.l.b16 %v1187
        %v1323 = vunpack.c.l.b16 %v1188
        %v1324 = vunpack.c.l.b16 %v1189
        %v1325 = vunpack.c.l.b16 %v1190
        %v1326 = vunpack.c.l.b16 %v1191
        %v1327 = vunpack.c.l.b16 %v1192
        %v1328 = vunpack.c.l.b16 %v1193
        %v1329 = vunpack.c.l.b16 %v1194
        %v1330 = vunpack.c.l.b16 %v1195
        %v1331 = vunpack.c.l.b16 %v1196
        %v1332 = vunpack.c.l.b16 %v1197
        %v1333 = vunpack.c.l.b16 %v1198
        %v1334 = vpack.c.b16 %v1319, %v1318
        %v1335 = vpack.c.b16 %v1321, %v1320
        %v1336 = vpack.c.b16 %v1323, %v1322
        %v1337 = vpack.c.b16 %v1325, %v1324
        %v1338 = vpack.c.b16 %v1327, %v1326
        %v1339 = vpack.c.b16 %v1329, %v1328
        %v1340 = vpack.c.b16 %v1331, %v1330
        %v1341 = vpack.c.b16 %v1333, %v1332
        %1350 = vmatprep.subr.bf16.mxu0 0
        %1351 = vmatpush1.bf16.msra.mxu0 %v1334
        %1352 = vmatprep.subr.bf16.mxu0 0
        %1353 = vmatpush1.bf16.msra.mxu0 %v1335
        %1354 = vmatprep.subr.bf16.mxu0 0
        %1355 = vmatpush1.bf16.msra.mxu0 %v1336
        %1356 = vmatprep.subr.bf16.mxu0 0
        %1357 = vmatpush1.bf16.msra.mxu0 %v1337
        %1358 = vmatprep.subr.bf16.mxu0 0
        %1359 = vmatpush1.bf16.msra.mxu0 %v1338
        %1360 = vmatprep.subr.bf16.mxu0 0
        %1361 = vmatpush1.bf16.msra.mxu0 %v1339
        %1362 = vmatprep.subr.bf16.mxu0 0
        %1363 = vmatpush1.bf16.msra.mxu0 %v1340
        %1364 = vmatprep.subr.bf16.mxu0 0
        %1365 = vmatpush1.bf16.msra.mxu0 %v1341
        %1366 = vmatprep.subr.bf16.mxu0 0
        %1367 = vmatpush1.bf16.msra.mxu0 0
        %1368 = vmatprep.subr.bf16.mxu0 0
        %1369 = vmatpush1.bf16.msra.mxu0 0
        %1370 = vmatprep.subr.bf16.mxu0 0
        %1371 = vmatpush1.bf16.msra.mxu0 0
        %1372 = vmatprep.subr.bf16.mxu0 0
        %1373 = vmatpush1.bf16.msra.mxu0 0
        %1374 = vmatprep.subr.bf16.mxu0 0
        %1375 = vmatpush1.bf16.msra.mxu0 0
        %1376 = vmatprep.subr.bf16.mxu0 0
        %1377 = vmatpush1.bf16.msra.mxu0 0
        %1378 = vmatprep.subr.bf16.mxu0 0
        %1379 = vmatpush1.bf16.msra.mxu0 0
        %1380 = vmatprep.subr.bf16.mxu0 0
        %1381 = vmatpush1.bf16.msra.mxu0 0
        %1382 = vmatprep.mubr.bf16.mxu0 0
        %1383 = vmatmul.mubr.bf16.gmra.mrb[0].mxu0 %v1270
        %v1384 = vpop.f32.mrb[0].mxu0
        %v1385 = vadd.f32 %v1204, %v1384
        %v1386 = vpop.f32.mrb[0].mxu0
        %v1387 = vpop.f32.mrb[0].mxu0
        %v1388 = vadd.f32 %v1204, %v1387
        %v1389 = vpop.f32.mrb[0].mxu0
        %1390 = vmatprep.mubr.bf16.mxu0 0
        %1391 = vmatmul.mubr.bf16.gmra.mrb[0].mxu0 %v1271
        %v1392 = vpop.f32.mrb[0].mxu0
        %v1393 = vadd.f32 %v1204, %v1392
        %v1394 = vpop.f32.mrb[0].mxu0
        %v1395 = vpop.f32.mrb[0].mxu0
        %v1396 = vadd.f32 %v1204, %v1395
        %v1397 = vpop.f32.mrb[0].mxu0
        %1398 = vmatprep.mubr.bf16.mxu0 0
        %1399 = vmatmul.mubr.bf16.gmra.mrb[0].mxu0 %v1272
        %v1400 = vpop.f32.mrb[0].mxu0
        %v1401 = vadd.f32 %v1204, %v1400
        %v1402 = vpop.f32.mrb[0].mxu0
        %v1403 = vpop.f32.mrb[0].mxu0
        %v1404 = vadd.f32 %v1204, %v1403
        %v1405 = vpop.f32.mrb[0].mxu0
        %1406 = vmatprep.mubr.bf16.mxu0 0
        %1407 = vmatmul.mubr.bf16.gmra.mrb[0].mxu0 %v1273
        %v1408 = vpop.f32.mrb[0].mxu0
        %v1409 = vadd.f32 %v1204, %v1408
        %v1410 = vpop.f32.mrb[0].mxu0
        %v1411 = vpop.f32.mrb[0].mxu0
        %v1412 = vadd.f32 %v1204, %v1411
        %v1413 = vpop.f32.mrb[0].mxu0
        %1414 = vmatprep.mubr.bf16.mxu0 0
        %1415 = vmatmul.mubr.bf16.gmra.mrb[0].mxu0 %v1274
        %v1416 = vpop.f32.mrb[0].mxu0
        %v1417 = vadd.f32 %v1204, %v1416
        %v1418 = vpop.f32.mrb[0].mxu0
        %v1419 = vpop.f32.mrb[0].mxu0
        %v1420 = vadd.f32 %v1204, %v1419
        %v1421 = vpop.f32.mrb[0].mxu0
        %1422 = vmatprep.mubr.bf16.mxu0 0
        %1423 = vmatmul.mubr.bf16.gmra.mrb[0].mxu0 %v1275
        %v1424 = vpop.f32.mrb[0].mxu0
        %v1425 = vadd.f32 %v1204, %v1424
        %v1426 = vpop.f32.mrb[0].mxu0
        %v1427 = vpop.f32.mrb[0].mxu0
        %v1428 = vadd.f32 %v1204, %v1427
        %v1429 = vpop.f32.mrb[0].mxu0
        %1430 = vmatprep.mubr.bf16.mxu0 0
        %1431 = vmatmul.mubr.bf16.gmra.mrb[0].mxu0 %v1276
        %v1432 = vpop.f32.mrb[0].mxu0
        %v1433 = vadd.f32 %v1204, %v1432
        %v1434 = vpop.f32.mrb[0].mxu0
        %v1435 = vpop.f32.mrb[0].mxu0
        %v1436 = vadd.f32 %v1204, %v1435
        %v1437 = vpop.f32.mrb[0].mxu0
        %1438 = vmatprep.mubr.bf16.mxu0 0
        %1439 = vmatmul.mubr.bf16.gmra.mrb[0].mxu0 %v1277
        %v1440 = vpop.f32.mrb[0].mxu0
        %v1441 = vadd.f32 %v1204, %v1440
        %v1442 = vpop.f32.mrb[0].mxu0
        %v1443 = vpop.f32.mrb[0].mxu0
        %v1444 = vadd.f32 %v1204, %v1443
        %v1445 = vpop.f32.mrb[0].mxu0
        %1446 = vmatprep.mubr.bf16.mxu0 0
        %1447 = vmatmul.mubr.bf16.gmra.mrb[0].mxu0 %v1278
        %v1448 = vpop.f32.mrb[0].mxu0
        %v1449 = vadd.f32 %v1204, %v1448
        %v1450 = vpop.f32.mrb[0].mxu0
        %v1451 = vpop.f32.mrb[0].mxu0
        %v1452 = vadd.f32 %v1204, %v1451
        %v1453 = vpop.f32.mrb[0].mxu0
        %1454 = vmatprep.mubr.bf16.mxu0 0
        %1455 = vmatmul.mubr.bf16.gmra.mrb[0].mxu0 %v1279
        %v1456 = vpop.f32.mrb[0].mxu0
        %v1457 = vadd.f32 %v1204, %v1456
        %v1458 = vpop.f32.mrb[0].mxu0
        %v1459 = vpop.f32.mrb[0].mxu0
        %v1460 = vadd.f32 %v1204, %v1459
        %v1461 = vpop.f32.mrb[0].mxu0
        %1462 = vmatprep.mubr.bf16.mxu0 0
        %1463 = vmatmul.mubr.bf16.gmra.mrb[0].mxu0 %v1280
        %v1464 = vpop.f32.mrb[0].mxu0
        %v1465 = vadd.f32 %v1204, %v1464
        %v1466 = vpop.f32.mrb[0].mxu0
        %v1467 = vpop.f32.mrb[0].mxu0
        %v1468 = vadd.f32 %v1204, %v1467
        %v1469 = vpop.f32.mrb[0].mxu0
        %1470 = vmatprep.mubr.bf16.mxu0 0
        %1471 = vmatmul.mubr.bf16.gmra.mrb[0].mxu0 %v1281
        %v1472 = vpop.f32.mrb[0].mxu0
        %v1473 = vadd.f32 %v1204, %v1472
        %v1474 = vpop.f32.mrb[0].mxu0
        %v1475 = vpop.f32.mrb[0].mxu0
        %v1476 = vadd.f32 %v1204, %v1475
        %v1477 = vpop.f32.mrb[0].mxu0
        %1478 = vmatprep.mubr.bf16.mxu0 0
        %1479 = vmatmul.mubr.bf16.gmra.mrb[0].mxu0 %v1282
        %v1480 = vpop.f32.mrb[0].mxu0
        %v1481 = vadd.f32 %v1204, %v1480
        %v1482 = vpop.f32.mrb[0].mxu0
        %v1483 = vpop.f32.mrb[0].mxu0
        %v1484 = vadd.f32 %v1204, %v1483
        %v1485 = vpop.f32.mrb[0].mxu0
        %1486 = vmatprep.mubr.bf16.mxu0 0
        %1487 = vmatmul.mubr.bf16.gmra.mrb[0].mxu0 %v1283
        %v1488 = vpop.f32.mrb[0].mxu0
        %v1489 = vadd.f32 %v1204, %v1488
        %v1490 = vpop.f32.mrb[0].mxu0
        %v1491 = vpop.f32.mrb[0].mxu0
        %v1492 = vadd.f32 %v1204, %v1491
        %v1493 = vpop.f32.mrb[0].mxu0
        %1494 = vmatprep.mubr.bf16.mxu0 0
        %1495 = vmatmul.mubr.bf16.gmra.mrb[0].mxu0 %v1284
        %v1496 = vpop.f32.mrb[0].mxu0
        %v1497 = vadd.f32 %v1204, %v1496
        %v1498 = vpop.f32.mrb[0].mxu0
        %v1499 = vpop.f32.mrb[0].mxu0
        %v1500 = vadd.f32 %v1204, %v1499
        %v1501 = vpop.f32.mrb[0].mxu0
        %1502 = vmatprep.mubr.bf16.mxu0 0
        %1503 = vmatmul.mubr.bf16.gmra.mrb[0].mxu0 %v1285
        %v1504 = vpop.f32.mrb[0].mxu0
        %v1505 = vadd.f32 %v1204, %v1504
        %v1506 = vpop.f32.mrb[0].mxu0
        %v1507 = vpop.f32.mrb[0].mxu0
        %v1508 = vadd.f32 %v1204, %v1507
        %v1509 = vpop.f32.mrb[0].mxu0
        %1510 = vdwg.mxu0
        %v1511 = vtanh.pop %v1385
        %v1512 = vtanh.pop %v1388
        %v1513 = vtanh.pop %v1393
        %v1514 = vtanh.pop %v1396
        %v1515 = vtanh.pop %v1401
        %v1516 = vtanh.pop %v1404
        %v1517 = vtanh.pop %v1409
        %v1518 = vtanh.pop %v1412
        %v1519 = vtanh.pop %v1417
        %v1520 = vtanh.pop %v1420
        %v1521 = vtanh.pop %v1425
        %v1522 = vtanh.pop %v1428
        %v1523 = vtanh.pop %v1433
        %v1524 = vtanh.pop %v1436
        %v1525 = vtanh.pop %v1441
        %v1526 = vtanh.pop %v1444
        %v1527 = vtanh.pop %v1449
        %v1528 = vtanh.pop %v1452
        %v1529 = vtanh.pop %v1457
        %v1530 = vtanh.pop %v1460
        %v1531 = vtanh.pop %v1465
        %v1532 = vtanh.pop %v1468
        %v1533 = vtanh.pop %v1473
        %v1534 = vtanh.pop %v1476
        %v1535 = vtanh.pop %v1481
        %v1536 = vtanh.pop %v1484
        %v1537 = vtanh.pop %v1489
        %v1538 = vtanh.pop %v1492
        %v1539 = vtanh.pop %v1497
        %v1540 = vtanh.pop %v1500
        %v1541 = vtanh.pop %v1505
        %v1542 = vtanh.pop %v1508
        %1575 = vrot.lane.b32.xlu0 %v1511, 8
        %v1576 = vpop.permute.xlu0 %1575
        %1577 = vrot.lane.b32.xlu0 %v1512, 8
        %v1578 = vpop.permute.xlu0 %1577
        %1579 = vrot.lane.b32.xlu0 %v1513, 8
        %v1580 = vpop.permute.xlu0 %1579
        %1581 = vrot.lane.b32.xlu0 %v1514, 8
        %v1582 = vpop.permute.xlu0 %1581
        %1583 = vrot.lane.b32.xlu0 %v1515, 8
        %v1584 = vpop.permute.xlu0 %1583
        %1585 = vrot.lane.b32.xlu0 %v1516, 8
        %v1586 = vpop.permute.xlu0 %1585
        %1587 = vrot.lane.b32.xlu0 %v1517, 8
        %v1588 = vpop.permute.xlu0 %1587
        %1589 = vrot.lane.b32.xlu0 %v1518, 8
        %v1590 = vpop.permute.xlu0 %1589
        %1591 = vrot.lane.b32.xlu0 %v1519, 8
        %v1592 = vpop.permute.xlu0 %1591
        %1593 = vrot.lane.b32.xlu0 %v1520, 8
        %v1594 = vpop.permute.xlu0 %1593
        %1595 = vrot.lane.b32.xlu0 %v1521, 8
        %v1596 = vpop.permute.xlu0 %1595
        %1597 = vrot.lane.b32.xlu0 %v1522, 8
        %v1598 = vpop.permute.xlu0 %1597
        %1599 = vrot.lane.b32.xlu0 %v1523, 8
        %v1600 = vpop.permute.xlu0 %1599
        %1601 = vrot.lane.b32.xlu0 %v1524, 8
        %v1602 = vpop.permute.xlu0 %1601
        %1603 = vrot.lane.b32.xlu0 %v1525, 8
        %v1604 = vpop.permute.xlu0 %1603
        %1605 = vrot.lane.b32.xlu0 %v1526, 8
        %v1606 = vpop.permute.xlu0 %1605
        %1607 = vrot.lane.b32.xlu0 %v1527, 8
        %v1608 = vpop.permute.xlu0 %1607
        %1609 = vrot.lane.b32.xlu0 %v1528, 8
        %v1610 = vpop.permute.xlu0 %1609
        %1611 = vrot.lane.b32.xlu0 %v1529, 8
        %v1612 = vpop.permute.xlu0 %1611
        %1613 = vrot.lane.b32.xlu0 %v1530, 8
        %v1614 = vpop.permute.xlu0 %1613
        %1615 = vrot.lane.b32.xlu0 %v1531, 8
        %v1616 = vpop.permute.xlu0 %1615
        %1617 = vrot.lane.b32.xlu0 %v1532, 8
        %v1618 = vpop.permute.xlu0 %1617
        %1619 = vrot.lane.b32.xlu0 %v1533, 8
        %v1620 = vpop.permute.xlu0 %1619
        %1621 = vrot.lane.b32.xlu0 %v1534, 8
        %v1622 = vpop.permute.xlu0 %1621
        %1623 = vrot.lane.b32.xlu0 %v1535, 8
        %v1624 = vpop.permute.xlu0 %1623
        %1625 = vrot.lane.b32.xlu0 %v1536, 8
        %v1626 = vpop.permute.xlu0 %1625
        %1627 = vrot.lane.b32.xlu0 %v1537, 8
        %v1628 = vpop.permute.xlu0 %1627
        %1629 = vrot.lane.b32.xlu0 %v1538, 8
        %v1630 = vpop.permute.xlu0 %1629
        %1631 = vrot.lane.b32.xlu0 %v1539, 8
        %v1632 = vpop.permute.xlu0 %1631
        %1633 = vrot.lane.b32.xlu0 %v1540, 8
        %v1634 = vpop.permute.xlu0 %1633
        %1635 = vrot.lane.b32.xlu0 %v1541, 8
        %v1636 = vpop.permute.xlu0 %1635
        %1637 = vrot.lane.b32.xlu0 %v1542, 8
        %v1638 = vpop.permute.xlu0 %1637
        %vm1671 = vcmask 130112
        %1672 = vst.msk [vmem:[%s721] sm:$0xff] %vm1671, %v1576
        %1673 = vst.msk [vmem:[%s721 + $0x8] sm:$0xff] %vm1671, %v1578
        %1674 = vst.msk [vmem:[%s721 + $0x10] sm:$0xff] %vm1671, %v1580
        %1675 = vst.msk [vmem:[%s721 + $0x18] sm:$0xff] %vm1671, %v1582
        %1676 = vst.msk [vmem:[%s721 + $0x20] sm:$0xff] %vm1671, %v1584
        %1677 = vst.msk [vmem:[%s721 + $0x28] sm:$0xff] %vm1671, %v1586
        %1678 = vst.msk [vmem:[%s721 + $0x30] sm:$0xff] %vm1671, %v1588
        %1679 = vst.msk [vmem:[%s721 + $0x38] sm:$0xff] %vm1671, %v1590
        %1680 = vst.msk [vmem:[%s721 + $0x40] sm:$0xff] %vm1671, %v1592
        %1681 = vst.msk [vmem:[%s721 + $0x48] sm:$0xff] %vm1671, %v1594
        %1682 = vst.msk [vmem:[%s721 + $0x50] sm:$0xff] %vm1671, %v1596
        %1683 = vst.msk [vmem:[%s721 + $0x58] sm:$0xff] %vm1671, %v1598
        %1684 = vst.msk [vmem:[%s721 + $0x60] sm:$0xff] %vm1671, %v1600
        %1685 = vst.msk [vmem:[%s721 + $0x68] sm:$0xff] %vm1671, %v1602
        %1686 = vst.msk [vmem:[%s721 + $0x70] sm:$0xff] %vm1671, %v1604
        %1687 = vst.msk [vmem:[%s721 + $0x78] sm:$0xff] %vm1671, %v1606
        %1688 = vst.msk [vmem:[%s721 + $0x80] sm:$0xff] %vm1671, %v1608
        %1689 = vst.msk [vmem:[%s721 + $0x88] sm:$0xff] %vm1671, %v1610
        %1690 = vst.msk [vmem:[%s721 + $0x90] sm:$0xff] %vm1671, %v1612
        %1691 = vst.msk [vmem:[%s721 + $0x98] sm:$0xff] %vm1671, %v1614
        %1692 = vst.msk [vmem:[%s721 + $0xa0] sm:$0xff] %vm1671, %v1616
        %1693 = vst.msk [vmem:[%s721 + $0xa8] sm:$0xff] %vm1671, %v1618
        %1694 = vst.msk [vmem:[%s721 + $0xb0] sm:$0xff] %vm1671, %v1620
        %1695 = vst.msk [vmem:[%s721 + $0xb8] sm:$0xff] %vm1671, %v1622
        %1696 = vst.msk [vmem:[%s721 + $0xc0] sm:$0xff] %vm1671, %v1624
        %1697 = vst.msk [vmem:[%s721 + $0xc8] sm:$0xff] %vm1671, %v1626
        %1698 = vst.msk [vmem:[%s721 + $0xd0] sm:$0xff] %vm1671, %v1628
        %1699 = vst.msk [vmem:[%s721 + $0xd8] sm:$0xff] %vm1671, %v1630
        %1700 = vst.msk [vmem:[%s721 + $0xe0] sm:$0xff] %vm1671, %v1632
        %1701 = vst.msk [vmem:[%s721 + $0xe8] sm:$0xff] %vm1671, %v1634
        %1702 = vst.msk [vmem:[%s721 + $0xf0] sm:$0xff] %vm1671, %v1636
        %1703 = vst.msk [vmem:[%s721 + $0xf8] sm:$0xff] %vm1671, %v1638
        %s1704 = scalar_lea.vmem %s695, 256 [#allocation2]
        %v1705 = vld [vmem:[%s1704] sm:$0xf]
        %v1706 = vld [vmem:[%s1704 + $0x4] sm:$0xf]
        %v1707 = vld [vmem:[%s1704 + $0x8] sm:$0xf]
        %v1708 = vld [vmem:[%s1704 + $0xc] sm:$0xf]
        %v1709 = vld [vmem:[%s1704 + $0x10] sm:$0xf]
        %v1710 = vld [vmem:[%s1704 + $0x14] sm:$0xf]
        %v1711 = vld [vmem:[%s1704 + $0x18] sm:$0xf]
        %v1712 = vld [vmem:[%s1704 + $0x1c] sm:$0xf]
        %v1713 = vld [vmem:[%s1704 + $0x20] sm:$0xf]
        %v1714 = vld [vmem:[%s1704 + $0x24] sm:$0xf]
        %v1715 = vld [vmem:[%s1704 + $0x28] sm:$0xf]
        %v1716 = vld [vmem:[%s1704 + $0x2c] sm:$0xf]
        %v1717 = vld [vmem:[%s1704 + $0x30] sm:$0xf]
        %v1718 = vld [vmem:[%s1704 + $0x34] sm:$0xf]
        %v1719 = vld [vmem:[%s1704 + $0x38] sm:$0xf]
        %v1720 = vld [vmem:[%s1704 + $0x3c] sm:$0xf]
        %v1721 = vld [vmem:[%s1704 + $0x40] sm:$0xf]
        %v1722 = vld [vmem:[%s1704 + $0x44] sm:$0xf]
        %v1723 = vld [vmem:[%s1704 + $0x48] sm:$0xf]
        %v1724 = vld [vmem:[%s1704 + $0x4c] sm:$0xf]
        %v1725 = vld [vmem:[%s1704 + $0x50] sm:$0xf]
        %v1726 = vld [vmem:[%s1704 + $0x54] sm:$0xf]
        %v1727 = vld [vmem:[%s1704 + $0x58] sm:$0xf]
        %v1728 = vld [vmem:[%s1704 + $0x5c] sm:$0xf]
        %v1729 = vld [vmem:[%s1704 + $0x60] sm:$0xf]
        %v1730 = vld [vmem:[%s1704 + $0x64] sm:$0xf]
        %v1731 = vld [vmem:[%s1704 + $0x68] sm:$0xf]
        %v1732 = vld [vmem:[%s1704 + $0x6c] sm:$0xf]
        %v1733 = vld [vmem:[%s1704 + $0x70] sm:$0xf]
        %v1734 = vld [vmem:[%s1704 + $0x74] sm:$0xf]
        %v1735 = vld [vmem:[%s1704 + $0x78] sm:$0xf]
        %v1736 = vld [vmem:[%s1704 + $0x7c] sm:$0xf]
        %s1737 = scalar_lea.vmem %s1, 128
        %v1738 = vld [vmem:[%s1737] sm:$0xf]
        %v1739 = vld [vmem:[%s1737 + $0x4] sm:$0xf]
        %v1740 = vld [vmem:[%s1737 + $0x8] sm:$0xf]
        %v1741 = vld [vmem:[%s1737 + $0xc] sm:$0xf]
        %v1742 = vld [vmem:[%s1737 + $0x10] sm:$0xf]
        %v1743 = vld [vmem:[%s1737 + $0x14] sm:$0xf]
        %v1744 = vld [vmem:[%s1737 + $0x18] sm:$0xf]
        %v1745 = vld [vmem:[%s1737 + $0x1c] sm:$0xf]
        %v1746 = vld [vmem:[%s1737 + $0x20] sm:$0xf]
        %v1747 = vld [vmem:[%s1737 + $0x24] sm:$0xf]
        %v1748 = vld [vmem:[%s1737 + $0x28] sm:$0xf]
        %v1749 = vld [vmem:[%s1737 + $0x2c] sm:$0xf]
        %v1750 = vld [vmem:[%s1737 + $0x30] sm:$0xf]
        %v1751 = vld [vmem:[%s1737 + $0x34] sm:$0xf]
        %v1752 = vld [vmem:[%s1737 + $0x38] sm:$0xf]
        %v1753 = vld [vmem:[%s1737 + $0x3c] sm:$0xf]
        %v1754 = vld [vmem:[%s2] sm:$0x1]
        %v1756 = vlaneseq
        %v1757 = vshrl.u32 %v1756, 7
        %v1758 = vsub.s32 0, %v1757
        %v1759 = vrot.slane %v1754, %v1758
        %v1793 = vunpack.c.l.b16 %v1705
        %v1794 = vunpack.c.l.b16 %v1706
        %v1795 = vunpack.c.l.b16 %v1707
        %v1796 = vunpack.c.l.b16 %v1708
        %v1797 = vunpack.c.l.b16 %v1709
        %v1798 = vunpack.c.l.b16 %v1710
        %v1799 = vunpack.c.l.b16 %v1711
        %v1800 = vunpack.c.l.b16 %v1712
        %v1801 = vunpack.c.l.b16 %v1713
        %v1802 = vunpack.c.l.b16 %v1714
        %v1803 = vunpack.c.l.b16 %v1715
        %v1804 = vunpack.c.l.b16 %v1716
        %v1805 = vunpack.c.l.b16 %v1717
        %v1806 = vunpack.c.l.b16 %v1718
        %v1807 = vunpack.c.l.b16 %v1719
        %v1808 = vunpack.c.l.b16 %v1720
        %v1809 = vunpack.c.l.b16 %v1721
        %v1810 = vunpack.c.l.b16 %v1722
        %v1811 = vunpack.c.l.b16 %v1723
        %v1812 = vunpack.c.l.b16 %v1724
        %v1813 = vunpack.c.l.b16 %v1725
        %v1814 = vunpack.c.l.b16 %v1726
        %v1815 = vunpack.c.l.b16 %v1727
        %v1816 = vunpack.c.l.b16 %v1728
        %v1817 = vunpack.c.l.b16 %v1729
        %v1818 = vunpack.c.l.b16 %v1730
        %v1819 = vunpack.c.l.b16 %v1731
        %v1820 = vunpack.c.l.b16 %v1732
        %v1821 = vunpack.c.l.b16 %v1733
        %v1822 = vunpack.c.l.b16 %v1734
        %v1823 = vunpack.c.l.b16 %v1735
        %v1824 = vunpack.c.l.b16 %v1736
        %v1825 = vpack.c.b16 %v1794, %v1793
        %v1826 = vpack.c.b16 %v1796, %v1795
        %v1827 = vpack.c.b16 %v1798, %v1797
        %v1828 = vpack.c.b16 %v1800, %v1799
        %v1829 = vpack.c.b16 %v1802, %v1801
        %v1830 = vpack.c.b16 %v1804, %v1803
        %v1831 = vpack.c.b16 %v1806, %v1805
        %v1832 = vpack.c.b16 %v1808, %v1807
        %v1833 = vpack.c.b16 %v1810, %v1809
        %v1834 = vpack.c.b16 %v1812, %v1811
        %v1835 = vpack.c.b16 %v1814, %v1813
        %v1836 = vpack.c.b16 %v1816, %v1815
        %v1837 = vpack.c.b16 %v1818, %v1817
        %v1838 = vpack.c.b16 %v1820, %v1819
        %v1839 = vpack.c.b16 %v1822, %v1821
        %v1840 = vpack.c.b16 %v1824, %v1823
        %v1873 = vunpack.c.l.b16 %v1738
        %v1874 = vunpack.c.l.b16 %v1739
        %v1875 = vunpack.c.l.b16 %v1740
        %v1876 = vunpack.c.l.b16 %v1741
        %v1877 = vunpack.c.l.b16 %v1742
        %v1878 = vunpack.c.l.b16 %v1743
        %v1879 = vunpack.c.l.b16 %v1744
        %v1880 = vunpack.c.l.b16 %v1745
        %v1881 = vunpack.c.l.b16 %v1746
        %v1882 = vunpack.c.l.b16 %v1747
        %v1883 = vunpack.c.l.b16 %v1748
        %v1884 = vunpack.c.l.b16 %v1749
        %v1885 = vunpack.c.l.b16 %v1750
        %v1886 = vunpack.c.l.b16 %v1751
        %v1887 = vunpack.c.l.b16 %v1752
        %v1888 = vunpack.c.l.b16 %v1753
        %v1889 = vpack.c.b16 %v1874, %v1873
        %v1890 = vpack.c.b16 %v1876, %v1875
        %v1891 = vpack.c.b16 %v1878, %v1877
        %v1892 = vpack.c.b16 %v1880, %v1879
        %v1893 = vpack.c.b16 %v1882, %v1881
        %v1894 = vpack.c.b16 %v1884, %v1883
        %v1895 = vpack.c.b16 %v1886, %v1885
        %v1896 = vpack.c.b16 %v1888, %v1887
        %1905 = vmatprep.subr.bf16.mxu0 0
        %1906 = vmatpush1.bf16.msra.mxu0 %v1889
        %1907 = vmatprep.subr.bf16.mxu0 0
        %1908 = vmatpush1.bf16.msra.mxu0 %v1890
        %1909 = vmatprep.subr.bf16.mxu0 0
        %1910 = vmatpush1.bf16.msra.mxu0 %v1891
        %1911 = vmatprep.subr.bf16.mxu0 0
        %1912 = vmatpush1.bf16.msra.mxu0 %v1892
        %1913 = vmatprep.subr.bf16.mxu0 0
        %1914 = vmatpush1.bf16.msra.mxu0 %v1893
        %1915 = vmatprep.subr.bf16.mxu0 0
        %1916 = vmatpush1.bf16.msra.mxu0 %v1894
        %1917 = vmatprep.subr.bf16.mxu0 0
        %1918 = vmatpush1.bf16.msra.mxu0 %v1895
        %1919 = vmatprep.subr.bf16.mxu0 0
        %1920 = vmatpush1.bf16.msra.mxu0 %v1896
        %1921 = vmatprep.subr.bf16.mxu0 0
        %1922 = vmatpush1.bf16.msra.mxu0 0
        %1923 = vmatprep.subr.bf16.mxu0 0
        %1924 = vmatpush1.bf16.msra.mxu0 0
        %1925 = vmatprep.subr.bf16.mxu0 0
        %1926 = vmatpush1.bf16.msra.mxu0 0
        %1927 = vmatprep.subr.bf16.mxu0 0
        %1928 = vmatpush1.bf16.msra.mxu0 0
        %1929 = vmatprep.subr.bf16.mxu0 0
        %1930 = vmatpush1.bf16.msra.mxu0 0
        %1931 = vmatprep.subr.bf16.mxu0 0
        %1932 = vmatpush1.bf16.msra.mxu0 0
        %1933 = vmatprep.subr.bf16.mxu0 0
        %1934 = vmatpush1.bf16.msra.mxu0 0
        %1935 = vmatprep.subr.bf16.mxu0 0
        %1936 = vmatpush1.bf16.msra.mxu0 0
        %1937 = vmatprep.mubr.bf16.mxu0 0
        %1938 = vmatmul.mubr.bf16.gmra.mrb[0].mxu0 %v1825
        %v1939 = vpop.f32.mrb[0].mxu0
        %v1940 = vadd.f32 %v1759, %v1939
        %v1941 = vpop.f32.mrb[0].mxu0
        %v1942 = vpop.f32.mrb[0].mxu0
        %v1943 = vadd.f32 %v1759, %v1942
        %v1944 = vpop.f32.mrb[0].mxu0
        %1945 = vmatprep.mubr.bf16.mxu0 0
        %1946 = vmatmul.mubr.bf16.gmra.mrb[0].mxu0 %v1826
        %v1947 = vpop.f32.mrb[0].mxu0
        %v1948 = vadd.f32 %v1759, %v1947
        %v1949 = vpop.f32.mrb[0].mxu0
        %v1950 = vpop.f32.mrb[0].mxu0
        %v1951 = vadd.f32 %v1759, %v1950
        %v1952 = vpop.f32.mrb[0].mxu0
        %1953 = vmatprep.mubr.bf16.mxu0 0
        %1954 = vmatmul.mubr.bf16.gmra.mrb[0].mxu0 %v1827
        %v1955 = vpop.f32.mrb[0].mxu0
        %v1956 = vadd.f32 %v1759, %v1955
        %v1957 = vpop.f32.mrb[0].mxu0
        %v1958 = vpop.f32.mrb[0].mxu0
        %v1959 = vadd.f32 %v1759, %v1958
        %v1960 = vpop.f32.mrb[0].mxu0
        %1961 = vmatprep.mubr.bf16.mxu0 0
        %1962 = vmatmul.mubr.bf16.gmra.mrb[0].mxu0 %v1828
        %v1963 = vpop.f32.mrb[0].mxu0
        %v1964 = vadd.f32 %v1759, %v1963
        %v1965 = vpop.f32.mrb[0].mxu0
        %v1966 = vpop.f32.mrb[0].mxu0
        %v1967 = vadd.f32 %v1759, %v1966
        %v1968 = vpop.f32.mrb[0].mxu0
        %1969 = vmatprep.mubr.bf16.mxu0 0
        %1970 = vmatmul.mubr.bf16.gmra.mrb[0].mxu0 %v1829
        %v1971 = vpop.f32.mrb[0].mxu0
        %v1972 = vadd.f32 %v1759, %v1971
        %v1973 = vpop.f32.mrb[0].mxu0
        %v1974 = vpop.f32.mrb[0].mxu0
        %v1975 = vadd.f32 %v1759, %v1974
        %v1976 = vpop.f32.mrb[0].mxu0
        %1977 = vmatprep.mubr.bf16.mxu0 0
        %1978 = vmatmul.mubr.bf16.gmra.mrb[0].mxu0 %v1830
        %v1979 = vpop.f32.mrb[0].mxu0
        %v1980 = vadd.f32 %v1759, %v1979
        %v1981 = vpop.f32.mrb[0].mxu0
        %v1982 = vpop.f32.mrb[0].mxu0
        %v1983 = vadd.f32 %v1759, %v1982
        %v1984 = vpop.f32.mrb[0].mxu0
        %1985 = vmatprep.mubr.bf16.mxu0 0
        %1986 = vmatmul.mubr.bf16.gmra.mrb[0].mxu0 %v1831
        %v1987 = vpop.f32.mrb[0].mxu0
        %v1988 = vadd.f32 %v1759, %v1987
        %v1989 = vpop.f32.mrb[0].mxu0
        %v1990 = vpop.f32.mrb[0].mxu0
        %v1991 = vadd.f32 %v1759, %v1990
        %v1992 = vpop.f32.mrb[0].mxu0
        %1993 = vmatprep.mubr.bf16.mxu0 0
        %1994 = vmatmul.mubr.bf16.gmra.mrb[0].mxu0 %v1832
        %v1995 = vpop.f32.mrb[0].mxu0
        %v1996 = vadd.f32 %v1759, %v1995
        %v1997 = vpop.f32.mrb[0].mxu0
        %v1998 = vpop.f32.mrb[0].mxu0
        %v1999 = vadd.f32 %v1759, %v1998
        %v2000 = vpop.f32.mrb[0].mxu0
        %2001 = vmatprep.mubr.bf16.mxu0 0
        %2002 = vmatmul.mubr.bf16.gmra.mrb[0].mxu0 %v1833
        %v2003 = vpop.f32.mrb[0].mxu0
        %v2004 = vadd.f32 %v1759, %v2003
        %v2005 = vpop.f32.mrb[0].mxu0
        %v2006 = vpop.f32.mrb[0].mxu0
        %v2007 = vadd.f32 %v1759, %v2006
        %v2008 = vpop.f32.mrb[0].mxu0
        %2009 = vmatprep.mubr.bf16.mxu0 0
        %2010 = vmatmul.mubr.bf16.gmra.mrb[0].mxu0 %v1834
        %v2011 = vpop.f32.mrb[0].mxu0
        %v2012 = vadd.f32 %v1759, %v2011
        %v2013 = vpop.f32.mrb[0].mxu0
        %v2014 = vpop.f32.mrb[0].mxu0
        %v2015 = vadd.f32 %v1759, %v2014
        %v2016 = vpop.f32.mrb[0].mxu0
        %2017 = vmatprep.mubr.bf16.mxu0 0
        %2018 = vmatmul.mubr.bf16.gmra.mrb[0].mxu0 %v1835
        %v2019 = vpop.f32.mrb[0].mxu0
        %v2020 = vadd.f32 %v1759, %v2019
        %v2021 = vpop.f32.mrb[0].mxu0
        %v2022 = vpop.f32.mrb[0].mxu0
        %v2023 = vadd.f32 %v1759, %v2022
        %v2024 = vpop.f32.mrb[0].mxu0
        %2025 = vmatprep.mubr.bf16.mxu0 0
        %2026 = vmatmul.mubr.bf16.gmra.mrb[0].mxu0 %v1836
        %v2027 = vpop.f32.mrb[0].mxu0
        %v2028 = vadd.f32 %v1759, %v2027
        %v2029 = vpop.f32.mrb[0].mxu0
        %v2030 = vpop.f32.mrb[0].mxu0
        %v2031 = vadd.f32 %v1759, %v2030
        %v2032 = vpop.f32.mrb[0].mxu0
        %2033 = vmatprep.mubr.bf16.mxu0 0
        %2034 = vmatmul.mubr.bf16.gmra.mrb[0].mxu0 %v1837
        %v2035 = vpop.f32.mrb[0].mxu0
        %v2036 = vadd.f32 %v1759, %v2035
        %v2037 = vpop.f32.mrb[0].mxu0
        %v2038 = vpop.f32.mrb[0].mxu0
        %v2039 = vadd.f32 %v1759, %v2038
        %v2040 = vpop.f32.mrb[0].mxu0
        %2041 = vmatprep.mubr.bf16.mxu0 0
        %2042 = vmatmul.mubr.bf16.gmra.mrb[0].mxu0 %v1838
        %v2043 = vpop.f32.mrb[0].mxu0
        %v2044 = vadd.f32 %v1759, %v2043
        %v2045 = vpop.f32.mrb[0].mxu0
        %v2046 = vpop.f32.mrb[0].mxu0
        %v2047 = vadd.f32 %v1759, %v2046
        %v2048 = vpop.f32.mrb[0].mxu0
        %2049 = vmatprep.mubr.bf16.mxu0 0
        %2050 = vmatmul.mubr.bf16.gmra.mrb[0].mxu0 %v1839
        %v2051 = vpop.f32.mrb[0].mxu0
        %v2052 = vadd.f32 %v1759, %v2051
        %v2053 = vpop.f32.mrb[0].mxu0
        %v2054 = vpop.f32.mrb[0].mxu0
        %v2055 = vadd.f32 %v1759, %v2054
        %v2056 = vpop.f32.mrb[0].mxu0
        %2057 = vmatprep.mubr.bf16.mxu0 0
        %2058 = vmatmul.mubr.bf16.gmra.mrb[0].mxu0 %v1840
        %v2059 = vpop.f32.mrb[0].mxu0
        %v2060 = vadd.f32 %v1759, %v2059
        %v2061 = vpop.f32.mrb[0].mxu0
        %v2062 = vpop.f32.mrb[0].mxu0
        %v2063 = vadd.f32 %v1759, %v2062
        %v2064 = vpop.f32.mrb[0].mxu0
        %2065 = vdwg.mxu0
        %v2066 = vtanh.pop %v1940
        %v2067 = vtanh.pop %v1943
        %v2068 = vtanh.pop %v1948
        %v2069 = vtanh.pop %v1951
        %v2070 = vtanh.pop %v1956
        %v2071 = vtanh.pop %v1959
        %v2072 = vtanh.pop %v1964
        %v2073 = vtanh.pop %v1967
        %v2074 = vtanh.pop %v1972
        %v2075 = vtanh.pop %v1975
        %v2076 = vtanh.pop %v1980
        %v2077 = vtanh.pop %v1983
        %v2078 = vtanh.pop %v1988
        %v2079 = vtanh.pop %v1991
        %v2080 = vtanh.pop %v1996
        %v2081 = vtanh.pop %v1999
        %v2082 = vtanh.pop %v2004
        %v2083 = vtanh.pop %v2007
        %v2084 = vtanh.pop %v2012
        %v2085 = vtanh.pop %v2015
        %v2086 = vtanh.pop %v2020
        %v2087 = vtanh.pop %v2023
        %v2088 = vtanh.pop %v2028
        %v2089 = vtanh.pop %v2031
        %v2090 = vtanh.pop %v2036
        %v2091 = vtanh.pop %v2039
        %v2092 = vtanh.pop %v2044
        %v2093 = vtanh.pop %v2047
        %v2094 = vtanh.pop %v2052
        %v2095 = vtanh.pop %v2055
        %v2096 = vtanh.pop %v2060
        %v2097 = vtanh.pop %v2063
        %2130 = vrot.lane.b32.xlu0 %v2066, 16
        %v2131 = vpop.permute.xlu0 %2130
        %2132 = vrot.lane.b32.xlu0 %v2067, 16
        %v2133 = vpop.permute.xlu0 %2132
        %2134 = vrot.lane.b32.xlu0 %v2068, 16
        %v2135 = vpop.permute.xlu0 %2134
        %2136 = vrot.lane.b32.xlu0 %v2069, 16
        %v2137 = vpop.permute.xlu0 %2136
        %2138 = vrot.lane.b32.xlu0 %v2070, 16
        %v2139 = vpop.permute.xlu0 %2138
        %2140 = vrot.lane.b32.xlu0 %v2071, 16
        %v2141 = vpop.permute.xlu0 %2140
        %2142 = vrot.lane.b32.xlu0 %v2072, 16
        %v2143 = vpop.permute.xlu0 %2142
        %2144 = vrot.lane.b32.xlu0 %v2073, 16
        %v2145 = vpop.permute.xlu0 %2144
        %2146 = vrot.lane.b32.xlu0 %v2074, 16
        %v2147 = vpop.permute.xlu0 %2146
        %2148 = vrot.lane.b32.xlu0 %v2075, 16
        %v2149 = vpop.permute.xlu0 %2148
        %2150 = vrot.lane.b32.xlu0 %v2076, 16
        %v2151 = vpop.permute.xlu0 %2150
        %2152 = vrot.lane.b32.xlu0 %v2077, 16
        %v2153 = vpop.permute.xlu0 %2152
        %2154 = vrot.lane.b32.xlu0 %v2078, 16
        %v2155 = vpop.permute.xlu0 %2154
        %2156 = vrot.lane.b32.xlu0 %v2079, 16
        %v2157 = vpop.permute.xlu0 %2156
        %2158 = vrot.lane.b32.xlu0 %v2080, 16
        %v2159 = vpop.permute.xlu0 %2158
        %2160 = vrot.lane.b32.xlu0 %v2081, 16
        %v2161 = vpop.permute.xlu0 %2160
        %2162 = vrot.lane.b32.xlu0 %v2082, 16
        %v2163 = vpop.permute.xlu0 %2162
        %2164 = vrot.lane.b32.xlu0 %v2083, 16
        %v2165 = vpop.permute.xlu0 %2164
        %2166 = vrot.lane.b32.xlu0 %v2084, 16
        %v2167 = vpop.permute.xlu0 %2166
        %2168 = vrot.lane.b32.xlu0 %v2085, 16
        %v2169 = vpop.permute.xlu0 %2168
        %2170 = vrot.lane.b32.xlu0 %v2086, 16
        %v2171 = vpop.permute.xlu0 %2170
        %2172 = vrot.lane.b32.xlu0 %v2087, 16
        %v2173 = vpop.permute.xlu0 %2172
        %2174 = vrot.lane.b32.xlu0 %v2088, 16
        %v2175 = vpop.permute.xlu0 %2174
        %2176 = vrot.lane.b32.xlu0 %v2089, 16
        %v2177 = vpop.permute.xlu0 %2176
        %2178 = vrot.lane.b32.xlu0 %v2090, 16
        %v2179 = vpop.permute.xlu0 %2178
        %2180 = vrot.lane.b32.xlu0 %v2091, 16
        %v2181 = vpop.permute.xlu0 %2180
        %2182 = vrot.lane.b32.xlu0 %v2092, 16
        %v2183 = vpop.permute.xlu0 %2182
        %2184 = vrot.lane.b32.xlu0 %v2093, 16
        %v2185 = vpop.permute.xlu0 %2184
        %2186 = vrot.lane.b32.xlu0 %v2094, 16
        %v2187 = vpop.permute.xlu0 %2186
        %2188 = vrot.lane.b32.xlu0 %v2095, 16
        %v2189 = vpop.permute.xlu0 %2188
        %2190 = vrot.lane.b32.xlu0 %v2096, 16
        %v2191 = vpop.permute.xlu0 %2190
        %2192 = vrot.lane.b32.xlu0 %v2097, 16
        %v2193 = vpop.permute.xlu0 %2192
        %vm2226 = vcmask 195712
        %2227 = vst.msk [vmem:[%s721] sm:$0xff] %vm2226, %v2131
        %2228 = vst.msk [vmem:[%s721 + $0x8] sm:$0xff] %vm2226, %v2133
        %2229 = vst.msk [vmem:[%s721 + $0x10] sm:$0xff] %vm2226, %v2135
        %2230 = vst.msk [vmem:[%s721 + $0x18] sm:$0xff] %vm2226, %v2137
        %2231 = vst.msk [vmem:[%s721 + $0x20] sm:$0xff] %vm2226, %v2139
        %2232 = vst.msk [vmem:[%s721 + $0x28] sm:$0xff] %vm2226, %v2141
        %2233 = vst.msk [vmem:[%s721 + $0x30] sm:$0xff] %vm2226, %v2143
        %2234 = vst.msk [vmem:[%s721 + $0x38] sm:$0xff] %vm2226, %v2145
        %2235 = vst.msk [vmem:[%s721 + $0x40] sm:$0xff] %vm2226, %v2147
        %2236 = vst.msk [vmem:[%s721 + $0x48] sm:$0xff] %vm2226, %v2149
        %2237 = vst.msk [vmem:[%s721 + $0x50] sm:$0xff] %vm2226, %v2151
        %2238 = vst.msk [vmem:[%s721 + $0x58] sm:$0xff] %vm2226, %v2153
        %2239 = vst.msk [vmem:[%s721 + $0x60] sm:$0xff] %vm2226, %v2155
        %2240 = vst.msk [vmem:[%s721 + $0x68] sm:$0xff] %vm2226, %v2157
        %2241 = vst.msk [vmem:[%s721 + $0x70] sm:$0xff] %vm2226, %v2159
        %2242 = vst.msk [vmem:[%s721 + $0x78] sm:$0xff] %vm2226, %v2161
        %2243 = vst.msk [vmem:[%s721 + $0x80] sm:$0xff] %vm2226, %v2163
        %2244 = vst.msk [vmem:[%s721 + $0x88] sm:$0xff] %vm2226, %v2165
        %2245 = vst.msk [vmem:[%s721 + $0x90] sm:$0xff] %vm2226, %v2167
        %2246 = vst.msk [vmem:[%s721 + $0x98] sm:$0xff] %vm2226, %v2169
        %2247 = vst.msk [vmem:[%s721 + $0xa0] sm:$0xff] %vm2226, %v2171
        %2248 = vst.msk [vmem:[%s721 + $0xa8] sm:$0xff] %vm2226, %v2173
        %2249 = vst.msk [vmem:[%s721 + $0xb0] sm:$0xff] %vm2226, %v2175
        %2250 = vst.msk [vmem:[%s721 + $0xb8] sm:$0xff] %vm2226, %v2177
        %2251 = vst.msk [vmem:[%s721 + $0xc0] sm:$0xff] %vm2226, %v2179
        %2252 = vst.msk [vmem:[%s721 + $0xc8] sm:$0xff] %vm2226, %v2181
        %2253 = vst.msk [vmem:[%s721 + $0xd0] sm:$0xff] %vm2226, %v2183
        %2254 = vst.msk [vmem:[%s721 + $0xd8] sm:$0xff] %vm2226, %v2185
        %2255 = vst.msk [vmem:[%s721 + $0xe0] sm:$0xff] %vm2226, %v2187
        %2256 = vst.msk [vmem:[%s721 + $0xe8] sm:$0xff] %vm2226, %v2189
        %2257 = vst.msk [vmem:[%s721 + $0xf0] sm:$0xff] %vm2226, %v2191
        %2258 = vst.msk [vmem:[%s721 + $0xf8] sm:$0xff] %vm2226, %v2193
        %s2259 = scalar_lea.vmem %s695, 384 [#allocation2]
        %v2260 = vld [vmem:[%s2259] sm:$0xf]
        %v2261 = vld [vmem:[%s2259 + $0x4] sm:$0xf]
        %v2262 = vld [vmem:[%s2259 + $0x8] sm:$0xf]
        %v2263 = vld [vmem:[%s2259 + $0xc] sm:$0xf]
        %v2264 = vld [vmem:[%s2259 + $0x10] sm:$0xf]
        %v2265 = vld [vmem:[%s2259 + $0x14] sm:$0xf]
        %v2266 = vld [vmem:[%s2259 + $0x18] sm:$0xf]
        %v2267 = vld [vmem:[%s2259 + $0x1c] sm:$0xf]
        %v2268 = vld [vmem:[%s2259 + $0x20] sm:$0xf]
        %v2269 = vld [vmem:[%s2259 + $0x24] sm:$0xf]
        %v2270 = vld [vmem:[%s2259 + $0x28] sm:$0xf]
        %v2271 = vld [vmem:[%s2259 + $0x2c] sm:$0xf]
        %v2272 = vld [vmem:[%s2259 + $0x30] sm:$0xf]
        %v2273 = vld [vmem:[%s2259 + $0x34] sm:$0xf]
        %v2274 = vld [vmem:[%s2259 + $0x38] sm:$0xf]
        %v2275 = vld [vmem:[%s2259 + $0x3c] sm:$0xf]
        %v2276 = vld [vmem:[%s2259 + $0x40] sm:$0xf]
        %v2277 = vld [vmem:[%s2259 + $0x44] sm:$0xf]
        %v2278 = vld [vmem:[%s2259 + $0x48] sm:$0xf]
        %v2279 = vld [vmem:[%s2259 + $0x4c] sm:$0xf]
        %v2280 = vld [vmem:[%s2259 + $0x50] sm:$0xf]
        %v2281 = vld [vmem:[%s2259 + $0x54] sm:$0xf]
        %v2282 = vld [vmem:[%s2259 + $0x58] sm:$0xf]
        %v2283 = vld [vmem:[%s2259 + $0x5c] sm:$0xf]
        %v2284 = vld [vmem:[%s2259 + $0x60] sm:$0xf]
        %v2285 = vld [vmem:[%s2259 + $0x64] sm:$0xf]
        %v2286 = vld [vmem:[%s2259 + $0x68] sm:$0xf]
        %v2287 = vld [vmem:[%s2259 + $0x6c] sm:$0xf]
        %v2288 = vld [vmem:[%s2259 + $0x70] sm:$0xf]
        %v2289 = vld [vmem:[%s2259 + $0x74] sm:$0xf]
        %v2290 = vld [vmem:[%s2259 + $0x78] sm:$0xf]
        %v2291 = vld [vmem:[%s2259 + $0x7c] sm:$0xf]
        %s2292 = scalar_lea.vmem %s1, 192
        %v2293 = vld [vmem:[%s2292] sm:$0xf]
        %v2294 = vld [vmem:[%s2292 + $0x4] sm:$0xf]
        %v2295 = vld [vmem:[%s2292 + $0x8] sm:$0xf]
        %v2296 = vld [vmem:[%s2292 + $0xc] sm:$0xf]
        %v2297 = vld [vmem:[%s2292 + $0x10] sm:$0xf]
        %v2298 = vld [vmem:[%s2292 + $0x14] sm:$0xf]
        %v2299 = vld [vmem:[%s2292 + $0x18] sm:$0xf]
        %v2300 = vld [vmem:[%s2292 + $0x1c] sm:$0xf]
        %v2301 = vld [vmem:[%s2292 + $0x20] sm:$0xf]
        %v2302 = vld [vmem:[%s2292 + $0x24] sm:$0xf]
        %v2303 = vld [vmem:[%s2292 + $0x28] sm:$0xf]
        %v2304 = vld [vmem:[%s2292 + $0x2c] sm:$0xf]
        %v2305 = vld [vmem:[%s2292 + $0x30] sm:$0xf]
        %v2306 = vld [vmem:[%s2292 + $0x34] sm:$0xf]
        %v2307 = vld [vmem:[%s2292 + $0x38] sm:$0xf]
        %v2308 = vld [vmem:[%s2292 + $0x3c] sm:$0xf]
        %v2309 = vld [vmem:[%s2] sm:$0x1]
        %v2311 = vlaneseq
        %v2312 = vshrl.u32 %v2311, 7
        %v2313 = vsub.s32 0, %v2312
        %v2314 = vrot.slane %v2309, %v2313
        %v2348 = vunpack.c.l.b16 %v2260
        %v2349 = vunpack.c.l.b16 %v2261
        %v2350 = vunpack.c.l.b16 %v2262
        %v2351 = vunpack.c.l.b16 %v2263
        %v2352 = vunpack.c.l.b16 %v2264
        %v2353 = vunpack.c.l.b16 %v2265
        %v2354 = vunpack.c.l.b16 %v2266
        %v2355 = vunpack.c.l.b16 %v2267
        %v2356 = vunpack.c.l.b16 %v2268
        %v2357 = vunpack.c.l.b16 %v2269
        %v2358 = vunpack.c.l.b16 %v2270
        %v2359 = vunpack.c.l.b16 %v2271
        %v2360 = vunpack.c.l.b16 %v2272
        %v2361 = vunpack.c.l.b16 %v2273
        %v2362 = vunpack.c.l.b16 %v2274
        %v2363 = vunpack.c.l.b16 %v2275
        %v2364 = vunpack.c.l.b16 %v2276
        %v2365 = vunpack.c.l.b16 %v2277
        %v2366 = vunpack.c.l.b16 %v2278
        %v2367 = vunpack.c.l.b16 %v2279
        %v2368 = vunpack.c.l.b16 %v2280
        %v2369 = vunpack.c.l.b16 %v2281
        %v2370 = vunpack.c.l.b16 %v2282
        %v2371 = vunpack.c.l.b16 %v2283
        %v2372 = vunpack.c.l.b16 %v2284
        %v2373 = vunpack.c.l.b16 %v2285
        %v2374 = vunpack.c.l.b16 %v2286
        %v2375 = vunpack.c.l.b16 %v2287
        %v2376 = vunpack.c.l.b16 %v2288
        %v2377 = vunpack.c.l.b16 %v2289
        %v2378 = vunpack.c.l.b16 %v2290
        %v2379 = vunpack.c.l.b16 %v2291
        %v2380 = vpack.c.b16 %v2349, %v2348
        %v2381 = vpack.c.b16 %v2351, %v2350
        %v2382 = vpack.c.b16 %v2353, %v2352
        %v2383 = vpack.c.b16 %v2355, %v2354
        %v2384 = vpack.c.b16 %v2357, %v2356
        %v2385 = vpack.c.b16 %v2359, %v2358
        %v2386 = vpack.c.b16 %v2361, %v2360
        %v2387 = vpack.c.b16 %v2363, %v2362
        %v2388 = vpack.c.b16 %v2365, %v2364
        %v2389 = vpack.c.b16 %v2367, %v2366
        %v2390 = vpack.c.b16 %v2369, %v2368
        %v2391 = vpack.c.b16 %v2371, %v2370
        %v2392 = vpack.c.b16 %v2373, %v2372
        %v2393 = vpack.c.b16 %v2375, %v2374
        %v2394 = vpack.c.b16 %v2377, %v2376
        %v2395 = vpack.c.b16 %v2379, %v2378
        %v2428 = vunpack.c.l.b16 %v2293
        %v2429 = vunpack.c.l.b16 %v2294
        %v2430 = vunpack.c.l.b16 %v2295
        %v2431 = vunpack.c.l.b16 %v2296
        %v2432 = vunpack.c.l.b16 %v2297
        %v2433 = vunpack.c.l.b16 %v2298
        %v2434 = vunpack.c.l.b16 %v2299
        %v2435 = vunpack.c.l.b16 %v2300
        %v2436 = vunpack.c.l.b16 %v2301
        %v2437 = vunpack.c.l.b16 %v2302
        %v2438 = vunpack.c.l.b16 %v2303
        %v2439 = vunpack.c.l.b16 %v2304
        %v2440 = vunpack.c.l.b16 %v2305
        %v2441 = vunpack.c.l.b16 %v2306
        %v2442 = vunpack.c.l.b16 %v2307
        %v2443 = vunpack.c.l.b16 %v2308
        %v2444 = vpack.c.b16 %v2429, %v2428
        %v2445 = vpack.c.b16 %v2431, %v2430
        %v2446 = vpack.c.b16 %v2433, %v2432
        %v2447 = vpack.c.b16 %v2435, %v2434
        %v2448 = vpack.c.b16 %v2437, %v2436
        %v2449 = vpack.c.b16 %v2439, %v2438
        %v2450 = vpack.c.b16 %v2441, %v2440
        %v2451 = vpack.c.b16 %v2443, %v2442
        %2460 = vmatprep.subr.bf16.mxu0 0
        %2461 = vmatpush1.bf16.msra.mxu0 %v2444
        %2462 = vmatprep.subr.bf16.mxu0 0
        %2463 = vmatpush1.bf16.msra.mxu0 %v2445
        %2464 = vmatprep.subr.bf16.mxu0 0
        %2465 = vmatpush1.bf16.msra.mxu0 %v2446
        %2466 = vmatprep.subr.bf16.mxu0 0
        %2467 = vmatpush1.bf16.msra.mxu0 %v2447
        %2468 = vmatprep.subr.bf16.mxu0 0
        %2469 = vmatpush1.bf16.msra.mxu0 %v2448
        %2470 = vmatprep.subr.bf16.mxu0 0
        %2471 = vmatpush1.bf16.msra.mxu0 %v2449
        %2472 = vmatprep.subr.bf16.mxu0 0
        %2473 = vmatpush1.bf16.msra.mxu0 %v2450
        %2474 = vmatprep.subr.bf16.mxu0 0
        %2475 = vmatpush1.bf16.msra.mxu0 %v2451
        %2476 = vmatprep.subr.bf16.mxu0 0
        %2477 = vmatpush1.bf16.msra.mxu0 0
        %2478 = vmatprep.subr.bf16.mxu0 0
        %2479 = vmatpush1.bf16.msra.mxu0 0
        %2480 = vmatprep.subr.bf16.mxu0 0
        %2481 = vmatpush1.bf16.msra.mxu0 0
        %2482 = vmatprep.subr.bf16.mxu0 0
        %2483 = vmatpush1.bf16.msra.mxu0 0
        %2484 = vmatprep.subr.bf16.mxu0 0
        %2485 = vmatpush1.bf16.msra.mxu0 0
        %2486 = vmatprep.subr.bf16.mxu0 0
        %2487 = vmatpush1.bf16.msra.mxu0 0
        %2488 = vmatprep.subr.bf16.mxu0 0
        %2489 = vmatpush1.bf16.msra.mxu0 0
        %2490 = vmatprep.subr.bf16.mxu0 0
        %2491 = vmatpush1.bf16.msra.mxu0 0
        %2492 = vmatprep.mubr.bf16.mxu0 0
        %2493 = vmatmul.mubr.bf16.gmra.mrb[0].mxu0 %v2380
        %v2494 = vpop.f32.mrb[0].mxu0
        %v2495 = vadd.f32 %v2314, %v2494
        %v2496 = vpop.f32.mrb[0].mxu0
        %v2497 = vpop.f32.mrb[0].mxu0
        %v2498 = vadd.f32 %v2314, %v2497
        %v2499 = vpop.f32.mrb[0].mxu0
        %2500 = vmatprep.mubr.bf16.mxu0 0
        %2501 = vmatmul.mubr.bf16.gmra.mrb[0].mxu0 %v2381
        %v2502 = vpop.f32.mrb[0].mxu0
        %v2503 = vadd.f32 %v2314, %v2502
        %v2504 = vpop.f32.mrb[0].mxu0
        %v2505 = vpop.f32.mrb[0].mxu0
        %v2506 = vadd.f32 %v2314, %v2505
        %v2507 = vpop.f32.mrb[0].mxu0
        %2508 = vmatprep.mubr.bf16.mxu0 0
        %2509 = vmatmul.mubr.bf16.gmra.mrb[0].mxu0 %v2382
        %v2510 = vpop.f32.mrb[0].mxu0
        %v2511 = vadd.f32 %v2314, %v2510
        %v2512 = vpop.f32.mrb[0].mxu0
        %v2513 = vpop.f32.mrb[0].mxu0
        %v2514 = vadd.f32 %v2314, %v2513
        %v2515 = vpop.f32.mrb[0].mxu0
        %2516 = vmatprep.mubr.bf16.mxu0 0
        %2517 = vmatmul.mubr.bf16.gmra.mrb[0].mxu0 %v2383
        %v2518 = vpop.f32.mrb[0].mxu0
        %v2519 = vadd.f32 %v2314, %v2518
        %v2520 = vpop.f32.mrb[0].mxu0
        %v2521 = vpop.f32.mrb[0].mxu0
        %v2522 = vadd.f32 %v2314, %v2521
        %v2523 = vpop.f32.mrb[0].mxu0
        %2524 = vmatprep.mubr.bf16.mxu0 0
        %2525 = vmatmul.mubr.bf16.gmra.mrb[0].mxu0 %v2384
        %v2526 = vpop.f32.mrb[0].mxu0
        %v2527 = vadd.f32 %v2314, %v2526
        %v2528 = vpop.f32.mrb[0].mxu0
        %v2529 = vpop.f32.mrb[0].mxu0
        %v2530 = vadd.f32 %v2314, %v2529
        %v2531 = vpop.f32.mrb[0].mxu0
        %2532 = vmatprep.mubr.bf16.mxu0 0
        %2533 = vmatmul.mubr.bf16.gmra.mrb[0].mxu0 %v2385
        %v2534 = vpop.f32.mrb[0].mxu0
        %v2535 = vadd.f32 %v2314, %v2534
        %v2536 = vpop.f32.mrb[0].mxu0
        %v2537 = vpop.f32.mrb[0].mxu0
        %v2538 = vadd.f32 %v2314, %v2537
        %v2539 = vpop.f32.mrb[0].mxu0
        %2540 = vmatprep.mubr.bf16.mxu0 0
        %2541 = vmatmul.mubr.bf16.gmra.mrb[0].mxu0 %v2386
        %v2542 = vpop.f32.mrb[0].mxu0
        %v2543 = vadd.f32 %v2314, %v2542
        %v2544 = vpop.f32.mrb[0].mxu0
        %v2545 = vpop.f32.mrb[0].mxu0
        %v2546 = vadd.f32 %v2314, %v2545
        %v2547 = vpop.f32.mrb[0].mxu0
        %2548 = vmatprep.mubr.bf16.mxu0 0
        %2549 = vmatmul.mubr.bf16.gmra.mrb[0].mxu0 %v2387
        %v2550 = vpop.f32.mrb[0].mxu0
        %v2551 = vadd.f32 %v2314, %v2550
        %v2552 = vpop.f32.mrb[0].mxu0
        %v2553 = vpop.f32.mrb[0].mxu0
        %v2554 = vadd.f32 %v2314, %v2553
        %v2555 = vpop.f32.mrb[0].mxu0
        %2556 = vmatprep.mubr.bf16.mxu0 0
        %2557 = vmatmul.mubr.bf16.gmra.mrb[0].mxu0 %v2388
        %v2558 = vpop.f32.mrb[0].mxu0
        %v2559 = vadd.f32 %v2314, %v2558
        %v2560 = vpop.f32.mrb[0].mxu0
        %v2561 = vpop.f32.mrb[0].mxu0
        %v2562 = vadd.f32 %v2314, %v2561
        %v2563 = vpop.f32.mrb[0].mxu0
        %2564 = vmatprep.mubr.bf16.mxu0 0
        %2565 = vmatmul.mubr.bf16.gmra.mrb[0].mxu0 %v2389
        %v2566 = vpop.f32.mrb[0].mxu0
        %v2567 = vadd.f32 %v2314, %v2566
        %v2568 = vpop.f32.mrb[0].mxu0
        %v2569 = vpop.f32.mrb[0].mxu0
        %v2570 = vadd.f32 %v2314, %v2569
        %v2571 = vpop.f32.mrb[0].mxu0
        %2572 = vmatprep.mubr.bf16.mxu0 0
        %2573 = vmatmul.mubr.bf16.gmra.mrb[0].mxu0 %v2390
        %v2574 = vpop.f32.mrb[0].mxu0
        %v2575 = vadd.f32 %v2314, %v2574
        %v2576 = vpop.f32.mrb[0].mxu0
        %v2577 = vpop.f32.mrb[0].mxu0
        %v2578 = vadd.f32 %v2314, %v2577
        %v2579 = vpop.f32.mrb[0].mxu0
        %2580 = vmatprep.mubr.bf16.mxu0 0
        %2581 = vmatmul.mubr.bf16.gmra.mrb[0].mxu0 %v2391
        %v2582 = vpop.f32.mrb[0].mxu0
        %v2583 = vadd.f32 %v2314, %v2582
        %v2584 = vpop.f32.mrb[0].mxu0
        %v2585 = vpop.f32.mrb[0].mxu0
        %v2586 = vadd.f32 %v2314, %v2585
        %v2587 = vpop.f32.mrb[0].mxu0
        %2588 = vmatprep.mubr.bf16.mxu0 0
        %2589 = vmatmul.mubr.bf16.gmra.mrb[0].mxu0 %v2392
        %v2590 = vpop.f32.mrb[0].mxu0
        %v2591 = vadd.f32 %v2314, %v2590
        %v2592 = vpop.f32.mrb[0].mxu0
        %v2593 = vpop.f32.mrb[0].mxu0
        %v2594 = vadd.f32 %v2314, %v2593
        %v2595 = vpop.f32.mrb[0].mxu0
        %2596 = vmatprep.mubr.bf16.mxu0 0
        %2597 = vmatmul.mubr.bf16.gmra.mrb[0].mxu0 %v2393
        %v2598 = vpop.f32.mrb[0].mxu0
        %v2599 = vadd.f32 %v2314, %v2598
        %v2600 = vpop.f32.mrb[0].mxu0
        %v2601 = vpop.f32.mrb[0].mxu0
        %v2602 = vadd.f32 %v2314, %v2601
        %v2603 = vpop.f32.mrb[0].mxu0
        %2604 = vmatprep.mubr.bf16.mxu0 0
        %2605 = vmatmul.mubr.bf16.gmra.mrb[0].mxu0 %v2394
        %v2606 = vpop.f32.mrb[0].mxu0
        %v2607 = vadd.f32 %v2314, %v2606
        %v2608 = vpop.f32.mrb[0].mxu0
        %v2609 = vpop.f32.mrb[0].mxu0
        %v2610 = vadd.f32 %v2314, %v2609
        %v2611 = vpop.f32.mrb[0].mxu0
        %2612 = vmatprep.mubr.bf16.mxu0 0
        %2613 = vmatmul.mubr.bf16.gmra.mrb[0].mxu0 %v2395
        %v2614 = vpop.f32.mrb[0].mxu0
        %v2615 = vadd.f32 %v2314, %v2614
        %v2616 = vpop.f32.mrb[0].mxu0
        %v2617 = vpop.f32.mrb[0].mxu0
        %v2618 = vadd.f32 %v2314, %v2617
        %v2619 = vpop.f32.mrb[0].mxu0
        %2620 = vdwg.mxu0
        %v2621 = vtanh.pop %v2495
        %v2622 = vtanh.pop %v2498
        %v2623 = vtanh.pop %v2503
        %v2624 = vtanh.pop %v2506
        %v2625 = vtanh.pop %v2511
        %v2626 = vtanh.pop %v2514
        %v2627 = vtanh.pop %v2519
        %v2628 = vtanh.pop %v2522
        %v2629 = vtanh.pop %v2527
        %v2630 = vtanh.pop %v2530
        %v2631 = vtanh.pop %v2535
        %v2632 = vtanh.pop %v2538
        %v2633 = vtanh.pop %v2543
        %v2634 = vtanh.pop %v2546
        %v2635 = vtanh.pop %v2551
        %v2636 = vtanh.pop %v2554
        %v2637 = vtanh.pop %v2559
        %v2638 = vtanh.pop %v2562
        %v2639 = vtanh.pop %v2567
        %v2640 = vtanh.pop %v2570
        %v2641 = vtanh.pop %v2575
        %v2642 = vtanh.pop %v2578
        %v2643 = vtanh.pop %v2583
        %v2644 = vtanh.pop %v2586
        %v2645 = vtanh.pop %v2591
        %v2646 = vtanh.pop %v2594
        %v2647 = vtanh.pop %v2599
        %v2648 = vtanh.pop %v2602
        %v2649 = vtanh.pop %v2607
        %v2650 = vtanh.pop %v2610
        %v2651 = vtanh.pop %v2615
        %v2652 = vtanh.pop %v2618
        %2685 = vrot.lane.b32.xlu0 %v2621, 24
        %v2686 = vpop.permute.xlu0 %2685
        %2687 = vrot.lane.b32.xlu0 %v2622, 24
        %v2688 = vpop.permute.xlu0 %2687
        %2689 = vrot.lane.b32.xlu0 %v2623, 24
        %v2690 = vpop.permute.xlu0 %2689
        %2691 = vrot.lane.b32.xlu0 %v2624, 24
        %v2692 = vpop.permute.xlu0 %2691
        %2693 = vrot.lane.b32.xlu0 %v2625, 24
        %v2694 = vpop.permute.xlu0 %2693
        %2695 = vrot.lane.b32.xlu0 %v2626, 24
        %v2696 = vpop.permute.xlu0 %2695
        %2697 = vrot.lane.b32.xlu0 %v2627, 24
        %v2698 = vpop.permute.xlu0 %2697
        %2699 = vrot.lane.b32.xlu0 %v2628, 24
        %v2700 = vpop.permute.xlu0 %2699
        %2701 = vrot.lane.b32.xlu0 %v2629, 24
        %v2702 = vpop.permute.xlu0 %2701
        %2703 = vrot.lane.b32.xlu0 %v2630, 24
        %v2704 = vpop.permute.xlu0 %2703
        %2705 = vrot.lane.b32.xlu0 %v2631, 24
        %v2706 = vpop.permute.xlu0 %2705
        %2707 = vrot.lane.b32.xlu0 %v2632, 24
        %v2708 = vpop.permute.xlu0 %2707
        %2709 = vrot.lane.b32.xlu0 %v2633, 24
        %v2710 = vpop.permute.xlu0 %2709
        %2711 = vrot.lane.b32.xlu0 %v2634, 24
        %v2712 = vpop.permute.xlu0 %2711
        %2713 = vrot.lane.b32.xlu0 %v2635, 24
        %v2714 = vpop.permute.xlu0 %2713
        %2715 = vrot.lane.b32.xlu0 %v2636, 24
        %v2716 = vpop.permute.xlu0 %2715
        %2717 = vrot.lane.b32.xlu0 %v2637, 24
        %v2718 = vpop.permute.xlu0 %2717
        %2719 = vrot.lane.b32.xlu0 %v2638, 24
        %v2720 = vpop.permute.xlu0 %2719
        %2721 = vrot.lane.b32.xlu0 %v2639, 24
        %v2722 = vpop.permute.xlu0 %2721
        %2723 = vrot.lane.b32.xlu0 %v2640, 24
        %v2724 = vpop.permute.xlu0 %2723
        %2725 = vrot.lane.b32.xlu0 %v2641, 24
        %v2726 = vpop.permute.xlu0 %2725
        %2727 = vrot.lane.b32.xlu0 %v2642, 24
        %v2728 = vpop.permute.xlu0 %2727
        %2729 = vrot.lane.b32.xlu0 %v2643, 24
        %v2730 = vpop.permute.xlu0 %2729
        %2731 = vrot.lane.b32.xlu0 %v2644, 24
        %v2732 = vpop.permute.xlu0 %2731
        %2733 = vrot.lane.b32.xlu0 %v2645, 24
        %v2734 = vpop.permute.xlu0 %2733
        %2735 = vrot.lane.b32.xlu0 %v2646, 24
        %v2736 = vpop.permute.xlu0 %2735
        %2737 = vrot.lane.b32.xlu0 %v2647, 24
        %v2738 = vpop.permute.xlu0 %2737
        %2739 = vrot.lane.b32.xlu0 %v2648, 24
        %v2740 = vpop.permute.xlu0 %2739
        %2741 = vrot.lane.b32.xlu0 %v2649, 24
        %v2742 = vpop.permute.xlu0 %2741
        %2743 = vrot.lane.b32.xlu0 %v2650, 24
        %v2744 = vpop.permute.xlu0 %2743
        %2745 = vrot.lane.b32.xlu0 %v2651, 24
        %v2746 = vpop.permute.xlu0 %2745
        %2747 = vrot.lane.b32.xlu0 %v2652, 24
        %v2748 = vpop.permute.xlu0 %2747
        %vm2781 = vcmask 261312
        %2782 = vst.msk [vmem:[%s721] sm:$0xff] %vm2781, %v2686
        %2783 = vst.msk [vmem:[%s721 + $0x8] sm:$0xff] %vm2781, %v2688
        %2784 = vst.msk [vmem:[%s721 + $0x10] sm:$0xff] %vm2781, %v2690
        %2785 = vst.msk [vmem:[%s721 + $0x18] sm:$0xff] %vm2781, %v2692
        %2786 = vst.msk [vmem:[%s721 + $0x20] sm:$0xff] %vm2781, %v2694
        %2787 = vst.msk [vmem:[%s721 + $0x28] sm:$0xff] %vm2781, %v2696
        %2788 = vst.msk [vmem:[%s721 + $0x30] sm:$0xff] %vm2781, %v2698
        %2789 = vst.msk [vmem:[%s721 + $0x38] sm:$0xff] %vm2781, %v2700
        %2790 = vst.msk [vmem:[%s721 + $0x40] sm:$0xff] %vm2781, %v2702
        %2791 = vst.msk [vmem:[%s721 + $0x48] sm:$0xff] %vm2781, %v2704
        %2792 = vst.msk [vmem:[%s721 + $0x50] sm:$0xff] %vm2781, %v2706
        %2793 = vst.msk [vmem:[%s721 + $0x58] sm:$0xff] %vm2781, %v2708
        %2794 = vst.msk [vmem:[%s721 + $0x60] sm:$0xff] %vm2781, %v2710
        %2795 = vst.msk [vmem:[%s721 + $0x68] sm:$0xff] %vm2781, %v2712
        %2796 = vst.msk [vmem:[%s721 + $0x70] sm:$0xff] %vm2781, %v2714
        %2797 = vst.msk [vmem:[%s721 + $0x78] sm:$0xff] %vm2781, %v2716
        %2798 = vst.msk [vmem:[%s721 + $0x80] sm:$0xff] %vm2781, %v2718
        %2799 = vst.msk [vmem:[%s721 + $0x88] sm:$0xff] %vm2781, %v2720
        %2800 = vst.msk [vmem:[%s721 + $0x90] sm:$0xff] %vm2781, %v2722
        %2801 = vst.msk [vmem:[%s721 + $0x98] sm:$0xff] %vm2781, %v2724
        %2802 = vst.msk [vmem:[%s721 + $0xa0] sm:$0xff] %vm2781, %v2726
        %2803 = vst.msk [vmem:[%s721 + $0xa8] sm:$0xff] %vm2781, %v2728
        %2804 = vst.msk [vmem:[%s721 + $0xb0] sm:$0xff] %vm2781, %v2730
        %2805 = vst.msk [vmem:[%s721 + $0xb8] sm:$0xff] %vm2781, %v2732
        %2806 = vst.msk [vmem:[%s721 + $0xc0] sm:$0xff] %vm2781, %v2734
        %2807 = vst.msk [vmem:[%s721 + $0xc8] sm:$0xff] %vm2781, %v2736
        %2808 = vst.msk [vmem:[%s721 + $0xd0] sm:$0xff] %vm2781, %v2738
        %2809 = vst.msk [vmem:[%s721 + $0xd8] sm:$0xff] %vm2781, %v2740
        %2810 = vst.msk [vmem:[%s721 + $0xe0] sm:$0xff] %vm2781, %v2742
        %2811 = vst.msk [vmem:[%s721 + $0xe8] sm:$0xff] %vm2781, %v2744
        %2812 = vst.msk [vmem:[%s721 + $0xf0] sm:$0xff] %vm2781, %v2746
        %2813 = vst.msk [vmem:[%s721 + $0xf8] sm:$0xff] %vm2781, %v2748
        %s2814 = smul.u32 32, %s14
        %p2815 = scmp.lt.s32.totalorder %s2814, 63
        %s2816 = scalar_select %p2815, %s2814, 63
        %s2817 = smul.addr %s2816, 8
        %s2818 = scalar_lea.vmem %s3, %s2817
        // Predicated region
        $region74: #{generator_forward.7} parent=68 // pred_check
          %p2819 = pneg %p100
        $region75: #{generator_forward.7} parent=68 // pred_check_branch
          %2821 = sbr.rel (%p2819) target = $region77
        $region76: #{generator_forward.7} parent=68 // pred_region
          %s2822 = smul.u32 32, %s14
        $region77: #{generator_forward.7} parent=68 // pred_fallthru
          _
      $region69: #{generator_forward.7} parent=5 // pred_fallthru
        _
      %p2823 = scmp.le.s32.totalorder 2, %s9
      // Predicated region
      $region78: #{generator_forward.7} parent=5 // pred_check
        %p2824 = pneg %p2823
      $region79: #{generator_forward.7} parent=5 // pred_check_branch
        %2826 = sbr.rel (%p2824) target = $region81
      $region80: #{generator_forward.7} parent=5 // pred_region
        %s2827 = ssub.s32 %s9, 2
        // Predicated region
        $region82: #{generator_forward.7} parent=80 // pred_check
          %p2828 = pneg %p106
        $region83: #{generator_forward.7} parent=80 // pred_check_branch
          %2830 = sbr.rel (%p2828) target = $region85
        $region84: #{generator_forward.7} parent=80 // pred_region
          %s2831 = smul.u32 32, %s15
          %p2832 = scmp.lt.s32.totalorder %s2831, 63
          %s2833 = scalar_select %p2832, %s2831, 63
          %s2834 = smul.addr %s2833, 8
          %s2835 = scalar_lea.vmem %s3, %s2834
        $region85: #{generator_forward.7} parent=80 // pred_fallthru
          _
      $region81: #{generator_forward.7} parent=5 // pred_fallthru
        _
    $region6: #{generator_forward.7} parent=1 // loop_footer
      %s13 = sadd.s32 1, %s9
    $region7: #{generator_forward.7} parent=1 // loop_footer_branch
      %8 = sbr.rel target = $region3
    $region8: #{generator_forward.7} parent=1 // loop_exit
      _

</llo_original>
